<compile_context>
chip_gen: v7x
topology: tpu7x:2x2x1
jax: 0.10.0
libtpu: 0.0.40
codegen_flags: <defaults>
</compile_context>

<pallas_src>
import functools
import math

import jax
import jax.numpy as jnp
from jax import lax
from jax.experimental import pallas as pl
from jax.experimental.pallas import tpu as pltpu


# -----------------------------------------------------------------------------
# In-kernel helpers
# -----------------------------------------------------------------------------
def _ln(x, gamma, beta, eps):
    """Row-wise LayerNorm in f32. gamma/beta are (1, D)."""
    mu = jnp.mean(x, axis=-1, keepdims=True)
    var = jnp.mean((x - mu) ** 2, axis=-1, keepdims=True)
    return (x - mu) * lax.rsqrt(var + eps) * gamma + beta


def _mha_block(q_in, k_in, v_in, residual, bias,
               wq, bq, wk, bk, wv, bv, wo, bo, gamma, beta, ctx_ref,
               *, nhead, scale, eps):
    """Post-norm MHA block: LayerNorm(residual + OutProj(MHA(q_in, k_in, v_in))).

    Matmul operands in bf16, accumulation / softmax / LayerNorm in f32.
    Per-head contexts are written into the `ctx_ref` VMEM scratch so the output
    projection is a single K=D matmul (instead of nhead K=Dh matmuls).
    """
    bf16 = jnp.bfloat16
    f32 = jnp.float32

    # Projections; 1/sqrt(Dh) folded into q (not into the (Lq, Lk) score tile).
    q = (jnp.dot(q_in.astype(bf16), wq, preferred_element_type=f32) + bq) * scale
    k = jnp.dot(k_in.astype(bf16), wk, preferred_element_type=f32) + bk
    v = jnp.dot(v_in.astype(bf16), wv, preferred_element_type=f32) + bv

    D = q.shape[-1]
    Dh = D // nhead
    for h in range(nhead):                       # static unroll; nhead is small
        lo, hi = h * Dh, (h + 1) * Dh
        qh = q[:, lo:hi].astype(bf16)
        kh = k[:, lo:hi].astype(bf16)
        vh = v[:, lo:hi].astype(bf16)
        # q_h @ k_h^T without materializing a transpose.
        s = lax.dot_general(qh, kh, (((1,), (1,)), ((), ())),
                            preferred_element_type=f32)          # (Lq, Lk) f32
        if bias is not None:
            s = s + bias          # additive mask stays in f32 (-1e30 sentinel)
        s = s - jnp.max(s, axis=-1, keepdims=True)
        p = jnp.exp(s)
        p = p / jnp.sum(p, axis=-1, keepdims=True)   # exact (matches torch f32)
        ctx_ref[:, lo:hi] = jnp.dot(p.astype(bf16), vh,
                                    preferred_element_type=f32)
    # Single output projection with contraction K = D (feeds the MXU properly).
    attn = jnp.dot(ctx_ref[...].astype(bf16), wo, preferred_element_type=f32) + bo
    return _ln(residual + attn, gamma, beta, eps)


# -----------------------------------------------------------------------------
# Fused decoder-layer kernel (self-attn + cross-attn + FFN, one grid step per
# (batch, query-tile))
# -----------------------------------------------------------------------------
def _decoder_layer_kernel(*refs, nhead, scale, eps, tq,
                          has_qpos, has_pos, has_self_bias, has_cross_bias,
                          has_final):
    it = iter(refs)
    tgt_ref = next(it)                 # (1, Lq, D) full rows (self-attn keys)
    mem_ref = next(it)                 # (1, Lk, D)
    qpos_ref = next(it) if has_qpos else None
    pos_ref = next(it) if has_pos else None
    sbias_ref = next(it) if has_self_bias else None
    cbias_ref = next(it) if has_cross_bias else None
    s_wq, s_bq, s_wk, s_bk, s_wv, s_bv, s_wo, s_bo = (next(it) for _ in range(8))
    n1g, n1b = next(it), next(it)
    c_wq, c_bq, c_wk, c_bk, c_wv, c_bv, c_wo, c_bo = (next(it) for _ in range(8))
    n2g, n2b = next(it), next(it)
    w1, b1, w2, b2 = (next(it) for _ in range(4))
    n3g, n3b = next(it), next(it)
    fg = fb = None
    if has_final:
        fg, fb = next(it), next(it)
    out_ref = next(it)                 # (1, tq, D)
    ctx_ref = next(it)                 # VMEM scratch (tq, D) f32

    Lq_full = tgt_ref.shape[1]
    qi = pl.program_id(1)

    tgt_all = tgt_ref[0]                                   # (Lq, D) f32
    qp_all = qpos_ref[0] if has_qpos else None
    if tq == Lq_full:
        tgt_rows = tgt_all
        qp_rows = qp_all
    else:
        row0 = pl.multiple_of(qi * tq, tq)
        tgt_rows = tgt_ref[0, pl.ds(row0, tq), :]          # (tq, D)
        qp_rows = qpos_ref[0, pl.ds(row0, tq), :] if has_qpos else None

    # ---- self-attention block (q = k = tgt + query_pos, v = tgt) ----
    q_in = tgt_rows + qp_rows if has_qpos else tgt_rows
    k_in = tgt_all + qp_all if has_qpos else tgt_all
    sbias = sbias_ref[0] if has_self_bias else None        # (tq|1, Lq) f32
    x = _mha_block(q_in, k_in, tgt_all, tgt_rows, sbias,
                   s_wq[...], s_bq[...], s_wk[...], s_bk[...],
                   s_wv[...], s_bv[...], s_wo[...], s_bo[...],
                   n1g[...], n1b[...], ctx_ref,
                   nhead=nhead, scale=scale, eps=eps)

    # ---- cross-attention block (q = x + query_pos, k = memory + pos, v = memory)
    mem = mem_ref[0]
    k_in2 = mem + pos_ref[0] if has_pos else mem
    q_in2 = x + qp_rows if has_qpos else x
    cbias = cbias_ref[0] if has_cross_bias else None       # (tq|1, Lk) f32
    x = _mha_block(q_in2, k_in2, mem, x, cbias,
                   c_wq[...], c_bq[...], c_wk[...], c_bk[...],
                   c_wv[...], c_bv[...], c_wo[...], c_bo[...],
                   n2g[...], n2b[...], ctx_ref,
                   nhead=nhead, scale=scale, eps=eps)

    # ---- FFN block (W1 -> relu -> W2 -> add & LayerNorm) ----
    bf16 = jnp.bfloat16
    h = jnp.dot(x.astype(bf16), w1[...], preferred_element_type=jnp.float32) + b1[...]
    h = jnp.maximum(h, 0.0)
    y = jnp.dot(h.astype(bf16), w2[...], preferred_element_type=jnp.float32) + b2[...]
    out = _ln(x + y, n3g[...], n3b[...], eps)
    if has_final:                     # final decoder LayerNorm folded in
        out = _ln(out, fg[...], fb[...], eps)
    out_ref[0] = out.astype(out_ref.dtype)


# -----------------------------------------------------------------------------
# Wrappers
# -----------------------------------------------------------------------------
def _choose_query_tiles(Lq, B, min_steps=4):
    """Tile the query axis so the grid has >= min_steps steps (v7x has 2
    TensorCores; >=2 steps/core also lets the input pipeline overlap), keeping
    the query tile a multiple of 8 sublanes."""
    qb = 1
    while B * qb < min_steps:
        cand = qb * 2
        if Lq % cand == 0 and (Lq // cand) % 8 == 0:
            qb = cand
        else:
            break
    return qb


def _bias_spec(bias_shape, tq):
    """BlockSpec for a compact additive bias of shape (1|B, 1|Lq, Lk)."""
    Bb, Lqb, Lkb = bias_shape
    per_batch = Bb > 1
    per_query = Lqb > 1
    blk_q = tq if per_query else 1

    def imap(b, qi, _pb=per_batch, _pq=per_query):
        return (b if _pb else 0, qi if _pq else 0, 0)

    return pl.BlockSpec((1, blk_q, Lkb), imap)


def _build_bias(attn_mask, key_padding_mask, B, Lq, Lk):
    """Compact additive attention bias (f32), or None when no mask is given.

    Shape is (1|B, 1|Lq, Lk): axes along which the mask does not vary are kept
    at size 1, so the common key-padding-only case never materializes a
    (B, Lq, Lk) tensor.  The -1e30 sentinel stays in f32 inside the kernel.
    """
    if attn_mask is None and key_padding_mask is None:
        return None
    NEG = jnp.float32(-1e30)
    am = None
    if attn_mask is not None:             # (Lq, Lk) bool (True=masked) or additive float
        if jnp.issubdtype(attn_mask.dtype, jnp.bool_):
            am = jnp.where(attn_mask, NEG, 0.0).astype(jnp.float32)
        else:
            am = attn_mask.astype(jnp.float32)
        am = am[None]                      # (1, Lq, Lk)
    kp = None
    if key_padding_mask is not None:       # (B, Lk) bool, True = padded
        kp = jnp.where(key_padding_mask.astype(jnp.bool_), NEG, 0.0
                       ).astype(jnp.float32)[:, None, :]   # (B, 1, Lk)
    if am is None:
        return kp
    if kp is None:
        return am
    return am + kp                          # (B, Lq, Lk)


def fused_decoder_layer(tgt, memory, p, nhead, *,
                        self_bias=None, cross_bias=None,
                        pos=None, query_pos=None, final_norm=None, eps=1e-5):
    """One whole decoder layer fused into a single pallas_call.

    tgt: (B, Lq, D), memory: (B, Lk, D) — batch-first.  Returns (B, Lq, D).
    """
    B, Lq, D = tgt.shape
    Lk = memory.shape[1]
    assert D % nhead == 0
    scale = 1.0 / math.sqrt(D // nhead)
    F = p["w1"].shape[1]

    QB = _choose_query_tiles(Lq, B)
    tq = Lq // QB

    has_qpos = query_pos is not None
    has_pos = pos is not None
    has_self_bias = self_bias is not None
    has_cross_bias = cross_bias is not None
    has_final = final_norm is not None

    f32, bf16 = jnp.float32, jnp.bfloat16
    in_specs, args = [], []

    def add(arr, spec):
        in_specs.append(spec)
        args.append(arr)

    def full3(L):
        return pl.BlockSpec((1, L, D), lambda b, qi: (b, 0, 0))

    def wspec(r, c):
        # TODO(synk): pipeline_mode=pl.Buffered(1) for these grid-invariant
        # weight blocks at DETR scale (halves reserved weight VMEM).
        return pl.BlockSpec((r, c), lambda b, qi: (0, 0))

    add(tgt, full3(Lq))                       # full rows: self-attn keys/values
    add(memory, full3(Lk))
    if has_qpos:
        add(query_pos, full3(Lq))
    if has_pos:
        add(pos, full3(Lk))
    if has_self_bias:
        add(self_bias, _bias_spec(self_bias.shape, tq))
    if has_cross_bias:
        add(cross_bias, _bias_spec(cross_bias.shape, tq))

    def add_mha(ap):
        for wname, bname in (("wq", "bq"), ("wk", "bk"), ("wv", "bv"), ("wo", "bo")):
            add(ap[wname].astype(bf16), wspec(D, D))
            add(ap[bname].reshape(1, D).astype(f32), wspec(1, D))

    add_mha(p["self_attn"])
    add(p["norm1_g"].reshape(1, D).astype(f32), wspec(1, D))
    add(p["norm1_b"].reshape(1, D).astype(f32), wspec(1, D))
    add_mha(p["cross_attn"])
    add(p["norm2_g"].reshape(1, D).astype(f32), wspec(1, D))
    add(p["norm2_b"].reshape(1, D).astype(f32), wspec(1, D))
    add(p["w1"].astype(bf16), wspec(D, F))
    add(p["b1"].reshape(1, F).astype(f32), wspec(1, F))
    add(p["w2"].astype(bf16), wspec(F, D))
    add(p["b2"].reshape(1, D).astype(f32), wspec(1, D))
    add(p["norm3_g"].reshape(1, D).astype(f32), wspec(1, D))
    add(p["norm3_b"].reshape(1, D).astype(f32), wspec(1, D))
    if has_final:
        fg, fb = final_norm
        add(fg.reshape(1, D).astype(f32), wspec(1, D))
        add(fb.reshape(1, D).astype(f32), wspec(1, D))

    kernel = functools.partial(
        _decoder_layer_kernel, nhead=nhead, scale=scale, eps=eps, tq=tq,
        has_qpos=has_qpos, has_pos=has_pos, has_self_bias=has_self_bias,
        has_cross_bias=has_cross_bias, has_final=has_final)

    return pl.pallas_call(
        kernel,
        out_shape=jax.ShapeDtypeStruct((B, Lq, D), tgt.dtype),
        grid=(B, QB),
        in_specs=in_specs,
        out_specs=pl.BlockSpec((1, tq, D), lambda b, qi: (b, qi, 0)),
        scratch_shapes=[pltpu.VMEM((tq, D), jnp.float32)],
        compiler_params=pltpu.CompilerParams(
            dimension_semantics=("parallel", "parallel")),
    )(*args)


def _layernorm_kernel(x_ref, g_ref, b_ref, o_ref, *, eps):
    o_ref[...] = _ln(x_ref[...].astype(jnp.float32), g_ref[...], b_ref[...],
                     eps).astype(o_ref.dtype)


def pallas_layernorm(x, gamma, beta, eps=1e-5):
    """(M, D) row-wise LayerNorm (only used for return_intermediate outputs)."""
    M, D = x.shape
    tm = M
    for cand in (512, 256, 128, 64, 32, 16, 8):
        if M % cand == 0 and M // cand >= 2:
            tm = cand
            break
    return pl.pallas_call(
        functools.partial(_layernorm_kernel, eps=eps),
        out_shape=jax.ShapeDtypeStruct((M, D), x.dtype),
        grid=(M // tm,),
        in_specs=[pl.BlockSpec((tm, D), lambda i: (i, 0)),
                  pl.BlockSpec((1, D), lambda i: (0, 0)),
                  pl.BlockSpec((1, D), lambda i: (0, 0))],
        out_specs=pl.BlockSpec((tm, D), lambda i: (i, 0)),
        compiler_params=pltpu.CompilerParams(dimension_semantics=("parallel",)),
    )(x, gamma.reshape(1, D).astype(jnp.float32),
      beta.reshape(1, D).astype(jnp.float32))


# -----------------------------------------------------------------------------
# Decoder glue (batch-first internally; (L, B, D) at the API boundary like torch)
# -----------------------------------------------------------------------------
def transformer_decoder_forward(tgt, memory, params, nhead,
                                tgt_mask=None, memory_mask=None,
                                tgt_key_padding_mask=None,
                                memory_key_padding_mask=None,
                                pos=None, query_pos=None,
                                return_intermediate=False):
    """Inputs sequence-first (L, B, D) like torch; transposed to batch-first once."""
    Lq, B, D = tgt.shape
    Lk = memory.shape[0]

    tgt_bf = jnp.transpose(tgt, (1, 0, 2))
    mem_bf = jnp.transpose(memory, (1, 0, 2))
    pos_bf = None if pos is None else jnp.transpose(pos, (1, 0, 2))
    qpos_bf = None if query_pos is None else jnp.transpose(query_pos, (1, 0, 2))

    self_bias = _build_bias(tgt_mask, tgt_key_padding_mask, B, Lq, Lq)
    cross_bias = _build_bias(memory_mask, memory_key_padding_mask, B, Lq, Lk)

    norm_g = params.get("norm_g")
    norm_b = params.get("norm_b")
    has_norm = norm_g is not None

    output = tgt_bf
    intermediate = []
    n_layers = len(params["layers"])
    for li, layer_p in enumerate(params["layers"]):
        # Fold the final LayerNorm into the last layer's kernel when the
        # un-normed output is not needed afterwards.
        fold_final = has_norm and (li == n_layers - 1) and not return_intermediate
        output = fused_decoder_layer(
            output, mem_bf, layer_p, nhead,
            self_bias=self_bias, cross_bias=cross_bias,
            pos=pos_bf, query_pos=qpos_bf,
            final_norm=(norm_g, norm_b) if fold_final else None)
        if return_intermediate:
            normed = (pallas_layernorm(output.reshape(B * Lq, D), norm_g, norm_b)
                      .reshape(B, Lq, D) if has_norm else output)
            intermediate.append(jnp.transpose(normed, (1, 0, 2)))

    if return_intermediate:
        # torch pops the last intermediate and re-appends norm(output) — the
        # same value when norm is not None, so the stack already matches.
        return jnp.stack(intermediate)

    return jnp.transpose(output, (1, 0, 2))     # back to (Lq, B, D)


# -----------------------------------------------------------------------------
# Deterministic parameter construction
# -----------------------------------------------------------------------------
def _mha_params(key, d_model):
    ks = jax.random.split(key, 8)
    s = 0.05
    return {
        "wq": s * jax.random.normal(ks[0], (d_model, d_model), jnp.float32),
        "bq": s * jax.random.normal(ks[1], (d_model,), jnp.float32),
        "wk": s * jax.random.normal(ks[2], (d_model, d_model), jnp.float32),
        "bk": s * jax.random.normal(ks[3], (d_model,), jnp.float32),
        "wv": s * jax.random.normal(ks[4], (d_model, d_model), jnp.float32),
        "bv": s * jax.random.normal(ks[5], (d_model,), jnp.float32),
        "wo": s * jax.random.normal(ks[6], (d_model, d_model), jnp.float32),
        "bo": s * jax.random.normal(ks[7], (d_model,), jnp.float32),
    }


def _layer_params(key, d_model, dim_ff):
    ks = jax.random.split(key, 6)
    s = 0.05
    return {
        "self_attn": _mha_params(ks[0], d_model),
        "cross_attn": _mha_params(ks[1], d_model),
        "w1": s * jax.random.normal(ks[2], (d_model, dim_ff), jnp.float32),
        "b1": s * jax.random.normal(ks[3], (dim_ff,), jnp.float32),
        "w2": s * jax.random.normal(ks[4], (dim_ff, d_model), jnp.float32),
        "b2": s * jax.random.normal(ks[5], (d_model,), jnp.float32),
        "norm1_g": jnp.ones((d_model,), jnp.float32),
        "norm1_b": jnp.zeros((d_model,), jnp.float32),
        "norm2_g": jnp.ones((d_model,), jnp.float32),
        "norm2_b": jnp.zeros((d_model,), jnp.float32),
        "norm3_g": jnp.ones((d_model,), jnp.float32),
        "norm3_b": jnp.zeros((d_model,), jnp.float32),
    }


def make_decoder_params(key, num_layers, d_model, dim_ff):
    ks = jax.random.split(key, num_layers)
    return {
        "layers": [_layer_params(ks[i], d_model, dim_ff) for i in range(num_layers)],
        "norm_g": jnp.ones((d_model,), jnp.float32),
        "norm_b": jnp.zeros((d_model,), jnp.float32),
    }


# -----------------------------------------------------------------------------
if __name__ == "__main__":
    d_model = 32
    nhead = 4
    dim_ff = 64
    num_layers = 2
    Lq, Lk, B = 16, 24, 2   # (num_queries, memory_len, batch)

    root = jax.random.PRNGKey(0)
    k_par, k_tgt, k_mem, k_pos, k_qpos = jax.random.split(root, 5)

    params = make_decoder_params(k_par, num_layers, d_model, dim_ff)

    # layout: (seq, batch, d_model), matching PyTorch batch_first=False
    tgt = jax.random.normal(k_tgt, (Lq, B, d_model), jnp.float32)
    memory = jax.random.normal(k_mem, (Lk, B, d_model), jnp.float32)
    pos = jax.random.normal(k_pos, (Lk, B, d_model), jnp.float32)
    query_pos = jax.random.normal(k_qpos, (Lq, B, d_model), jnp.float32)
    # Pad the last 4 memory positions of batch element 1 (exercises the compact
    # (B, 1, Lk) key-padding bias path).
    memory_key_padding_mask = jnp.zeros((B, Lk), jnp.bool_).at[1, Lk - 4:].set(True)

    fwd = jax.jit(transformer_decoder_forward, static_argnums=(3,))
    out = fwd(tgt, memory, params, nhead,
              memory_key_padding_mask=memory_key_padding_mask,
              pos=pos, query_pos=query_pos)
    out = jax.block_until_ready(out)
    assert out.shape == (Lq, B, d_model)
    assert bool(jnp.all(jnp.isfinite(out)))
    print("KERNEL_OK")
</pallas_src>

<mosaic_0001>
module attributes {stable_mosaic.version = 11 : i64} {
  func.func @_decoder_layer_kernel(%arg0: i32, %arg1: i32, %arg2: memref<1x16x32xf32, #tpu.memory_space<vmem>>, %arg3: memref<1x24x32xf32, #tpu.memory_space<vmem>>, %arg4: memref<1x16x32xf32, #tpu.memory_space<vmem>>, %arg5: memref<1x24x32xf32, #tpu.memory_space<vmem>>, %arg6: memref<1x1x24xf32, #tpu.memory_space<vmem>>, %arg7: memref<32x32xbf16, #tpu.memory_space<vmem>>, %arg8: memref<1x32xf32, #tpu.memory_space<vmem>>, %arg9: memref<32x32xbf16, #tpu.memory_space<vmem>>, %arg10: memref<1x32xf32, #tpu.memory_space<vmem>>, %arg11: memref<32x32xbf16, #tpu.memory_space<vmem>>, %arg12: memref<1x32xf32, #tpu.memory_space<vmem>>, %arg13: memref<32x32xbf16, #tpu.memory_space<vmem>>, %arg14: memref<1x32xf32, #tpu.memory_space<vmem>>, %arg15: memref<1x32xf32, #tpu.memory_space<vmem>>, %arg16: memref<1x32xf32, #tpu.memory_space<vmem>>, %arg17: memref<32x32xbf16, #tpu.memory_space<vmem>>, %arg18: memref<1x32xf32, #tpu.memory_space<vmem>>, %arg19: memref<32x32xbf16, #tpu.memory_space<vmem>>, %arg20: memref<1x32xf32, #tpu.memory_space<vmem>>, %arg21: memref<32x32xbf16, #tpu.memory_space<vmem>>, %arg22: memref<1x32xf32, #tpu.memory_space<vmem>>, %arg23: memref<32x32xbf16, #tpu.memory_space<vmem>>, %arg24: memref<1x32xf32, #tpu.memory_space<vmem>>, %arg25: memref<1x32xf32, #tpu.memory_space<vmem>>, %arg26: memref<1x32xf32, #tpu.memory_space<vmem>>, %arg27: memref<32x64xbf16, #tpu.memory_space<vmem>>, %arg28: memref<1x64xf32, #tpu.memory_space<vmem>>, %arg29: memref<64x32xbf16, #tpu.memory_space<vmem>>, %arg30: memref<1x32xf32, #tpu.memory_space<vmem>>, %arg31: memref<1x32xf32, #tpu.memory_space<vmem>>, %arg32: memref<1x32xf32, #tpu.memory_space<vmem>>, %arg33: memref<1x8x32xf32, #tpu.memory_space<vmem>>, %arg34: memref<8x32xf32, #tpu.memory_space<vmem>>) attributes {dimension_semantics = [#tpu.dimension_semantics<parallel>, #tpu.dimension_semantics<parallel>], iteration_bounds = array<i64: 2, 2>, scalar_prefetch = 0 : i64, scratch_operands = 1 : i64, tpu.core_type = #tpu.core_type<tc>, window_params = [{transform_indices = @transform_0, window_bounds = array<i64: 1, 16, 32>}, {transform_indices = @transform_1, window_bounds = array<i64: 1, 24, 32>}, {transform_indices = @transform_2, window_bounds = array<i64: 1, 16, 32>}, {transform_indices = @transform_3, window_bounds = array<i64: 1, 24, 32>}, {transform_indices = @transform_4, window_bounds = array<i64: 1, 1, 24>}, {pipeline_mode = #tpu.pipeline_mode<synchronous>, transform_indices = @transform_5, window_bounds = array<i64: 32, 32>}, {pipeline_mode = #tpu.pipeline_mode<synchronous>, transform_indices = @transform_6, window_bounds = array<i64: 1, 32>}, {pipeline_mode = #tpu.pipeline_mode<synchronous>, transform_indices = @transform_7, window_bounds = array<i64: 32, 32>}, {pipeline_mode = #tpu.pipeline_mode<synchronous>, transform_indices = @transform_8, window_bounds = array<i64: 1, 32>}, {pipeline_mode = #tpu.pipeline_mode<synchronous>, transform_indices = @transform_9, window_bounds = array<i64: 32, 32>}, {pipeline_mode = #tpu.pipeline_mode<synchronous>, transform_indices = @transform_10, window_bounds = array<i64: 1, 32>}, {pipeline_mode = #tpu.pipeline_mode<synchronous>, transform_indices = @transform_11, window_bounds = array<i64: 32, 32>}, {pipeline_mode = #tpu.pipeline_mode<synchronous>, transform_indices = @transform_12, window_bounds = array<i64: 1, 32>}, {pipeline_mode = #tpu.pipeline_mode<synchronous>, transform_indices = @transform_13, window_bounds = array<i64: 1, 32>}, {pipeline_mode = #tpu.pipeline_mode<synchronous>, transform_indices = @transform_14, window_bounds = array<i64: 1, 32>}, {pipeline_mode = #tpu.pipeline_mode<synchronous>, transform_indices = @transform_15, window_bounds = array<i64: 32, 32>}, {pipeline_mode = #tpu.pipeline_mode<synchronous>, transform_indices = @transform_16, window_bounds = array<i64: 1, 32>}, {pipeline_mode = #tpu.pipeline_mode<synchronous>, transform_indices = @transform_17, window_bounds = array<i64: 32, 32>}, {pipeline_mode = #tpu.pipeline_mode<synchronous>, transform_indices = @transform_18, window_bounds = array<i64: 1, 32>}, {pipeline_mode = #tpu.pipeline_mode<synchronous>, transform_indices = @transform_19, window_bounds = array<i64: 32, 32>}, {pipeline_mode = #tpu.pipeline_mode<synchronous>, transform_indices = @transform_20, window_bounds = array<i64: 1, 32>}, {pipeline_mode = #tpu.pipeline_mode<synchronous>, transform_indices = @transform_21, window_bounds = array<i64: 32, 32>}, {pipeline_mode = #tpu.pipeline_mode<synchronous>, transform_indices = @transform_22, window_bounds = array<i64: 1, 32>}, {pipeline_mode = #tpu.pipeline_mode<synchronous>, transform_indices = @transform_23, window_bounds = array<i64: 1, 32>}, {pipeline_mode = #tpu.pipeline_mode<synchronous>, transform_indices = @transform_24, window_bounds = array<i64: 1, 32>}, {pipeline_mode = #tpu.pipeline_mode<synchronous>, transform_indices = @transform_25, window_bounds = array<i64: 32, 64>}, {pipeline_mode = #tpu.pipeline_mode<synchronous>, transform_indices = @transform_26, window_bounds = array<i64: 1, 64>}, {pipeline_mode = #tpu.pipeline_mode<synchronous>, transform_indices = @transform_27, window_bounds = array<i64: 64, 32>}, {pipeline_mode = #tpu.pipeline_mode<synchronous>, transform_indices = @transform_28, window_bounds = array<i64: 1, 32>}, {pipeline_mode = #tpu.pipeline_mode<synchronous>, transform_indices = @transform_29, window_bounds = array<i64: 1, 32>}, {pipeline_mode = #tpu.pipeline_mode<synchronous>, transform_indices = @transform_30, window_bounds = array<i64: 1, 32>}, {transform_indices = @transform_31, window_bounds = array<i64: 1, 8, 32>}]} {
    %c0 = arith.constant 0 : index
    %c0_0 = arith.constant 0 : index
    %c0_1 = arith.constant 0 : index
    %0 = vector.load %arg2[%c0, %c0_0, %c0_1] : memref<1x16x32xf32, #tpu.memory_space<vmem>>, vector<1x16x32xf32>
    %1 = vector.shape_cast %0 : vector<1x16x32xf32> to vector<16x32xf32>
    %c0_2 = arith.constant 0 : index
    %c0_3 = arith.constant 0 : index
    %c0_4 = arith.constant 0 : index
    %2 = vector.load %arg4[%c0_2, %c0_3, %c0_4] : memref<1x16x32xf32, #tpu.memory_space<vmem>>, vector<1x16x32xf32>
    %3 = vector.shape_cast %2 : vector<1x16x32xf32> to vector<16x32xf32>
    %c8_i32 = arith.constant 8 : i32
    %4 = arith.muli %arg1, %c8_i32 : i32
    %5 = tpu.assume_multiple %4, 8 : i32
    %c0_5 = arith.constant 0 : index
    %6 = arith.index_cast %5 : i32 to index
    %c0_6 = arith.constant 0 : index
    %7 = vector.load %arg2[%c0_5, %6, %c0_6] : memref<1x16x32xf32, #tpu.memory_space<vmem>>, vector<1x8x32xf32>
    %8 = vector.shape_cast %7 : vector<1x8x32xf32> to vector<8x32xf32>
    %c0_7 = arith.constant 0 : index
    %9 = arith.index_cast %5 : i32 to index
    %c0_8 = arith.constant 0 : index
    %10 = vector.load %arg4[%c0_7, %9, %c0_8] : memref<1x16x32xf32, #tpu.memory_space<vmem>>, vector<1x8x32xf32>
    %11 = vector.shape_cast %10 : vector<1x8x32xf32> to vector<8x32xf32>
    %12 = arith.addf %8, %11 : vector<8x32xf32>
    %13 = arith.addf %1, %3 : vector<16x32xf32>
    %c0_9 = arith.constant 0 : index
    %c0_10 = arith.constant 0 : index
    %14 = vector.load %arg7[%c0_9, %c0_10] : memref<32x32xbf16, #tpu.memory_space<vmem>>, vector<32x32xbf16>
    %c0_11 = arith.constant 0 : index
    %c0_12 = arith.constant 0 : index
    %15 = vector.load %arg8[%c0_11, %c0_12] : memref<1x32xf32, #tpu.memory_space<vmem>>, vector<1x32xf32>
    %c0_13 = arith.constant 0 : index
    %c0_14 = arith.constant 0 : index
    %16 = vector.load %arg9[%c0_13, %c0_14] : memref<32x32xbf16, #tpu.memory_space<vmem>>, vector<32x32xbf16>
    %c0_15 = arith.constant 0 : index
    %c0_16 = arith.constant 0 : index
    %17 = vector.load %arg10[%c0_15, %c0_16] : memref<1x32xf32, #tpu.memory_space<vmem>>, vector<1x32xf32>
    %c0_17 = arith.constant 0 : index
    %c0_18 = arith.constant 0 : index
    %18 = vector.load %arg11[%c0_17, %c0_18] : memref<32x32xbf16, #tpu.memory_space<vmem>>, vector<32x32xbf16>
    %c0_19 = arith.constant 0 : index
    %c0_20 = arith.constant 0 : index
    %19 = vector.load %arg12[%c0_19, %c0_20] : memref<1x32xf32, #tpu.memory_space<vmem>>, vector<1x32xf32>
    %c0_21 = arith.constant 0 : index
    %c0_22 = arith.constant 0 : index
    %20 = vector.load %arg13[%c0_21, %c0_22] : memref<32x32xbf16, #tpu.memory_space<vmem>>, vector<32x32xbf16>
    %c0_23 = arith.constant 0 : index
    %c0_24 = arith.constant 0 : index
    %21 = vector.load %arg14[%c0_23, %c0_24] : memref<1x32xf32, #tpu.memory_space<vmem>>, vector<1x32xf32>
    %c0_25 = arith.constant 0 : index
    %c0_26 = arith.constant 0 : index
    %22 = vector.load %arg15[%c0_25, %c0_26] : memref<1x32xf32, #tpu.memory_space<vmem>>, vector<1x32xf32>
    %c0_27 = arith.constant 0 : index
    %c0_28 = arith.constant 0 : index
    %23 = vector.load %arg16[%c0_27, %c0_28] : memref<1x32xf32, #tpu.memory_space<vmem>>, vector<1x32xf32>
    %24 = arith.truncf %12 : vector<8x32xf32> to vector<8x32xbf16>
    %cst = arith.constant dense<0.000000e+00> : vector<8x32xf32>
    %25 = tpu.matmul %24, %14, %cst {dimension_numbers = #tpu.dot_dimension_numbers<[1], [0], [0], [1], [0, 0, 1, 1], [], []>} : vector<8x32xbf16>, vector<32x32xbf16>, vector<8x32xf32> -> vector<8x32xf32>
    %26 = vector.broadcast %15 : vector<1x32xf32> to vector<8x32xf32>
    %27 = arith.addf %25, %26 : vector<8x32xf32>
    %cst_29 = arith.constant 0.353553385 : f32
    %28 = vector.broadcast %cst_29 : f32 to vector<8x32xf32>
    %29 = arith.mulf %27, %28 : vector<8x32xf32>
    %30 = arith.truncf %13 : vector<16x32xf32> to vector<16x32xbf16>
    %cst_30 = arith.constant dense<0.000000e+00> : vector<16x32xf32>
    %31 = tpu.matmul %30, %16, %cst_30 {dimension_numbers = #tpu.dot_dimension_numbers<[1], [0], [0], [1], [0, 0, 1, 1], [], []>} : vector<16x32xbf16>, vector<32x32xbf16>, vector<16x32xf32> -> vector<16x32xf32>
    %32 = vector.broadcast %17 : vector<1x32xf32> to vector<16x32xf32>
    %33 = arith.addf %31, %32 : vector<16x32xf32>
    %34 = arith.truncf %1 : vector<16x32xf32> to vector<16x32xbf16>
    %cst_31 = arith.constant dense<0.000000e+00> : vector<16x32xf32>
    %35 = tpu.matmul %34, %18, %cst_31 {dimension_numbers = #tpu.dot_dimension_numbers<[1], [0], [0], [1], [0, 0, 1, 1], [], []>} : vector<16x32xbf16>, vector<32x32xbf16>, vector<16x32xf32> -> vector<16x32xf32>
    %36 = vector.broadcast %19 : vector<1x32xf32> to vector<16x32xf32>
    %37 = arith.addf %35, %36 : vector<16x32xf32>
    %38 = vector.extract_strided_slice %29 {offsets = [0, 0], sizes = [8, 8], strides = [1, 1]} : vector<8x32xf32> to vector<8x8xf32>
    %39 = arith.truncf %38 : vector<8x8xf32> to vector<8x8xbf16>
    %40 = vector.extract_strided_slice %33 {offsets = [0, 0], sizes = [16, 8], strides = [1, 1]} : vector<16x32xf32> to vector<16x8xf32>
    %41 = arith.truncf %40 : vector<16x8xf32> to vector<16x8xbf16>
    %42 = vector.extract_strided_slice %37 {offsets = [0, 0], sizes = [16, 8], strides = [1, 1]} : vector<16x32xf32> to vector<16x8xf32>
    %43 = arith.truncf %42 : vector<16x8xf32> to vector<16x8xbf16>
    %cst_32 = arith.constant dense<0.000000e+00> : vector<8x16xf32>
    %44 = tpu.matmul %39, %41, %cst_32 {dimension_numbers = #tpu.dot_dimension_numbers<[1], [1], [0], [0], [0, 0, 1, 0], [], []>} : vector<8x8xbf16>, vector<16x8xbf16>, vector<8x16xf32> -> vector<8x16xf32>
    %cst_33 = arith.constant dense<0xFF800000> : vector<8xf32>
    %45 = vector.multi_reduction <maximumf>, %44, %cst_33 [1] : vector<8x16xf32> to vector<8xf32>
    %46 = vector.shape_cast %45 : vector<8xf32> to vector<8x1xf32>
    %47 = vector.broadcast %46 : vector<8x1xf32> to vector<8x16xf32>
    %48 = arith.subf %44, %47 : vector<8x16xf32>
    %49 = math.exp %48 : vector<8x16xf32>
    %cst_34 = arith.constant dense<0.000000e+00> : vector<8xf32>
    %50 = vector.multi_reduction <add>, %49, %cst_34 [1] : vector<8x16xf32> to vector<8xf32>
    %51 = vector.shape_cast %50 : vector<8xf32> to vector<8x1xf32>
    %52 = vector.broadcast %51 : vector<8x1xf32> to vector<8x16xf32>
    %53 = arith.divf %49, %52 : vector<8x16xf32>
    %54 = arith.truncf %53 : vector<8x16xf32> to vector<8x16xbf16>
    %cst_35 = arith.constant dense<0.000000e+00> : vector<8x8xf32>
    %55 = tpu.matmul %54, %43, %cst_35 {dimension_numbers = #tpu.dot_dimension_numbers<[1], [0], [0], [1], [0, 0, 1, 1], [], []>} : vector<8x16xbf16>, vector<16x8xbf16>, vector<8x8xf32> -> vector<8x8xf32>
    %c0_36 = arith.constant 0 : index
    %c0_37 = arith.constant 0 : index
    %56 = vector.load %arg34[%c0_36, %c0_37] : memref<8x32xf32, #tpu.memory_space<vmem>>, vector<8x8xf32>
    tpu.vector_store %arg34[%c0_36, %c0_37], %55 {strides = array<i32>} : memref<8x32xf32, #tpu.memory_space<vmem>>, vector<8x8xf32>,
    %57 = vector.extract_strided_slice %29 {offsets = [0, 8], sizes = [8, 8], strides = [1, 1]} : vector<8x32xf32> to vector<8x8xf32>
    %58 = arith.truncf %57 : vector<8x8xf32> to vector<8x8xbf16>
    %59 = vector.extract_strided_slice %33 {offsets = [0, 8], sizes = [16, 8], strides = [1, 1]} : vector<16x32xf32> to vector<16x8xf32>
    %60 = arith.truncf %59 : vector<16x8xf32> to vector<16x8xbf16>
    %61 = vector.extract_strided_slice %37 {offsets = [0, 8], sizes = [16, 8], strides = [1, 1]} : vector<16x32xf32> to vector<16x8xf32>
    %62 = arith.truncf %61 : vector<16x8xf32> to vector<16x8xbf16>
    %cst_38 = arith.constant dense<0.000000e+00> : vector<8x16xf32>
    %63 = tpu.matmul %58, %60, %cst_38 {dimension_numbers = #tpu.dot_dimension_numbers<[1], [1], [0], [0], [0, 0, 1, 0], [], []>} : vector<8x8xbf16>, vector<16x8xbf16>, vector<8x16xf32> -> vector<8x16xf32>
    %cst_39 = arith.constant dense<0xFF800000> : vector<8xf32>
    %64 = vector.multi_reduction <maximumf>, %63, %cst_39 [1] : vector<8x16xf32> to vector<8xf32>
    %65 = vector.shape_cast %64 : vector<8xf32> to vector<8x1xf32>
    %66 = vector.broadcast %65 : vector<8x1xf32> to vector<8x16xf32>
    %67 = arith.subf %63, %66 : vector<8x16xf32>
    %68 = math.exp %67 : vector<8x16xf32>
    %cst_40 = arith.constant dense<0.000000e+00> : vector<8xf32>
    %69 = vector.multi_reduction <add>, %68, %cst_40 [1] : vector<8x16xf32> to vector<8xf32>
    %70 = vector.shape_cast %69 : vector<8xf32> to vector<8x1xf32>
    %71 = vector.broadcast %70 : vector<8x1xf32> to vector<8x16xf32>
    %72 = arith.divf %68, %71 : vector<8x16xf32>
    %73 = arith.truncf %72 : vector<8x16xf32> to vector<8x16xbf16>
    %cst_41 = arith.constant dense<0.000000e+00> : vector<8x8xf32>
    %74 = tpu.matmul %73, %62, %cst_41 {dimension_numbers = #tpu.dot_dimension_numbers<[1], [0], [0], [1], [0, 0, 1, 1], [], []>} : vector<8x16xbf16>, vector<16x8xbf16>, vector<8x8xf32> -> vector<8x8xf32>
    %c0_42 = arith.constant 0 : index
    %c8 = arith.constant 8 : index
    %75 = vector.load %arg34[%c0_42, %c8] : memref<8x32xf32, #tpu.memory_space<vmem>>, vector<8x8xf32>
    tpu.vector_store %arg34[%c0_42, %c8], %74 {strides = array<i32>} : memref<8x32xf32, #tpu.memory_space<vmem>>, vector<8x8xf32>,
    %76 = vector.extract_strided_slice %29 {offsets = [0, 16], sizes = [8, 8], strides = [1, 1]} : vector<8x32xf32> to vector<8x8xf32>
    %77 = arith.truncf %76 : vector<8x8xf32> to vector<8x8xbf16>
    %78 = vector.extract_strided_slice %33 {offsets = [0, 16], sizes = [16, 8], strides = [1, 1]} : vector<16x32xf32> to vector<16x8xf32>
    %79 = arith.truncf %78 : vector<16x8xf32> to vector<16x8xbf16>
    %80 = vector.extract_strided_slice %37 {offsets = [0, 16], sizes = [16, 8], strides = [1, 1]} : vector<16x32xf32> to vector<16x8xf32>
    %81 = arith.truncf %80 : vector<16x8xf32> to vector<16x8xbf16>
    %cst_43 = arith.constant dense<0.000000e+00> : vector<8x16xf32>
    %82 = tpu.matmul %77, %79, %cst_43 {dimension_numbers = #tpu.dot_dimension_numbers<[1], [1], [0], [0], [0, 0, 1, 0], [], []>} : vector<8x8xbf16>, vector<16x8xbf16>, vector<8x16xf32> -> vector<8x16xf32>
    %cst_44 = arith.constant dense<0xFF800000> : vector<8xf32>
    %83 = vector.multi_reduction <maximumf>, %82, %cst_44 [1] : vector<8x16xf32> to vector<8xf32>
    %84 = vector.shape_cast %83 : vector<8xf32> to vector<8x1xf32>
    %85 = vector.broadcast %84 : vector<8x1xf32> to vector<8x16xf32>
    %86 = arith.subf %82, %85 : vector<8x16xf32>
    %87 = math.exp %86 : vector<8x16xf32>
    %cst_45 = arith.constant dense<0.000000e+00> : vector<8xf32>
    %88 = vector.multi_reduction <add>, %87, %cst_45 [1] : vector<8x16xf32> to vector<8xf32>
    %89 = vector.shape_cast %88 : vector<8xf32> to vector<8x1xf32>
    %90 = vector.broadcast %89 : vector<8x1xf32> to vector<8x16xf32>
    %91 = arith.divf %87, %90 : vector<8x16xf32>
    %92 = arith.truncf %91 : vector<8x16xf32> to vector<8x16xbf16>
    %cst_46 = arith.constant dense<0.000000e+00> : vector<8x8xf32>
    %93 = tpu.matmul %92, %81, %cst_46 {dimension_numbers = #tpu.dot_dimension_numbers<[1], [0], [0], [1], [0, 0, 1, 1], [], []>} : vector<8x16xbf16>, vector<16x8xbf16>, vector<8x8xf32> -> vector<8x8xf32>
    %c0_47 = arith.constant 0 : index
    %c16 = arith.constant 16 : index
    %94 = vector.load %arg34[%c0_47, %c16] : memref<8x32xf32, #tpu.memory_space<vmem>>, vector<8x8xf32>
    tpu.vector_store %arg34[%c0_47, %c16], %93 {strides = array<i32>} : memref<8x32xf32, #tpu.memory_space<vmem>>, vector<8x8xf32>,
    %95 = vector.extract_strided_slice %29 {offsets = [0, 24], sizes = [8, 8], strides = [1, 1]} : vector<8x32xf32> to vector<8x8xf32>
    %96 = arith.truncf %95 : vector<8x8xf32> to vector<8x8xbf16>
    %97 = vector.extract_strided_slice %33 {offsets = [0, 24], sizes = [16, 8], strides = [1, 1]} : vector<16x32xf32> to vector<16x8xf32>
    %98 = arith.truncf %97 : vector<16x8xf32> to vector<16x8xbf16>
    %99 = vector.extract_strided_slice %37 {offsets = [0, 24], sizes = [16, 8], strides = [1, 1]} : vector<16x32xf32> to vector<16x8xf32>
    %100 = arith.truncf %99 : vector<16x8xf32> to vector<16x8xbf16>
    %cst_48 = arith.constant dense<0.000000e+00> : vector<8x16xf32>
    %101 = tpu.matmul %96, %98, %cst_48 {dimension_numbers = #tpu.dot_dimension_numbers<[1], [1], [0], [0], [0, 0, 1, 0], [], []>} : vector<8x8xbf16>, vector<16x8xbf16>, vector<8x16xf32> -> vector<8x16xf32>
    %cst_49 = arith.constant dense<0xFF800000> : vector<8xf32>
    %102 = vector.multi_reduction <maximumf>, %101, %cst_49 [1] : vector<8x16xf32> to vector<8xf32>
    %103 = vector.shape_cast %102 : vector<8xf32> to vector<8x1xf32>
    %104 = vector.broadcast %103 : vector<8x1xf32> to vector<8x16xf32>
    %105 = arith.subf %101, %104 : vector<8x16xf32>
    %106 = math.exp %105 : vector<8x16xf32>
    %cst_50 = arith.constant dense<0.000000e+00> : vector<8xf32>
    %107 = vector.multi_reduction <add>, %106, %cst_50 [1] : vector<8x16xf32> to vector<8xf32>
    %108 = vector.shape_cast %107 : vector<8xf32> to vector<8x1xf32>
    %109 = vector.broadcast %108 : vector<8x1xf32> to vector<8x16xf32>
    %110 = arith.divf %106, %109 : vector<8x16xf32>
    %111 = arith.truncf %110 : vector<8x16xf32> to vector<8x16xbf16>
    %cst_51 = arith.constant dense<0.000000e+00> : vector<8x8xf32>
    %112 = tpu.matmul %111, %100, %cst_51 {dimension_numbers = #tpu.dot_dimension_numbers<[1], [0], [0], [1], [0, 0, 1, 1], [], []>} : vector<8x16xbf16>, vector<16x8xbf16>, vector<8x8xf32> -> vector<8x8xf32>
    %c0_52 = arith.constant 0 : index
    %c24 = arith.constant 24 : index
    %113 = vector.load %arg34[%c0_52, %c24] : memref<8x32xf32, #tpu.memory_space<vmem>>, vector<8x8xf32>
    tpu.vector_store %arg34[%c0_52, %c24], %112 {strides = array<i32>} : memref<8x32xf32, #tpu.memory_space<vmem>>, vector<8x8xf32>,
    %c0_53 = arith.constant 0 : index
    %c0_54 = arith.constant 0 : index
    %114 = vector.load %arg34[%c0_53, %c0_54] : memref<8x32xf32, #tpu.memory_space<vmem>>, vector<8x32xf32>
    %115 = arith.truncf %114 : vector<8x32xf32> to vector<8x32xbf16>
    %cst_55 = arith.constant dense<0.000000e+00> : vector<8x32xf32>
    %116 = tpu.matmul %115, %20, %cst_55 {dimension_numbers = #tpu.dot_dimension_numbers<[1], [0], [0], [1], [0, 0, 1, 1], [], []>} : vector<8x32xbf16>, vector<32x32xbf16>, vector<8x32xf32> -> vector<8x32xf32>
    %117 = vector.broadcast %21 : vector<1x32xf32> to vector<8x32xf32>
    %118 = arith.addf %116, %117 : vector<8x32xf32>
    %119 = arith.addf %8, %118 : vector<8x32xf32>
    %cst_56 = arith.constant dense<0.000000e+00> : vector<8xf32>
    %120 = vector.multi_reduction <add>, %119, %cst_56 [1] : vector<8x32xf32> to vector<8xf32>
    %121 = vector.shape_cast %120 : vector<8xf32> to vector<8x1xf32>
    %cst_57 = arith.constant 3.200000e+01 : f32
    %122 = vector.broadcast %cst_57 : f32 to vector<8x1xf32>
    %123 = arith.divf %121, %122 : vector<8x1xf32>
    %124 = vector.broadcast %123 : vector<8x1xf32> to vector<8x32xf32>
    %125 = arith.subf %119, %124 : vector<8x32xf32>
    %126 = arith.mulf %125, %125 : vector<8x32xf32>
    %cst_58 = arith.constant dense<0.000000e+00> : vector<8xf32>
    %127 = vector.multi_reduction <add>, %126, %cst_58 [1] : vector<8x32xf32> to vector<8xf32>
    %128 = vector.shape_cast %127 : vector<8xf32> to vector<8x1xf32>
    %cst_59 = arith.constant 3.200000e+01 : f32
    %129 = vector.broadcast %cst_59 : f32 to vector<8x1xf32>
    %130 = arith.divf %128, %129 : vector<8x1xf32>
    %131 = vector.broadcast %123 : vector<8x1xf32> to vector<8x32xf32>
    %132 = arith.subf %119, %131 : vector<8x32xf32>
    %cst_60 = arith.constant 9.99999974E-6 : f32
    %133 = vector.broadcast %cst_60 : f32 to vector<8x1xf32>
    %134 = arith.addf %130, %133 : vector<8x1xf32>
    %135 = math.rsqrt %134 : vector<8x1xf32>
    %136 = vector.broadcast %135 : vector<8x1xf32> to vector<8x32xf32>
    %137 = arith.mulf %132, %136 : vector<8x32xf32>
    %138 = vector.broadcast %22 : vector<1x32xf32> to vector<8x32xf32>
    %139 = arith.mulf %137, %138 : vector<8x32xf32>
    %140 = vector.broadcast %23 : vector<1x32xf32> to vector<8x32xf32>
    %141 = arith.addf %139, %140 : vector<8x32xf32>
    %c0_61 = arith.constant 0 : index
    %c0_62 = arith.constant 0 : index
    %c0_63 = arith.constant 0 : index
    %142 = vector.load %arg3[%c0_61, %c0_62, %c0_63] : memref<1x24x32xf32, #tpu.memory_space<vmem>>, vector<1x24x32xf32>
    %143 = vector.shape_cast %142 : vector<1x24x32xf32> to vector<24x32xf32>
    %c0_64 = arith.constant 0 : index
    %c0_65 = arith.constant 0 : index
    %c0_66 = arith.constant 0 : index
    %144 = vector.load %arg5[%c0_64, %c0_65, %c0_66] : memref<1x24x32xf32, #tpu.memory_space<vmem>>, vector<1x24x32xf32>
    %145 = vector.shape_cast %144 : vector<1x24x32xf32> to vector<24x32xf32>
    %146 = arith.addf %143, %145 : vector<24x32xf32>
    %147 = arith.addf %141, %11 : vector<8x32xf32>
    %c0_67 = arith.constant 0 : index
    %c0_68 = arith.constant 0 : index
    %c0_69 = arith.constant 0 : index
    %148 = vector.load %arg6[%c0_67, %c0_68, %c0_69] : memref<1x1x24xf32, #tpu.memory_space<vmem>>, vector<1x1x24xf32>
    %149 = vector.shape_cast %148 : vector<1x1x24xf32> to vector<1x24xf32>
    %c0_70 = arith.constant 0 : index
    %c0_71 = arith.constant 0 : index
    %150 = vector.load %arg17[%c0_70, %c0_71] : memref<32x32xbf16, #tpu.memory_space<vmem>>, vector<32x32xbf16>
    %c0_72 = arith.constant 0 : index
    %c0_73 = arith.constant 0 : index
    %151 = vector.load %arg18[%c0_72, %c0_73] : memref<1x32xf32, #tpu.memory_space<vmem>>, vector<1x32xf32>
    %c0_74 = arith.constant 0 : index
    %c0_75 = arith.constant 0 : index
    %152 = vector.load %arg19[%c0_74, %c0_75] : memref<32x32xbf16, #tpu.memory_space<vmem>>, vector<32x32xbf16>
    %c0_76 = arith.constant 0 : index
    %c0_77 = arith.constant 0 : index
    %153 = vector.load %arg20[%c0_76, %c0_77] : memref<1x32xf32, #tpu.memory_space<vmem>>, vector<1x32xf32>
    %c0_78 = arith.constant 0 : index
    %c0_79 = arith.constant 0 : index
    %154 = vector.load %arg21[%c0_78, %c0_79] : memref<32x32xbf16, #tpu.memory_space<vmem>>, vector<32x32xbf16>
    %c0_80 = arith.constant 0 : index
    %c0_81 = arith.constant 0 : index
    %155 = vector.load %arg22[%c0_80, %c0_81] : memref<1x32xf32, #tpu.memory_space<vmem>>, vector<1x32xf32>
    %c0_82 = arith.constant 0 : index
    %c0_83 = arith.constant 0 : index
    %156 = vector.load %arg23[%c0_82, %c0_83] : memref<32x32xbf16, #tpu.memory_space<vmem>>, vector<32x32xbf16>
    %c0_84 = arith.constant 0 : index
    %c0_85 = arith.constant 0 : index
    %157 = vector.load %arg24[%c0_84, %c0_85] : memref<1x32xf32, #tpu.memory_space<vmem>>, vector<1x32xf32>
    %c0_86 = arith.constant 0 : index
    %c0_87 = arith.constant 0 : index
    %158 = vector.load %arg25[%c0_86, %c0_87] : memref<1x32xf32, #tpu.memory_space<vmem>>, vector<1x32xf32>
    %c0_88 = arith.constant 0 : index
    %c0_89 = arith.constant 0 : index
    %159 = vector.load %arg26[%c0_88, %c0_89] : memref<1x32xf32, #tpu.memory_space<vmem>>, vector<1x32xf32>
    %160 = arith.truncf %147 : vector<8x32xf32> to vector<8x32xbf16>
    %cst_90 = arith.constant dense<0.000000e+00> : vector<8x32xf32>
    %161 = tpu.matmul %160, %150, %cst_90 {dimension_numbers = #tpu.dot_dimension_numbers<[1], [0], [0], [1], [0, 0, 1, 1], [], []>} : vector<8x32xbf16>, vector<32x32xbf16>, vector<8x32xf32> -> vector<8x32xf32>
    %162 = vector.broadcast %151 : vector<1x32xf32> to vector<8x32xf32>
    %163 = arith.addf %161, %162 : vector<8x32xf32>
    %cst_91 = arith.constant 0.353553385 : f32
    %164 = vector.broadcast %cst_91 : f32 to vector<8x32xf32>
    %165 = arith.mulf %163, %164 : vector<8x32xf32>
    %166 = arith.truncf %146 : vector<24x32xf32> to vector<24x32xbf16>
    %cst_92 = arith.constant dense<0.000000e+00> : vector<24x32xf32>
    %167 = tpu.matmul %166, %152, %cst_92 {dimension_numbers = #tpu.dot_dimension_numbers<[1], [0], [0], [1], [0, 0, 1, 1], [], []>} : vector<24x32xbf16>, vector<32x32xbf16>, vector<24x32xf32> -> vector<24x32xf32>
    %168 = vector.broadcast %153 : vector<1x32xf32> to vector<24x32xf32>
    %169 = arith.addf %167, %168 : vector<24x32xf32>
    %170 = arith.truncf %143 : vector<24x32xf32> to vector<24x32xbf16>
    %cst_93 = arith.constant dense<0.000000e+00> : vector<24x32xf32>
    %171 = tpu.matmul %170, %154, %cst_93 {dimension_numbers = #tpu.dot_dimension_numbers<[1], [0], [0], [1], [0, 0, 1, 1], [], []>} : vector<24x32xbf16>, vector<32x32xbf16>, vector<24x32xf32> -> vector<24x32xf32>
    %172 = vector.broadcast %155 : vector<1x32xf32> to vector<24x32xf32>
    %173 = arith.addf %171, %172 : vector<24x32xf32>
    %174 = vector.extract_strided_slice %165 {offsets = [0, 0], sizes = [8, 8], strides = [1, 1]} : vector<8x32xf32> to vector<8x8xf32>
    %175 = arith.truncf %174 : vector<8x8xf32> to vector<8x8xbf16>
    %176 = vector.extract_strided_slice %169 {offsets = [0, 0], sizes = [24, 8], strides = [1, 1]} : vector<24x32xf32> to vector<24x8xf32>
    %177 = arith.truncf %176 : vector<24x8xf32> to vector<24x8xbf16>
    %178 = vector.extract_strided_slice %173 {offsets = [0, 0], sizes = [24, 8], strides = [1, 1]} : vector<24x32xf32> to vector<24x8xf32>
    %179 = arith.truncf %178 : vector<24x8xf32> to vector<24x8xbf16>
    %cst_94 = arith.constant dense<0.000000e+00> : vector<8x24xf32>
    %180 = tpu.matmul %175, %177, %cst_94 {dimension_numbers = #tpu.dot_dimension_numbers<[1], [1], [0], [0], [0, 0, 1, 0], [], []>} : vector<8x8xbf16>, vector<24x8xbf16>, vector<8x24xf32> -> vector<8x24xf32>
    %181 = vector.broadcast %149 : vector<1x24xf32> to vector<8x24xf32>
    %182 = arith.addf %180, %181 : vector<8x24xf32>
    %cst_95 = arith.constant dense<0xFF800000> : vector<8xf32>
    %183 = vector.multi_reduction <maximumf>, %182, %cst_95 [1] : vector<8x24xf32> to vector<8xf32>
    %184 = vector.shape_cast %183 : vector<8xf32> to vector<8x1xf32>
    %185 = vector.broadcast %184 : vector<8x1xf32> to vector<8x24xf32>
    %186 = arith.subf %182, %185 : vector<8x24xf32>
    %187 = math.exp %186 : vector<8x24xf32>
    %cst_96 = arith.constant dense<0.000000e+00> : vector<8xf32>
    %188 = vector.multi_reduction <add>, %187, %cst_96 [1] : vector<8x24xf32> to vector<8xf32>
    %189 = vector.shape_cast %188 : vector<8xf32> to vector<8x1xf32>
    %190 = vector.broadcast %189 : vector<8x1xf32> to vector<8x24xf32>
    %191 = arith.divf %187, %190 : vector<8x24xf32>
    %192 = arith.truncf %191 : vector<8x24xf32> to vector<8x24xbf16>
    %cst_97 = arith.constant dense<0.000000e+00> : vector<8x8xf32>
    %193 = tpu.matmul %192, %179, %cst_97 {dimension_numbers = #tpu.dot_dimension_numbers<[1], [0], [0], [1], [0, 0, 1, 1], [], []>} : vector<8x24xbf16>, vector<24x8xbf16>, vector<8x8xf32> -> vector<8x8xf32>
    %c0_98 = arith.constant 0 : index
    %c0_99 = arith.constant 0 : index
    %194 = vector.load %arg34[%c0_98, %c0_99] : memref<8x32xf32, #tpu.memory_space<vmem>>, vector<8x8xf32>
    tpu.vector_store %arg34[%c0_98, %c0_99], %193 {strides = array<i32>} : memref<8x32xf32, #tpu.memory_space<vmem>>, vector<8x8xf32>,
    %195 = vector.extract_strided_slice %165 {offsets = [0, 8], sizes = [8, 8], strides = [1, 1]} : vector<8x32xf32> to vector<8x8xf32>
    %196 = arith.truncf %195 : vector<8x8xf32> to vector<8x8xbf16>
    %197 = vector.extract_strided_slice %169 {offsets = [0, 8], sizes = [24, 8], strides = [1, 1]} : vector<24x32xf32> to vector<24x8xf32>
    %198 = arith.truncf %197 : vector<24x8xf32> to vector<24x8xbf16>
    %199 = vector.extract_strided_slice %173 {offsets = [0, 8], sizes = [24, 8], strides = [1, 1]} : vector<24x32xf32> to vector<24x8xf32>
    %200 = arith.truncf %199 : vector<24x8xf32> to vector<24x8xbf16>
    %cst_100 = arith.constant dense<0.000000e+00> : vector<8x24xf32>
    %201 = tpu.matmul %196, %198, %cst_100 {dimension_numbers = #tpu.dot_dimension_numbers<[1], [1], [0], [0], [0, 0, 1, 0], [], []>} : vector<8x8xbf16>, vector<24x8xbf16>, vector<8x24xf32> -> vector<8x24xf32>
    %202 = vector.broadcast %149 : vector<1x24xf32> to vector<8x24xf32>
    %203 = arith.addf %201, %202 : vector<8x24xf32>
    %cst_101 = arith.constant dense<0xFF800000> : vector<8xf32>
    %204 = vector.multi_reduction <maximumf>, %203, %cst_101 [1] : vector<8x24xf32> to vector<8xf32>
    %205 = vector.shape_cast %204 : vector<8xf32> to vector<8x1xf32>
    %206 = vector.broadcast %205 : vector<8x1xf32> to vector<8x24xf32>
    %207 = arith.subf %203, %206 : vector<8x24xf32>
    %208 = math.exp %207 : vector<8x24xf32>
    %cst_102 = arith.constant dense<0.000000e+00> : vector<8xf32>
    %209 = vector.multi_reduction <add>, %208, %cst_102 [1] : vector<8x24xf32> to vector<8xf32>
    %210 = vector.shape_cast %209 : vector<8xf32> to vector<8x1xf32>
    %211 = vector.broadcast %210 : vector<8x1xf32> to vector<8x24xf32>
    %212 = arith.divf %208, %211 : vector<8x24xf32>
    %213 = arith.truncf %212 : vector<8x24xf32> to vector<8x24xbf16>
    %cst_103 = arith.constant dense<0.000000e+00> : vector<8x8xf32>
    %214 = tpu.matmul %213, %200, %cst_103 {dimension_numbers = #tpu.dot_dimension_numbers<[1], [0], [0], [1], [0, 0, 1, 1], [], []>} : vector<8x24xbf16>, vector<24x8xbf16>, vector<8x8xf32> -> vector<8x8xf32>
    %c0_104 = arith.constant 0 : index
    %c8_105 = arith.constant 8 : index
    %215 = vector.load %arg34[%c0_104, %c8_105] : memref<8x32xf32, #tpu.memory_space<vmem>>, vector<8x8xf32>
    tpu.vector_store %arg34[%c0_104, %c8_105], %214 {strides = array<i32>} : memref<8x32xf32, #tpu.memory_space<vmem>>, vector<8x8xf32>,
    %216 = vector.extract_strided_slice %165 {offsets = [0, 16], sizes = [8, 8], strides = [1, 1]} : vector<8x32xf32> to vector<8x8xf32>
    %217 = arith.truncf %216 : vector<8x8xf32> to vector<8x8xbf16>
    %218 = vector.extract_strided_slice %169 {offsets = [0, 16], sizes = [24, 8], strides = [1, 1]} : vector<24x32xf32> to vector<24x8xf32>
    %219 = arith.truncf %218 : vector<24x8xf32> to vector<24x8xbf16>
    %220 = vector.extract_strided_slice %173 {offsets = [0, 16], sizes = [24, 8], strides = [1, 1]} : vector<24x32xf32> to vector<24x8xf32>
    %221 = arith.truncf %220 : vector<24x8xf32> to vector<24x8xbf16>
    %cst_106 = arith.constant dense<0.000000e+00> : vector<8x24xf32>
    %222 = tpu.matmul %217, %219, %cst_106 {dimension_numbers = #tpu.dot_dimension_numbers<[1], [1], [0], [0], [0, 0, 1, 0], [], []>} : vector<8x8xbf16>, vector<24x8xbf16>, vector<8x24xf32> -> vector<8x24xf32>
    %223 = vector.broadcast %149 : vector<1x24xf32> to vector<8x24xf32>
    %224 = arith.addf %222, %223 : vector<8x24xf32>
    %cst_107 = arith.constant dense<0xFF800000> : vector<8xf32>
    %225 = vector.multi_reduction <maximumf>, %224, %cst_107 [1] : vector<8x24xf32> to vector<8xf32>
    %226 = vector.shape_cast %225 : vector<8xf32> to vector<8x1xf32>
    %227 = vector.broadcast %226 : vector<8x1xf32> to vector<8x24xf32>
    %228 = arith.subf %224, %227 : vector<8x24xf32>
    %229 = math.exp %228 : vector<8x24xf32>
    %cst_108 = arith.constant dense<0.000000e+00> : vector<8xf32>
    %230 = vector.multi_reduction <add>, %229, %cst_108 [1] : vector<8x24xf32> to vector<8xf32>
    %231 = vector.shape_cast %230 : vector<8xf32> to vector<8x1xf32>
    %232 = vector.broadcast %231 : vector<8x1xf32> to vector<8x24xf32>
    %233 = arith.divf %229, %232 : vector<8x24xf32>
    %234 = arith.truncf %233 : vector<8x24xf32> to vector<8x24xbf16>
    %cst_109 = arith.constant dense<0.000000e+00> : vector<8x8xf32>
    %235 = tpu.matmul %234, %221, %cst_109 {dimension_numbers = #tpu.dot_dimension_numbers<[1], [0], [0], [1], [0, 0, 1, 1], [], []>} : vector<8x24xbf16>, vector<24x8xbf16>, vector<8x8xf32> -> vector<8x8xf32>
    %c0_110 = arith.constant 0 : index
    %c16_111 = arith.constant 16 : index
    %236 = vector.load %arg34[%c0_110, %c16_111] : memref<8x32xf32, #tpu.memory_space<vmem>>, vector<8x8xf32>
    tpu.vector_store %arg34[%c0_110, %c16_111], %235 {strides = array<i32>} : memref<8x32xf32, #tpu.memory_space<vmem>>, vector<8x8xf32>,
    %237 = vector.extract_strided_slice %165 {offsets = [0, 24], sizes = [8, 8], strides = [1, 1]} : vector<8x32xf32> to vector<8x8xf32>
    %238 = arith.truncf %237 : vector<8x8xf32> to vector<8x8xbf16>
    %239 = vector.extract_strided_slice %169 {offsets = [0, 24], sizes = [24, 8], strides = [1, 1]} : vector<24x32xf32> to vector<24x8xf32>
    %240 = arith.truncf %239 : vector<24x8xf32> to vector<24x8xbf16>
    %241 = vector.extract_strided_slice %173 {offsets = [0, 24], sizes = [24, 8], strides = [1, 1]} : vector<24x32xf32> to vector<24x8xf32>
    %242 = arith.truncf %241 : vector<24x8xf32> to vector<24x8xbf16>
    %cst_112 = arith.constant dense<0.000000e+00> : vector<8x24xf32>
    %243 = tpu.matmul %238, %240, %cst_112 {dimension_numbers = #tpu.dot_dimension_numbers<[1], [1], [0], [0], [0, 0, 1, 0], [], []>} : vector<8x8xbf16>, vector<24x8xbf16>, vector<8x24xf32> -> vector<8x24xf32>
    %244 = vector.broadcast %149 : vector<1x24xf32> to vector<8x24xf32>
    %245 = arith.addf %243, %244 : vector<8x24xf32>
    %cst_113 = arith.constant dense<0xFF800000> : vector<8xf32>
    %246 = vector.multi_reduction <maximumf>, %245, %cst_113 [1] : vector<8x24xf32> to vector<8xf32>
    %247 = vector.shape_cast %246 : vector<8xf32> to vector<8x1xf32>
    %248 = vector.broadcast %247 : vector<8x1xf32> to vector<8x24xf32>
    %249 = arith.subf %245, %248 : vector<8x24xf32>
    %250 = math.exp %249 : vector<8x24xf32>
    %cst_114 = arith.constant dense<0.000000e+00> : vector<8xf32>
    %251 = vector.multi_reduction <add>, %250, %cst_114 [1] : vector<8x24xf32> to vector<8xf32>
    %252 = vector.shape_cast %251 : vector<8xf32> to vector<8x1xf32>
    %253 = vector.broadcast %252 : vector<8x1xf32> to vector<8x24xf32>
    %254 = arith.divf %250, %253 : vector<8x24xf32>
    %255 = arith.truncf %254 : vector<8x24xf32> to vector<8x24xbf16>
    %cst_115 = arith.constant dense<0.000000e+00> : vector<8x8xf32>
    %256 = tpu.matmul %255, %242, %cst_115 {dimension_numbers = #tpu.dot_dimension_numbers<[1], [0], [0], [1], [0, 0, 1, 1], [], []>} : vector<8x24xbf16>, vector<24x8xbf16>, vector<8x8xf32> -> vector<8x8xf32>
    %c0_116 = arith.constant 0 : index
    %c24_117 = arith.constant 24 : index
    %257 = vector.load %arg34[%c0_116, %c24_117] : memref<8x32xf32, #tpu.memory_space<vmem>>, vector<8x8xf32>
    tpu.vector_store %arg34[%c0_116, %c24_117], %256 {strides = array<i32>} : memref<8x32xf32, #tpu.memory_space<vmem>>, vector<8x8xf32>,
    %c0_118 = arith.constant 0 : index
    %c0_119 = arith.constant 0 : index
    %258 = vector.load %arg34[%c0_118, %c0_119] : memref<8x32xf32, #tpu.memory_space<vmem>>, vector<8x32xf32>
    %259 = arith.truncf %258 : vector<8x32xf32> to vector<8x32xbf16>
    %cst_120 = arith.constant dense<0.000000e+00> : vector<8x32xf32>
    %260 = tpu.matmul %259, %156, %cst_120 {dimension_numbers = #tpu.dot_dimension_numbers<[1], [0], [0], [1], [0, 0, 1, 1], [], []>} : vector<8x32xbf16>, vector<32x32xbf16>, vector<8x32xf32> -> vector<8x32xf32>
    %261 = vector.broadcast %157 : vector<1x32xf32> to vector<8x32xf32>
    %262 = arith.addf %260, %261 : vector<8x32xf32>
    %263 = arith.addf %141, %262 : vector<8x32xf32>
    %cst_121 = arith.constant dense<0.000000e+00> : vector<8xf32>
    %264 = vector.multi_reduction <add>, %263, %cst_121 [1] : vector<8x32xf32> to vector<8xf32>
    %265 = vector.shape_cast %264 : vector<8xf32> to vector<8x1xf32>
    %cst_122 = arith.constant 3.200000e+01 : f32
    %266 = vector.broadcast %cst_122 : f32 to vector<8x1xf32>
    %267 = arith.divf %265, %266 : vector<8x1xf32>
    %268 = vector.broadcast %267 : vector<8x1xf32> to vector<8x32xf32>
    %269 = arith.subf %263, %268 : vector<8x32xf32>
    %270 = arith.mulf %269, %269 : vector<8x32xf32>
    %cst_123 = arith.constant dense<0.000000e+00> : vector<8xf32>
    %271 = vector.multi_reduction <add>, %270, %cst_123 [1] : vector<8x32xf32> to vector<8xf32>
    %272 = vector.shape_cast %271 : vector<8xf32> to vector<8x1xf32>
    %cst_124 = arith.constant 3.200000e+01 : f32
    %273 = vector.broadcast %cst_124 : f32 to vector<8x1xf32>
    %274 = arith.divf %272, %273 : vector<8x1xf32>
    %275 = vector.broadcast %267 : vector<8x1xf32> to vector<8x32xf32>
    %276 = arith.subf %263, %275 : vector<8x32xf32>
    %cst_125 = arith.constant 9.99999974E-6 : f32
    %277 = vector.broadcast %cst_125 : f32 to vector<8x1xf32>
    %278 = arith.addf %274, %277 : vector<8x1xf32>
    %279 = math.rsqrt %278 : vector<8x1xf32>
    %280 = vector.broadcast %279 : vector<8x1xf32> to vector<8x32xf32>
    %281 = arith.mulf %276, %280 : vector<8x32xf32>
    %282 = vector.broadcast %158 : vector<1x32xf32> to vector<8x32xf32>
    %283 = arith.mulf %281, %282 : vector<8x32xf32>
    %284 = vector.broadcast %159 : vector<1x32xf32> to vector<8x32xf32>
    %285 = arith.addf %283, %284 : vector<8x32xf32>
    %286 = arith.truncf %285 : vector<8x32xf32> to vector<8x32xbf16>
    %c0_126 = arith.constant 0 : index
    %c0_127 = arith.constant 0 : index
    %287 = vector.load %arg27[%c0_126, %c0_127] : memref<32x64xbf16, #tpu.memory_space<vmem>>, vector<32x64xbf16>
    %cst_128 = arith.constant dense<0.000000e+00> : vector<8x64xf32>
    %288 = tpu.matmul %286, %287, %cst_128 {dimension_numbers = #tpu.dot_dimension_numbers<[1], [0], [0], [1], [0, 0, 1, 1], [], []>} : vector<8x32xbf16>, vector<32x64xbf16>, vector<8x64xf32> -> vector<8x64xf32>
    %c0_129 = arith.constant 0 : index
    %c0_130 = arith.constant 0 : index
    %289 = vector.load %arg28[%c0_129, %c0_130] : memref<1x64xf32, #tpu.memory_space<vmem>>, vector<1x64xf32>
    %290 = vector.broadcast %289 : vector<1x64xf32> to vector<8x64xf32>
    %291 = arith.addf %288, %290 : vector<8x64xf32>
    %cst_131 = arith.constant 0.000000e+00 : f32
    %292 = vector.broadcast %cst_131 : f32 to vector<8x64xf32>
    %293 = arith.maximumf %291, %292 : vector<8x64xf32>
    %294 = arith.truncf %293 : vector<8x64xf32> to vector<8x64xbf16>
    %c0_132 = arith.constant 0 : index
    %c0_133 = arith.constant 0 : index
    %295 = vector.load %arg29[%c0_132, %c0_133] : memref<64x32xbf16, #tpu.memory_space<vmem>>, vector<64x32xbf16>
    %cst_134 = arith.constant dense<0.000000e+00> : vector<8x32xf32>
    %296 = tpu.matmul %294, %295, %cst_134 {dimension_numbers = #tpu.dot_dimension_numbers<[1], [0], [0], [1], [0, 0, 1, 1], [], []>} : vector<8x64xbf16>, vector<64x32xbf16>, vector<8x32xf32> -> vector<8x32xf32>
    %c0_135 = arith.constant 0 : index
    %c0_136 = arith.constant 0 : index
    %297 = vector.load %arg30[%c0_135, %c0_136] : memref<1x32xf32, #tpu.memory_space<vmem>>, vector<1x32xf32>
    %298 = vector.broadcast %297 : vector<1x32xf32> to vector<8x32xf32>
    %299 = arith.addf %296, %298 : vector<8x32xf32>
    %300 = arith.addf %285, %299 : vector<8x32xf32>
    %c0_137 = arith.constant 0 : index
    %c0_138 = arith.constant 0 : index
    %301 = vector.load %arg31[%c0_137, %c0_138] : memref<1x32xf32, #tpu.memory_space<vmem>>, vector<1x32xf32>
    %c0_139 = arith.constant 0 : index
    %c0_140 = arith.constant 0 : index
    %302 = vector.load %arg32[%c0_139, %c0_140] : memref<1x32xf32, #tpu.memory_space<vmem>>, vector<1x32xf32>
    %cst_141 = arith.constant dense<0.000000e+00> : vector<8xf32>
    %303 = vector.multi_reduction <add>, %300, %cst_141 [1] : vector<8x32xf32> to vector<8xf32>
    %304 = vector.shape_cast %303 : vector<8xf32> to vector<8x1xf32>
    %cst_142 = arith.constant 3.200000e+01 : f32
    %305 = vector.broadcast %cst_142 : f32 to vector<8x1xf32>
    %306 = arith.divf %304, %305 : vector<8x1xf32>
    %307 = vector.broadcast %306 : vector<8x1xf32> to vector<8x32xf32>
    %308 = arith.subf %300, %307 : vector<8x32xf32>
    %309 = arith.mulf %308, %308 : vector<8x32xf32>
    %cst_143 = arith.constant dense<0.000000e+00> : vector<8xf32>
    %310 = vector.multi_reduction <add>, %309, %cst_143 [1] : vector<8x32xf32> to vector<8xf32>
    %311 = vector.shape_cast %310 : vector<8xf32> to vector<8x1xf32>
    %cst_144 = arith.constant 3.200000e+01 : f32
    %312 = vector.broadcast %cst_144 : f32 to vector<8x1xf32>
    %313 = arith.divf %311, %312 : vector<8x1xf32>
    %314 = vector.broadcast %306 : vector<8x1xf32> to vector<8x32xf32>
    %315 = arith.subf %300, %314 : vector<8x32xf32>
    %cst_145 = arith.constant 9.99999974E-6 : f32
    %316 = vector.broadcast %cst_145 : f32 to vector<8x1xf32>
    %317 = arith.addf %313, %316 : vector<8x1xf32>
    %318 = math.rsqrt %317 : vector<8x1xf32>
    %319 = vector.broadcast %318 : vector<8x1xf32> to vector<8x32xf32>
    %320 = arith.mulf %315, %319 : vector<8x32xf32>
    %321 = vector.broadcast %301 : vector<1x32xf32> to vector<8x32xf32>
    %322 = arith.mulf %320, %321 : vector<8x32xf32>
    %323 = vector.broadcast %302 : vector<1x32xf32> to vector<8x32xf32>
    %324 = arith.addf %322, %323 : vector<8x32xf32>
    %c0_146 = arith.constant 0 : index
    %c0_147 = arith.constant 0 : index
    %c0_148 = arith.constant 0 : index
    %325 = vector.load %arg33[%c0_146, %c0_147, %c0_148] : memref<1x8x32xf32, #tpu.memory_space<vmem>>, vector<1x8x32xf32>
    %326 = vector.shape_cast %325 : vector<1x8x32xf32> to vector<8x32xf32>
    %327 = vector.shape_cast %324 : vector<8x32xf32> to vector<1x8x32xf32>
    tpu.vector_store %arg33[%c0_146, %c0_147, %c0_148], %327 {strides = array<i32>} : memref<1x8x32xf32, #tpu.memory_space<vmem>>, vector<1x8x32xf32>,
    return
  }
  func.func @transform_0(%arg0: i32, %arg1: i32) -> (i32, i32, i32) {
    %c0_i32 = arith.constant 0 : i32
    %c0_i32_0 = arith.constant 0 : i32
    %c0_i32_1 = arith.constant 0 : i32
    return %arg0, %c0_i32, %c0_i32_0 : i32, i32, i32
  }
  func.func @transform_1(%arg0: i32, %arg1: i32) -> (i32, i32, i32) {
    %c0_i32 = arith.constant 0 : i32
    %c0_i32_0 = arith.constant 0 : i32
    %c0_i32_1 = arith.constant 0 : i32
    return %arg0, %c0_i32, %c0_i32_0 : i32, i32, i32
  }
  func.func @transform_2(%arg0: i32, %arg1: i32) -> (i32, i32, i32) {
    %c0_i32 = arith.constant 0 : i32
    %c0_i32_0 = arith.constant 0 : i32
    %c0_i32_1 = arith.constant 0 : i32
    return %arg0, %c0_i32, %c0_i32_0 : i32, i32, i32
  }
  func.func @transform_3(%arg0: i32, %arg1: i32) -> (i32, i32, i32) {
    %c0_i32 = arith.constant 0 : i32
    %c0_i32_0 = arith.constant 0 : i32
    %c0_i32_1 = arith.constant 0 : i32
    return %arg0, %c0_i32, %c0_i32_0 : i32, i32, i32
  }
  func.func @transform_4(%arg0: i32, %arg1: i32) -> (i32, i32, i32) {
    %c0_i32 = arith.constant 0 : i32
    %c0_i32_0 = arith.constant 0 : i32
    %c0_i32_1 = arith.constant 0 : i32
    return %arg0, %c0_i32, %c0_i32_0 : i32, i32, i32
  }
  func.func @transform_5(%arg0: i32, %arg1: i32) -> (i32, i32) {
    %c0_i32 = arith.constant 0 : i32
    %c0_i32_0 = arith.constant 0 : i32
    %c0_i32_1 = arith.constant 0 : i32
    return %c0_i32, %c0_i32_0 : i32, i32
  }
  func.func @transform_6(%arg0: i32, %arg1: i32) -> (i32, i32) {
    %c0_i32 = arith.constant 0 : i32
    %c0_i32_0 = arith.constant 0 : i32
    %c0_i32_1 = arith.constant 0 : i32
    return %c0_i32, %c0_i32_0 : i32, i32
  }
  func.func @transform_7(%arg0: i32, %arg1: i32) -> (i32, i32) {
    %c0_i32 = arith.constant 0 : i32
    %c0_i32_0 = arith.constant 0 : i32
    %c0_i32_1 = arith.constant 0 : i32
    return %c0_i32, %c0_i32_0 : i32, i32
  }
  func.func @transform_8(%arg0: i32, %arg1: i32) -> (i32, i32) {
    %c0_i32 = arith.constant 0 : i32
    %c0_i32_0 = arith.constant 0 : i32
    %c0_i32_1 = arith.constant 0 : i32
    return %c0_i32, %c0_i32_0 : i32, i32
  }
  func.func @transform_9(%arg0: i32, %arg1: i32) -> (i32, i32) {
    %c0_i32 = arith.constant 0 : i32
    %c0_i32_0 = arith.constant 0 : i32
    %c0_i32_1 = arith.constant 0 : i32
    return %c0_i32, %c0_i32_0 : i32, i32
  }
  func.func @transform_10(%arg0: i32, %arg1: i32) -> (i32, i32) {
    %c0_i32 = arith.constant 0 : i32
    %c0_i32_0 = arith.constant 0 : i32
    %c0_i32_1 = arith.constant 0 : i32
    return %c0_i32, %c0_i32_0 : i32, i32
  }
  func.func @transform_11(%arg0: i32, %arg1: i32) -> (i32, i32) {
    %c0_i32 = arith.constant 0 : i32
    %c0_i32_0 = arith.constant 0 : i32
    %c0_i32_1 = arith.constant 0 : i32
    return %c0_i32, %c0_i32_0 : i32, i32
  }
  func.func @transform_12(%arg0: i32, %arg1: i32) -> (i32, i32) {
    %c0_i32 = arith.constant 0 : i32
    %c0_i32_0 = arith.constant 0 : i32
    %c0_i32_1 = arith.constant 0 : i32
    return %c0_i32, %c0_i32_0 : i32, i32
  }
  func.func @transform_13(%arg0: i32, %arg1: i32) -> (i32, i32) {
    %c0_i32 = arith.constant 0 : i32
    %c0_i32_0 = arith.constant 0 : i32
    %c0_i32_1 = arith.constant 0 : i32
    return %c0_i32, %c0_i32_0 : i32, i32
  }
  func.func @transform_14(%arg0: i32, %arg1: i32) -> (i32, i32) {
    %c0_i32 = arith.constant 0 : i32
    %c0_i32_0 = arith.constant 0 : i32
    %c0_i32_1 = arith.constant 0 : i32
    return %c0_i32, %c0_i32_0 : i32, i32
  }
  func.func @transform_15(%arg0: i32, %arg1: i32) -> (i32, i32) {
    %c0_i32 = arith.constant 0 : i32
    %c0_i32_0 = arith.constant 0 : i32
    %c0_i32_1 = arith.constant 0 : i32
    return %c0_i32, %c0_i32_0 : i32, i32
  }
  func.func @transform_16(%arg0: i32, %arg1: i32) -> (i32, i32) {
    %c0_i32 = arith.constant 0 : i32
    %c0_i32_0 = arith.constant 0 : i32
    %c0_i32_1 = arith.constant 0 : i32
    return %c0_i32, %c0_i32_0 : i32, i32
  }
  func.func @transform_17(%arg0: i32, %arg1: i32) -> (i32, i32) {
    %c0_i32 = arith.constant 0 : i32
    %c0_i32_0 = arith.constant 0 : i32
    %c0_i32_1 = arith.constant 0 : i32
    return %c0_i32, %c0_i32_0 : i32, i32
  }
  func.func @transform_18(%arg0: i32, %arg1: i32) -> (i32, i32) {
    %c0_i32 = arith.constant 0 : i32
    %c0_i32_0 = arith.constant 0 : i32
    %c0_i32_1 = arith.constant 0 : i32
    return %c0_i32, %c0_i32_0 : i32, i32
  }
  func.func @transform_19(%arg0: i32, %arg1: i32) -> (i32, i32) {
    %c0_i32 = arith.constant 0 : i32
    %c0_i32_0 = arith.constant 0 : i32
    %c0_i32_1 = arith.constant 0 : i32
    return %c0_i32, %c0_i32_0 : i32, i32
  }
  func.func @transform_20(%arg0: i32, %arg1: i32) -> (i32, i32) {
    %c0_i32 = arith.constant 0 : i32
    %c0_i32_0 = arith.constant 0 : i32
    %c0_i32_1 = arith.constant 0 : i32
    return %c0_i32, %c0_i32_0 : i32, i32
  }
  func.func @transform_21(%arg0: i32, %arg1: i32) -> (i32, i32) {
    %c0_i32 = arith.constant 0 : i32
    %c0_i32_0 = arith.constant 0 : i32
    %c0_i32_1 = arith.constant 0 : i32
    return %c0_i32, %c0_i32_0 : i32, i32
  }
  func.func @transform_22(%arg0: i32, %arg1: i32) -> (i32, i32) {
    %c0_i32 = arith.constant 0 : i32
    %c0_i32_0 = arith.constant 0 : i32
    %c0_i32_1 = arith.constant 0 : i32
    return %c0_i32, %c0_i32_0 : i32, i32
  }
  func.func @transform_23(%arg0: i32, %arg1: i32) -> (i32, i32) {
    %c0_i32 = arith.constant 0 : i32
    %c0_i32_0 = arith.constant 0 : i32
    %c0_i32_1 = arith.constant 0 : i32
    return %c0_i32, %c0_i32_0 : i32, i32
  }
  func.func @transform_24(%arg0: i32, %arg1: i32) -> (i32, i32) {
    %c0_i32 = arith.constant 0 : i32
    %c0_i32_0 = arith.constant 0 : i32
    %c0_i32_1 = arith.constant 0 : i32
    return %c0_i32, %c0_i32_0 : i32, i32
  }
  func.func @transform_25(%arg0: i32, %arg1: i32) -> (i32, i32) {
    %c0_i32 = arith.constant 0 : i32
    %c0_i32_0 = arith.constant 0 : i32
    %c0_i32_1 = arith.constant 0 : i32
    return %c0_i32, %c0_i32_0 : i32, i32
  }
  func.func @transform_26(%arg0: i32, %arg1: i32) -> (i32, i32) {
    %c0_i32 = arith.constant 0 : i32
    %c0_i32_0 = arith.constant 0 : i32
    %c0_i32_1 = arith.constant 0 : i32
    return %c0_i32, %c0_i32_0 : i32, i32
  }
  func.func @transform_27(%arg0: i32, %arg1: i32) -> (i32, i32) {
    %c0_i32 = arith.constant 0 : i32
    %c0_i32_0 = arith.constant 0 : i32
    %c0_i32_1 = arith.constant 0 : i32
    return %c0_i32, %c0_i32_0 : i32, i32
  }
  func.func @transform_28(%arg0: i32, %arg1: i32) -> (i32, i32) {
    %c0_i32 = arith.constant 0 : i32
    %c0_i32_0 = arith.constant 0 : i32
    %c0_i32_1 = arith.constant 0 : i32
    return %c0_i32, %c0_i32_0 : i32, i32
  }
  func.func @transform_29(%arg0: i32, %arg1: i32) -> (i32, i32) {
    %c0_i32 = arith.constant 0 : i32
    %c0_i32_0 = arith.constant 0 : i32
    %c0_i32_1 = arith.constant 0 : i32
    return %c0_i32, %c0_i32_0 : i32, i32
  }
  func.func @transform_30(%arg0: i32, %arg1: i32) -> (i32, i32) {
    %c0_i32 = arith.constant 0 : i32
    %c0_i32_0 = arith.constant 0 : i32
    %c0_i32_1 = arith.constant 0 : i32
    return %c0_i32, %c0_i32_0 : i32, i32
  }
  func.func @transform_31(%arg0: i32, %arg1: i32) -> (i32, i32, i32) {
    %c0_i32 = arith.constant 0 : i32
    %c0_i32_0 = arith.constant 0 : i32
    return %arg0, %arg1, %c0_i32 : i32, i32, i32
  }
}

module attributes {stable_mosaic.version = 11 : i64} {
  func.func @_decoder_layer_kernel(%arg0: i32, %arg1: i32, %arg2: memref<1x16x32xf32, #tpu.memory_space<vmem>>, %arg3: memref<1x24x32xf32, #tpu.memory_space<vmem>>, %arg4: memref<1x16x32xf32, #tpu.memory_space<vmem>>, %arg5: memref<1x24x32xf32, #tpu.memory_space<vmem>>, %arg6: memref<1x1x24xf32, #tpu.memory_space<vmem>>, %arg7: memref<32x32xbf16, #tpu.memory_space<vmem>>, %arg8: memref<1x32xf32, #tpu.memory_space<vmem>>, %arg9: memref<32x32xbf16, #tpu.memory_space<vmem>>, %arg10: memref<1x32xf32, #tpu.memory_space<vmem>>, %arg11: memref<32x32xbf16, #tpu.memory_space<vmem>>, %arg12: memref<1x32xf32, #tpu.memory_space<vmem>>, %arg13: memref<32x32xbf16, #tpu.memory_space<vmem>>, %arg14: memref<1x32xf32, #tpu.memory_space<vmem>>, %arg15: memref<1x32xf32, #tpu.memory_space<vmem>>, %arg16: memref<1x32xf32, #tpu.memory_space<vmem>>, %arg17: memref<32x32xbf16, #tpu.memory_space<vmem>>, %arg18: memref<1x32xf32, #tpu.memory_space<vmem>>, %arg19: memref<32x32xbf16, #tpu.memory_space<vmem>>, %arg20: memref<1x32xf32, #tpu.memory_space<vmem>>, %arg21: memref<32x32xbf16, #tpu.memory_space<vmem>>, %arg22: memref<1x32xf32, #tpu.memory_space<vmem>>, %arg23: memref<32x32xbf16, #tpu.memory_space<vmem>>, %arg24: memref<1x32xf32, #tpu.memory_space<vmem>>, %arg25: memref<1x32xf32, #tpu.memory_space<vmem>>, %arg26: memref<1x32xf32, #tpu.memory_space<vmem>>, %arg27: memref<32x64xbf16, #tpu.memory_space<vmem>>, %arg28: memref<1x64xf32, #tpu.memory_space<vmem>>, %arg29: memref<64x32xbf16, #tpu.memory_space<vmem>>, %arg30: memref<1x32xf32, #tpu.memory_space<vmem>>, %arg31: memref<1x32xf32, #tpu.memory_space<vmem>>, %arg32: memref<1x32xf32, #tpu.memory_space<vmem>>, %arg33: memref<1x32xf32, #tpu.memory_space<vmem>>, %arg34: memref<1x32xf32, #tpu.memory_space<vmem>>, %arg35: memref<1x8x32xf32, #tpu.memory_space<vmem>>, %arg36: memref<8x32xf32, #tpu.memory_space<vmem>>) attributes {dimension_semantics = [#tpu.dimension_semantics<parallel>, #tpu.dimension_semantics<parallel>], iteration_bounds = array<i64: 2, 2>, scalar_prefetch = 0 : i64, scratch_operands = 1 : i64, tpu.core_type = #tpu.core_type<tc>, window_params = [{transform_indices = @transform_0, window_bounds = array<i64: 1, 16, 32>}, {transform_indices = @transform_1, window_bounds = array<i64: 1, 24, 32>}, {transform_indices = @transform_2, window_bounds = array<i64: 1, 16, 32>}, {transform_indices = @transform_3, window_bounds = array<i64: 1, 24, 32>}, {transform_indices = @transform_4, window_bounds = array<i64: 1, 1, 24>}, {pipeline_mode = #tpu.pipeline_mode<synchronous>, transform_indices = @transform_5, window_bounds = array<i64: 32, 32>}, {pipeline_mode = #tpu.pipeline_mode<synchronous>, transform_indices = @transform_6, window_bounds = array<i64: 1, 32>}, {pipeline_mode = #tpu.pipeline_mode<synchronous>, transform_indices = @transform_7, window_bounds = array<i64: 32, 32>}, {pipeline_mode = #tpu.pipeline_mode<synchronous>, transform_indices = @transform_8, window_bounds = array<i64: 1, 32>}, {pipeline_mode = #tpu.pipeline_mode<synchronous>, transform_indices = @transform_9, window_bounds = array<i64: 32, 32>}, {pipeline_mode = #tpu.pipeline_mode<synchronous>, transform_indices = @transform_10, window_bounds = array<i64: 1, 32>}, {pipeline_mode = #tpu.pipeline_mode<synchronous>, transform_indices = @transform_11, window_bounds = array<i64: 32, 32>}, {pipeline_mode = #tpu.pipeline_mode<synchronous>, transform_indices = @transform_12, window_bounds = array<i64: 1, 32>}, {pipeline_mode = #tpu.pipeline_mode<synchronous>, transform_indices = @transform_13, window_bounds = array<i64: 1, 32>}, {pipeline_mode = #tpu.pipeline_mode<synchronous>, transform_indices = @transform_14, window_bounds = array<i64: 1, 32>}, {pipeline_mode = #tpu.pipeline_mode<synchronous>, transform_indices = @transform_15, window_bounds = array<i64: 32, 32>}, {pipeline_mode = #tpu.pipeline_mode<synchronous>, transform_indices = @transform_16, window_bounds = array<i64: 1, 32>}, {pipeline_mode = #tpu.pipeline_mode<synchronous>, transform_indices = @transform_17, window_bounds = array<i64: 32, 32>}, {pipeline_mode = #tpu.pipeline_mode<synchronous>, transform_indices = @transform_18, window_bounds = array<i64: 1, 32>}, {pipeline_mode = #tpu.pipeline_mode<synchronous>, transform_indices = @transform_19, window_bounds = array<i64: 32, 32>}, {pipeline_mode = #tpu.pipeline_mode<synchronous>, transform_indices = @transform_20, window_bounds = array<i64: 1, 32>}, {pipeline_mode = #tpu.pipeline_mode<synchronous>, transform_indices = @transform_21, window_bounds = array<i64: 32, 32>}, {pipeline_mode = #tpu.pipeline_mode<synchronous>, transform_indices = @transform_22, window_bounds = array<i64: 1, 32>}, {pipeline_mode = #tpu.pipeline_mode<synchronous>, transform_indices = @transform_23, window_bounds = array<i64: 1, 32>}, {pipeline_mode = #tpu.pipeline_mode<synchronous>, transform_indices = @transform_24, window_bounds = array<i64: 1, 32>}, {pipeline_mode = #tpu.pipeline_mode<synchronous>, transform_indices = @transform_25, window_bounds = array<i64: 32, 64>}, {pipeline_mode = #tpu.pipeline_mode<synchronous>, transform_indices = @transform_26, window_bounds = array<i64: 1, 64>}, {pipeline_mode = #tpu.pipeline_mode<synchronous>, transform_indices = @transform_27, window_bounds = array<i64: 64, 32>}, {pipeline_mode = #tpu.pipeline_mode<synchronous>, transform_indices = @transform_28, window_bounds = array<i64: 1, 32>}, {pipeline_mode = #tpu.pipeline_mode<synchronous>, transform_indices = @transform_29, window_bounds = array<i64: 1, 32>}, {pipeline_mode = #tpu.pipeline_mode<synchronous>, transform_indices = @transform_30, window_bounds = array<i64: 1, 32>}, {pipeline_mode = #tpu.pipeline_mode<synchronous>, transform_indices = @transform_31, window_bounds = array<i64: 1, 32>}, {pipeline_mode = #tpu.pipeline_mode<synchronous>, transform_indices = @transform_32, window_bounds = array<i64: 1, 32>}, {transform_indices = @transform_33, window_bounds = array<i64: 1, 8, 32>}]} {
    %c0 = arith.constant 0 : index
    %c0_0 = arith.constant 0 : index
    %c0_1 = arith.constant 0 : index
    %0 = vector.load %arg2[%c0, %c0_0, %c0_1] : memref<1x16x32xf32, #tpu.memory_space<vmem>>, vector<1x16x32xf32>
    %1 = vector.shape_cast %0 : vector<1x16x32xf32> to vector<16x32xf32>
    %c0_2 = arith.constant 0 : index
    %c0_3 = arith.constant 0 : index
    %c0_4 = arith.constant 0 : index
    %2 = vector.load %arg4[%c0_2, %c0_3, %c0_4] : memref<1x16x32xf32, #tpu.memory_space<vmem>>, vector<1x16x32xf32>
    %3 = vector.shape_cast %2 : vector<1x16x32xf32> to vector<16x32xf32>
    %c8_i32 = arith.constant 8 : i32
    %4 = arith.muli %arg1, %c8_i32 : i32
    %5 = tpu.assume_multiple %4, 8 : i32
    %c0_5 = arith.constant 0 : index
    %6 = arith.index_cast %5 : i32 to index
    %c0_6 = arith.constant 0 : index
    %7 = vector.load %arg2[%c0_5, %6, %c0_6] : memref<1x16x32xf32, #tpu.memory_space<vmem>>, vector<1x8x32xf32>
    %8 = vector.shape_cast %7 : vector<1x8x32xf32> to vector<8x32xf32>
    %c0_7 = arith.constant 0 : index
    %9 = arith.index_cast %5 : i32 to index
    %c0_8 = arith.constant 0 : index
    %10 = vector.load %arg4[%c0_7, %9, %c0_8] : memref<1x16x32xf32, #tpu.memory_space<vmem>>, vector<1x8x32xf32>
    %11 = vector.shape_cast %10 : vector<1x8x32xf32> to vector<8x32xf32>
    %12 = arith.addf %8, %11 : vector<8x32xf32>
    %13 = arith.addf %1, %3 : vector<16x32xf32>
    %c0_9 = arith.constant 0 : index
    %c0_10 = arith.constant 0 : index
    %14 = vector.load %arg7[%c0_9, %c0_10] : memref<32x32xbf16, #tpu.memory_space<vmem>>, vector<32x32xbf16>
    %c0_11 = arith.constant 0 : index
    %c0_12 = arith.constant 0 : index
    %15 = vector.load %arg8[%c0_11, %c0_12] : memref<1x32xf32, #tpu.memory_space<vmem>>, vector<1x32xf32>
    %c0_13 = arith.constant 0 : index
    %c0_14 = arith.constant 0 : index
    %16 = vector.load %arg9[%c0_13, %c0_14] : memref<32x32xbf16, #tpu.memory_space<vmem>>, vector<32x32xbf16>
    %c0_15 = arith.constant 0 : index
    %c0_16 = arith.constant 0 : index
    %17 = vector.load %arg10[%c0_15, %c0_16] : memref<1x32xf32, #tpu.memory_space<vmem>>, vector<1x32xf32>
    %c0_17 = arith.constant 0 : index
    %c0_18 = arith.constant 0 : index
    %18 = vector.load %arg11[%c0_17, %c0_18] : memref<32x32xbf16, #tpu.memory_space<vmem>>, vector<32x32xbf16>
    %c0_19 = arith.constant 0 : index
    %c0_20 = arith.constant 0 : index
    %19 = vector.load %arg12[%c0_19, %c0_20] : memref<1x32xf32, #tpu.memory_space<vmem>>, vector<1x32xf32>
    %c0_21 = arith.constant 0 : index
    %c0_22 = arith.constant 0 : index
    %20 = vector.load %arg13[%c0_21, %c0_22] : memref<32x32xbf16, #tpu.memory_space<vmem>>, vector<32x32xbf16>
    %c0_23 = arith.constant 0 : index
    %c0_24 = arith.constant 0 : index
    %21 = vector.load %arg14[%c0_23, %c0_24] : memref<1x32xf32, #tpu.memory_space<vmem>>, vector<1x32xf32>
    %c0_25 = arith.constant 0 : index
    %c0_26 = arith.constant 0 : index
    %22 = vector.load %arg15[%c0_25, %c0_26] : memref<1x32xf32, #tpu.memory_space<vmem>>, vector<1x32xf32>
    %c0_27 = arith.constant 0 : index
    %c0_28 = arith.constant 0 : index
    %23 = vector.load %arg16[%c0_27, %c0_28] : memref<1x32xf32, #tpu.memory_space<vmem>>, vector<1x32xf32>
    %24 = arith.truncf %12 : vector<8x32xf32> to vector<8x32xbf16>
    %cst = arith.constant dense<0.000000e+00> : vector<8x32xf32>
    %25 = tpu.matmul %24, %14, %cst {dimension_numbers = #tpu.dot_dimension_numbers<[1], [0], [0], [1], [0, 0, 1, 1], [], []>} : vector<8x32xbf16>, vector<32x32xbf16>, vector<8x32xf32> -> vector<8x32xf32>
    %26 = vector.broadcast %15 : vector<1x32xf32> to vector<8x32xf32>
    %27 = arith.addf %25, %26 : vector<8x32xf32>
    %cst_29 = arith.constant 0.353553385 : f32
    %28 = vector.broadcast %cst_29 : f32 to vector<8x32xf32>
    %29 = arith.mulf %27, %28 : vector<8x32xf32>
    %30 = arith.truncf %13 : vector<16x32xf32> to vector<16x32xbf16>
    %cst_30 = arith.constant dense<0.000000e+00> : vector<16x32xf32>
    %31 = tpu.matmul %30, %16, %cst_30 {dimension_numbers = #tpu.dot_dimension_numbers<[1], [0], [0], [1], [0, 0, 1, 1], [], []>} : vector<16x32xbf16>, vector<32x32xbf16>, vector<16x32xf32> -> vector<16x32xf32>
    %32 = vector.broadcast %17 : vector<1x32xf32> to vector<16x32xf32>
    %33 = arith.addf %31, %32 : vector<16x32xf32>
    %34 = arith.truncf %1 : vector<16x32xf32> to vector<16x32xbf16>
    %cst_31 = arith.constant dense<0.000000e+00> : vector<16x32xf32>
    %35 = tpu.matmul %34, %18, %cst_31 {dimension_numbers = #tpu.dot_dimension_numbers<[1], [0], [0], [1], [0, 0, 1, 1], [], []>} : vector<16x32xbf16>, vector<32x32xbf16>, vector<16x32xf32> -> vector<16x32xf32>
    %36 = vector.broadcast %19 : vector<1x32xf32> to vector<16x32xf32>
    %37 = arith.addf %35, %36 : vector<16x32xf32>
    %38 = vector.extract_strided_slice %29 {offsets = [0, 0], sizes = [8, 8], strides = [1, 1]} : vector<8x32xf32> to vector<8x8xf32>
    %39 = arith.truncf %38 : vector<8x8xf32> to vector<8x8xbf16>
    %40 = vector.extract_strided_slice %33 {offsets = [0, 0], sizes = [16, 8], strides = [1, 1]} : vector<16x32xf32> to vector<16x8xf32>
    %41 = arith.truncf %40 : vector<16x8xf32> to vector<16x8xbf16>
    %42 = vector.extract_strided_slice %37 {offsets = [0, 0], sizes = [16, 8], strides = [1, 1]} : vector<16x32xf32> to vector<16x8xf32>
    %43 = arith.truncf %42 : vector<16x8xf32> to vector<16x8xbf16>
    %cst_32 = arith.constant dense<0.000000e+00> : vector<8x16xf32>
    %44 = tpu.matmul %39, %41, %cst_32 {dimension_numbers = #tpu.dot_dimension_numbers<[1], [1], [0], [0], [0, 0, 1, 0], [], []>} : vector<8x8xbf16>, vector<16x8xbf16>, vector<8x16xf32> -> vector<8x16xf32>
    %cst_33 = arith.constant dense<0xFF800000> : vector<8xf32>
    %45 = vector.multi_reduction <maximumf>, %44, %cst_33 [1] : vector<8x16xf32> to vector<8xf32>
    %46 = vector.shape_cast %45 : vector<8xf32> to vector<8x1xf32>
    %47 = vector.broadcast %46 : vector<8x1xf32> to vector<8x16xf32>
    %48 = arith.subf %44, %47 : vector<8x16xf32>
    %49 = math.exp %48 : vector<8x16xf32>
    %cst_34 = arith.constant dense<0.000000e+00> : vector<8xf32>
    %50 = vector.multi_reduction <add>, %49, %cst_34 [1] : vector<8x16xf32> to vector<8xf32>
    %51 = vector.shape_cast %50 : vector<8xf32> to vector<8x1xf32>
    %52 = vector.broadcast %51 : vector<8x1xf32> to vector<8x16xf32>
    %53 = arith.divf %49, %52 : vector<8x16xf32>
    %54 = arith.truncf %53 : vector<8x16xf32> to vector<8x16xbf16>
    %cst_35 = arith.constant dense<0.000000e+00> : vector<8x8xf32>
    %55 = tpu.matmul %54, %43, %cst_35 {dimension_numbers = #tpu.dot_dimension_numbers<[1], [0], [0], [1], [0, 0, 1, 1], [], []>} : vector<8x16xbf16>, vector<16x8xbf16>, vector<8x8xf32> -> vector<8x8xf32>
    %c0_36 = arith.constant 0 : index
    %c0_37 = arith.constant 0 : index
    %56 = vector.load %arg36[%c0_36, %c0_37] : memref<8x32xf32, #tpu.memory_space<vmem>>, vector<8x8xf32>
    tpu.vector_store %arg36[%c0_36, %c0_37], %55 {strides = array<i32>} : memref<8x32xf32, #tpu.memory_space<vmem>>, vector<8x8xf32>,
    %57 = vector.extract_strided_slice %29 {offsets = [0, 8], sizes = [8, 8], strides = [1, 1]} : vector<8x32xf32> to vector<8x8xf32>
    %58 = arith.truncf %57 : vector<8x8xf32> to vector<8x8xbf16>
    %59 = vector.extract_strided_slice %33 {offsets = [0, 8], sizes = [16, 8], strides = [1, 1]} : vector<16x32xf32> to vector<16x8xf32>
    %60 = arith.truncf %59 : vector<16x8xf32> to vector<16x8xbf16>
    %61 = vector.extract_strided_slice %37 {offsets = [0, 8], sizes = [16, 8], strides = [1, 1]} : vector<16x32xf32> to vector<16x8xf32>
    %62 = arith.truncf %61 : vector<16x8xf32> to vector<16x8xbf16>
    %cst_38 = arith.constant dense<0.000000e+00> : vector<8x16xf32>
    %63 = tpu.matmul %58, %60, %cst_38 {dimension_numbers = #tpu.dot_dimension_numbers<[1], [1], [0], [0], [0, 0, 1, 0], [], []>} : vector<8x8xbf16>, vector<16x8xbf16>, vector<8x16xf32> -> vector<8x16xf32>
    %cst_39 = arith.constant dense<0xFF800000> : vector<8xf32>
    %64 = vector.multi_reduction <maximumf>, %63, %cst_39 [1] : vector<8x16xf32> to vector<8xf32>
    %65 = vector.shape_cast %64 : vector<8xf32> to vector<8x1xf32>
    %66 = vector.broadcast %65 : vector<8x1xf32> to vector<8x16xf32>
    %67 = arith.subf %63, %66 : vector<8x16xf32>
    %68 = math.exp %67 : vector<8x16xf32>
    %cst_40 = arith.constant dense<0.000000e+00> : vector<8xf32>
    %69 = vector.multi_reduction <add>, %68, %cst_40 [1] : vector<8x16xf32> to vector<8xf32>
    %70 = vector.shape_cast %69 : vector<8xf32> to vector<8x1xf32>
    %71 = vector.broadcast %70 : vector<8x1xf32> to vector<8x16xf32>
    %72 = arith.divf %68, %71 : vector<8x16xf32>
    %73 = arith.truncf %72 : vector<8x16xf32> to vector<8x16xbf16>
    %cst_41 = arith.constant dense<0.000000e+00> : vector<8x8xf32>
    %74 = tpu.matmul %73, %62, %cst_41 {dimension_numbers = #tpu.dot_dimension_numbers<[1], [0], [0], [1], [0, 0, 1, 1], [], []>} : vector<8x16xbf16>, vector<16x8xbf16>, vector<8x8xf32> -> vector<8x8xf32>
    %c0_42 = arith.constant 0 : index
    %c8 = arith.constant 8 : index
    %75 = vector.load %arg36[%c0_42, %c8] : memref<8x32xf32, #tpu.memory_space<vmem>>, vector<8x8xf32>
    tpu.vector_store %arg36[%c0_42, %c8], %74 {strides = array<i32>} : memref<8x32xf32, #tpu.memory_space<vmem>>, vector<8x8xf32>,
    %76 = vector.extract_strided_slice %29 {offsets = [0, 16], sizes = [8, 8], strides = [1, 1]} : vector<8x32xf32> to vector<8x8xf32>
    %77 = arith.truncf %76 : vector<8x8xf32> to vector<8x8xbf16>
    %78 = vector.extract_strided_slice %33 {offsets = [0, 16], sizes = [16, 8], strides = [1, 1]} : vector<16x32xf32> to vector<16x8xf32>
    %79 = arith.truncf %78 : vector<16x8xf32> to vector<16x8xbf16>
    %80 = vector.extract_strided_slice %37 {offsets = [0, 16], sizes = [16, 8], strides = [1, 1]} : vector<16x32xf32> to vector<16x8xf32>
    %81 = arith.truncf %80 : vector<16x8xf32> to vector<16x8xbf16>
    %cst_43 = arith.constant dense<0.000000e+00> : vector<8x16xf32>
    %82 = tpu.matmul %77, %79, %cst_43 {dimension_numbers = #tpu.dot_dimension_numbers<[1], [1], [0], [0], [0, 0, 1, 0], [], []>} : vector<8x8xbf16>, vector<16x8xbf16>, vector<8x16xf32> -> vector<8x16xf32>
    %cst_44 = arith.constant dense<0xFF800000> : vector<8xf32>
    %83 = vector.multi_reduction <maximumf>, %82, %cst_44 [1] : vector<8x16xf32> to vector<8xf32>
    %84 = vector.shape_cast %83 : vector<8xf32> to vector<8x1xf32>
    %85 = vector.broadcast %84 : vector<8x1xf32> to vector<8x16xf32>
    %86 = arith.subf %82, %85 : vector<8x16xf32>
    %87 = math.exp %86 : vector<8x16xf32>
    %cst_45 = arith.constant dense<0.000000e+00> : vector<8xf32>
    %88 = vector.multi_reduction <add>, %87, %cst_45 [1] : vector<8x16xf32> to vector<8xf32>
    %89 = vector.shape_cast %88 : vector<8xf32> to vector<8x1xf32>
    %90 = vector.broadcast %89 : vector<8x1xf32> to vector<8x16xf32>
    %91 = arith.divf %87, %90 : vector<8x16xf32>
    %92 = arith.truncf %91 : vector<8x16xf32> to vector<8x16xbf16>
    %cst_46 = arith.constant dense<0.000000e+00> : vector<8x8xf32>
    %93 = tpu.matmul %92, %81, %cst_46 {dimension_numbers = #tpu.dot_dimension_numbers<[1], [0], [0], [1], [0, 0, 1, 1], [], []>} : vector<8x16xbf16>, vector<16x8xbf16>, vector<8x8xf32> -> vector<8x8xf32>
    %c0_47 = arith.constant 0 : index
    %c16 = arith.constant 16 : index
    %94 = vector.load %arg36[%c0_47, %c16] : memref<8x32xf32, #tpu.memory_space<vmem>>, vector<8x8xf32>
    tpu.vector_store %arg36[%c0_47, %c16], %93 {strides = array<i32>} : memref<8x32xf32, #tpu.memory_space<vmem>>, vector<8x8xf32>,
    %95 = vector.extract_strided_slice %29 {offsets = [0, 24], sizes = [8, 8], strides = [1, 1]} : vector<8x32xf32> to vector<8x8xf32>
    %96 = arith.truncf %95 : vector<8x8xf32> to vector<8x8xbf16>
    %97 = vector.extract_strided_slice %33 {offsets = [0, 24], sizes = [16, 8], strides = [1, 1]} : vector<16x32xf32> to vector<16x8xf32>
    %98 = arith.truncf %97 : vector<16x8xf32> to vector<16x8xbf16>
    %99 = vector.extract_strided_slice %37 {offsets = [0, 24], sizes = [16, 8], strides = [1, 1]} : vector<16x32xf32> to vector<16x8xf32>
    %100 = arith.truncf %99 : vector<16x8xf32> to vector<16x8xbf16>
    %cst_48 = arith.constant dense<0.000000e+00> : vector<8x16xf32>
    %101 = tpu.matmul %96, %98, %cst_48 {dimension_numbers = #tpu.dot_dimension_numbers<[1], [1], [0], [0], [0, 0, 1, 0], [], []>} : vector<8x8xbf16>, vector<16x8xbf16>, vector<8x16xf32> -> vector<8x16xf32>
    %cst_49 = arith.constant dense<0xFF800000> : vector<8xf32>
    %102 = vector.multi_reduction <maximumf>, %101, %cst_49 [1] : vector<8x16xf32> to vector<8xf32>
    %103 = vector.shape_cast %102 : vector<8xf32> to vector<8x1xf32>
    %104 = vector.broadcast %103 : vector<8x1xf32> to vector<8x16xf32>
    %105 = arith.subf %101, %104 : vector<8x16xf32>
    %106 = math.exp %105 : vector<8x16xf32>
    %cst_50 = arith.constant dense<0.000000e+00> : vector<8xf32>
    %107 = vector.multi_reduction <add>, %106, %cst_50 [1] : vector<8x16xf32> to vector<8xf32>
    %108 = vector.shape_cast %107 : vector<8xf32> to vector<8x1xf32>
    %109 = vector.broadcast %108 : vector<8x1xf32> to vector<8x16xf32>
    %110 = arith.divf %106, %109 : vector<8x16xf32>
    %111 = arith.truncf %110 : vector<8x16xf32> to vector<8x16xbf16>
    %cst_51 = arith.constant dense<0.000000e+00> : vector<8x8xf32>
    %112 = tpu.matmul %111, %100, %cst_51 {dimension_numbers = #tpu.dot_dimension_numbers<[1], [0], [0], [1], [0, 0, 1, 1], [], []>} : vector<8x16xbf16>, vector<16x8xbf16>, vector<8x8xf32> -> vector<8x8xf32>
    %c0_52 = arith.constant 0 : index
    %c24 = arith.constant 24 : index
    %113 = vector.load %arg36[%c0_52, %c24] : memref<8x32xf32, #tpu.memory_space<vmem>>, vector<8x8xf32>
    tpu.vector_store %arg36[%c0_52, %c24], %112 {strides = array<i32>} : memref<8x32xf32, #tpu.memory_space<vmem>>, vector<8x8xf32>,
    %c0_53 = arith.constant 0 : index
    %c0_54 = arith.constant 0 : index
    %114 = vector.load %arg36[%c0_53, %c0_54] : memref<8x32xf32, #tpu.memory_space<vmem>>, vector<8x32xf32>
    %115 = arith.truncf %114 : vector<8x32xf32> to vector<8x32xbf16>
    %cst_55 = arith.constant dense<0.000000e+00> : vector<8x32xf32>
    %116 = tpu.matmul %115, %20, %cst_55 {dimension_numbers = #tpu.dot_dimension_numbers<[1], [0], [0], [1], [0, 0, 1, 1], [], []>} : vector<8x32xbf16>, vector<32x32xbf16>, vector<8x32xf32> -> vector<8x32xf32>
    %117 = vector.broadcast %21 : vector<1x32xf32> to vector<8x32xf32>
    %118 = arith.addf %116, %117 : vector<8x32xf32>
    %119 = arith.addf %8, %118 : vector<8x32xf32>
    %cst_56 = arith.constant dense<0.000000e+00> : vector<8xf32>
    %120 = vector.multi_reduction <add>, %119, %cst_56 [1] : vector<8x32xf32> to vector<8xf32>
    %121 = vector.shape_cast %120 : vector<8xf32> to vector<8x1xf32>
    %cst_57 = arith.constant 3.200000e+01 : f32
    %122 = vector.broadcast %cst_57 : f32 to vector<8x1xf32>
    %123 = arith.divf %121, %122 : vector<8x1xf32>
    %124 = vector.broadcast %123 : vector<8x1xf32> to vector<8x32xf32>
    %125 = arith.subf %119, %124 : vector<8x32xf32>
    %126 = arith.mulf %125, %125 : vector<8x32xf32>
    %cst_58 = arith.constant dense<0.000000e+00> : vector<8xf32>
    %127 = vector.multi_reduction <add>, %126, %cst_58 [1] : vector<8x32xf32> to vector<8xf32>
    %128 = vector.shape_cast %127 : vector<8xf32> to vector<8x1xf32>
    %cst_59 = arith.constant 3.200000e+01 : f32
    %129 = vector.broadcast %cst_59 : f32 to vector<8x1xf32>
    %130 = arith.divf %128, %129 : vector<8x1xf32>
    %131 = vector.broadcast %123 : vector<8x1xf32> to vector<8x32xf32>
    %132 = arith.subf %119, %131 : vector<8x32xf32>
    %cst_60 = arith.constant 9.99999974E-6 : f32
    %133 = vector.broadcast %cst_60 : f32 to vector<8x1xf32>
    %134 = arith.addf %130, %133 : vector<8x1xf32>
    %135 = math.rsqrt %134 : vector<8x1xf32>
    %136 = vector.broadcast %135 : vector<8x1xf32> to vector<8x32xf32>
    %137 = arith.mulf %132, %136 : vector<8x32xf32>
    %138 = vector.broadcast %22 : vector<1x32xf32> to vector<8x32xf32>
    %139 = arith.mulf %137, %138 : vector<8x32xf32>
    %140 = vector.broadcast %23 : vector<1x32xf32> to vector<8x32xf32>
    %141 = arith.addf %139, %140 : vector<8x32xf32>
    %c0_61 = arith.constant 0 : index
    %c0_62 = arith.constant 0 : index
    %c0_63 = arith.constant 0 : index
    %142 = vector.load %arg3[%c0_61, %c0_62, %c0_63] : memref<1x24x32xf32, #tpu.memory_space<vmem>>, vector<1x24x32xf32>
    %143 = vector.shape_cast %142 : vector<1x24x32xf32> to vector<24x32xf32>
    %c0_64 = arith.constant 0 : index
    %c0_65 = arith.constant 0 : index
    %c0_66 = arith.constant 0 : index
    %144 = vector.load %arg5[%c0_64, %c0_65, %c0_66] : memref<1x24x32xf32, #tpu.memory_space<vmem>>, vector<1x24x32xf32>
    %145 = vector.shape_cast %144 : vector<1x24x32xf32> to vector<24x32xf32>
    %146 = arith.addf %143, %145 : vector<24x32xf32>
    %147 = arith.addf %141, %11 : vector<8x32xf32>
    %c0_67 = arith.constant 0 : index
    %c0_68 = arith.constant 0 : index
    %c0_69 = arith.constant 0 : index
    %148 = vector.load %arg6[%c0_67, %c0_68, %c0_69] : memref<1x1x24xf32, #tpu.memory_space<vmem>>, vector<1x1x24xf32>
    %149 = vector.shape_cast %148 : vector<1x1x24xf32> to vector<1x24xf32>
    %c0_70 = arith.constant 0 : index
    %c0_71 = arith.constant 0 : index
    %150 = vector.load %arg17[%c0_70, %c0_71] : memref<32x32xbf16, #tpu.memory_space<vmem>>, vector<32x32xbf16>
    %c0_72 = arith.constant 0 : index
    %c0_73 = arith.constant 0 : index
    %151 = vector.load %arg18[%c0_72, %c0_73] : memref<1x32xf32, #tpu.memory_space<vmem>>, vector<1x32xf32>
    %c0_74 = arith.constant 0 : index
    %c0_75 = arith.constant 0 : index
    %152 = vector.load %arg19[%c0_74, %c0_75] : memref<32x32xbf16, #tpu.memory_space<vmem>>, vector<32x32xbf16>
    %c0_76 = arith.constant 0 : index
    %c0_77 = arith.constant 0 : index
    %153 = vector.load %arg20[%c0_76, %c0_77] : memref<1x32xf32, #tpu.memory_space<vmem>>, vector<1x32xf32>
    %c0_78 = arith.constant 0 : index
    %c0_79 = arith.constant 0 : index
    %154 = vector.load %arg21[%c0_78, %c0_79] : memref<32x32xbf16, #tpu.memory_space<vmem>>, vector<32x32xbf16>
    %c0_80 = arith.constant 0 : index
    %c0_81 = arith.constant 0 : index
    %155 = vector.load %arg22[%c0_80, %c0_81] : memref<1x32xf32, #tpu.memory_space<vmem>>, vector<1x32xf32>
    %c0_82 = arith.constant 0 : index
    %c0_83 = arith.constant 0 : index
    %156 = vector.load %arg23[%c0_82, %c0_83] : memref<32x32xbf16, #tpu.memory_space<vmem>>, vector<32x32xbf16>
    %c0_84 = arith.constant 0 : index
    %c0_85 = arith.constant 0 : index
    %157 = vector.load %arg24[%c0_84, %c0_85] : memref<1x32xf32, #tpu.memory_space<vmem>>, vector<1x32xf32>
    %c0_86 = arith.constant 0 : index
    %c0_87 = arith.constant 0 : index
    %158 = vector.load %arg25[%c0_86, %c0_87] : memref<1x32xf32, #tpu.memory_space<vmem>>, vector<1x32xf32>
    %c0_88 = arith.constant 0 : index
    %c0_89 = arith.constant 0 : index
    %159 = vector.load %arg26[%c0_88, %c0_89] : memref<1x32xf32, #tpu.memory_space<vmem>>, vector<1x32xf32>
    %160 = arith.truncf %147 : vector<8x32xf32> to vector<8x32xbf16>
    %cst_90 = arith.constant dense<0.000000e+00> : vector<8x32xf32>
    %161 = tpu.matmul %160, %150, %cst_90 {dimension_numbers = #tpu.dot_dimension_numbers<[1], [0], [0], [1], [0, 0, 1, 1], [], []>} : vector<8x32xbf16>, vector<32x32xbf16>, vector<8x32xf32> -> vector<8x32xf32>
    %162 = vector.broadcast %151 : vector<1x32xf32> to vector<8x32xf32>
    %163 = arith.addf %161, %162 : vector<8x32xf32>
    %cst_91 = arith.constant 0.353553385 : f32
    %164 = vector.broadcast %cst_91 : f32 to vector<8x32xf32>
    %165 = arith.mulf %163, %164 : vector<8x32xf32>
    %166 = arith.truncf %146 : vector<24x32xf32> to vector<24x32xbf16>
    %cst_92 = arith.constant dense<0.000000e+00> : vector<24x32xf32>
    %167 = tpu.matmul %166, %152, %cst_92 {dimension_numbers = #tpu.dot_dimension_numbers<[1], [0], [0], [1], [0, 0, 1, 1], [], []>} : vector<24x32xbf16>, vector<32x32xbf16>, vector<24x32xf32> -> vector<24x32xf32>
    %168 = vector.broadcast %153 : vector<1x32xf32> to vector<24x32xf32>
    %169 = arith.addf %167, %168 : vector<24x32xf32>
    %170 = arith.truncf %143 : vector<24x32xf32> to vector<24x32xbf16>
    %cst_93 = arith.constant dense<0.000000e+00> : vector<24x32xf32>
    %171 = tpu.matmul %170, %154, %cst_93 {dimension_numbers = #tpu.dot_dimension_numbers<[1], [0], [0], [1], [0, 0, 1, 1], [], []>} : vector<24x32xbf16>, vector<32x32xbf16>, vector<24x32xf32> -> vector<24x32xf32>
    %172 = vector.broadcast %155 : vector<1x32xf32> to vector<24x32xf32>
    %173 = arith.addf %171, %172 : vector<24x32xf32>
    %174 = vector.extract_strided_slice %165 {offsets = [0, 0], sizes = [8, 8], strides = [1, 1]} : vector<8x32xf32> to vector<8x8xf32>
    %175 = arith.truncf %174 : vector<8x8xf32> to vector<8x8xbf16>
    %176 = vector.extract_strided_slice %169 {offsets = [0, 0], sizes = [24, 8], strides = [1, 1]} : vector<24x32xf32> to vector<24x8xf32>
    %177 = arith.truncf %176 : vector<24x8xf32> to vector<24x8xbf16>
    %178 = vector.extract_strided_slice %173 {offsets = [0, 0], sizes = [24, 8], strides = [1, 1]} : vector<24x32xf32> to vector<24x8xf32>
    %179 = arith.truncf %178 : vector<24x8xf32> to vector<24x8xbf16>
    %cst_94 = arith.constant dense<0.000000e+00> : vector<8x24xf32>
    %180 = tpu.matmul %175, %177, %cst_94 {dimension_numbers = #tpu.dot_dimension_numbers<[1], [1], [0], [0], [0, 0, 1, 0], [], []>} : vector<8x8xbf16>, vector<24x8xbf16>, vector<8x24xf32> -> vector<8x24xf32>
    %181 = vector.broadcast %149 : vector<1x24xf32> to vector<8x24xf32>
    %182 = arith.addf %180, %181 : vector<8x24xf32>
    %cst_95 = arith.constant dense<0xFF800000> : vector<8xf32>
    %183 = vector.multi_reduction <maximumf>, %182, %cst_95 [1] : vector<8x24xf32> to vector<8xf32>
    %184 = vector.shape_cast %183 : vector<8xf32> to vector<8x1xf32>
    %185 = vector.broadcast %184 : vector<8x1xf32> to vector<8x24xf32>
    %186 = arith.subf %182, %185 : vector<8x24xf32>
    %187 = math.exp %186 : vector<8x24xf32>
    %cst_96 = arith.constant dense<0.000000e+00> : vector<8xf32>
    %188 = vector.multi_reduction <add>, %187, %cst_96 [1] : vector<8x24xf32> to vector<8xf32>
    %189 = vector.shape_cast %188 : vector<8xf32> to vector<8x1xf32>
    %190 = vector.broadcast %189 : vector<8x1xf32> to vector<8x24xf32>
    %191 = arith.divf %187, %190 : vector<8x24xf32>
    %192 = arith.truncf %191 : vector<8x24xf32> to vector<8x24xbf16>
    %cst_97 = arith.constant dense<0.000000e+00> : vector<8x8xf32>
    %193 = tpu.matmul %192, %179, %cst_97 {dimension_numbers = #tpu.dot_dimension_numbers<[1], [0], [0], [1], [0, 0, 1, 1], [], []>} : vector<8x24xbf16>, vector<24x8xbf16>, vector<8x8xf32> -> vector<8x8xf32>
    %c0_98 = arith.constant 0 : index
    %c0_99 = arith.constant 0 : index
    %194 = vector.load %arg36[%c0_98, %c0_99] : memref<8x32xf32, #tpu.memory_space<vmem>>, vector<8x8xf32>
    tpu.vector_store %arg36[%c0_98, %c0_99], %193 {strides = array<i32>} : memref<8x32xf32, #tpu.memory_space<vmem>>, vector<8x8xf32>,
    %195 = vector.extract_strided_slice %165 {offsets = [0, 8], sizes = [8, 8], strides = [1, 1]} : vector<8x32xf32> to vector<8x8xf32>
    %196 = arith.truncf %195 : vector<8x8xf32> to vector<8x8xbf16>
    %197 = vector.extract_strided_slice %169 {offsets = [0, 8], sizes = [24, 8], strides = [1, 1]} : vector<24x32xf32> to vector<24x8xf32>
    %198 = arith.truncf %197 : vector<24x8xf32> to vector<24x8xbf16>
    %199 = vector.extract_strided_slice %173 {offsets = [0, 8], sizes = [24, 8], strides = [1, 1]} : vector<24x32xf32> to vector<24x8xf32>
    %200 = arith.truncf %199 : vector<24x8xf32> to vector<24x8xbf16>
    %cst_100 = arith.constant dense<0.000000e+00> : vector<8x24xf32>
    %201 = tpu.matmul %196, %198, %cst_100 {dimension_numbers = #tpu.dot_dimension_numbers<[1], [1], [0], [0], [0, 0, 1, 0], [], []>} : vector<8x8xbf16>, vector<24x8xbf16>, vector<8x24xf32> -> vector<8x24xf32>
    %202 = vector.broadcast %149 : vector<1x24xf32> to vector<8x24xf32>
    %203 = arith.addf %201, %202 : vector<8x24xf32>
    %cst_101 = arith.constant dense<0xFF800000> : vector<8xf32>
    %204 = vector.multi_reduction <maximumf>, %203, %cst_101 [1] : vector<8x24xf32> to vector<8xf32>
    %205 = vector.shape_cast %204 : vector<8xf32> to vector<8x1xf32>
    %206 = vector.broadcast %205 : vector<8x1xf32> to vector<8x24xf32>
    %207 = arith.subf %203, %206 : vector<8x24xf32>
    %208 = math.exp %207 : vector<8x24xf32>
    %cst_102 = arith.constant dense<0.000000e+00> : vector<8xf32>
    %209 = vector.multi_reduction <add>, %208, %cst_102 [1] : vector<8x24xf32> to vector<8xf32>
    %210 = vector.shape_cast %209 : vector<8xf32> to vector<8x1xf32>
    %211 = vector.broadcast %210 : vector<8x1xf32> to vector<8x24xf32>
    %212 = arith.divf %208, %211 : vector<8x24xf32>
    %213 = arith.truncf %212 : vector<8x24xf32> to vector<8x24xbf16>
    %cst_103 = arith.constant dense<0.000000e+00> : vector<8x8xf32>
    %214 = tpu.matmul %213, %200, %cst_103 {dimension_numbers = #tpu.dot_dimension_numbers<[1], [0], [0], [1], [0, 0, 1, 1], [], []>} : vector<8x24xbf16>, vector<24x8xbf16>, vector<8x8xf32> -> vector<8x8xf32>
    %c0_104 = arith.constant 0 : index
    %c8_105 = arith.constant 8 : index
    %215 = vector.load %arg36[%c0_104, %c8_105] : memref<8x32xf32, #tpu.memory_space<vmem>>, vector<8x8xf32>
    tpu.vector_store %arg36[%c0_104, %c8_105], %214 {strides = array<i32>} : memref<8x32xf32, #tpu.memory_space<vmem>>, vector<8x8xf32>,
    %216 = vector.extract_strided_slice %165 {offsets = [0, 16], sizes = [8, 8], strides = [1, 1]} : vector<8x32xf32> to vector<8x8xf32>
    %217 = arith.truncf %216 : vector<8x8xf32> to vector<8x8xbf16>
    %218 = vector.extract_strided_slice %169 {offsets = [0, 16], sizes = [24, 8], strides = [1, 1]} : vector<24x32xf32> to vector<24x8xf32>
    %219 = arith.truncf %218 : vector<24x8xf32> to vector<24x8xbf16>
    %220 = vector.extract_strided_slice %173 {offsets = [0, 16], sizes = [24, 8], strides = [1, 1]} : vector<24x32xf32> to vector<24x8xf32>
    %221 = arith.truncf %220 : vector<24x8xf32> to vector<24x8xbf16>
    %cst_106 = arith.constant dense<0.000000e+00> : vector<8x24xf32>
    %222 = tpu.matmul %217, %219, %cst_106 {dimension_numbers = #tpu.dot_dimension_numbers<[1], [1], [0], [0], [0, 0, 1, 0], [], []>} : vector<8x8xbf16>, vector<24x8xbf16>, vector<8x24xf32> -> vector<8x24xf32>
    %223 = vector.broadcast %149 : vector<1x24xf32> to vector<8x24xf32>
    %224 = arith.addf %222, %223 : vector<8x24xf32>
    %cst_107 = arith.constant dense<0xFF800000> : vector<8xf32>
    %225 = vector.multi_reduction <maximumf>, %224, %cst_107 [1] : vector<8x24xf32> to vector<8xf32>
    %226 = vector.shape_cast %225 : vector<8xf32> to vector<8x1xf32>
    %227 = vector.broadcast %226 : vector<8x1xf32> to vector<8x24xf32>
    %228 = arith.subf %224, %227 : vector<8x24xf32>
    %229 = math.exp %228 : vector<8x24xf32>
    %cst_108 = arith.constant dense<0.000000e+00> : vector<8xf32>
    %230 = vector.multi_reduction <add>, %229, %cst_108 [1] : vector<8x24xf32> to vector<8xf32>
    %231 = vector.shape_cast %230 : vector<8xf32> to vector<8x1xf32>
    %232 = vector.broadcast %231 : vector<8x1xf32> to vector<8x24xf32>
    %233 = arith.divf %229, %232 : vector<8x24xf32>
    %234 = arith.truncf %233 : vector<8x24xf32> to vector<8x24xbf16>
    %cst_109 = arith.constant dense<0.000000e+00> : vector<8x8xf32>
    %235 = tpu.matmul %234, %221, %cst_109 {dimension_numbers = #tpu.dot_dimension_numbers<[1], [0], [0], [1], [0, 0, 1, 1], [], []>} : vector<8x24xbf16>, vector<24x8xbf16>, vector<8x8xf32> -> vector<8x8xf32>
    %c0_110 = arith.constant 0 : index
    %c16_111 = arith.constant 16 : index
    %236 = vector.load %arg36[%c0_110, %c16_111] : memref<8x32xf32, #tpu.memory_space<vmem>>, vector<8x8xf32>
    tpu.vector_store %arg36[%c0_110, %c16_111], %235 {strides = array<i32>} : memref<8x32xf32, #tpu.memory_space<vmem>>, vector<8x8xf32>,
    %237 = vector.extract_strided_slice %165 {offsets = [0, 24], sizes = [8, 8], strides = [1, 1]} : vector<8x32xf32> to vector<8x8xf32>
    %238 = arith.truncf %237 : vector<8x8xf32> to vector<8x8xbf16>
    %239 = vector.extract_strided_slice %169 {offsets = [0, 24], sizes = [24, 8], strides = [1, 1]} : vector<24x32xf32> to vector<24x8xf32>
    %240 = arith.truncf %239 : vector<24x8xf32> to vector<24x8xbf16>
    %241 = vector.extract_strided_slice %173 {offsets = [0, 24], sizes = [24, 8], strides = [1, 1]} : vector<24x32xf32> to vector<24x8xf32>
    %242 = arith.truncf %241 : vector<24x8xf32> to vector<24x8xbf16>
    %cst_112 = arith.constant dense<0.000000e+00> : vector<8x24xf32>
    %243 = tpu.matmul %238, %240, %cst_112 {dimension_numbers = #tpu.dot_dimension_numbers<[1], [1], [0], [0], [0, 0, 1, 0], [], []>} : vector<8x8xbf16>, vector<24x8xbf16>, vector<8x24xf32> -> vector<8x24xf32>
    %244 = vector.broadcast %149 : vector<1x24xf32> to vector<8x24xf32>
    %245 = arith.addf %243, %244 : vector<8x24xf32>
    %cst_113 = arith.constant dense<0xFF800000> : vector<8xf32>
    %246 = vector.multi_reduction <maximumf>, %245, %cst_113 [1] : vector<8x24xf32> to vector<8xf32>
    %247 = vector.shape_cast %246 : vector<8xf32> to vector<8x1xf32>
    %248 = vector.broadcast %247 : vector<8x1xf32> to vector<8x24xf32>
    %249 = arith.subf %245, %248 : vector<8x24xf32>
    %250 = math.exp %249 : vector<8x24xf32>
    %cst_114 = arith.constant dense<0.000000e+00> : vector<8xf32>
    %251 = vector.multi_reduction <add>, %250, %cst_114 [1] : vector<8x24xf32> to vector<8xf32>
    %252 = vector.shape_cast %251 : vector<8xf32> to vector<8x1xf32>
    %253 = vector.broadcast %252 : vector<8x1xf32> to vector<8x24xf32>
    %254 = arith.divf %250, %253 : vector<8x24xf32>
    %255 = arith.truncf %254 : vector<8x24xf32> to vector<8x24xbf16>
    %cst_115 = arith.constant dense<0.000000e+00> : vector<8x8xf32>
    %256 = tpu.matmul %255, %242, %cst_115 {dimension_numbers = #tpu.dot_dimension_numbers<[1], [0], [0], [1], [0, 0, 1, 1], [], []>} : vector<8x24xbf16>, vector<24x8xbf16>, vector<8x8xf32> -> vector<8x8xf32>
    %c0_116 = arith.constant 0 : index
    %c24_117 = arith.constant 24 : index
    %257 = vector.load %arg36[%c0_116, %c24_117] : memref<8x32xf32, #tpu.memory_space<vmem>>, vector<8x8xf32>
    tpu.vector_store %arg36[%c0_116, %c24_117], %256 {strides = array<i32>} : memref<8x32xf32, #tpu.memory_space<vmem>>, vector<8x8xf32>,
    %c0_118 = arith.constant 0 : index
    %c0_119 = arith.constant 0 : index
    %258 = vector.load %arg36[%c0_118, %c0_119] : memref<8x32xf32, #tpu.memory_space<vmem>>, vector<8x32xf32>
    %259 = arith.truncf %258 : vector<8x32xf32> to vector<8x32xbf16>
    %cst_120 = arith.constant dense<0.000000e+00> : vector<8x32xf32>
    %260 = tpu.matmul %259, %156, %cst_120 {dimension_numbers = #tpu.dot_dimension_numbers<[1], [0], [0], [1], [0, 0, 1, 1], [], []>} : vector<8x32xbf16>, vector<32x32xbf16>, vector<8x32xf32> -> vector<8x32xf32>
    %261 = vector.broadcast %157 : vector<1x32xf32> to vector<8x32xf32>
    %262 = arith.addf %260, %261 : vector<8x32xf32>
    %263 = arith.addf %141, %262 : vector<8x32xf32>
    %cst_121 = arith.constant dense<0.000000e+00> : vector<8xf32>
    %264 = vector.multi_reduction <add>, %263, %cst_121 [1] : vector<8x32xf32> to vector<8xf32>
    %265 = vector.shape_cast %264 : vector<8xf32> to vector<8x1xf32>
    %cst_122 = arith.constant 3.200000e+01 : f32
    %266 = vector.broadcast %cst_122 : f32 to vector<8x1xf32>
    %267 = arith.divf %265, %266 : vector<8x1xf32>
    %268 = vector.broadcast %267 : vector<8x1xf32> to vector<8x32xf32>
    %269 = arith.subf %263, %268 : vector<8x32xf32>
    %270 = arith.mulf %269, %269 : vector<8x32xf32>
    %cst_123 = arith.constant dense<0.000000e+00> : vector<8xf32>
    %271 = vector.multi_reduction <add>, %270, %cst_123 [1] : vector<8x32xf32> to vector<8xf32>
    %272 = vector.shape_cast %271 : vector<8xf32> to vector<8x1xf32>
    %cst_124 = arith.constant 3.200000e+01 : f32
    %273 = vector.broadcast %cst_124 : f32 to vector<8x1xf32>
    %274 = arith.divf %272, %273 : vector<8x1xf32>
    %275 = vector.broadcast %267 : vector<8x1xf32> to vector<8x32xf32>
    %276 = arith.subf %263, %275 : vector<8x32xf32>
    %cst_125 = arith.constant 9.99999974E-6 : f32
    %277 = vector.broadcast %cst_125 : f32 to vector<8x1xf32>
    %278 = arith.addf %274, %277 : vector<8x1xf32>
    %279 = math.rsqrt %278 : vector<8x1xf32>
    %280 = vector.broadcast %279 : vector<8x1xf32> to vector<8x32xf32>
    %281 = arith.mulf %276, %280 : vector<8x32xf32>
    %282 = vector.broadcast %158 : vector<1x32xf32> to vector<8x32xf32>
    %283 = arith.mulf %281, %282 : vector<8x32xf32>
    %284 = vector.broadcast %159 : vector<1x32xf32> to vector<8x32xf32>
    %285 = arith.addf %283, %284 : vector<8x32xf32>
    %286 = arith.truncf %285 : vector<8x32xf32> to vector<8x32xbf16>
    %c0_126 = arith.constant 0 : index
    %c0_127 = arith.constant 0 : index
    %287 = vector.load %arg27[%c0_126, %c0_127] : memref<32x64xbf16, #tpu.memory_space<vmem>>, vector<32x64xbf16>
    %cst_128 = arith.constant dense<0.000000e+00> : vector<8x64xf32>
    %288 = tpu.matmul %286, %287, %cst_128 {dimension_numbers = #tpu.dot_dimension_numbers<[1], [0], [0], [1], [0, 0, 1, 1], [], []>} : vector<8x32xbf16>, vector<32x64xbf16>, vector<8x64xf32> -> vector<8x64xf32>
    %c0_129 = arith.constant 0 : index
    %c0_130 = arith.constant 0 : index
    %289 = vector.load %arg28[%c0_129, %c0_130] : memref<1x64xf32, #tpu.memory_space<vmem>>, vector<1x64xf32>
    %290 = vector.broadcast %289 : vector<1x64xf32> to vector<8x64xf32>
    %291 = arith.addf %288, %290 : vector<8x64xf32>
    %cst_131 = arith.constant 0.000000e+00 : f32
    %292 = vector.broadcast %cst_131 : f32 to vector<8x64xf32>
    %293 = arith.maximumf %291, %292 : vector<8x64xf32>
    %294 = arith.truncf %293 : vector<8x64xf32> to vector<8x64xbf16>
    %c0_132 = arith.constant 0 : index
    %c0_133 = arith.constant 0 : index
    %295 = vector.load %arg29[%c0_132, %c0_133] : memref<64x32xbf16, #tpu.memory_space<vmem>>, vector<64x32xbf16>
    %cst_134 = arith.constant dense<0.000000e+00> : vector<8x32xf32>
    %296 = tpu.matmul %294, %295, %cst_134 {dimension_numbers = #tpu.dot_dimension_numbers<[1], [0], [0], [1], [0, 0, 1, 1], [], []>} : vector<8x64xbf16>, vector<64x32xbf16>, vector<8x32xf32> -> vector<8x32xf32>
    %c0_135 = arith.constant 0 : index
    %c0_136 = arith.constant 0 : index
    %297 = vector.load %arg30[%c0_135, %c0_136] : memref<1x32xf32, #tpu.memory_space<vmem>>, vector<1x32xf32>
    %298 = vector.broadcast %297 : vector<1x32xf32> to vector<8x32xf32>
    %299 = arith.addf %296, %298 : vector<8x32xf32>
    %300 = arith.addf %285, %299 : vector<8x32xf32>
    %c0_137 = arith.constant 0 : index
    %c0_138 = arith.constant 0 : index
    %301 = vector.load %arg31[%c0_137, %c0_138] : memref<1x32xf32, #tpu.memory_space<vmem>>, vector<1x32xf32>
    %c0_139 = arith.constant 0 : index
    %c0_140 = arith.constant 0 : index
    %302 = vector.load %arg32[%c0_139, %c0_140] : memref<1x32xf32, #tpu.memory_space<vmem>>, vector<1x32xf32>
    %cst_141 = arith.constant dense<0.000000e+00> : vector<8xf32>
    %303 = vector.multi_reduction <add>, %300, %cst_141 [1] : vector<8x32xf32> to vector<8xf32>
    %304 = vector.shape_cast %303 : vector<8xf32> to vector<8x1xf32>
    %cst_142 = arith.constant 3.200000e+01 : f32
    %305 = vector.broadcast %cst_142 : f32 to vector<8x1xf32>
    %306 = arith.divf %304, %305 : vector<8x1xf32>
    %307 = vector.broadcast %306 : vector<8x1xf32> to vector<8x32xf32>
    %308 = arith.subf %300, %307 : vector<8x32xf32>
    %309 = arith.mulf %308, %308 : vector<8x32xf32>
    %cst_143 = arith.constant dense<0.000000e+00> : vector<8xf32>
    %310 = vector.multi_reduction <add>, %309, %cst_143 [1] : vector<8x32xf32> to vector<8xf32>
    %311 = vector.shape_cast %310 : vector<8xf32> to vector<8x1xf32>
    %cst_144 = arith.constant 3.200000e+01 : f32
    %312 = vector.broadcast %cst_144 : f32 to vector<8x1xf32>
    %313 = arith.divf %311, %312 : vector<8x1xf32>
    %314 = vector.broadcast %306 : vector<8x1xf32> to vector<8x32xf32>
    %315 = arith.subf %300, %314 : vector<8x32xf32>
    %cst_145 = arith.constant 9.99999974E-6 : f32
    %316 = vector.broadcast %cst_145 : f32 to vector<8x1xf32>
    %317 = arith.addf %313, %316 : vector<8x1xf32>
    %318 = math.rsqrt %317 : vector<8x1xf32>
    %319 = vector.broadcast %318 : vector<8x1xf32> to vector<8x32xf32>
    %320 = arith.mulf %315, %319 : vector<8x32xf32>
    %321 = vector.broadcast %301 : vector<1x32xf32> to vector<8x32xf32>
    %322 = arith.mulf %320, %321 : vector<8x32xf32>
    %323 = vector.broadcast %302 : vector<1x32xf32> to vector<8x32xf32>
    %324 = arith.addf %322, %323 : vector<8x32xf32>
    %c0_146 = arith.constant 0 : index
    %c0_147 = arith.constant 0 : index
    %325 = vector.load %arg33[%c0_146, %c0_147] : memref<1x32xf32, #tpu.memory_space<vmem>>, vector<1x32xf32>
    %c0_148 = arith.constant 0 : index
    %c0_149 = arith.constant 0 : index
    %326 = vector.load %arg34[%c0_148, %c0_149] : memref<1x32xf32, #tpu.memory_space<vmem>>, vector<1x32xf32>
    %cst_150 = arith.constant dense<0.000000e+00> : vector<8xf32>
    %327 = vector.multi_reduction <add>, %324, %cst_150 [1] : vector<8x32xf32> to vector<8xf32>
    %328 = vector.shape_cast %327 : vector<8xf32> to vector<8x1xf32>
    %cst_151 = arith.constant 3.200000e+01 : f32
    %329 = vector.broadcast %cst_151 : f32 to vector<8x1xf32>
    %330 = arith.divf %328, %329 : vector<8x1xf32>
    %331 = vector.broadcast %330 : vector<8x1xf32> to vector<8x32xf32>
    %332 = arith.subf %324, %331 : vector<8x32xf32>
    %333 = arith.mulf %332, %332 : vector<8x32xf32>
    %cst_152 = arith.constant dense<0.000000e+00> : vector<8xf32>
    %334 = vector.multi_reduction <add>, %333, %cst_152 [1] : vector<8x32xf32> to vector<8xf32>
    %335 = vector.shape_cast %334 : vector<8xf32> to vector<8x1xf32>
    %cst_153 = arith.constant 3.200000e+01 : f32
    %336 = vector.broadcast %cst_153 : f32 to vector<8x1xf32>
    %337 = arith.divf %335, %336 : vector<8x1xf32>
    %338 = vector.broadcast %330 : vector<8x1xf32> to vector<8x32xf32>
    %339 = arith.subf %324, %338 : vector<8x32xf32>
    %cst_154 = arith.constant 9.99999974E-6 : f32
    %340 = vector.broadcast %cst_154 : f32 to vector<8x1xf32>
    %341 = arith.addf %337, %340 : vector<8x1xf32>
    %342 = math.rsqrt %341 : vector<8x1xf32>
    %343 = vector.broadcast %342 : vector<8x1xf32> to vector<8x32xf32>
    %344 = arith.mulf %339, %343 : vector<8x32xf32>
    %345 = vector.broadcast %325 : vector<1x32xf32> to vector<8x32xf32>
    %346 = arith.mulf %344, %345 : vector<8x32xf32>
    %347 = vector.broadcast %326 : vector<1x32xf32> to vector<8x32xf32>
    %348 = arith.addf %346, %347 : vector<8x32xf32>
    %c0_155 = arith.constant 0 : index
    %c0_156 = arith.constant 0 : index
    %c0_157 = arith.constant 0 : index
    %349 = vector.load %arg35[%c0_155, %c0_156, %c0_157] : memref<1x8x32xf32, #tpu.memory_space<vmem>>, vector<1x8x32xf32>
    %350 = vector.shape_cast %349 : vector<1x8x32xf32> to vector<8x32xf32>
    %351 = vector.shape_cast %348 : vector<8x32xf32> to vector<1x8x32xf32>
    tpu.vector_store %arg35[%c0_155, %c0_156, %c0_157], %351 {strides = array<i32>} : memref<1x8x32xf32, #tpu.memory_space<vmem>>, vector<1x8x32xf32>,
    return
  }
  func.func @transform_0(%arg0: i32, %arg1: i32) -> (i32, i32, i32) {
    %c0_i32 = arith.constant 0 : i32
    %c0_i32_0 = arith.constant 0 : i32
    %c0_i32_1 = arith.constant 0 : i32
    return %arg0, %c0_i32, %c0_i32_0 : i32, i32, i32
  }
  func.func @transform_1(%arg0: i32, %arg1: i32) -> (i32, i32, i32) {
    %c0_i32 = arith.constant 0 : i32
    %c0_i32_0 = arith.constant 0 : i32
    %c0_i32_1 = arith.constant 0 : i32
    return %arg0, %c0_i32, %c0_i32_0 : i32, i32, i32
  }
  func.func @transform_2(%arg0: i32, %arg1: i32) -> (i32, i32, i32) {
    %c0_i32 = arith.constant 0 : i32
    %c0_i32_0 = arith.constant 0 : i32
    %c0_i32_1 = arith.constant 0 : i32
    return %arg0, %c0_i32, %c0_i32_0 : i32, i32, i32
  }
  func.func @transform_3(%arg0: i32, %arg1: i32) -> (i32, i32, i32) {
    %c0_i32 = arith.constant 0 : i32
    %c0_i32_0 = arith.constant 0 : i32
    %c0_i32_1 = arith.constant 0 : i32
    return %arg0, %c0_i32, %c0_i32_0 : i32, i32, i32
  }
  func.func @transform_4(%arg0: i32, %arg1: i32) -> (i32, i32, i32) {
    %c0_i32 = arith.constant 0 : i32
    %c0_i32_0 = arith.constant 0 : i32
    %c0_i32_1 = arith.constant 0 : i32
    return %arg0, %c0_i32, %c0_i32_0 : i32, i32, i32
  }
  func.func @transform_5(%arg0: i32, %arg1: i32) -> (i32, i32) {
    %c0_i32 = arith.constant 0 : i32
    %c0_i32_0 = arith.constant 0 : i32
    %c0_i32_1 = arith.constant 0 : i32
    return %c0_i32, %c0_i32_0 : i32, i32
  }
  func.func @transform_6(%arg0: i32, %arg1: i32) -> (i32, i32) {
    %c0_i32 = arith.constant 0 : i32
    %c0_i32_0 = arith.constant 0 : i32
    %c0_i32_1 = arith.constant 0 : i32
    return %c0_i32, %c0_i32_0 : i32, i32
  }
  func.func @transform_7(%arg0: i32, %arg1: i32) -> (i32, i32) {
    %c0_i32 = arith.constant 0 : i32
    %c0_i32_0 = arith.constant 0 : i32
    %c0_i32_1 = arith.constant 0 : i32
    return %c0_i32, %c0_i32_0 : i32, i32
  }
  func.func @transform_8(%arg0: i32, %arg1: i32) -> (i32, i32) {
    %c0_i32 = arith.constant 0 : i32
    %c0_i32_0 = arith.constant 0 : i32
    %c0_i32_1 = arith.constant 0 : i32
    return %c0_i32, %c0_i32_0 : i32, i32
  }
  func.func @transform_9(%arg0: i32, %arg1: i32) -> (i32, i32) {
    %c0_i32 = arith.constant 0 : i32
    %c0_i32_0 = arith.constant 0 : i32
    %c0_i32_1 = arith.constant 0 : i32
    return %c0_i32, %c0_i32_0 : i32, i32
  }
  func.func @transform_10(%arg0: i32, %arg1: i32) -> (i32, i32) {
    %c0_i32 = arith.constant 0 : i32
    %c0_i32_0 = arith.constant 0 : i32
    %c0_i32_1 = arith.constant 0 : i32
    return %c0_i32, %c0_i32_0 : i32, i32
  }
  func.func @transform_11(%arg0: i32, %arg1: i32) -> (i32, i32) {
    %c0_i32 = arith.constant 0 : i32
    %c0_i32_0 = arith.constant 0 : i32
    %c0_i32_1 = arith.constant 0 : i32
    return %c0_i32, %c0_i32_0 : i32, i32
  }
  func.func @transform_12(%arg0: i32, %arg1: i32) -> (i32, i32) {
    %c0_i32 = arith.constant 0 : i32
    %c0_i32_0 = arith.constant 0 : i32
    %c0_i32_1 = arith.constant 0 : i32
    return %c0_i32, %c0_i32_0 : i32, i32
  }
  func.func @transform_13(%arg0: i32, %arg1: i32) -> (i32, i32) {
    %c0_i32 = arith.constant 0 : i32
    %c0_i32_0 = arith.constant 0 : i32
    %c0_i32_1 = arith.constant 0 : i32
    return %c0_i32, %c0_i32_0 : i32, i32
  }
  func.func @transform_14(%arg0: i32, %arg1: i32) -> (i32, i32) {
    %c0_i32 = arith.constant 0 : i32
    %c0_i32_0 = arith.constant 0 : i32
    %c0_i32_1 = arith.constant 0 : i32
    return %c0_i32, %c0_i32_0 : i32, i32
  }
  func.func @transform_15(%arg0: i32, %arg1: i32) -> (i32, i32) {
    %c0_i32 = arith.constant 0 : i32
    %c0_i32_0 = arith.constant 0 : i32
    %c0_i32_1 = arith.constant 0 : i32
    return %c0_i32, %c0_i32_0 : i32, i32
  }
  func.func @transform_16(%arg0: i32, %arg1: i32) -> (i32, i32) {
    %c0_i32 = arith.constant 0 : i32
    %c0_i32_0 = arith.constant 0 : i32
    %c0_i32_1 = arith.constant 0 : i32
    return %c0_i32, %c0_i32_0 : i32, i32
  }
  func.func @transform_17(%arg0: i32, %arg1: i32) -> (i32, i32) {
    %c0_i32 = arith.constant 0 : i32
    %c0_i32_0 = arith.constant 0 : i32
    %c0_i32_1 = arith.constant 0 : i32
    return %c0_i32, %c0_i32_0 : i32, i32
  }
  func.func @transform_18(%arg0: i32, %arg1: i32) -> (i32, i32) {
    %c0_i32 = arith.constant 0 : i32
    %c0_i32_0 = arith.constant 0 : i32
    %c0_i32_1 = arith.constant 0 : i32
    return %c0_i32, %c0_i32_0 : i32, i32
  }
  func.func @transform_19(%arg0: i32, %arg1: i32) -> (i32, i32) {
    %c0_i32 = arith.constant 0 : i32
    %c0_i32_0 = arith.constant 0 : i32
    %c0_i32_1 = arith.constant 0 : i32
    return %c0_i32, %c0_i32_0 : i32, i32
  }
  func.func @transform_20(%arg0: i32, %arg1: i32) -> (i32, i32) {
    %c0_i32 = arith.constant 0 : i32
    %c0_i32_0 = arith.constant 0 : i32
    %c0_i32_1 = arith.constant 0 : i32
    return %c0_i32, %c0_i32_0 : i32, i32
  }
  func.func @transform_21(%arg0: i32, %arg1: i32) -> (i32, i32) {
    %c0_i32 = arith.constant 0 : i32
    %c0_i32_0 = arith.constant 0 : i32
    %c0_i32_1 = arith.constant 0 : i32
    return %c0_i32, %c0_i32_0 : i32, i32
  }
  func.func @transform_22(%arg0: i32, %arg1: i32) -> (i32, i32) {
    %c0_i32 = arith.constant 0 : i32
    %c0_i32_0 = arith.constant 0 : i32
    %c0_i32_1 = arith.constant 0 : i32
    return %c0_i32, %c0_i32_0 : i32, i32
  }
  func.func @transform_23(%arg0: i32, %arg1: i32) -> (i32, i32) {
    %c0_i32 = arith.constant 0 : i32
    %c0_i32_0 = arith.constant 0 : i32
    %c0_i32_1 = arith.constant 0 : i32
    return %c0_i32, %c0_i32_0 : i32, i32
  }
  func.func @transform_24(%arg0: i32, %arg1: i32) -> (i32, i32) {
    %c0_i32 = arith.constant 0 : i32
    %c0_i32_0 = arith.constant 0 : i32
    %c0_i32_1 = arith.constant 0 : i32
    return %c0_i32, %c0_i32_0 : i32, i32
  }
  func.func @transform_25(%arg0: i32, %arg1: i32) -> (i32, i32) {
    %c0_i32 = arith.constant 0 : i32
    %c0_i32_0 = arith.constant 0 : i32
    %c0_i32_1 = arith.constant 0 : i32
    return %c0_i32, %c0_i32_0 : i32, i32
  }
  func.func @transform_26(%arg0: i32, %arg1: i32) -> (i32, i32) {
    %c0_i32 = arith.constant 0 : i32
    %c0_i32_0 = arith.constant 0 : i32
    %c0_i32_1 = arith.constant 0 : i32
    return %c0_i32, %c0_i32_0 : i32, i32
  }
  func.func @transform_27(%arg0: i32, %arg1: i32) -> (i32, i32) {
    %c0_i32 = arith.constant 0 : i32
    %c0_i32_0 = arith.constant 0 : i32
    %c0_i32_1 = arith.constant 0 : i32
    return %c0_i32, %c0_i32_0 : i32, i32
  }
  func.func @transform_28(%arg0: i32, %arg1: i32) -> (i32, i32) {
    %c0_i32 = arith.constant 0 : i32
    %c0_i32_0 = arith.constant 0 : i32
    %c0_i32_1 = arith.constant 0 : i32
    return %c0_i32, %c0_i32_0 : i32, i32
  }
  func.func @transform_29(%arg0: i32, %arg1: i32) -> (i32, i32) {
    %c0_i32 = arith.constant 0 : i32
    %c0_i32_0 = arith.constant 0 : i32
    %c0_i32_1 = arith.constant 0 : i32
    return %c0_i32, %c0_i32_0 : i32, i32
  }
  func.func @transform_30(%arg0: i32, %arg1: i32) -> (i32, i32) {
    %c0_i32 = arith.constant 0 : i32
    %c0_i32_0 = arith.constant 0 : i32
    %c0_i32_1 = arith.constant 0 : i32
    return %c0_i32, %c0_i32_0 : i32, i32
  }
  func.func @transform_31(%arg0: i32, %arg1: i32) -> (i32, i32) {
    %c0_i32 = arith.constant 0 : i32
    %c0_i32_0 = arith.constant 0 : i32
    %c0_i32_1 = arith.constant 0 : i32
    return %c0_i32, %c0_i32_0 : i32, i32
  }
  func.func @transform_32(%arg0: i32, %arg1: i32) -> (i32, i32) {
    %c0_i32 = arith.constant 0 : i32
    %c0_i32_0 = arith.constant 0 : i32
    %c0_i32_1 = arith.constant 0 : i32
    return %c0_i32, %c0_i32_0 : i32, i32
  }
  func.func @transform_33(%arg0: i32, %arg1: i32) -> (i32, i32, i32) {
    %c0_i32 = arith.constant 0 : i32
    %c0_i32_0 = arith.constant 0 : i32
    return %arg0, %arg1, %c0_i32 : i32, i32, i32
  }
}

</mosaic_0001>

<llo_original>
// kernel: transformer_decoder_forward.2
$region0: #{transformer_decoder_forward.2}
  #allocation0 [shape = 'u32[]', space=smem, size = 0x4, offset = 0x4, fixed_abs, tag = 'smem constant byte address 0x4 - core index']
  #allocation1 [shape = 'u32[144,128]{1,0:T(1,128)}', space=vmem, size = 0x12000, scoped, tag = 'internal scratch']
  #allocation2 [shape = 'f32[8,32]{1,0:T(8,128)}', space=vmem, size = 0x1000, scoped, tag = 'scratch operand']
  %s0 = inlined_call_operand.smem [shape: u32[32], index: -1, kind: input, shape index: {}]
  %s1 = sld [smem:[%s0]]
  %s2 = scalar_lea.smem %s0, 1
  %s3 = sld [smem:[%s2]]
  %s4 = scalar_lea.smem %s0, 2
  %s5 = sld [smem:[%s4]]
  %s6 = scalar_lea.smem %s0, 3
  %s7 = sld [smem:[%s6]]
  %s8 = scalar_lea.smem %s0, 4
  %s9 = sld [smem:[%s8]]
  %s10 = scalar_lea.smem %s0, 5
  %s11 = sld [smem:[%s10]]
  %s12 = scalar_lea.smem %s0, 6
  %s13 = sld [smem:[%s12]]
  %s14 = scalar_lea.smem %s0, 7
  %s15 = sld [smem:[%s14]]
  %s16 = scalar_lea.smem %s0, 8
  %s17 = sld [smem:[%s16]]
  %s18 = scalar_lea.smem %s0, 9
  %s19 = sld [smem:[%s18]]
  %s20 = scalar_lea.smem %s0, 10
  %s21 = sld [smem:[%s20]]
  %s22 = scalar_lea.smem %s0, 11
  %s23 = sld [smem:[%s22]]
  %s24 = scalar_lea.smem %s0, 12
  %s25 = sld [smem:[%s24]]
  %s26 = scalar_lea.smem %s0, 13
  %s27 = sld [smem:[%s26]]
  %s28 = scalar_lea.smem %s0, 14
  %s29 = sld [smem:[%s28]]
  %s30 = scalar_lea.smem %s0, 15
  %s31 = sld [smem:[%s30]]
  %s32 = scalar_lea.smem %s0, 16
  %s33 = sld [smem:[%s32]]
  %s34 = scalar_lea.smem %s0, 17
  %s35 = sld [smem:[%s34]]
  %s36 = scalar_lea.smem %s0, 18
  %s37 = sld [smem:[%s36]]
  %s38 = scalar_lea.smem %s0, 19
  %s39 = sld [smem:[%s38]]
  %s40 = scalar_lea.smem %s0, 20
  %s41 = sld [smem:[%s40]]
  %s42 = scalar_lea.smem %s0, 21
  %s43 = sld [smem:[%s42]]
  %s44 = scalar_lea.smem %s0, 22
  %s45 = sld [smem:[%s44]]
  %s46 = scalar_lea.smem %s0, 23
  %s47 = sld [smem:[%s46]]
  %s48 = scalar_lea.smem %s0, 24
  %s49 = sld [smem:[%s48]]
  %s50 = scalar_lea.smem %s0, 25
  %s51 = sld [smem:[%s50]]
  %s52 = scalar_lea.smem %s0, 26
  %s53 = sld [smem:[%s52]]
  %s54 = scalar_lea.smem %s0, 27
  %s55 = sld [smem:[%s54]]
  %s56 = scalar_lea.smem %s0, 28
  %s57 = sld [smem:[%s56]]
  %s58 = scalar_lea.smem %s0, 29
  %s59 = sld [smem:[%s58]]
  %s60 = scalar_lea.smem %s0, 30
  %s61 = sld [smem:[%s60]]
  %s62 = scalar_lea.smem %s0, 31
  %s63 = sld [smem:[%s62]]
  %s64 = sld [smem:[#allocation0]]
  $region157: #{transformer_decoder_forward.2} parent=0
    _
  %s66 = ssub.s32 1, %s64
  %s67 = scalar_select 0, %s66, %s64
  loop: start=0, step=1, limit=6
  $region2: #{transformer_decoder_forward.2} parent=0 // loop_pre_header
    _
  $region3: #{transformer_decoder_forward.2} parent=0 // loop_header
    %s69 = sphi 0, %s73
    %p70 = scmp.ge.s32.totalorder %s69, 6
    %s76 = sphi 0, %s88
    %s77 = sphi 0, %s84
    %s78 = sphi 0, %s76
    %s79 = sphi 0, %s77
    %s80 = sphi 0, %s78
    %s81 = sphi 0, %s79
    %s91 = sphi 0, %s93
    %s94 = sphi 0, %s91
    %s95 = sphi 0, %s94
    %s111 = sphi 0, %s95
    %s117 = sphi 0, %s119
    %s120 = sphi 0, %s117
    %s121 = sphi 0, %s120
    %s137 = sphi 0, %s121
    %s143 = sphi 0, %s145
    %s146 = sphi 0, %s143
    %s147 = sphi 0, %s146
    %s163 = sphi 0, %s147
    %s169 = sphi 0, %s171
    %s172 = sphi 0, %s169
    %s173 = sphi 0, %s172
    %s189 = sphi 0, %s173
    %s195 = sphi 0, %s197
    %s198 = sphi 0, %s195
    %s199 = sphi 0, %s198
    %s215 = sphi 0, %s199
    %s219 = sphi 0, %s219
    %s221 = sphi 0, %s219
    %s222 = sphi 0, %s221
    %s236 = sphi 0, %s222
    %s240 = sphi 0, %s240
    %s242 = sphi 0, %s240
    %s243 = sphi 0, %s242
    %s257 = sphi 0, %s243
    %s261 = sphi 0, %s261
    %s263 = sphi 0, %s261
    %s264 = sphi 0, %s263
    %s278 = sphi 0, %s264
    %s282 = sphi 0, %s282
    %s284 = sphi 0, %s282
    %s285 = sphi 0, %s284
    %s299 = sphi 0, %s285
    %s303 = sphi 0, %s303
    %s305 = sphi 0, %s303
    %s306 = sphi 0, %s305
    %s320 = sphi 0, %s306
    %s324 = sphi 0, %s324
    %s326 = sphi 0, %s324
    %s327 = sphi 0, %s326
    %s341 = sphi 0, %s327
    %s345 = sphi 0, %s345
    %s347 = sphi 0, %s345
    %s348 = sphi 0, %s347
    %s362 = sphi 0, %s348
    %s366 = sphi 0, %s366
    %s368 = sphi 0, %s366
    %s369 = sphi 0, %s368
    %s383 = sphi 0, %s369
    %s387 = sphi 0, %s387
    %s389 = sphi 0, %s387
    %s390 = sphi 0, %s389
    %s404 = sphi 0, %s390
    %s408 = sphi 0, %s408
    %s410 = sphi 0, %s408
    %s411 = sphi 0, %s410
    %s425 = sphi 0, %s411
    %s429 = sphi 0, %s429
    %s431 = sphi 0, %s429
    %s432 = sphi 0, %s431
    %s446 = sphi 0, %s432
    %s450 = sphi 0, %s450
    %s452 = sphi 0, %s450
    %s453 = sphi 0, %s452
    %s467 = sphi 0, %s453
    %s471 = sphi 0, %s471
    %s473 = sphi 0, %s471
    %s474 = sphi 0, %s473
    %s488 = sphi 0, %s474
    %s492 = sphi 0, %s492
    %s494 = sphi 0, %s492
    %s495 = sphi 0, %s494
    %s509 = sphi 0, %s495
    %s513 = sphi 0, %s513
    %s515 = sphi 0, %s513
    %s516 = sphi 0, %s515
    %s530 = sphi 0, %s516
    %s534 = sphi 0, %s534
    %s536 = sphi 0, %s534
    %s537 = sphi 0, %s536
    %s551 = sphi 0, %s537
    %s555 = sphi 0, %s555
    %s557 = sphi 0, %s555
    %s558 = sphi 0, %s557
    %s572 = sphi 0, %s558
    %s576 = sphi 0, %s576
    %s578 = sphi 0, %s576
    %s579 = sphi 0, %s578
    %s593 = sphi 0, %s579
    %s597 = sphi 0, %s597
    %s599 = sphi 0, %s597
    %s600 = sphi 0, %s599
    %s614 = sphi 0, %s600
    %s618 = sphi 0, %s618
    %s620 = sphi 0, %s618
    %s621 = sphi 0, %s620
    %s635 = sphi 0, %s621
    %s639 = sphi 0, %s639
    %s641 = sphi 0, %s639
    %s642 = sphi 0, %s641
    %s656 = sphi 0, %s642
    %s660 = sphi 0, %s660
    %s662 = sphi 0, %s660
    %s663 = sphi 0, %s662
    %s677 = sphi 0, %s663
    %s681 = sphi 0, %s681
    %s683 = sphi 0, %s681
    %s684 = sphi 0, %s683
    %s698 = sphi 0, %s684
    %s702 = sphi 0, %s702
    %s704 = sphi 0, %s702
    %s705 = sphi 0, %s704
    %s719 = sphi 0, %s705
    %s723 = sphi 0, %s723
    %s725 = sphi 0, %s723
    %s726 = sphi 0, %s725
    %s740 = sphi 0, %s726
    %s744 = sphi 0, %s744
    %s746 = sphi 0, %s744
    %s747 = sphi 0, %s746
    %s761 = sphi 0, %s747
    %s769 = sphi 0, %s771
    %s772 = sphi 0, %s769
    %s773 = sphi 0, %s772
    %s789 = sphi 0, %s773
  $region4: #{transformer_decoder_forward.2} parent=0 // loop_header_branch
    %72 = sbr.rel (%p70) target = $region8
  $region5: #{transformer_decoder_forward.2} parent=0 // loop_body
    %s74 = ssub.s32 %s69, 1
    %s75 = ssub.s32 %s69, 2
    %s82 = sadd.s32 1, %s77
    %p83 = scmp.ge.s32.totalorder %s82, 2
    %s84 = scalar_select %p83, 0, %s82
    %s85 = sadd.s32 1, %s76
    %s86 = scalar_select %p83, %s85, %s76
    %p87 = scmp.ge.s32.totalorder %s86, 2
    %s88 = scalar_select %p87, 0, %s86
    %s89 = ssub.s32 %s76, %s88
    %p90 = scmp.eq.s32.totalorder %s89, 0
    %s92 = sadd.s32 %s91, 1
    %s93 = scalar_select %p90, %s91, %s92
    %p96 = pneg %p90
    %p97 = scmp.eq.s32.totalorder %s69, 3
    %p98 = por %p96, %p97
    %p99 = scmp.ne.s32.totalorder %s91, %s94
    %p100 = scmp.eq.s32.totalorder %s69, 0
    %p101 = por %p99, %p100
    %p102 = scmp.ne.s32.totalorder %s91, %s94
    %p103 = scmp.eq.s32.totalorder %s74, 3
    %p104 = por %p102, %p103
    %p105 = scmp.ne.s32.totalorder %s94, %s95
    %p106 = scmp.eq.s32.totalorder %s74, 0
    %p107 = por %p105, %p106
    %p108 = scmp.ne.s32.totalorder %s94, %s95
    %p109 = scmp.eq.s32.totalorder %s75, 3
    %p110 = por %p108, %p109
    %p112 = scmp.ne.s32.totalorder %s95, %s111
    %p113 = scmp.eq.s32.totalorder %s75, 0
    %p114 = por %p112, %p113
    %s115 = ssub.s32 %s76, %s88
    %p116 = scmp.eq.s32.totalorder %s115, 0
    %s118 = sadd.s32 %s117, 1
    %s119 = scalar_select %p116, %s117, %s118
    %p122 = pneg %p116
    %p123 = scmp.eq.s32.totalorder %s69, 3
    %p124 = por %p122, %p123
    %p125 = scmp.ne.s32.totalorder %s117, %s120
    %p126 = scmp.eq.s32.totalorder %s69, 0
    %p127 = por %p125, %p126
    %p128 = scmp.ne.s32.totalorder %s117, %s120
    %p129 = scmp.eq.s32.totalorder %s74, 3
    %p130 = por %p128, %p129
    %p131 = scmp.ne.s32.totalorder %s120, %s121
    %p132 = scmp.eq.s32.totalorder %s74, 0
    %p133 = por %p131, %p132
    %p134 = scmp.ne.s32.totalorder %s120, %s121
    %p135 = scmp.eq.s32.totalorder %s75, 3
    %p136 = por %p134, %p135
    %p138 = scmp.ne.s32.totalorder %s121, %s137
    %p139 = scmp.eq.s32.totalorder %s75, 0
    %p140 = por %p138, %p139
    %s141 = ssub.s32 %s76, %s88
    %p142 = scmp.eq.s32.totalorder %s141, 0
    %s144 = sadd.s32 %s143, 1
    %s145 = scalar_select %p142, %s143, %s144
    %p148 = pneg %p142
    %p149 = scmp.eq.s32.totalorder %s69, 3
    %p150 = por %p148, %p149
    %p151 = scmp.ne.s32.totalorder %s143, %s146
    %p152 = scmp.eq.s32.totalorder %s69, 0
    %p153 = por %p151, %p152
    %p154 = scmp.ne.s32.totalorder %s143, %s146
    %p155 = scmp.eq.s32.totalorder %s74, 3
    %p156 = por %p154, %p155
    %p157 = scmp.ne.s32.totalorder %s146, %s147
    %p158 = scmp.eq.s32.totalorder %s74, 0
    %p159 = por %p157, %p158
    %p160 = scmp.ne.s32.totalorder %s146, %s147
    %p161 = scmp.eq.s32.totalorder %s75, 3
    %p162 = por %p160, %p161
    %p164 = scmp.ne.s32.totalorder %s147, %s163
    %p165 = scmp.eq.s32.totalorder %s75, 0
    %p166 = por %p164, %p165
    %s167 = ssub.s32 %s76, %s88
    %p168 = scmp.eq.s32.totalorder %s167, 0
    %s170 = sadd.s32 %s169, 1
    %s171 = scalar_select %p168, %s169, %s170
    %p174 = pneg %p168
    %p175 = scmp.eq.s32.totalorder %s69, 3
    %p176 = por %p174, %p175
    %p177 = scmp.ne.s32.totalorder %s169, %s172
    %p178 = scmp.eq.s32.totalorder %s69, 0
    %p179 = por %p177, %p178
    %p180 = scmp.ne.s32.totalorder %s169, %s172
    %p181 = scmp.eq.s32.totalorder %s74, 3
    %p182 = por %p180, %p181
    %p183 = scmp.ne.s32.totalorder %s172, %s173
    %p184 = scmp.eq.s32.totalorder %s74, 0
    %p185 = por %p183, %p184
    %p186 = scmp.ne.s32.totalorder %s172, %s173
    %p187 = scmp.eq.s32.totalorder %s75, 3
    %p188 = por %p186, %p187
    %p190 = scmp.ne.s32.totalorder %s173, %s189
    %p191 = scmp.eq.s32.totalorder %s75, 0
    %p192 = por %p190, %p191
    %s193 = ssub.s32 %s76, %s88
    %p194 = scmp.eq.s32.totalorder %s193, 0
    %s196 = sadd.s32 %s195, 1
    %s197 = scalar_select %p194, %s195, %s196
    %p200 = pneg %p194
    %p201 = scmp.eq.s32.totalorder %s69, 3
    %p202 = por %p200, %p201
    %p203 = scmp.ne.s32.totalorder %s195, %s198
    %p204 = scmp.eq.s32.totalorder %s69, 0
    %p205 = por %p203, %p204
    %p206 = scmp.ne.s32.totalorder %s195, %s198
    %p207 = scmp.eq.s32.totalorder %s74, 3
    %p208 = por %p206, %p207
    %p209 = scmp.ne.s32.totalorder %s198, %s199
    %p210 = scmp.eq.s32.totalorder %s74, 0
    %p211 = por %p209, %p210
    %p212 = scmp.ne.s32.totalorder %s198, %s199
    %p213 = scmp.eq.s32.totalorder %s75, 3
    %p214 = por %p212, %p213
    %p216 = scmp.ne.s32.totalorder %s199, %s215
    %p217 = scmp.eq.s32.totalorder %s75, 0
    %p218 = por %p216, %p217
    %s220 = sadd.s32 %s219, 1
    %p223 = scmp.eq.s32.totalorder %s69, 3
    %p224 = scmp.ne.s32.totalorder %s219, %s221
    %p225 = scmp.eq.s32.totalorder %s69, 0
    %p226 = por %p224, %p225
    %p227 = scmp.ne.s32.totalorder %s219, %s221
    %p228 = scmp.eq.s32.totalorder %s74, 3
    %p229 = por %p227, %p228
    %p230 = scmp.ne.s32.totalorder %s221, %s222
    %p231 = scmp.eq.s32.totalorder %s74, 0
    %p232 = por %p230, %p231
    %p233 = scmp.ne.s32.totalorder %s221, %s222
    %p234 = scmp.eq.s32.totalorder %s75, 3
    %p235 = por %p233, %p234
    %p237 = scmp.ne.s32.totalorder %s222, %s236
    %p238 = scmp.eq.s32.totalorder %s75, 0
    %p239 = por %p237, %p238
    %s241 = sadd.s32 %s240, 1
    %p244 = scmp.eq.s32.totalorder %s69, 3
    %p245 = scmp.ne.s32.totalorder %s240, %s242
    %p246 = scmp.eq.s32.totalorder %s69, 0
    %p247 = por %p245, %p246
    %p248 = scmp.ne.s32.totalorder %s240, %s242
    %p249 = scmp.eq.s32.totalorder %s74, 3
    %p250 = por %p248, %p249
    %p251 = scmp.ne.s32.totalorder %s242, %s243
    %p252 = scmp.eq.s32.totalorder %s74, 0
    %p253 = por %p251, %p252
    %p254 = scmp.ne.s32.totalorder %s242, %s243
    %p255 = scmp.eq.s32.totalorder %s75, 3
    %p256 = por %p254, %p255
    %p258 = scmp.ne.s32.totalorder %s243, %s257
    %p259 = scmp.eq.s32.totalorder %s75, 0
    %p260 = por %p258, %p259
    %s262 = sadd.s32 %s261, 1
    %p265 = scmp.eq.s32.totalorder %s69, 3
    %p266 = scmp.ne.s32.totalorder %s261, %s263
    %p267 = scmp.eq.s32.totalorder %s69, 0
    %p268 = por %p266, %p267
    %p269 = scmp.ne.s32.totalorder %s261, %s263
    %p270 = scmp.eq.s32.totalorder %s74, 3
    %p271 = por %p269, %p270
    %p272 = scmp.ne.s32.totalorder %s263, %s264
    %p273 = scmp.eq.s32.totalorder %s74, 0
    %p274 = por %p272, %p273
    %p275 = scmp.ne.s32.totalorder %s263, %s264
    %p276 = scmp.eq.s32.totalorder %s75, 3
    %p277 = por %p275, %p276
    %p279 = scmp.ne.s32.totalorder %s264, %s278
    %p280 = scmp.eq.s32.totalorder %s75, 0
    %p281 = por %p279, %p280
    %s283 = sadd.s32 %s282, 1
    %p286 = scmp.eq.s32.totalorder %s69, 3
    %p287 = scmp.ne.s32.totalorder %s282, %s284
    %p288 = scmp.eq.s32.totalorder %s69, 0
    %p289 = por %p287, %p288
    %p290 = scmp.ne.s32.totalorder %s282, %s284
    %p291 = scmp.eq.s32.totalorder %s74, 3
    %p292 = por %p290, %p291
    %p293 = scmp.ne.s32.totalorder %s284, %s285
    %p294 = scmp.eq.s32.totalorder %s74, 0
    %p295 = por %p293, %p294
    %p296 = scmp.ne.s32.totalorder %s284, %s285
    %p297 = scmp.eq.s32.totalorder %s75, 3
    %p298 = por %p296, %p297
    %p300 = scmp.ne.s32.totalorder %s285, %s299
    %p301 = scmp.eq.s32.totalorder %s75, 0
    %p302 = por %p300, %p301
    %s304 = sadd.s32 %s303, 1
    %p307 = scmp.eq.s32.totalorder %s69, 3
    %p308 = scmp.ne.s32.totalorder %s303, %s305
    %p309 = scmp.eq.s32.totalorder %s69, 0
    %p310 = por %p308, %p309
    %p311 = scmp.ne.s32.totalorder %s303, %s305
    %p312 = scmp.eq.s32.totalorder %s74, 3
    %p313 = por %p311, %p312
    %p314 = scmp.ne.s32.totalorder %s305, %s306
    %p315 = scmp.eq.s32.totalorder %s74, 0
    %p316 = por %p314, %p315
    %p317 = scmp.ne.s32.totalorder %s305, %s306
    %p318 = scmp.eq.s32.totalorder %s75, 3
    %p319 = por %p317, %p318
    %p321 = scmp.ne.s32.totalorder %s306, %s320
    %p322 = scmp.eq.s32.totalorder %s75, 0
    %p323 = por %p321, %p322
    %s325 = sadd.s32 %s324, 1
    %p328 = scmp.eq.s32.totalorder %s69, 3
    %p329 = scmp.ne.s32.totalorder %s324, %s326
    %p330 = scmp.eq.s32.totalorder %s69, 0
    %p331 = por %p329, %p330
    %p332 = scmp.ne.s32.totalorder %s324, %s326
    %p333 = scmp.eq.s32.totalorder %s74, 3
    %p334 = por %p332, %p333
    %p335 = scmp.ne.s32.totalorder %s326, %s327
    %p336 = scmp.eq.s32.totalorder %s74, 0
    %p337 = por %p335, %p336
    %p338 = scmp.ne.s32.totalorder %s326, %s327
    %p339 = scmp.eq.s32.totalorder %s75, 3
    %p340 = por %p338, %p339
    %p342 = scmp.ne.s32.totalorder %s327, %s341
    %p343 = scmp.eq.s32.totalorder %s75, 0
    %p344 = por %p342, %p343
    %s346 = sadd.s32 %s345, 1
    %p349 = scmp.eq.s32.totalorder %s69, 3
    %p350 = scmp.ne.s32.totalorder %s345, %s347
    %p351 = scmp.eq.s32.totalorder %s69, 0
    %p352 = por %p350, %p351
    %p353 = scmp.ne.s32.totalorder %s345, %s347
    %p354 = scmp.eq.s32.totalorder %s74, 3
    %p355 = por %p353, %p354
    %p356 = scmp.ne.s32.totalorder %s347, %s348
    %p357 = scmp.eq.s32.totalorder %s74, 0
    %p358 = por %p356, %p357
    %p359 = scmp.ne.s32.totalorder %s347, %s348
    %p360 = scmp.eq.s32.totalorder %s75, 3
    %p361 = por %p359, %p360
    %p363 = scmp.ne.s32.totalorder %s348, %s362
    %p364 = scmp.eq.s32.totalorder %s75, 0
    %p365 = por %p363, %p364
    %s367 = sadd.s32 %s366, 1
    %p370 = scmp.eq.s32.totalorder %s69, 3
    %p371 = scmp.ne.s32.totalorder %s366, %s368
    %p372 = scmp.eq.s32.totalorder %s69, 0
    %p373 = por %p371, %p372
    %p374 = scmp.ne.s32.totalorder %s366, %s368
    %p375 = scmp.eq.s32.totalorder %s74, 3
    %p376 = por %p374, %p375
    %p377 = scmp.ne.s32.totalorder %s368, %s369
    %p378 = scmp.eq.s32.totalorder %s74, 0
    %p379 = por %p377, %p378
    %p380 = scmp.ne.s32.totalorder %s368, %s369
    %p381 = scmp.eq.s32.totalorder %s75, 3
    %p382 = por %p380, %p381
    %p384 = scmp.ne.s32.totalorder %s369, %s383
    %p385 = scmp.eq.s32.totalorder %s75, 0
    %p386 = por %p384, %p385
    %s388 = sadd.s32 %s387, 1
    %p391 = scmp.eq.s32.totalorder %s69, 3
    %p392 = scmp.ne.s32.totalorder %s387, %s389
    %p393 = scmp.eq.s32.totalorder %s69, 0
    %p394 = por %p392, %p393
    %p395 = scmp.ne.s32.totalorder %s387, %s389
    %p396 = scmp.eq.s32.totalorder %s74, 3
    %p397 = por %p395, %p396
    %p398 = scmp.ne.s32.totalorder %s389, %s390
    %p399 = scmp.eq.s32.totalorder %s74, 0
    %p400 = por %p398, %p399
    %p401 = scmp.ne.s32.totalorder %s389, %s390
    %p402 = scmp.eq.s32.totalorder %s75, 3
    %p403 = por %p401, %p402
    %p405 = scmp.ne.s32.totalorder %s390, %s404
    %p406 = scmp.eq.s32.totalorder %s75, 0
    %p407 = por %p405, %p406
    %s409 = sadd.s32 %s408, 1
    %p412 = scmp.eq.s32.totalorder %s69, 3
    %p413 = scmp.ne.s32.totalorder %s408, %s410
    %p414 = scmp.eq.s32.totalorder %s69, 0
    %p415 = por %p413, %p414
    %p416 = scmp.ne.s32.totalorder %s408, %s410
    %p417 = scmp.eq.s32.totalorder %s74, 3
    %p418 = por %p416, %p417
    %p419 = scmp.ne.s32.totalorder %s410, %s411
    %p420 = scmp.eq.s32.totalorder %s74, 0
    %p421 = por %p419, %p420
    %p422 = scmp.ne.s32.totalorder %s410, %s411
    %p423 = scmp.eq.s32.totalorder %s75, 3
    %p424 = por %p422, %p423
    %p426 = scmp.ne.s32.totalorder %s411, %s425
    %p427 = scmp.eq.s32.totalorder %s75, 0
    %p428 = por %p426, %p427
    %s430 = sadd.s32 %s429, 1
    %p433 = scmp.eq.s32.totalorder %s69, 3
    %p434 = scmp.ne.s32.totalorder %s429, %s431
    %p435 = scmp.eq.s32.totalorder %s69, 0
    %p436 = por %p434, %p435
    %p437 = scmp.ne.s32.totalorder %s429, %s431
    %p438 = scmp.eq.s32.totalorder %s74, 3
    %p439 = por %p437, %p438
    %p440 = scmp.ne.s32.totalorder %s431, %s432
    %p441 = scmp.eq.s32.totalorder %s74, 0
    %p442 = por %p440, %p441
    %p443 = scmp.ne.s32.totalorder %s431, %s432
    %p444 = scmp.eq.s32.totalorder %s75, 3
    %p445 = por %p443, %p444
    %p447 = scmp.ne.s32.totalorder %s432, %s446
    %p448 = scmp.eq.s32.totalorder %s75, 0
    %p449 = por %p447, %p448
    %s451 = sadd.s32 %s450, 1
    %p454 = scmp.eq.s32.totalorder %s69, 3
    %p455 = scmp.ne.s32.totalorder %s450, %s452
    %p456 = scmp.eq.s32.totalorder %s69, 0
    %p457 = por %p455, %p456
    %p458 = scmp.ne.s32.totalorder %s450, %s452
    %p459 = scmp.eq.s32.totalorder %s74, 3
    %p460 = por %p458, %p459
    %p461 = scmp.ne.s32.totalorder %s452, %s453
    %p462 = scmp.eq.s32.totalorder %s74, 0
    %p463 = por %p461, %p462
    %p464 = scmp.ne.s32.totalorder %s452, %s453
    %p465 = scmp.eq.s32.totalorder %s75, 3
    %p466 = por %p464, %p465
    %p468 = scmp.ne.s32.totalorder %s453, %s467
    %p469 = scmp.eq.s32.totalorder %s75, 0
    %p470 = por %p468, %p469
    %s472 = sadd.s32 %s471, 1
    %p475 = scmp.eq.s32.totalorder %s69, 3
    %p476 = scmp.ne.s32.totalorder %s471, %s473
    %p477 = scmp.eq.s32.totalorder %s69, 0
    %p478 = por %p476, %p477
    %p479 = scmp.ne.s32.totalorder %s471, %s473
    %p480 = scmp.eq.s32.totalorder %s74, 3
    %p481 = por %p479, %p480
    %p482 = scmp.ne.s32.totalorder %s473, %s474
    %p483 = scmp.eq.s32.totalorder %s74, 0
    %p484 = por %p482, %p483
    %p485 = scmp.ne.s32.totalorder %s473, %s474
    %p486 = scmp.eq.s32.totalorder %s75, 3
    %p487 = por %p485, %p486
    %p489 = scmp.ne.s32.totalorder %s474, %s488
    %p490 = scmp.eq.s32.totalorder %s75, 0
    %p491 = por %p489, %p490
    %s493 = sadd.s32 %s492, 1
    %p496 = scmp.eq.s32.totalorder %s69, 3
    %p497 = scmp.ne.s32.totalorder %s492, %s494
    %p498 = scmp.eq.s32.totalorder %s69, 0
    %p499 = por %p497, %p498
    %p500 = scmp.ne.s32.totalorder %s492, %s494
    %p501 = scmp.eq.s32.totalorder %s74, 3
    %p502 = por %p500, %p501
    %p503 = scmp.ne.s32.totalorder %s494, %s495
    %p504 = scmp.eq.s32.totalorder %s74, 0
    %p505 = por %p503, %p504
    %p506 = scmp.ne.s32.totalorder %s494, %s495
    %p507 = scmp.eq.s32.totalorder %s75, 3
    %p508 = por %p506, %p507
    %p510 = scmp.ne.s32.totalorder %s495, %s509
    %p511 = scmp.eq.s32.totalorder %s75, 0
    %p512 = por %p510, %p511
    %s514 = sadd.s32 %s513, 1
    %p517 = scmp.eq.s32.totalorder %s69, 3
    %p518 = scmp.ne.s32.totalorder %s513, %s515
    %p519 = scmp.eq.s32.totalorder %s69, 0
    %p520 = por %p518, %p519
    %p521 = scmp.ne.s32.totalorder %s513, %s515
    %p522 = scmp.eq.s32.totalorder %s74, 3
    %p523 = por %p521, %p522
    %p524 = scmp.ne.s32.totalorder %s515, %s516
    %p525 = scmp.eq.s32.totalorder %s74, 0
    %p526 = por %p524, %p525
    %p527 = scmp.ne.s32.totalorder %s515, %s516
    %p528 = scmp.eq.s32.totalorder %s75, 3
    %p529 = por %p527, %p528
    %p531 = scmp.ne.s32.totalorder %s516, %s530
    %p532 = scmp.eq.s32.totalorder %s75, 0
    %p533 = por %p531, %p532
    %s535 = sadd.s32 %s534, 1
    %p538 = scmp.eq.s32.totalorder %s69, 3
    %p539 = scmp.ne.s32.totalorder %s534, %s536
    %p540 = scmp.eq.s32.totalorder %s69, 0
    %p541 = por %p539, %p540
    %p542 = scmp.ne.s32.totalorder %s534, %s536
    %p543 = scmp.eq.s32.totalorder %s74, 3
    %p544 = por %p542, %p543
    %p545 = scmp.ne.s32.totalorder %s536, %s537
    %p546 = scmp.eq.s32.totalorder %s74, 0
    %p547 = por %p545, %p546
    %p548 = scmp.ne.s32.totalorder %s536, %s537
    %p549 = scmp.eq.s32.totalorder %s75, 3
    %p550 = por %p548, %p549
    %p552 = scmp.ne.s32.totalorder %s537, %s551
    %p553 = scmp.eq.s32.totalorder %s75, 0
    %p554 = por %p552, %p553
    %s556 = sadd.s32 %s555, 1
    %p559 = scmp.eq.s32.totalorder %s69, 3
    %p560 = scmp.ne.s32.totalorder %s555, %s557
    %p561 = scmp.eq.s32.totalorder %s69, 0
    %p562 = por %p560, %p561
    %p563 = scmp.ne.s32.totalorder %s555, %s557
    %p564 = scmp.eq.s32.totalorder %s74, 3
    %p565 = por %p563, %p564
    %p566 = scmp.ne.s32.totalorder %s557, %s558
    %p567 = scmp.eq.s32.totalorder %s74, 0
    %p568 = por %p566, %p567
    %p569 = scmp.ne.s32.totalorder %s557, %s558
    %p570 = scmp.eq.s32.totalorder %s75, 3
    %p571 = por %p569, %p570
    %p573 = scmp.ne.s32.totalorder %s558, %s572
    %p574 = scmp.eq.s32.totalorder %s75, 0
    %p575 = por %p573, %p574
    %s577 = sadd.s32 %s576, 1
    %p580 = scmp.eq.s32.totalorder %s69, 3
    %p581 = scmp.ne.s32.totalorder %s576, %s578
    %p582 = scmp.eq.s32.totalorder %s69, 0
    %p583 = por %p581, %p582
    %p584 = scmp.ne.s32.totalorder %s576, %s578
    %p585 = scmp.eq.s32.totalorder %s74, 3
    %p586 = por %p584, %p585
    %p587 = scmp.ne.s32.totalorder %s578, %s579
    %p588 = scmp.eq.s32.totalorder %s74, 0
    %p589 = por %p587, %p588
    %p590 = scmp.ne.s32.totalorder %s578, %s579
    %p591 = scmp.eq.s32.totalorder %s75, 3
    %p592 = por %p590, %p591
    %p594 = scmp.ne.s32.totalorder %s579, %s593
    %p595 = scmp.eq.s32.totalorder %s75, 0
    %p596 = por %p594, %p595
    %s598 = sadd.s32 %s597, 1
    %p601 = scmp.eq.s32.totalorder %s69, 3
    %p602 = scmp.ne.s32.totalorder %s597, %s599
    %p603 = scmp.eq.s32.totalorder %s69, 0
    %p604 = por %p602, %p603
    %p605 = scmp.ne.s32.totalorder %s597, %s599
    %p606 = scmp.eq.s32.totalorder %s74, 3
    %p607 = por %p605, %p606
    %p608 = scmp.ne.s32.totalorder %s599, %s600
    %p609 = scmp.eq.s32.totalorder %s74, 0
    %p610 = por %p608, %p609
    %p611 = scmp.ne.s32.totalorder %s599, %s600
    %p612 = scmp.eq.s32.totalorder %s75, 3
    %p613 = por %p611, %p612
    %p615 = scmp.ne.s32.totalorder %s600, %s614
    %p616 = scmp.eq.s32.totalorder %s75, 0
    %p617 = por %p615, %p616
    %s619 = sadd.s32 %s618, 1
    %p622 = scmp.eq.s32.totalorder %s69, 3
    %p623 = scmp.ne.s32.totalorder %s618, %s620
    %p624 = scmp.eq.s32.totalorder %s69, 0
    %p625 = por %p623, %p624
    %p626 = scmp.ne.s32.totalorder %s618, %s620
    %p627 = scmp.eq.s32.totalorder %s74, 3
    %p628 = por %p626, %p627
    %p629 = scmp.ne.s32.totalorder %s620, %s621
    %p630 = scmp.eq.s32.totalorder %s74, 0
    %p631 = por %p629, %p630
    %p632 = scmp.ne.s32.totalorder %s620, %s621
    %p633 = scmp.eq.s32.totalorder %s75, 3
    %p634 = por %p632, %p633
    %p636 = scmp.ne.s32.totalorder %s621, %s635
    %p637 = scmp.eq.s32.totalorder %s75, 0
    %p638 = por %p636, %p637
    %s640 = sadd.s32 %s639, 1
    %p643 = scmp.eq.s32.totalorder %s69, 3
    %p644 = scmp.ne.s32.totalorder %s639, %s641
    %p645 = scmp.eq.s32.totalorder %s69, 0
    %p646 = por %p644, %p645
    %p647 = scmp.ne.s32.totalorder %s639, %s641
    %p648 = scmp.eq.s32.totalorder %s74, 3
    %p649 = por %p647, %p648
    %p650 = scmp.ne.s32.totalorder %s641, %s642
    %p651 = scmp.eq.s32.totalorder %s74, 0
    %p652 = por %p650, %p651
    %p653 = scmp.ne.s32.totalorder %s641, %s642
    %p654 = scmp.eq.s32.totalorder %s75, 3
    %p655 = por %p653, %p654
    %p657 = scmp.ne.s32.totalorder %s642, %s656
    %p658 = scmp.eq.s32.totalorder %s75, 0
    %p659 = por %p657, %p658
    %s661 = sadd.s32 %s660, 1
    %p664 = scmp.eq.s32.totalorder %s69, 3
    %p665 = scmp.ne.s32.totalorder %s660, %s662
    %p666 = scmp.eq.s32.totalorder %s69, 0
    %p667 = por %p665, %p666
    %p668 = scmp.ne.s32.totalorder %s660, %s662
    %p669 = scmp.eq.s32.totalorder %s74, 3
    %p670 = por %p668, %p669
    %p671 = scmp.ne.s32.totalorder %s662, %s663
    %p672 = scmp.eq.s32.totalorder %s74, 0
    %p673 = por %p671, %p672
    %p674 = scmp.ne.s32.totalorder %s662, %s663
    %p675 = scmp.eq.s32.totalorder %s75, 3
    %p676 = por %p674, %p675
    %p678 = scmp.ne.s32.totalorder %s663, %s677
    %p679 = scmp.eq.s32.totalorder %s75, 0
    %p680 = por %p678, %p679
    %s682 = sadd.s32 %s681, 1
    %p685 = scmp.eq.s32.totalorder %s69, 3
    %p686 = scmp.ne.s32.totalorder %s681, %s683
    %p687 = scmp.eq.s32.totalorder %s69, 0
    %p688 = por %p686, %p687
    %p689 = scmp.ne.s32.totalorder %s681, %s683
    %p690 = scmp.eq.s32.totalorder %s74, 3
    %p691 = por %p689, %p690
    %p692 = scmp.ne.s32.totalorder %s683, %s684
    %p693 = scmp.eq.s32.totalorder %s74, 0
    %p694 = por %p692, %p693
    %p695 = scmp.ne.s32.totalorder %s683, %s684
    %p696 = scmp.eq.s32.totalorder %s75, 3
    %p697 = por %p695, %p696
    %p699 = scmp.ne.s32.totalorder %s684, %s698
    %p700 = scmp.eq.s32.totalorder %s75, 0
    %p701 = por %p699, %p700
    %s703 = sadd.s32 %s702, 1
    %p706 = scmp.eq.s32.totalorder %s69, 3
    %p707 = scmp.ne.s32.totalorder %s702, %s704
    %p708 = scmp.eq.s32.totalorder %s69, 0
    %p709 = por %p707, %p708
    %p710 = scmp.ne.s32.totalorder %s702, %s704
    %p711 = scmp.eq.s32.totalorder %s74, 3
    %p712 = por %p710, %p711
    %p713 = scmp.ne.s32.totalorder %s704, %s705
    %p714 = scmp.eq.s32.totalorder %s74, 0
    %p715 = por %p713, %p714
    %p716 = scmp.ne.s32.totalorder %s704, %s705
    %p717 = scmp.eq.s32.totalorder %s75, 3
    %p718 = por %p716, %p717
    %p720 = scmp.ne.s32.totalorder %s705, %s719
    %p721 = scmp.eq.s32.totalorder %s75, 0
    %p722 = por %p720, %p721
    %s724 = sadd.s32 %s723, 1
    %p727 = scmp.eq.s32.totalorder %s69, 3
    %p728 = scmp.ne.s32.totalorder %s723, %s725
    %p729 = scmp.eq.s32.totalorder %s69, 0
    %p730 = por %p728, %p729
    %p731 = scmp.ne.s32.totalorder %s723, %s725
    %p732 = scmp.eq.s32.totalorder %s74, 3
    %p733 = por %p731, %p732
    %p734 = scmp.ne.s32.totalorder %s725, %s726
    %p735 = scmp.eq.s32.totalorder %s74, 0
    %p736 = por %p734, %p735
    %p737 = scmp.ne.s32.totalorder %s725, %s726
    %p738 = scmp.eq.s32.totalorder %s75, 3
    %p739 = por %p737, %p738
    %p741 = scmp.ne.s32.totalorder %s726, %s740
    %p742 = scmp.eq.s32.totalorder %s75, 0
    %p743 = por %p741, %p742
    %s745 = sadd.s32 %s744, 1
    %p748 = scmp.eq.s32.totalorder %s69, 3
    %p749 = scmp.ne.s32.totalorder %s744, %s746
    %p750 = scmp.eq.s32.totalorder %s69, 0
    %p751 = por %p749, %p750
    %p752 = scmp.ne.s32.totalorder %s744, %s746
    %p753 = scmp.eq.s32.totalorder %s74, 3
    %p754 = por %p752, %p753
    %p755 = scmp.ne.s32.totalorder %s746, %s747
    %p756 = scmp.eq.s32.totalorder %s74, 0
    %p757 = por %p755, %p756
    %p758 = scmp.ne.s32.totalorder %s746, %s747
    %p759 = scmp.eq.s32.totalorder %s75, 3
    %p760 = por %p758, %p759
    %p762 = scmp.ne.s32.totalorder %s747, %s761
    %p763 = scmp.eq.s32.totalorder %s75, 0
    %p764 = por %p762, %p763
    %s765 = ssub.s32 %s76, %s88
    %s766 = ssub.s32 %s77, %s84
    %s767 = sor.u32 %s765, %s766
    %p768 = scmp.eq.s32.totalorder %s767, 0
    %s770 = sadd.s32 %s769, 1
    %s771 = scalar_select %p768, %s769, %s770
    %p774 = pneg %p768
    %p775 = scmp.eq.s32.totalorder %s69, 3
    %p776 = por %p774, %p775
    %p777 = scmp.ne.s32.totalorder %s769, %s772
    %p778 = scmp.eq.s32.totalorder %s69, 0
    %p779 = por %p777, %p778
    %p780 = scmp.ne.s32.totalorder %s769, %s772
    %p781 = scmp.eq.s32.totalorder %s74, 3
    %p782 = por %p780, %p781
    %p783 = scmp.ne.s32.totalorder %s772, %s773
    %p784 = scmp.eq.s32.totalorder %s74, 0
    %p785 = por %p783, %p784
    %p786 = scmp.ne.s32.totalorder %s772, %s773
    %p787 = scmp.eq.s32.totalorder %s75, 3
    %p788 = por %p786, %p787
    %p790 = scmp.ne.s32.totalorder %s773, %s789
    %p791 = scmp.eq.s32.totalorder %s75, 0
    %p792 = por %p790, %p791
    %p793 = scmp.le.s32.totalorder 1, %s69
    %p794 = scmp.lt.s32.totalorder %s69, 5
    %p795 = pnand %p793, %p794
    %p796 = pneg %p795
    // Predicated region
    $region9: #{transformer_decoder_forward.2} parent=5 // pred_check
      _
    $region10: #{transformer_decoder_forward.2} parent=5 // pred_check_branch
      %798 = sbr.rel (%p795) target = $region12
    $region11: #{transformer_decoder_forward.2} parent=5 // pred_region
      %s799 = ssub.s32 %s69, 1
      // Predicated region
      $region13: #{transformer_decoder_forward.2} parent=11 // pred_check
        %p800 = pneg %p232
      $region14: #{transformer_decoder_forward.2} parent=11 // pred_check_branch
        %802 = sbr.rel (%p800) target = $region16
      $region15: #{transformer_decoder_forward.2} parent=11 // pred_region
        _
      $region16: #{transformer_decoder_forward.2} parent=11 // pred_fallthru
        _
      // Predicated region
      $region17: #{transformer_decoder_forward.2} parent=11 // pred_check
        %p803 = pneg %p253
      $region18: #{transformer_decoder_forward.2} parent=11 // pred_check_branch
        %805 = sbr.rel (%p803) target = $region20
      $region19: #{transformer_decoder_forward.2} parent=11 // pred_region
        _
      $region20: #{transformer_decoder_forward.2} parent=11 // pred_fallthru
        _
      // Predicated region
      $region21: #{transformer_decoder_forward.2} parent=11 // pred_check
        %p806 = pneg %p274
      $region22: #{transformer_decoder_forward.2} parent=11 // pred_check_branch
        %808 = sbr.rel (%p806) target = $region24
      $region23: #{transformer_decoder_forward.2} parent=11 // pred_region
        _
      $region24: #{transformer_decoder_forward.2} parent=11 // pred_fallthru
        _
      // Predicated region
      $region25: #{transformer_decoder_forward.2} parent=11 // pred_check
        %p809 = pneg %p295
      $region26: #{transformer_decoder_forward.2} parent=11 // pred_check_branch
        %811 = sbr.rel (%p809) target = $region28
      $region27: #{transformer_decoder_forward.2} parent=11 // pred_region
        _
      $region28: #{transformer_decoder_forward.2} parent=11 // pred_fallthru
        _
      // Predicated region
      $region29: #{transformer_decoder_forward.2} parent=11 // pred_check
        %p812 = pneg %p316
      $region30: #{transformer_decoder_forward.2} parent=11 // pred_check_branch
        %814 = sbr.rel (%p812) target = $region32
      $region31: #{transformer_decoder_forward.2} parent=11 // pred_region
        _
      $region32: #{transformer_decoder_forward.2} parent=11 // pred_fallthru
        _
      // Predicated region
      $region33: #{transformer_decoder_forward.2} parent=11 // pred_check
        %p815 = pneg %p337
      $region34: #{transformer_decoder_forward.2} parent=11 // pred_check_branch
        %817 = sbr.rel (%p815) target = $region36
      $region35: #{transformer_decoder_forward.2} parent=11 // pred_region
        _
      $region36: #{transformer_decoder_forward.2} parent=11 // pred_fallthru
        _
      // Predicated region
      $region37: #{transformer_decoder_forward.2} parent=11 // pred_check
        %p818 = pneg %p358
      $region38: #{transformer_decoder_forward.2} parent=11 // pred_check_branch
        %820 = sbr.rel (%p818) target = $region40
      $region39: #{transformer_decoder_forward.2} parent=11 // pred_region
        _
      $region40: #{transformer_decoder_forward.2} parent=11 // pred_fallthru
        _
      // Predicated region
      $region41: #{transformer_decoder_forward.2} parent=11 // pred_check
        %p821 = pneg %p379
      $region42: #{transformer_decoder_forward.2} parent=11 // pred_check_branch
        %823 = sbr.rel (%p821) target = $region44
      $region43: #{transformer_decoder_forward.2} parent=11 // pred_region
        _
      $region44: #{transformer_decoder_forward.2} parent=11 // pred_fallthru
        _
      // Predicated region
      $region45: #{transformer_decoder_forward.2} parent=11 // pred_check
        %p824 = pneg %p400
      $region46: #{transformer_decoder_forward.2} parent=11 // pred_check_branch
        %826 = sbr.rel (%p824) target = $region48
      $region47: #{transformer_decoder_forward.2} parent=11 // pred_region
        _
      $region48: #{transformer_decoder_forward.2} parent=11 // pred_fallthru
        _
      // Predicated region
      $region49: #{transformer_decoder_forward.2} parent=11 // pred_check
        %p827 = pneg %p421
      $region50: #{transformer_decoder_forward.2} parent=11 // pred_check_branch
        %829 = sbr.rel (%p827) target = $region52
      $region51: #{transformer_decoder_forward.2} parent=11 // pred_region
        _
      $region52: #{transformer_decoder_forward.2} parent=11 // pred_fallthru
        _
      // Predicated region
      $region53: #{transformer_decoder_forward.2} parent=11 // pred_check
        %p830 = pneg %p442
      $region54: #{transformer_decoder_forward.2} parent=11 // pred_check_branch
        %832 = sbr.rel (%p830) target = $region56
      $region55: #{transformer_decoder_forward.2} parent=11 // pred_region
        _
      $region56: #{transformer_decoder_forward.2} parent=11 // pred_fallthru
        _
      // Predicated region
      $region57: #{transformer_decoder_forward.2} parent=11 // pred_check
        %p833 = pneg %p463
      $region58: #{transformer_decoder_forward.2} parent=11 // pred_check_branch
        %835 = sbr.rel (%p833) target = $region60
      $region59: #{transformer_decoder_forward.2} parent=11 // pred_region
        _
      $region60: #{transformer_decoder_forward.2} parent=11 // pred_fallthru
        _
      // Predicated region
      $region61: #{transformer_decoder_forward.2} parent=11 // pred_check
        %p836 = pneg %p484
      $region62: #{transformer_decoder_forward.2} parent=11 // pred_check_branch
        %838 = sbr.rel (%p836) target = $region64
      $region63: #{transformer_decoder_forward.2} parent=11 // pred_region
        _
      $region64: #{transformer_decoder_forward.2} parent=11 // pred_fallthru
        _
      // Predicated region
      $region65: #{transformer_decoder_forward.2} parent=11 // pred_check
        %p839 = pneg %p505
      $region66: #{transformer_decoder_forward.2} parent=11 // pred_check_branch
        %841 = sbr.rel (%p839) target = $region68
      $region67: #{transformer_decoder_forward.2} parent=11 // pred_region
        _
      $region68: #{transformer_decoder_forward.2} parent=11 // pred_fallthru
        _
      // Predicated region
      $region69: #{transformer_decoder_forward.2} parent=11 // pred_check
        %p842 = pneg %p526
      $region70: #{transformer_decoder_forward.2} parent=11 // pred_check_branch
        %844 = sbr.rel (%p842) target = $region72
      $region71: #{transformer_decoder_forward.2} parent=11 // pred_region
        _
      $region72: #{transformer_decoder_forward.2} parent=11 // pred_fallthru
        _
      // Predicated region
      $region73: #{transformer_decoder_forward.2} parent=11 // pred_check
        %p845 = pneg %p547
      $region74: #{transformer_decoder_forward.2} parent=11 // pred_check_branch
        %847 = sbr.rel (%p845) target = $region76
      $region75: #{transformer_decoder_forward.2} parent=11 // pred_region
        _
      $region76: #{transformer_decoder_forward.2} parent=11 // pred_fallthru
        _
      // Predicated region
      $region77: #{transformer_decoder_forward.2} parent=11 // pred_check
        %p848 = pneg %p568
      $region78: #{transformer_decoder_forward.2} parent=11 // pred_check_branch
        %850 = sbr.rel (%p848) target = $region80
      $region79: #{transformer_decoder_forward.2} parent=11 // pred_region
        _
      $region80: #{transformer_decoder_forward.2} parent=11 // pred_fallthru
        _
      // Predicated region
      $region81: #{transformer_decoder_forward.2} parent=11 // pred_check
        %p851 = pneg %p589
      $region82: #{transformer_decoder_forward.2} parent=11 // pred_check_branch
        %853 = sbr.rel (%p851) target = $region84
      $region83: #{transformer_decoder_forward.2} parent=11 // pred_region
        _
      $region84: #{transformer_decoder_forward.2} parent=11 // pred_fallthru
        _
      // Predicated region
      $region85: #{transformer_decoder_forward.2} parent=11 // pred_check
        %p854 = pneg %p610
      $region86: #{transformer_decoder_forward.2} parent=11 // pred_check_branch
        %856 = sbr.rel (%p854) target = $region88
      $region87: #{transformer_decoder_forward.2} parent=11 // pred_region
        _
      $region88: #{transformer_decoder_forward.2} parent=11 // pred_fallthru
        _
      // Predicated region
      $region89: #{transformer_decoder_forward.2} parent=11 // pred_check
        %p857 = pneg %p631
      $region90: #{transformer_decoder_forward.2} parent=11 // pred_check_branch
        %859 = sbr.rel (%p857) target = $region92
      $region91: #{transformer_decoder_forward.2} parent=11 // pred_region
        _
      $region92: #{transformer_decoder_forward.2} parent=11 // pred_fallthru
        _
      // Predicated region
      $region93: #{transformer_decoder_forward.2} parent=11 // pred_check
        %p860 = pneg %p652
      $region94: #{transformer_decoder_forward.2} parent=11 // pred_check_branch
        %862 = sbr.rel (%p860) target = $region96
      $region95: #{transformer_decoder_forward.2} parent=11 // pred_region
        _
      $region96: #{transformer_decoder_forward.2} parent=11 // pred_fallthru
        _
      // Predicated region
      $region97: #{transformer_decoder_forward.2} parent=11 // pred_check
        %p863 = pneg %p673
      $region98: #{transformer_decoder_forward.2} parent=11 // pred_check_branch
        %865 = sbr.rel (%p863) target = $region100
      $region99: #{transformer_decoder_forward.2} parent=11 // pred_region
        _
      $region100: #{transformer_decoder_forward.2} parent=11 // pred_fallthru
        _
      // Predicated region
      $region101: #{transformer_decoder_forward.2} parent=11 // pred_check
        %p866 = pneg %p694
      $region102: #{transformer_decoder_forward.2} parent=11 // pred_check_branch
        %868 = sbr.rel (%p866) target = $region104
      $region103: #{transformer_decoder_forward.2} parent=11 // pred_region
        _
      $region104: #{transformer_decoder_forward.2} parent=11 // pred_fallthru
        _
      // Predicated region
      $region105: #{transformer_decoder_forward.2} parent=11 // pred_check
        %p869 = pneg %p715
      $region106: #{transformer_decoder_forward.2} parent=11 // pred_check_branch
        %871 = sbr.rel (%p869) target = $region108
      $region107: #{transformer_decoder_forward.2} parent=11 // pred_region
        _
      $region108: #{transformer_decoder_forward.2} parent=11 // pred_fallthru
        _
      // Predicated region
      $region109: #{transformer_decoder_forward.2} parent=11 // pred_check
        %p872 = pneg %p736
      $region110: #{transformer_decoder_forward.2} parent=11 // pred_check_branch
        %874 = sbr.rel (%p872) target = $region112
      $region111: #{transformer_decoder_forward.2} parent=11 // pred_region
        _
      $region112: #{transformer_decoder_forward.2} parent=11 // pred_fallthru
        _
      // Predicated region
      $region113: #{transformer_decoder_forward.2} parent=11 // pred_check
        %p875 = pneg %p757
      $region114: #{transformer_decoder_forward.2} parent=11 // pred_check_branch
        %877 = sbr.rel (%p875) target = $region116
      $region115: #{transformer_decoder_forward.2} parent=11 // pred_region
        _
      $region116: #{transformer_decoder_forward.2} parent=11 // pred_fallthru
        _
    $region12: #{transformer_decoder_forward.2} parent=5 // pred_fallthru
      _
    %p878 = scmp.lt.s32.totalorder %s69, 4
    // Predicated region
    $region117: #{transformer_decoder_forward.2} parent=5 // pred_check
      %p879 = pneg %p878
    $region118: #{transformer_decoder_forward.2} parent=5 // pred_check_branch
      %881 = sbr.rel (%p879) target = $region120
    $region119: #{transformer_decoder_forward.2} parent=5 // pred_region
      // Predicated region
      $region121: #{transformer_decoder_forward.2} parent=119 // pred_check
        %p882 = pneg %p101
      $region122: #{transformer_decoder_forward.2} parent=119 // pred_check_branch
        %884 = sbr.rel (%p882) target = $region124
      $region123: #{transformer_decoder_forward.2} parent=119 // pred_region
        %p885 = scmp.lt.s32.totalorder %s76, 1
        %s886 = scalar_select %p885, %s76, 1
        %s887 = smul.addr %s886, 2
        %s888 = smul.addr %s887, 8
        %s889 = scalar_lea.vmem %s1, %s888
      $region124: #{transformer_decoder_forward.2} parent=119 // pred_fallthru
        _
      // Predicated region
      $region125: #{transformer_decoder_forward.2} parent=119 // pred_check
        %p890 = pneg %p127
      $region126: #{transformer_decoder_forward.2} parent=119 // pred_check_branch
        %892 = sbr.rel (%p890) target = $region128
      $region127: #{transformer_decoder_forward.2} parent=119 // pred_region
        %p893 = scmp.lt.s32.totalorder %s76, 1
        %s894 = scalar_select %p893, %s76, 1
        %s895 = smul.addr %s894, 3
        %s896 = smul.addr %s895, 8
        %s897 = scalar_lea.vmem %s3, %s896
      $region128: #{transformer_decoder_forward.2} parent=119 // pred_fallthru
        _
      // Predicated region
      $region129: #{transformer_decoder_forward.2} parent=119 // pred_check
        %p898 = pneg %p153
      $region130: #{transformer_decoder_forward.2} parent=119 // pred_check_branch
        %900 = sbr.rel (%p898) target = $region132
      $region131: #{transformer_decoder_forward.2} parent=119 // pred_region
        %p901 = scmp.lt.s32.totalorder %s76, 1
        %s902 = scalar_select %p901, %s76, 1
        %s903 = smul.addr %s902, 2
        %s904 = smul.addr %s903, 8
        %s905 = scalar_lea.vmem %s5, %s904
      $region132: #{transformer_decoder_forward.2} parent=119 // pred_fallthru
        _
      // Predicated region
      $region133: #{transformer_decoder_forward.2} parent=119 // pred_check
        %p906 = pneg %p179
      $region134: #{transformer_decoder_forward.2} parent=119 // pred_check_branch
        %908 = sbr.rel (%p906) target = $region136
      $region135: #{transformer_decoder_forward.2} parent=119 // pred_region
        %p909 = scmp.lt.s32.totalorder %s76, 1
        %s910 = scalar_select %p909, %s76, 1
        %s911 = smul.addr %s910, 3
        %s912 = smul.addr %s911, 8
        %s913 = scalar_lea.vmem %s7, %s912
      $region136: #{transformer_decoder_forward.2} parent=119 // pred_fallthru
        _
      // Predicated region
      $region137: #{transformer_decoder_forward.2} parent=119 // pred_check
        %p914 = pneg %p205
      $region138: #{transformer_decoder_forward.2} parent=119 // pred_check_branch
        %916 = sbr.rel (%p914) target = $region140
      $region139: #{transformer_decoder_forward.2} parent=119 // pred_region
        %p917 = scmp.lt.s32.totalorder %s76, 1
        %s918 = scalar_select %p917, %s76, 1
        %s919 = scalar_lea.vmem %s9, %s918
      $region140: #{transformer_decoder_forward.2} parent=119 // pred_fallthru
        _
    $region120: #{transformer_decoder_forward.2} parent=5 // pred_fallthru
      _
    %p920 = scmp.le.s32.totalorder 1, %s69
    %p921 = scmp.lt.s32.totalorder %s69, 5
    %p922 = pnand %p920, %p921
    %p923 = pneg %p922
    // Predicated region
    $region141: #{transformer_decoder_forward.2} parent=5 // pred_check
      _
    $region142: #{transformer_decoder_forward.2} parent=5 // pred_check_branch
      %925 = sbr.rel (%p922) target = $region144
    $region143: #{transformer_decoder_forward.2} parent=5 // pred_region
      %s926 = ssub.s32 %s69, 1
      %p927 = scmp.lt.s32.totalorder %s78, 1
      %s928 = scalar_select %p927, %s78, 1
      %s929 = smul.addr %s928, 2
      %s930 = smul.addr %s929, 8
      %s931 = scalar_lea.vmem %s1, %s930
      %p932 = pneg %p107
      %p933 = pneg %p104
      %p934 = scmp.lt.s32.totalorder %s78, 1
      %s935 = scalar_select %p934, %s78, 1
      %s936 = smul.addr %s935, 3
      %s937 = smul.addr %s936, 8
      %s938 = scalar_lea.vmem %s3, %s937
      %p939 = pneg %p133
      %p940 = pneg %p130
      %p941 = scmp.lt.s32.totalorder %s78, 1
      %s942 = scalar_select %p941, %s78, 1
      %s943 = smul.addr %s942, 2
      %s944 = smul.addr %s943, 8
      %s945 = scalar_lea.vmem %s5, %s944
      %p946 = pneg %p159
      %p947 = pneg %p156
      %p948 = scmp.lt.s32.totalorder %s78, 1
      %s949 = scalar_select %p948, %s78, 1
      %s950 = smul.addr %s949, 3
      %s951 = smul.addr %s950, 8
      %s952 = scalar_lea.vmem %s7, %s951
      %p953 = pneg %p185
      %p954 = pneg %p182
      %p955 = scmp.lt.s32.totalorder %s78, 1
      %s956 = scalar_select %p955, %s78, 1
      %s957 = scalar_lea.vmem %s9, %s956
      %p958 = pneg %p211
      %p959 = pneg %p208
      %p960 = pneg %p232
      %p961 = pneg %p229
      %p962 = pneg %p253
      %p963 = pneg %p250
      %p964 = pneg %p274
      %p965 = pneg %p271
      %p966 = pneg %p295
      %p967 = pneg %p292
      %p968 = pneg %p316
      %p969 = pneg %p313
      %p970 = pneg %p337
      %p971 = pneg %p334
      %p972 = pneg %p358
      %p973 = pneg %p355
      %p974 = pneg %p379
      %p975 = pneg %p376
      %p976 = pneg %p400
      %p977 = pneg %p397
      %p978 = pneg %p421
      %p979 = pneg %p418
      %p980 = pneg %p442
      %p981 = pneg %p439
      %p982 = pneg %p463
      %p983 = pneg %p460
      %p984 = pneg %p484
      %p985 = pneg %p481
      %p986 = pneg %p505
      %p987 = pneg %p502
      %p988 = pneg %p526
      %p989 = pneg %p523
      %p990 = pneg %p547
      %p991 = pneg %p544
      %p992 = pneg %p568
      %p993 = pneg %p565
      %p994 = pneg %p589
      %p995 = pneg %p586
      %p996 = pneg %p610
      %p997 = pneg %p607
      %p998 = pneg %p631
      %p999 = pneg %p628
      %p1000 = pneg %p652
      %p1001 = pneg %p649
      %p1002 = pneg %p673
      %p1003 = pneg %p670
      %p1004 = pneg %p694
      %p1005 = pneg %p691
      %p1006 = pneg %p715
      %p1007 = pneg %p712
      %p1008 = pneg %p736
      %p1009 = pneg %p733
      %p1010 = pneg %p757
      %p1011 = pneg %p754
      %p1012 = pneg %p785
      %p1013 = pneg %p782
      %p1014 = scmp.lt.s32.totalorder %s78, 1
      %s1015 = scalar_select %p1014, %s78, 1
      %p1016 = scmp.lt.s32.totalorder %s79, 1
      %s1017 = scalar_select %p1016, %s79, 1
      %s1018 = smul.addr %s1015, 2
      %s1019 = sadd.s32 %s1017, %s1018
      %s1020 = smul.addr %s1019, 8
      %s1021 = scalar_lea.vmem %s63, %s1020
      %p1022 = scmp.lt.s32.totalorder %s78, 1
      %s1023 = scalar_select %p1022, %s78, 1
      %s1024 = smul.addr %s1023, 2
      %s1025 = smul.addr %s1024, 8
      %s1026 = scalar_lea.vmem %s1, %s1025
      %p1027 = scmp.lt.s32.totalorder %s78, 1
      %s1028 = scalar_select %p1027, %s78, 1
      %s1029 = smul.addr %s1028, 3
      %s1030 = smul.addr %s1029, 8
      %s1031 = scalar_lea.vmem %s3, %s1030
      %p1032 = scmp.lt.s32.totalorder %s78, 1
      %s1033 = scalar_select %p1032, %s78, 1
      %s1034 = smul.addr %s1033, 2
      %s1035 = smul.addr %s1034, 8
      %s1036 = scalar_lea.vmem %s5, %s1035
      %p1037 = scmp.lt.s32.totalorder %s78, 1
      %s1038 = scalar_select %p1037, %s78, 1
      %s1039 = smul.addr %s1038, 3
      %s1040 = smul.addr %s1039, 8
      %s1041 = scalar_lea.vmem %s7, %s1040
      %p1042 = scmp.lt.s32.totalorder %s78, 1
      %s1043 = scalar_select %p1042, %s78, 1
      %s1044 = scalar_lea.vmem %s9, %s1043
      %p1045 = scmp.lt.s32.totalorder %s78, 1
      %s1046 = scalar_select %p1045, %s78, 1
      %p1047 = scmp.lt.s32.totalorder %s79, 1
      %s1048 = scalar_select %p1047, %s79, 1
      %s1049 = smul.addr %s1046, 2
      %s1050 = sadd.s32 %s1048, %s1049
      %s1051 = smul.addr %s1050, 8
      %s1052 = scalar_lea.vmem %s63, %s1051
      %v1054 = vld [vmem:[%s1026] sm:$0xff]
      %v1055 = vld [vmem:[%s1026 + $0x8] sm:$0xff]
      %v1056 = vld [vmem:[%s1036] sm:$0xff]
      %v1057 = vld [vmem:[%s1036 + $0x8] sm:$0xff]
      %s1058 = smul.u32 %s79, 8
      %s1059 = scalar_lea.vmem %s1026, %s1058
      %v1060 = vld [vmem:[%s1059] sm:$0xff]
      %s1061 = scalar_lea.vmem %s1036, %s1058
      %v1062 = vld [vmem:[%s1061] sm:$0xff]
      %v1063 = vadd.f32 %v1060, %v1062
      %v1064 = vadd.f32 %v1054, %v1056
      %v1065 = vadd.f32 %v1055, %v1057
      %v1066 = vld [vmem:[%s11] sm:$0xf]
      %v1067 = vld [vmem:[%s11 + $0x4] sm:$0xf]
      %v1068 = vld [vmem:[%s11 + $0x8] sm:$0xf]
      %v1069 = vld [vmem:[%s11 + $0xc] sm:$0xf]
      %v1070 = vld [vmem:[%s13] sm:$0x1]
      %v1071 = vld [vmem:[%s15] sm:$0xf]
      %v1072 = vld [vmem:[%s15 + $0x4] sm:$0xf]
      %v1073 = vld [vmem:[%s15 + $0x8] sm:$0xf]
      %v1074 = vld [vmem:[%s15 + $0xc] sm:$0xf]
      %v1075 = vld [vmem:[%s17] sm:$0x1]
      %v1076 = vld [vmem:[%s19] sm:$0xf]
      %v1077 = vld [vmem:[%s19 + $0x4] sm:$0xf]
      %v1078 = vld [vmem:[%s19 + $0x8] sm:$0xf]
      %v1079 = vld [vmem:[%s19 + $0xc] sm:$0xf]
      %v1080 = vld [vmem:[%s21] sm:$0x1]
      %v1081 = vld [vmem:[%s23] sm:$0xf]
      %v1082 = vld [vmem:[%s23 + $0x4] sm:$0xf]
      %v1083 = vld [vmem:[%s23 + $0x8] sm:$0xf]
      %v1084 = vld [vmem:[%s23 + $0xc] sm:$0xf]
      %v1085 = vld [vmem:[%s25] sm:$0x1]
      %v1086 = vld [vmem:[%s27] sm:$0x1]
      %v1087 = vld [vmem:[%s29] sm:$0x1]
      %v1088 = vpack.c.bf16 %v1063, %v1063
      %v1090 = vlaneseq
      %v1091 = vshrl.u32 %v1090, 7
      %v1092 = vsub.s32 0, %v1091
      %v1093 = vrot.slane %v1070, %v1092
      %v1099 = vunpack.c.l.b16 %v1066
      %v1100 = vunpack.c.l.b16 %v1067
      %v1101 = vunpack.c.l.b16 %v1068
      %v1102 = vunpack.c.l.b16 %v1069
      %v1103 = vpack.c.b16 %v1100, %v1099
      %v1104 = vpack.c.b16 %v1102, %v1101
      %vm1107 = vcmask 261120
      %v1109 = vsel %vm1107, %v1088, 0
      %1111 = vmatprep.subr.bf16.mxu0 0
      %1112 = vmatpush1.bf16.msra.mxu0 %v1103
      %1113 = vmatprep.subr.bf16.mxu0 0
      %1114 = vmatpush1.bf16.msra.mxu0 %v1104
      %1115 = vmatprep.subr.bf16.mxu0 0
      %1116 = vmatpush1.bf16.msra.mxu0 0
      %1117 = vmatprep.subr.bf16.mxu0 0
      %1118 = vmatpush1.bf16.msra.mxu0 0
      %1119 = vmatprep.subr.bf16.mxu0 0
      %1120 = vmatpush1.bf16.msra.mxu0 0
      %1121 = vmatprep.subr.bf16.mxu0 0
      %1122 = vmatpush1.bf16.msra.mxu0 0
      %1123 = vmatprep.subr.bf16.mxu0 0
      %1124 = vmatpush1.bf16.msra.mxu0 0
      %1125 = vmatprep.subr.bf16.mxu0 0
      %1126 = vmatpush1.bf16.msra.mxu0 0
      %1127 = vmatprep.subr.bf16.mxu0 0
      %1128 = vmatpush1.bf16.msra.mxu0 0
      %1129 = vmatprep.subr.bf16.mxu0 0
      %1130 = vmatpush1.bf16.msra.mxu0 0
      %1131 = vmatprep.subr.bf16.mxu0 0
      %1132 = vmatpush1.bf16.msra.mxu0 0
      %1133 = vmatprep.subr.bf16.mxu0 0
      %1134 = vmatpush1.bf16.msra.mxu0 0
      %1135 = vmatprep.subr.bf16.mxu0 0
      %1136 = vmatpush1.bf16.msra.mxu0 0
      %1137 = vmatprep.subr.bf16.mxu0 0
      %1138 = vmatpush1.bf16.msra.mxu0 0
      %1139 = vmatprep.subr.bf16.mxu0 0
      %1140 = vmatpush1.bf16.msra.mxu0 0
      %1141 = vmatprep.subr.bf16.mxu0 0
      %1142 = vmatpush1.bf16.msra.mxu0 0
      %1143 = vmatprep.mubr.bf16.mxu0 0
      %1144 = vmatmul.mubr.bf16.gmra.mrb[0].mxu0 %v1109
      %v1145 = vpop.f32.mrb[0].mxu0
      %v1146 = vadd.f32 %v1093, %v1145
      %v1147 = vpop.f32.mrb[0].mxu0
      %v1148 = vpop.f32.mrb[0].mxu0
      %v1149 = vpop.f32.mrb[0].mxu0
      %1150 = vdwg.mxu0
      %v1151 = vmul.f32 %v1146, 0.35355338
      %v1152 = vpack.c.bf16 %v1065, %v1064
      %v1154 = vlaneseq
      %v1155 = vshrl.u32 %v1154, 7
      %v1156 = vsub.s32 0, %v1155
      %v1157 = vrot.slane %v1075, %v1156
      %v1163 = vunpack.c.l.b16 %v1071
      %v1164 = vunpack.c.l.b16 %v1072
      %v1165 = vunpack.c.l.b16 %v1073
      %v1166 = vunpack.c.l.b16 %v1074
      %v1167 = vpack.c.b16 %v1164, %v1163
      %v1168 = vpack.c.b16 %v1166, %v1165
      %v1172 = vsel %vm1107, %v1152, 0
      %1174 = vmatprep.subr.bf16.mxu0 0
      %1175 = vmatpush1.bf16.msra.mxu0 %v1167
      %1176 = vmatprep.subr.bf16.mxu0 0
      %1177 = vmatpush1.bf16.msra.mxu0 %v1168
      %1178 = vmatprep.subr.bf16.mxu0 0
      %1179 = vmatpush1.bf16.msra.mxu0 0
      %1180 = vmatprep.subr.bf16.mxu0 0
      %1181 = vmatpush1.bf16.msra.mxu0 0
      %1182 = vmatprep.subr.bf16.mxu0 0
      %1183 = vmatpush1.bf16.msra.mxu0 0
      %1184 = vmatprep.subr.bf16.mxu0 0
      %1185 = vmatpush1.bf16.msra.mxu0 0
      %1186 = vmatprep.subr.bf16.mxu0 0
      %1187 = vmatpush1.bf16.msra.mxu0 0
      %1188 = vmatprep.subr.bf16.mxu0 0
      %1189 = vmatpush1.bf16.msra.mxu0 0
      %1190 = vmatprep.subr.bf16.mxu0 0
      %1191 = vmatpush1.bf16.msra.mxu0 0
      %1192 = vmatprep.subr.bf16.mxu0 0
      %1193 = vmatpush1.bf16.msra.mxu0 0
      %1194 = vmatprep.subr.bf16.mxu0 0
      %1195 = vmatpush1.bf16.msra.mxu0 0
      %1196 = vmatprep.subr.bf16.mxu0 0
      %1197 = vmatpush1.bf16.msra.mxu0 0
      %1198 = vmatprep.subr.bf16.mxu0 0
      %1199 = vmatpush1.bf16.msra.mxu0 0
      %1200 = vmatprep.subr.bf16.mxu0 0
      %1201 = vmatpush1.bf16.msra.mxu0 0
      %1202 = vmatprep.subr.bf16.mxu0 0
      %1203 = vmatpush1.bf16.msra.mxu0 0
      %1204 = vmatprep.subr.bf16.mxu0 0
      %1205 = vmatpush1.bf16.msra.mxu0 0
      %1206 = vmatprep.mubr.bf16.mxu0 0
      %1207 = vmatmul.mubr.bf16.gmra.mrb[0].mxu0 %v1172
      %v1208 = vpop.f32.mrb[0].mxu0
      %v1209 = vadd.f32 %v1157, %v1208
      %v1210 = vpop.f32.mrb[0].mxu0
      %v1211 = vpop.f32.mrb[0].mxu0
      %v1212 = vadd.f32 %v1157, %v1211
      %v1213 = vpop.f32.mrb[0].mxu0
      %1214 = vdwg.mxu0
      %v1215 = vpack.c.bf16 %v1055, %v1054
      %v1217 = vlaneseq
      %v1218 = vshrl.u32 %v1217, 7
      %v1219 = vsub.s32 0, %v1218
      %v1220 = vrot.slane %v1080, %v1219
      %v1226 = vunpack.c.l.b16 %v1076
      %v1227 = vunpack.c.l.b16 %v1077
      %v1228 = vunpack.c.l.b16 %v1078
      %v1229 = vunpack.c.l.b16 %v1079
      %v1230 = vpack.c.b16 %v1227, %v1226
      %v1231 = vpack.c.b16 %v1229, %v1228
      %v1235 = vsel %vm1107, %v1215, 0
      %1237 = vmatprep.subr.bf16.mxu0 0
      %1238 = vmatpush1.bf16.msra.mxu0 %v1230
      %1239 = vmatprep.subr.bf16.mxu0 0
      %1240 = vmatpush1.bf16.msra.mxu0 %v1231
      %1241 = vmatprep.subr.bf16.mxu0 0
      %1242 = vmatpush1.bf16.msra.mxu0 0
      %1243 = vmatprep.subr.bf16.mxu0 0
      %1244 = vmatpush1.bf16.msra.mxu0 0
      %1245 = vmatprep.subr.bf16.mxu0 0
      %1246 = vmatpush1.bf16.msra.mxu0 0
      %1247 = vmatprep.subr.bf16.mxu0 0
      %1248 = vmatpush1.bf16.msra.mxu0 0
      %1249 = vmatprep.subr.bf16.mxu0 0
      %1250 = vmatpush1.bf16.msra.mxu0 0
      %1251 = vmatprep.subr.bf16.mxu0 0
      %1252 = vmatpush1.bf16.msra.mxu0 0
      %1253 = vmatprep.subr.bf16.mxu0 0
      %1254 = vmatpush1.bf16.msra.mxu0 0
      %1255 = vmatprep.subr.bf16.mxu0 0
      %1256 = vmatpush1.bf16.msra.mxu0 0
      %1257 = vmatprep.subr.bf16.mxu0 0
      %1258 = vmatpush1.bf16.msra.mxu0 0
      %1259 = vmatprep.subr.bf16.mxu0 0
      %1260 = vmatpush1.bf16.msra.mxu0 0
      %1261 = vmatprep.subr.bf16.mxu0 0
      %1262 = vmatpush1.bf16.msra.mxu0 0
      %1263 = vmatprep.subr.bf16.mxu0 0
      %1264 = vmatpush1.bf16.msra.mxu0 0
      %1265 = vmatprep.subr.bf16.mxu0 0
      %1266 = vmatpush1.bf16.msra.mxu0 0
      %1267 = vmatprep.subr.bf16.mxu0 0
      %1268 = vmatpush1.bf16.msra.mxu0 0
      %1269 = vmatprep.mubr.bf16.mxu0 0
      %1270 = vmatmul.mubr.bf16.gmra.mrb[0].mxu0 %v1235
      %v1271 = vpop.f32.mrb[0].mxu0
      %v1272 = vadd.f32 %v1220, %v1271
      %v1273 = vpop.f32.mrb[0].mxu0
      %v1274 = vpop.f32.mrb[0].mxu0
      %v1275 = vadd.f32 %v1220, %v1274
      %v1276 = vpop.f32.mrb[0].mxu0
      %1277 = vdwg.mxu0
      %v1278 = vpack.c.bf16 %v1151, %v1151
      %v1279 = vpack.c.bf16 %v1212, %v1209
      %v1280 = vpack.c.bf16 %v1275, %v1272
      %vm1281 = vcmask 64512
      %v1283 = vsel %vm1281, %v1278, 0
      %v1286 = vsel %vm1281, %v1279, 0
      %1288 = vmatprep.subr.bf16.mxu0 0
      %1289 = vmatpush1.bf16.xpose.msra.mxu0 %v1286
      %1290 = vmatprep.subr.bf16.mxu0 0
      %1291 = vmatpush1.bf16.xpose.msra.mxu0 0
      %1292 = vmatprep.subr.bf16.mxu0 0
      %1293 = vmatpush1.bf16.xpose.msra.mxu0 0
      %1294 = vmatprep.subr.bf16.mxu0 0
      %1295 = vmatpush1.bf16.xpose.msra.mxu0 0
      %1296 = vmatprep.subr.bf16.mxu0 0
      %1297 = vmatpush1.bf16.xpose.msra.mxu0 0
      %1298 = vmatprep.subr.bf16.mxu0 0
      %1299 = vmatpush1.bf16.xpose.msra.mxu0 0
      %1300 = vmatprep.subr.bf16.mxu0 0
      %1301 = vmatpush1.bf16.xpose.msra.mxu0 0
      %1302 = vmatprep.subr.bf16.mxu0 0
      %1303 = vmatpush1.bf16.xpose.msra.mxu0 0
      %1304 = vmatprep.subr.bf16.mxu0 0
      %1305 = vmatpush1.bf16.xpose.msra.mxu0 0
      %1306 = vmatprep.subr.bf16.mxu0 0
      %1307 = vmatpush1.bf16.xpose.msra.mxu0 0
      %1308 = vmatprep.subr.bf16.mxu0 0
      %1309 = vmatpush1.bf16.xpose.msra.mxu0 0
      %1310 = vmatprep.subr.bf16.mxu0 0
      %1311 = vmatpush1.bf16.xpose.msra.mxu0 0
      %1312 = vmatprep.subr.bf16.mxu0 0
      %1313 = vmatpush1.bf16.xpose.msra.mxu0 0
      %1314 = vmatprep.subr.bf16.mxu0 0
      %1315 = vmatpush1.bf16.xpose.msra.mxu0 0
      %1316 = vmatprep.subr.bf16.mxu0 0
      %1317 = vmatpush1.bf16.xpose.msra.mxu0 0
      %1318 = vmatprep.subr.bf16.mxu0 0
      %1319 = vmatpush1.bf16.xpose.msra.mxu0 0
      %1320 = vmatprep.mubr.bf16.mxu0 0
      %1321 = vmatmul.mubr.bf16.gmra.mrb[0].mxu0 %v1283
      %v1322 = vpop.f32.mrb[0].mxu0
      %v1323 = vadd.f32 0.0, %v1322
      %v1324 = vpop.f32.mrb[0].mxu0
      %v1325 = vpop.f32.mrb[0].mxu0
      %v1326 = vpop.f32.mrb[0].mxu0
      %1327 = vdwg.mxu0
      %vm1328 = vcmask 130048
      %v1329 = vsel %vm1328, %v1323, -inf
      %1330 = vmax.xlane.f32.xlu0 %v1329
      %v1331 = vpop.xlane.xlu0 %1330
      %v1332 = vsub.f32 %v1323, %v1331
      %v1333 = vmul.f32 %v1332, 1.442695
      %v1334 = vpow.pop %v1333
      %v1335 = vsel %vm1328, %v1334, 0.0
      %1336 = vadd.xlane.f32.xlu0 %v1335
      %v1337 = vpop.xlane.xlu0 %1336
      %v1338 = vrcp.pop %v1337
      %v1339 = vmul.f32 %v1334, %v1338
      %v1340 = vpack.c.bf16 %v1339, %v1339
      %v1342 = vsel %vm1328, %v1340, 0
      %1344 = vmatprep.subr.bf16.mxu0 0
      %1345 = vmatpush1.bf16.msra.mxu0 %v1280
      %1346 = vmatprep.subr.bf16.mxu0 0
      %1347 = vmatpush1.bf16.msra.mxu0 0
      %1348 = vmatprep.subr.bf16.mxu0 0
      %1349 = vmatpush1.bf16.msra.mxu0 0
      %1350 = vmatprep.subr.bf16.mxu0 0
      %1351 = vmatpush1.bf16.msra.mxu0 0
      %1352 = vmatprep.subr.bf16.mxu0 0
      %1353 = vmatpush1.bf16.msra.mxu0 0
      %1354 = vmatprep.subr.bf16.mxu0 0
      %1355 = vmatpush1.bf16.msra.mxu0 0
      %1356 = vmatprep.subr.bf16.mxu0 0
      %1357 = vmatpush1.bf16.msra.mxu0 0
      %1358 = vmatprep.subr.bf16.mxu0 0
      %1359 = vmatpush1.bf16.msra.mxu0 0
      %1360 = vmatprep.subr.bf16.mxu0 0
      %1361 = vmatpush1.bf16.msra.mxu0 0
      %1362 = vmatprep.subr.bf16.mxu0 0
      %1363 = vmatpush1.bf16.msra.mxu0 0
      %1364 = vmatprep.subr.bf16.mxu0 0
      %1365 = vmatpush1.bf16.msra.mxu0 0
      %1366 = vmatprep.subr.bf16.mxu0 0
      %1367 = vmatpush1.bf16.msra.mxu0 0
      %1368 = vmatprep.subr.bf16.mxu0 0
      %1369 = vmatpush1.bf16.msra.mxu0 0
      %1370 = vmatprep.subr.bf16.mxu0 0
      %1371 = vmatpush1.bf16.msra.mxu0 0
      %1372 = vmatprep.subr.bf16.mxu0 0
      %1373 = vmatpush1.bf16.msra.mxu0 0
      %1374 = vmatprep.subr.bf16.mxu0 0
      %1375 = vmatpush1.bf16.msra.mxu0 0
      %1376 = vmatprep.mubr.bf16.mxu0 0
      %1377 = vmatmul.mubr.bf16.gmra.mrb[0].mxu0 %v1342
      %v1378 = vpop.f32.mrb[0].mxu0
      %v1379 = vadd.f32 0.0, %v1378
      %v1380 = vpop.f32.mrb[0].mxu0
      %v1381 = vpop.f32.mrb[0].mxu0
      %v1382 = vpop.f32.mrb[0].mxu0
      %1383 = vdwg.mxu0
      %1384 = vst.msk [vmem:[#allocation2] sm:$0xff] %vm1281, %v1379
      %1386 = vrot.lane.b32.xlu0 %v1278, 120
      %v1387 = vpop.permute.xlu0 %1386
      %1389 = vrot.lane.b32.xlu0 %v1279, 120
      %v1390 = vpop.permute.xlu0 %1389
      %v1392 = vsel %vm1281, %v1387, 0
      %v1395 = vsel %vm1281, %v1390, 0
      %1397 = vmatprep.subr.bf16.mxu0 0
      %1398 = vmatpush1.bf16.xpose.msra.mxu0 %v1395
      %1399 = vmatprep.subr.bf16.mxu0 0
      %1400 = vmatpush1.bf16.xpose.msra.mxu0 0
      %1401 = vmatprep.subr.bf16.mxu0 0
      %1402 = vmatpush1.bf16.xpose.msra.mxu0 0
      %1403 = vmatprep.subr.bf16.mxu0 0
      %1404 = vmatpush1.bf16.xpose.msra.mxu0 0
      %1405 = vmatprep.subr.bf16.mxu0 0
      %1406 = vmatpush1.bf16.xpose.msra.mxu0 0
      %1407 = vmatprep.subr.bf16.mxu0 0
      %1408 = vmatpush1.bf16.xpose.msra.mxu0 0
      %1409 = vmatprep.subr.bf16.mxu0 0
      %1410 = vmatpush1.bf16.xpose.msra.mxu0 0
      %1411 = vmatprep.subr.bf16.mxu0 0
      %1412 = vmatpush1.bf16.xpose.msra.mxu0 0
      %1413 = vmatprep.subr.bf16.mxu0 0
      %1414 = vmatpush1.bf16.xpose.msra.mxu0 0
      %1415 = vmatprep.subr.bf16.mxu0 0
      %1416 = vmatpush1.bf16.xpose.msra.mxu0 0
      %1417 = vmatprep.subr.bf16.mxu0 0
      %1418 = vmatpush1.bf16.xpose.msra.mxu0 0
      %1419 = vmatprep.subr.bf16.mxu0 0
      %1420 = vmatpush1.bf16.xpose.msra.mxu0 0
      %1421 = vmatprep.subr.bf16.mxu0 0
      %1422 = vmatpush1.bf16.xpose.msra.mxu0 0
      %1423 = vmatprep.subr.bf16.mxu0 0
      %1424 = vmatpush1.bf16.xpose.msra.mxu0 0
      %1425 = vmatprep.subr.bf16.mxu0 0
      %1426 = vmatpush1.bf16.xpose.msra.mxu0 0
      %1427 = vmatprep.subr.bf16.mxu0 0
      %1428 = vmatpush1.bf16.xpose.msra.mxu0 0
      %1429 = vmatprep.mubr.bf16.mxu0 0
      %1430 = vmatmul.mubr.bf16.gmra.mrb[0].mxu0 %v1392
      %v1431 = vpop.f32.mrb[0].mxu0
      %v1432 = vadd.f32 0.0, %v1431
      %v1433 = vpop.f32.mrb[0].mxu0
      %v1434 = vpop.f32.mrb[0].mxu0
      %v1435 = vpop.f32.mrb[0].mxu0
      %1436 = vdwg.mxu0
      %v1437 = vsel %vm1328, %v1432, -inf
      %1438 = vmax.xlane.f32.xlu0 %v1437
      %v1439 = vpop.xlane.xlu0 %1438
      %v1440 = vsub.f32 %v1432, %v1439
      %v1441 = vmul.f32 %v1440, 1.442695
      %v1442 = vpow.pop %v1441
      %v1443 = vsel %vm1328, %v1442, 0.0
      %1444 = vadd.xlane.f32.xlu0 %v1443
      %v1445 = vpop.xlane.xlu0 %1444
      %v1446 = vrcp.pop %v1445
      %v1447 = vmul.f32 %v1442, %v1446
      %v1448 = vpack.c.bf16 %v1447, %v1447
      %1450 = vrot.lane.b32.xlu0 %v1280, 120
      %v1451 = vpop.permute.xlu0 %1450
      %v1454 = vsel %vm1328, %v1448, 0
      %1456 = vmatprep.subr.bf16.mxu0 0
      %1457 = vmatpush1.bf16.msra.mxu0 %v1451
      %1458 = vmatprep.subr.bf16.mxu0 0
      %1459 = vmatpush1.bf16.msra.mxu0 0
      %1460 = vmatprep.subr.bf16.mxu0 0
      %1461 = vmatpush1.bf16.msra.mxu0 0
      %1462 = vmatprep.subr.bf16.mxu0 0
      %1463 = vmatpush1.bf16.msra.mxu0 0
      %1464 = vmatprep.subr.bf16.mxu0 0
      %1465 = vmatpush1.bf16.msra.mxu0 0
      %1466 = vmatprep.subr.bf16.mxu0 0
      %1467 = vmatpush1.bf16.msra.mxu0 0
      %1468 = vmatprep.subr.bf16.mxu0 0
      %1469 = vmatpush1.bf16.msra.mxu0 0
      %1470 = vmatprep.subr.bf16.mxu0 0
      %1471 = vmatpush1.bf16.msra.mxu0 0
      %1472 = vmatprep.subr.bf16.mxu0 0
      %1473 = vmatpush1.bf16.msra.mxu0 0
      %1474 = vmatprep.subr.bf16.mxu0 0
      %1475 = vmatpush1.bf16.msra.mxu0 0
      %1476 = vmatprep.subr.bf16.mxu0 0
      %1477 = vmatpush1.bf16.msra.mxu0 0
      %1478 = vmatprep.subr.bf16.mxu0 0
      %1479 = vmatpush1.bf16.msra.mxu0 0
      %1480 = vmatprep.subr.bf16.mxu0 0
      %1481 = vmatpush1.bf16.msra.mxu0 0
      %1482 = vmatprep.subr.bf16.mxu0 0
      %1483 = vmatpush1.bf16.msra.mxu0 0
      %1484 = vmatprep.subr.bf16.mxu0 0
      %1485 = vmatpush1.bf16.msra.mxu0 0
      %1486 = vmatprep.subr.bf16.mxu0 0
      %1487 = vmatpush1.bf16.msra.mxu0 0
      %1488 = vmatprep.mubr.bf16.mxu0 0
      %1489 = vmatmul.mubr.bf16.gmra.mrb[0].mxu0 %v1454
      %v1490 = vpop.f32.mrb[0].mxu0
      %v1491 = vadd.f32 0.0, %v1490
      %v1492 = vpop.f32.mrb[0].mxu0
      %v1493 = vpop.f32.mrb[0].mxu0
      %v1494 = vpop.f32.mrb[0].mxu0
      %1495 = vdwg.mxu0
      %1497 = vrot.lane.b32.xlu0 %v1491, 8
      %v1498 = vpop.permute.xlu0 %1497
      %vm1500 = vcmask 130112
      %1501 = vst.msk [vmem:[#allocation2] sm:$0xff] %vm1500, %v1498
      %1502 = vrot.lane.b32.xlu0 %v1278, 112
      %v1503 = vpop.permute.xlu0 %1502
      %1504 = vrot.lane.b32.xlu0 %v1279, 112
      %v1505 = vpop.permute.xlu0 %1504
      %v1507 = vsel %vm1281, %v1503, 0
      %v1510 = vsel %vm1281, %v1505, 0
      %1512 = vmatprep.subr.bf16.mxu0 0
      %1513 = vmatpush1.bf16.xpose.msra.mxu0 %v1510
      %1514 = vmatprep.subr.bf16.mxu0 0
      %1515 = vmatpush1.bf16.xpose.msra.mxu0 0
      %1516 = vmatprep.subr.bf16.mxu0 0
      %1517 = vmatpush1.bf16.xpose.msra.mxu0 0
      %1518 = vmatprep.subr.bf16.mxu0 0
      %1519 = vmatpush1.bf16.xpose.msra.mxu0 0
      %1520 = vmatprep.subr.bf16.mxu0 0
      %1521 = vmatpush1.bf16.xpose.msra.mxu0 0
      %1522 = vmatprep.subr.bf16.mxu0 0
      %1523 = vmatpush1.bf16.xpose.msra.mxu0 0
      %1524 = vmatprep.subr.bf16.mxu0 0
      %1525 = vmatpush1.bf16.xpose.msra.mxu0 0
      %1526 = vmatprep.subr.bf16.mxu0 0
      %1527 = vmatpush1.bf16.xpose.msra.mxu0 0
      %1528 = vmatprep.subr.bf16.mxu0 0
      %1529 = vmatpush1.bf16.xpose.msra.mxu0 0
      %1530 = vmatprep.subr.bf16.mxu0 0
      %1531 = vmatpush1.bf16.xpose.msra.mxu0 0
      %1532 = vmatprep.subr.bf16.mxu0 0
      %1533 = vmatpush1.bf16.xpose.msra.mxu0 0
      %1534 = vmatprep.subr.bf16.mxu0 0
      %1535 = vmatpush1.bf16.xpose.msra.mxu0 0
      %1536 = vmatprep.subr.bf16.mxu0 0
      %1537 = vmatpush1.bf16.xpose.msra.mxu0 0
      %1538 = vmatprep.subr.bf16.mxu0 0
      %1539 = vmatpush1.bf16.xpose.msra.mxu0 0
      %1540 = vmatprep.subr.bf16.mxu0 0
      %1541 = vmatpush1.bf16.xpose.msra.mxu0 0
      %1542 = vmatprep.subr.bf16.mxu0 0
      %1543 = vmatpush1.bf16.xpose.msra.mxu0 0
      %1544 = vmatprep.mubr.bf16.mxu0 0
      %1545 = vmatmul.mubr.bf16.gmra.mrb[0].mxu0 %v1507
      %v1546 = vpop.f32.mrb[0].mxu0
      %v1547 = vadd.f32 0.0, %v1546
      %v1548 = vpop.f32.mrb[0].mxu0
      %v1549 = vpop.f32.mrb[0].mxu0
      %v1550 = vpop.f32.mrb[0].mxu0
      %1551 = vdwg.mxu0
      %v1552 = vsel %vm1328, %v1547, -inf
      %1553 = vmax.xlane.f32.xlu0 %v1552
      %v1554 = vpop.xlane.xlu0 %1553
      %v1555 = vsub.f32 %v1547, %v1554
      %v1556 = vmul.f32 %v1555, 1.442695
      %v1557 = vpow.pop %v1556
      %v1558 = vsel %vm1328, %v1557, 0.0
      %1559 = vadd.xlane.f32.xlu0 %v1558
      %v1560 = vpop.xlane.xlu0 %1559
      %v1561 = vrcp.pop %v1560
      %v1562 = vmul.f32 %v1557, %v1561
      %v1563 = vpack.c.bf16 %v1562, %v1562
      %1564 = vrot.lane.b32.xlu0 %v1280, 112
      %v1565 = vpop.permute.xlu0 %1564
      %v1568 = vsel %vm1328, %v1563, 0
      %1570 = vmatprep.subr.bf16.mxu0 0
      %1571 = vmatpush1.bf16.msra.mxu0 %v1565
      %1572 = vmatprep.subr.bf16.mxu0 0
      %1573 = vmatpush1.bf16.msra.mxu0 0
      %1574 = vmatprep.subr.bf16.mxu0 0
      %1575 = vmatpush1.bf16.msra.mxu0 0
      %1576 = vmatprep.subr.bf16.mxu0 0
      %1577 = vmatpush1.bf16.msra.mxu0 0
      %1578 = vmatprep.subr.bf16.mxu0 0
      %1579 = vmatpush1.bf16.msra.mxu0 0
      %1580 = vmatprep.subr.bf16.mxu0 0
      %1581 = vmatpush1.bf16.msra.mxu0 0
      %1582 = vmatprep.subr.bf16.mxu0 0
      %1583 = vmatpush1.bf16.msra.mxu0 0
      %1584 = vmatprep.subr.bf16.mxu0 0
      %1585 = vmatpush1.bf16.msra.mxu0 0
      %1586 = vmatprep.subr.bf16.mxu0 0
      %1587 = vmatpush1.bf16.msra.mxu0 0
      %1588 = vmatprep.subr.bf16.mxu0 0
      %1589 = vmatpush1.bf16.msra.mxu0 0
      %1590 = vmatprep.subr.bf16.mxu0 0
      %1591 = vmatpush1.bf16.msra.mxu0 0
      %1592 = vmatprep.subr.bf16.mxu0 0
      %1593 = vmatpush1.bf16.msra.mxu0 0
      %1594 = vmatprep.subr.bf16.mxu0 0
      %1595 = vmatpush1.bf16.msra.mxu0 0
      %1596 = vmatprep.subr.bf16.mxu0 0
      %1597 = vmatpush1.bf16.msra.mxu0 0
      %1598 = vmatprep.subr.bf16.mxu0 0
      %1599 = vmatpush1.bf16.msra.mxu0 0
      %1600 = vmatprep.subr.bf16.mxu0 0
      %1601 = vmatpush1.bf16.msra.mxu0 0
      %1602 = vmatprep.mubr.bf16.mxu0 0
      %1603 = vmatmul.mubr.bf16.gmra.mrb[0].mxu0 %v1568
      %v1604 = vpop.f32.mrb[0].mxu0
      %v1605 = vadd.f32 0.0, %v1604
      %v1606 = vpop.f32.mrb[0].mxu0
      %v1607 = vpop.f32.mrb[0].mxu0
      %v1608 = vpop.f32.mrb[0].mxu0
      %1609 = vdwg.mxu0
      %1611 = vrot.lane.b32.xlu0 %v1605, 16
      %v1612 = vpop.permute.xlu0 %1611
      %vm1614 = vcmask 195712
      %1615 = vst.msk [vmem:[#allocation2] sm:$0xff] %vm1614, %v1612
      %1616 = vrot.lane.b32.xlu0 %v1278, 104
      %v1617 = vpop.permute.xlu0 %1616
      %1618 = vrot.lane.b32.xlu0 %v1279, 104
      %v1619 = vpop.permute.xlu0 %1618
      %v1621 = vsel %vm1281, %v1617, 0
      %v1624 = vsel %vm1281, %v1619, 0
      %1626 = vmatprep.subr.bf16.mxu0 0
      %1627 = vmatpush1.bf16.xpose.msra.mxu0 %v1624
      %1628 = vmatprep.subr.bf16.mxu0 0
      %1629 = vmatpush1.bf16.xpose.msra.mxu0 0
      %1630 = vmatprep.subr.bf16.mxu0 0
      %1631 = vmatpush1.bf16.xpose.msra.mxu0 0
      %1632 = vmatprep.subr.bf16.mxu0 0
      %1633 = vmatpush1.bf16.xpose.msra.mxu0 0
      %1634 = vmatprep.subr.bf16.mxu0 0
      %1635 = vmatpush1.bf16.xpose.msra.mxu0 0
      %1636 = vmatprep.subr.bf16.mxu0 0
      %1637 = vmatpush1.bf16.xpose.msra.mxu0 0
      %1638 = vmatprep.subr.bf16.mxu0 0
      %1639 = vmatpush1.bf16.xpose.msra.mxu0 0
      %1640 = vmatprep.subr.bf16.mxu0 0
      %1641 = vmatpush1.bf16.xpose.msra.mxu0 0
      %1642 = vmatprep.subr.bf16.mxu0 0
      %1643 = vmatpush1.bf16.xpose.msra.mxu0 0
      %1644 = vmatprep.subr.bf16.mxu0 0
      %1645 = vmatpush1.bf16.xpose.msra.mxu0 0
      %1646 = vmatprep.subr.bf16.mxu0 0
      %1647 = vmatpush1.bf16.xpose.msra.mxu0 0
      %1648 = vmatprep.subr.bf16.mxu0 0
      %1649 = vmatpush1.bf16.xpose.msra.mxu0 0
      %1650 = vmatprep.subr.bf16.mxu0 0
      %1651 = vmatpush1.bf16.xpose.msra.mxu0 0
      %1652 = vmatprep.subr.bf16.mxu0 0
      %1653 = vmatpush1.bf16.xpose.msra.mxu0 0
      %1654 = vmatprep.subr.bf16.mxu0 0
      %1655 = vmatpush1.bf16.xpose.msra.mxu0 0
      %1656 = vmatprep.subr.bf16.mxu0 0
      %1657 = vmatpush1.bf16.xpose.msra.mxu0 0
      %1658 = vmatprep.mubr.bf16.mxu0 0
      %1659 = vmatmul.mubr.bf16.gmra.mrb[0].mxu0 %v1621
      %v1660 = vpop.f32.mrb[0].mxu0
      %v1661 = vadd.f32 0.0, %v1660
      %v1662 = vpop.f32.mrb[0].mxu0
      %v1663 = vpop.f32.mrb[0].mxu0
      %v1664 = vpop.f32.mrb[0].mxu0
      %1665 = vdwg.mxu0
      %v1666 = vsel %vm1328, %v1661, -inf
      %1667 = vmax.xlane.f32.xlu0 %v1666
      %v1668 = vpop.xlane.xlu0 %1667
      %v1669 = vsub.f32 %v1661, %v1668
      %v1670 = vmul.f32 %v1669, 1.442695
      %v1671 = vpow.pop %v1670
      %v1672 = vsel %vm1328, %v1671, 0.0
      %1673 = vadd.xlane.f32.xlu0 %v1672
      %v1674 = vpop.xlane.xlu0 %1673
      %v1675 = vrcp.pop %v1674
      %v1676 = vmul.f32 %v1671, %v1675
      %v1677 = vpack.c.bf16 %v1676, %v1676
      %1678 = vrot.lane.b32.xlu0 %v1280, 104
      %v1679 = vpop.permute.xlu0 %1678
      %v1682 = vsel %vm1328, %v1677, 0
      %1684 = vmatprep.subr.bf16.mxu0 0
      %1685 = vmatpush1.bf16.msra.mxu0 %v1679
      %1686 = vmatprep.subr.bf16.mxu0 0
      %1687 = vmatpush1.bf16.msra.mxu0 0
      %1688 = vmatprep.subr.bf16.mxu0 0
      %1689 = vmatpush1.bf16.msra.mxu0 0
      %1690 = vmatprep.subr.bf16.mxu0 0
      %1691 = vmatpush1.bf16.msra.mxu0 0
      %1692 = vmatprep.subr.bf16.mxu0 0
      %1693 = vmatpush1.bf16.msra.mxu0 0
      %1694 = vmatprep.subr.bf16.mxu0 0
      %1695 = vmatpush1.bf16.msra.mxu0 0
      %1696 = vmatprep.subr.bf16.mxu0 0
      %1697 = vmatpush1.bf16.msra.mxu0 0
      %1698 = vmatprep.subr.bf16.mxu0 0
      %1699 = vmatpush1.bf16.msra.mxu0 0
      %1700 = vmatprep.subr.bf16.mxu0 0
      %1701 = vmatpush1.bf16.msra.mxu0 0
      %1702 = vmatprep.subr.bf16.mxu0 0
      %1703 = vmatpush1.bf16.msra.mxu0 0
      %1704 = vmatprep.subr.bf16.mxu0 0
      %1705 = vmatpush1.bf16.msra.mxu0 0
      %1706 = vmatprep.subr.bf16.mxu0 0
      %1707 = vmatpush1.bf16.msra.mxu0 0
      %1708 = vmatprep.subr.bf16.mxu0 0
      %1709 = vmatpush1.bf16.msra.mxu0 0
      %1710 = vmatprep.subr.bf16.mxu0 0
      %1711 = vmatpush1.bf16.msra.mxu0 0
      %1712 = vmatprep.subr.bf16.mxu0 0
      %1713 = vmatpush1.bf16.msra.mxu0 0
      %1714 = vmatprep.subr.bf16.mxu0 0
      %1715 = vmatpush1.bf16.msra.mxu0 0
      %1716 = vmatprep.mubr.bf16.mxu0 0
      %1717 = vmatmul.mubr.bf16.gmra.mrb[0].mxu0 %v1682
      %v1718 = vpop.f32.mrb[0].mxu0
      %v1719 = vadd.f32 0.0, %v1718
      %v1720 = vpop.f32.mrb[0].mxu0
      %v1721 = vpop.f32.mrb[0].mxu0
      %v1722 = vpop.f32.mrb[0].mxu0
      %1723 = vdwg.mxu0
      %1725 = vrot.lane.b32.xlu0 %v1719, 24
      %v1726 = vpop.permute.xlu0 %1725
      %vm1728 = vcmask 261312
      %1729 = vst.msk [vmem:[#allocation2] sm:$0xff] %vm1728, %v1726
      %v1730 = vld [vmem:[#allocation2] sm:$0xff]
      %v1731 = vpack.c.bf16 %v1730, %v1730
      %v1733 = vlaneseq
      %v1734 = vshrl.u32 %v1733, 7
      %v1735 = vsub.s32 0, %v1734
      %v1736 = vrot.slane %v1085, %v1735
      %v1742 = vunpack.c.l.b16 %v1081
      %v1743 = vunpack.c.l.b16 %v1082
      %v1744 = vunpack.c.l.b16 %v1083
      %v1745 = vunpack.c.l.b16 %v1084
      %v1746 = vpack.c.b16 %v1743, %v1742
      %v1747 = vpack.c.b16 %v1745, %v1744
      %v1751 = vsel %vm1107, %v1731, 0
      %1753 = vmatprep.subr.bf16.mxu0 0
      %1754 = vmatpush1.bf16.msra.mxu0 %v1746
      %1755 = vmatprep.subr.bf16.mxu0 0
      %1756 = vmatpush1.bf16.msra.mxu0 %v1747
      %1757 = vmatprep.subr.bf16.mxu0 0
      %1758 = vmatpush1.bf16.msra.mxu0 0
      %1759 = vmatprep.subr.bf16.mxu0 0
      %1760 = vmatpush1.bf16.msra.mxu0 0
      %1761 = vmatprep.subr.bf16.mxu0 0
      %1762 = vmatpush1.bf16.msra.mxu0 0
      %1763 = vmatprep.subr.bf16.mxu0 0
      %1764 = vmatpush1.bf16.msra.mxu0 0
      %1765 = vmatprep.subr.bf16.mxu0 0
      %1766 = vmatpush1.bf16.msra.mxu0 0
      %1767 = vmatprep.subr.bf16.mxu0 0
      %1768 = vmatpush1.bf16.msra.mxu0 0
      %1769 = vmatprep.subr.bf16.mxu0 0
      %1770 = vmatpush1.bf16.msra.mxu0 0
      %1771 = vmatprep.subr.bf16.mxu0 0
      %1772 = vmatpush1.bf16.msra.mxu0 0
      %1773 = vmatprep.subr.bf16.mxu0 0
      %1774 = vmatpush1.bf16.msra.mxu0 0
      %1775 = vmatprep.subr.bf16.mxu0 0
      %1776 = vmatpush1.bf16.msra.mxu0 0
      %1777 = vmatprep.subr.bf16.mxu0 0
      %1778 = vmatpush1.bf16.msra.mxu0 0
      %1779 = vmatprep.subr.bf16.mxu0 0
      %1780 = vmatpush1.bf16.msra.mxu0 0
      %1781 = vmatprep.subr.bf16.mxu0 0
      %1782 = vmatpush1.bf16.msra.mxu0 0
      %1783 = vmatprep.subr.bf16.mxu0 0
      %1784 = vmatpush1.bf16.msra.mxu0 0
      %1785 = vmatprep.mubr.bf16.mxu0 0
      %1786 = vmatmul.mubr.bf16.gmra.mrb[0].mxu0 %v1751
      %v1787 = vpop.f32.mrb[0].mxu0
      %v1788 = vadd.f32 %v1736, %v1787
      %v1789 = vpop.f32.mrb[0].mxu0
      %v1790 = vpop.f32.mrb[0].mxu0
      %v1791 = vpop.f32.mrb[0].mxu0
      %1792 = vdwg.mxu0
      %v1793 = vadd.f32 %v1060, %v1788
      %v1794 = vsel %vm1107, %v1793, 0.0
      %1795 = vadd.xlane.f32.xlu0 %v1794
      %v1796 = vpop.xlane.xlu0 %1795
      %v1797 = vrcp.pop 32.0
      %v1798 = vmul.f32 %v1796, %v1797
      %v1799 = vsub.f32 %v1793, %v1798
      %v1800 = vmul.f32 %v1799, %v1799
      %v1801 = vsel %vm1107, %v1800, 0.0
      %1802 = vadd.xlane.f32.xlu0 %v1801
      %v1803 = vpop.xlane.xlu0 %1802
      %v1804 = vmul.f32 %v1803, %v1797
      %v1805 = vadd.f32 %v1804, 1e-05
      %v1806 = vrsqrt.pop %v1805
      %v1807 = vmul.f32 %v1799, %v1806
      %v1809 = vlaneseq
      %v1810 = vshrl.u32 %v1809, 7
      %v1811 = vsub.s32 0, %v1810
      %v1812 = vrot.slane %v1086, %v1811
      %v1814 = vmul.f32 %v1807, %v1812
      %v1816 = vlaneseq
      %v1817 = vshrl.u32 %v1816, 7
      %v1818 = vsub.s32 0, %v1817
      %v1819 = vrot.slane %v1087, %v1818
      %v1821 = vadd.f32 %v1814, %v1819
      %v1822 = vld [vmem:[%s1031] sm:$0xff]
      %v1823 = vld [vmem:[%s1031 + $0x8] sm:$0xff]
      %v1824 = vld [vmem:[%s1031 + $0x10] sm:$0xff]
      %v1825 = vld [vmem:[%s1041] sm:$0xff]
      %v1826 = vld [vmem:[%s1041 + $0x8] sm:$0xff]
      %v1827 = vld [vmem:[%s1041 + $0x10] sm:$0xff]
      %v1828 = vadd.f32 %v1822, %v1825
      %v1829 = vadd.f32 %v1823, %v1826
      %v1830 = vadd.f32 %v1824, %v1827
      %v1831 = vadd.f32 %v1821, %v1062
      %v1832 = vld [vmem:[%s1044] sm:$0x1]
      %v1833 = vld [vmem:[%s31] sm:$0xf]
      %v1834 = vld [vmem:[%s31 + $0x4] sm:$0xf]
      %v1835 = vld [vmem:[%s31 + $0x8] sm:$0xf]
      %v1836 = vld [vmem:[%s31 + $0xc] sm:$0xf]
      %v1837 = vld [vmem:[%s33] sm:$0x1]
      %v1838 = vld [vmem:[%s35] sm:$0xf]
      %v1839 = vld [vmem:[%s35 + $0x4] sm:$0xf]
      %v1840 = vld [vmem:[%s35 + $0x8] sm:$0xf]
      %v1841 = vld [vmem:[%s35 + $0xc] sm:$0xf]
      %v1842 = vld [vmem:[%s37] sm:$0x1]
      %v1843 = vld [vmem:[%s39] sm:$0xf]
      %v1844 = vld [vmem:[%s39 + $0x4] sm:$0xf]
      %v1845 = vld [vmem:[%s39 + $0x8] sm:$0xf]
      %v1846 = vld [vmem:[%s39 + $0xc] sm:$0xf]
      %v1847 = vld [vmem:[%s41] sm:$0x1]
      %v1848 = vld [vmem:[%s43] sm:$0xf]
      %v1849 = vld [vmem:[%s43 + $0x4] sm:$0xf]
      %v1850 = vld [vmem:[%s43 + $0x8] sm:$0xf]
      %v1851 = vld [vmem:[%s43 + $0xc] sm:$0xf]
      %v1852 = vld [vmem:[%s45] sm:$0x1]
      %v1853 = vld [vmem:[%s47] sm:$0x1]
      %v1854 = vld [vmem:[%s49] sm:$0x1]
      %v1855 = vpack.c.bf16 %v1831, %v1831
      %v1857 = vlaneseq
      %v1858 = vshrl.u32 %v1857, 7
      %v1859 = vsub.s32 0, %v1858
      %v1860 = vrot.slane %v1837, %v1859
      %v1866 = vunpack.c.l.b16 %v1833
      %v1867 = vunpack.c.l.b16 %v1834
      %v1868 = vunpack.c.l.b16 %v1835
      %v1869 = vunpack.c.l.b16 %v1836
      %v1870 = vpack.c.b16 %v1867, %v1866
      %v1871 = vpack.c.b16 %v1869, %v1868
      %v1875 = vsel %vm1107, %v1855, 0
      %1877 = vmatprep.subr.bf16.mxu0 0
      %1878 = vmatpush1.bf16.msra.mxu0 %v1870
      %1879 = vmatprep.subr.bf16.mxu0 0
      %1880 = vmatpush1.bf16.msra.mxu0 %v1871
      %1881 = vmatprep.subr.bf16.mxu0 0
      %1882 = vmatpush1.bf16.msra.mxu0 0
      %1883 = vmatprep.subr.bf16.mxu0 0
      %1884 = vmatpush1.bf16.msra.mxu0 0
      %1885 = vmatprep.subr.bf16.mxu0 0
      %1886 = vmatpush1.bf16.msra.mxu0 0
      %1887 = vmatprep.subr.bf16.mxu0 0
      %1888 = vmatpush1.bf16.msra.mxu0 0
      %1889 = vmatprep.subr.bf16.mxu0 0
      %1890 = vmatpush1.bf16.msra.mxu0 0
      %1891 = vmatprep.subr.bf16.mxu0 0
      %1892 = vmatpush1.bf16.msra.mxu0 0
      %1893 = vmatprep.subr.bf16.mxu0 0
      %1894 = vmatpush1.bf16.msra.mxu0 0
      %1895 = vmatprep.subr.bf16.mxu0 0
      %1896 = vmatpush1.bf16.msra.mxu0 0
      %1897 = vmatprep.subr.bf16.mxu0 0
      %1898 = vmatpush1.bf16.msra.mxu0 0
      %1899 = vmatprep.subr.bf16.mxu0 0
      %1900 = vmatpush1.bf16.msra.mxu0 0
      %1901 = vmatprep.subr.bf16.mxu0 0
      %1902 = vmatpush1.bf16.msra.mxu0 0
      %1903 = vmatprep.subr.bf16.mxu0 0
      %1904 = vmatpush1.bf16.msra.mxu0 0
      %1905 = vmatprep.subr.bf16.mxu0 0
      %1906 = vmatpush1.bf16.msra.mxu0 0
      %1907 = vmatprep.subr.bf16.mxu0 0
      %1908 = vmatpush1.bf16.msra.mxu0 0
      %1909 = vmatprep.mubr.bf16.mxu0 0
      %1910 = vmatmul.mubr.bf16.gmra.mrb[0].mxu0 %v1875
      %v1911 = vpop.f32.mrb[0].mxu0
      %v1912 = vadd.f32 %v1860, %v1911
      %v1913 = vpop.f32.mrb[0].mxu0
      %v1914 = vpop.f32.mrb[0].mxu0
      %v1915 = vpop.f32.mrb[0].mxu0
      %1916 = vdwg.mxu0
      %v1917 = vmul.f32 %v1912, 0.35355338
      %v1918 = vpack.c.bf16 %v1829, %v1828
      %v1919 = vpack.c.bf16 %v1830, %v1830
      %v1921 = vlaneseq
      %v1922 = vshrl.u32 %v1921, 7
      %v1923 = vsub.s32 0, %v1922
      %v1924 = vrot.slane %v1842, %v1923
      %v1930 = vunpack.c.l.b16 %v1838
      %v1931 = vunpack.c.l.b16 %v1839
      %v1932 = vunpack.c.l.b16 %v1840
      %v1933 = vunpack.c.l.b16 %v1841
      %v1934 = vpack.c.b16 %v1931, %v1930
      %v1935 = vpack.c.b16 %v1933, %v1932
      %v1939 = vsel %vm1107, %v1918, 0
      %v1942 = vsel %vm1107, %v1919, 0
      %1944 = vmatprep.subr.bf16.mxu0 0
      %1945 = vmatpush1.bf16.msra.mxu0 %v1934
      %1946 = vmatprep.subr.bf16.mxu0 0
      %1947 = vmatpush1.bf16.msra.mxu0 %v1935
      %1948 = vmatprep.subr.bf16.mxu0 0
      %1949 = vmatpush1.bf16.msra.mxu0 0
      %1950 = vmatprep.subr.bf16.mxu0 0
      %1951 = vmatpush1.bf16.msra.mxu0 0
      %1952 = vmatprep.subr.bf16.mxu0 0
      %1953 = vmatpush1.bf16.msra.mxu0 0
      %1954 = vmatprep.subr.bf16.mxu0 0
      %1955 = vmatpush1.bf16.msra.mxu0 0
      %1956 = vmatprep.subr.bf16.mxu0 0
      %1957 = vmatpush1.bf16.msra.mxu0 0
      %1958 = vmatprep.subr.bf16.mxu0 0
      %1959 = vmatpush1.bf16.msra.mxu0 0
      %1960 = vmatprep.subr.bf16.mxu0 0
      %1961 = vmatpush1.bf16.msra.mxu0 0
      %1962 = vmatprep.subr.bf16.mxu0 0
      %1963 = vmatpush1.bf16.msra.mxu0 0
      %1964 = vmatprep.subr.bf16.mxu0 0
      %1965 = vmatpush1.bf16.msra.mxu0 0
      %1966 = vmatprep.subr.bf16.mxu0 0
      %1967 = vmatpush1.bf16.msra.mxu0 0
      %1968 = vmatprep.subr.bf16.mxu0 0
      %1969 = vmatpush1.bf16.msra.mxu0 0
      %1970 = vmatprep.subr.bf16.mxu0 0
      %1971 = vmatpush1.bf16.msra.mxu0 0
      %1972 = vmatprep.subr.bf16.mxu0 0
      %1973 = vmatpush1.bf16.msra.mxu0 0
      %1974 = vmatprep.subr.bf16.mxu0 0
      %1975 = vmatpush1.bf16.msra.mxu0 0
      %1976 = vmatprep.mubr.bf16.mxu0 0
      %1977 = vmatmul.mubr.bf16.gmra.mrb[0].mxu0 %v1939
      %v1978 = vpop.f32.mrb[0].mxu0
      %v1979 = vadd.f32 %v1924, %v1978
      %v1980 = vpop.f32.mrb[0].mxu0
      %v1981 = vpop.f32.mrb[0].mxu0
      %v1982 = vadd.f32 %v1924, %v1981
      %v1983 = vpop.f32.mrb[0].mxu0
      %1984 = vmatprep.mubr.bf16.mxu0 0
      %1985 = vmatmul.mubr.bf16.gmra.mrb[0].mxu0 %v1942
      %v1986 = vpop.f32.mrb[0].mxu0
      %v1987 = vadd.f32 %v1924, %v1986
      %v1988 = vpop.f32.mrb[0].mxu0
      %v1989 = vpop.f32.mrb[0].mxu0
      %v1990 = vpop.f32.mrb[0].mxu0
      %1991 = vdwg.mxu0
      %v1992 = vpack.c.bf16 %v1823, %v1822
      %v1993 = vpack.c.bf16 %v1824, %v1824
      %v1995 = vlaneseq
      %v1996 = vshrl.u32 %v1995, 7
      %v1997 = vsub.s32 0, %v1996
      %v1998 = vrot.slane %v1847, %v1997
      %v2004 = vunpack.c.l.b16 %v1843
      %v2005 = vunpack.c.l.b16 %v1844
      %v2006 = vunpack.c.l.b16 %v1845
      %v2007 = vunpack.c.l.b16 %v1846
      %v2008 = vpack.c.b16 %v2005, %v2004
      %v2009 = vpack.c.b16 %v2007, %v2006
      %v2013 = vsel %vm1107, %v1992, 0
      %v2016 = vsel %vm1107, %v1993, 0
      %2018 = vmatprep.subr.bf16.mxu0 0
      %2019 = vmatpush1.bf16.msra.mxu0 %v2008
      %2020 = vmatprep.subr.bf16.mxu0 0
      %2021 = vmatpush1.bf16.msra.mxu0 %v2009
      %2022 = vmatprep.subr.bf16.mxu0 0
      %2023 = vmatpush1.bf16.msra.mxu0 0
      %2024 = vmatprep.subr.bf16.mxu0 0
      %2025 = vmatpush1.bf16.msra.mxu0 0
      %2026 = vmatprep.subr.bf16.mxu0 0
      %2027 = vmatpush1.bf16.msra.mxu0 0
      %2028 = vmatprep.subr.bf16.mxu0 0
      %2029 = vmatpush1.bf16.msra.mxu0 0
      %2030 = vmatprep.subr.bf16.mxu0 0
      %2031 = vmatpush1.bf16.msra.mxu0 0
      %2032 = vmatprep.subr.bf16.mxu0 0
      %2033 = vmatpush1.bf16.msra.mxu0 0
      %2034 = vmatprep.subr.bf16.mxu0 0
      %2035 = vmatpush1.bf16.msra.mxu0 0
      %2036 = vmatprep.subr.bf16.mxu0 0
      %2037 = vmatpush1.bf16.msra.mxu0 0
      %2038 = vmatprep.subr.bf16.mxu0 0
      %2039 = vmatpush1.bf16.msra.mxu0 0
      %2040 = vmatprep.subr.bf16.mxu0 0
      %2041 = vmatpush1.bf16.msra.mxu0 0
      %2042 = vmatprep.subr.bf16.mxu0 0
      %2043 = vmatpush1.bf16.msra.mxu0 0
      %2044 = vmatprep.subr.bf16.mxu0 0
      %2045 = vmatpush1.bf16.msra.mxu0 0
      %2046 = vmatprep.subr.bf16.mxu0 0
      %2047 = vmatpush1.bf16.msra.mxu0 0
      %2048 = vmatprep.subr.bf16.mxu0 0
      %2049 = vmatpush1.bf16.msra.mxu0 0
      %2050 = vmatprep.mubr.bf16.mxu0 0
      %2051 = vmatmul.mubr.bf16.gmra.mrb[0].mxu0 %v2013
      %v2052 = vpop.f32.mrb[0].mxu0
      %v2053 = vadd.f32 %v1998, %v2052
      %v2054 = vpop.f32.mrb[0].mxu0
      %v2055 = vpop.f32.mrb[0].mxu0
      %v2056 = vadd.f32 %v1998, %v2055
      %v2057 = vpop.f32.mrb[0].mxu0
      %2058 = vmatprep.mubr.bf16.mxu0 0
      %2059 = vmatmul.mubr.bf16.gmra.mrb[0].mxu0 %v2016
      %v2060 = vpop.f32.mrb[0].mxu0
      %v2061 = vadd.f32 %v1998, %v2060
      %v2062 = vpop.f32.mrb[0].mxu0
      %v2063 = vpop.f32.mrb[0].mxu0
      %v2064 = vpop.f32.mrb[0].mxu0
      %2065 = vdwg.mxu0
      %v2066 = vpack.c.bf16 %v1917, %v1917
      %v2067 = vpack.c.bf16 %v1982, %v1979
      %v2068 = vpack.c.bf16 %v1987, %v1987
      %v2069 = vpack.c.bf16 %v2056, %v2053
      %v2070 = vpack.c.bf16 %v2061, %v2061
      %v2072 = vlaneseq
      %v2073 = vshrl.u32 %v2072, 7
      %v2074 = vsub.s32 0, %v2073
      %v2075 = vrot.slane %v1832, %v2074
      %v2078 = vsel %vm1281, %v2066, 0
      %v2081 = vsel %vm1281, %v2067, 0
      %v2084 = vsel %vm1281, %v2068, 0
      %2086 = vmatprep.subr.bf16.mxu0 0
      %2087 = vmatpush1.bf16.xpose.msra.mxu0 %v2081
      %2088 = vmatprep.subr.bf16.mxu0 0
      %2089 = vmatpush1.bf16.xpose.msra.mxu0 %v2084
      %2090 = vmatprep.subr.bf16.mxu0 0
      %2091 = vmatpush1.bf16.xpose.msra.mxu0 0
      %2092 = vmatprep.subr.bf16.mxu0 0
      %2093 = vmatpush1.bf16.xpose.msra.mxu0 0
      %2094 = vmatprep.subr.bf16.mxu0 0
      %2095 = vmatpush1.bf16.xpose.msra.mxu0 0
      %2096 = vmatprep.subr.bf16.mxu0 0
      %2097 = vmatpush1.bf16.xpose.msra.mxu0 0
      %2098 = vmatprep.subr.bf16.mxu0 0
      %2099 = vmatpush1.bf16.xpose.msra.mxu0 0
      %2100 = vmatprep.subr.bf16.mxu0 0
      %2101 = vmatpush1.bf16.xpose.msra.mxu0 0
      %2102 = vmatprep.subr.bf16.mxu0 0
      %2103 = vmatpush1.bf16.xpose.msra.mxu0 0
      %2104 = vmatprep.subr.bf16.mxu0 0
      %2105 = vmatpush1.bf16.xpose.msra.mxu0 0
      %2106 = vmatprep.subr.bf16.mxu0 0
      %2107 = vmatpush1.bf16.xpose.msra.mxu0 0
      %2108 = vmatprep.subr.bf16.mxu0 0
      %2109 = vmatpush1.bf16.xpose.msra.mxu0 0
      %2110 = vmatprep.subr.bf16.mxu0 0
      %2111 = vmatpush1.bf16.xpose.msra.mxu0 0
      %2112 = vmatprep.subr.bf16.mxu0 0
      %2113 = vmatpush1.bf16.xpose.msra.mxu0 0
      %2114 = vmatprep.subr.bf16.mxu0 0
      %2115 = vmatpush1.bf16.xpose.msra.mxu0 0
      %2116 = vmatprep.subr.bf16.mxu0 0
      %2117 = vmatpush1.bf16.xpose.msra.mxu0 0
      %2118 = vmatprep.mubr.bf16.mxu0 0
      %2119 = vmatmul.mubr.bf16.gmra.mrb[0].mxu0 %v2078
      %v2120 = vpop.f32.mrb[0].mxu0
      %v2121 = vadd.f32 %v2075, %v2120
      %v2122 = vpop.f32.mrb[0].mxu0
      %v2123 = vpop.f32.mrb[0].mxu0
      %v2124 = vpop.f32.mrb[0].mxu0
      %2125 = vdwg.mxu0
      %vm2126 = vcmask 195584
      %v2127 = vsel %vm2126, %v2121, -inf
      %2128 = vmax.xlane.f32.xlu0 %v2127
      %v2129 = vpop.xlane.xlu0 %2128
      %v2130 = vsub.f32 %v2121, %v2129
      %v2131 = vmul.f32 %v2130, 1.442695
      %v2132 = vpow.pop %v2131
      %v2133 = vsel %vm2126, %v2132, 0.0
      %2134 = vadd.xlane.f32.xlu0 %v2133
      %v2135 = vpop.xlane.xlu0 %2134
      %v2136 = vrcp.pop %v2135
      %v2137 = vmul.f32 %v2132, %v2136
      %v2138 = vpack.c.bf16 %v2137, %v2137
      %v2140 = vsel %vm2126, %v2138, 0
      %vm2142 = vcmask 1043456
      %v2144 = vsel %vm2142, %v2070, 0
      %2146 = vmatprep.subr.bf16.mxu0 0
      %2147 = vmatpush1.bf16.msra.mxu0 %v2069
      %2148 = vmatprep.subr.bf16.mxu0 0
      %2149 = vmatpush1.bf16.msra.mxu0 %v2144
      %2150 = vmatprep.subr.bf16.mxu0 0
      %2151 = vmatpush1.bf16.msra.mxu0 0
      %2152 = vmatprep.subr.bf16.mxu0 0
      %2153 = vmatpush1.bf16.msra.mxu0 0
      %2154 = vmatprep.subr.bf16.mxu0 0
      %2155 = vmatpush1.bf16.msra.mxu0 0
      %2156 = vmatprep.subr.bf16.mxu0 0
      %2157 = vmatpush1.bf16.msra.mxu0 0
      %2158 = vmatprep.subr.bf16.mxu0 0
      %2159 = vmatpush1.bf16.msra.mxu0 0
      %2160 = vmatprep.subr.bf16.mxu0 0
      %2161 = vmatpush1.bf16.msra.mxu0 0
      %2162 = vmatprep.subr.bf16.mxu0 0
      %2163 = vmatpush1.bf16.msra.mxu0 0
      %2164 = vmatprep.subr.bf16.mxu0 0
      %2165 = vmatpush1.bf16.msra.mxu0 0
      %2166 = vmatprep.subr.bf16.mxu0 0
      %2167 = vmatpush1.bf16.msra.mxu0 0
      %2168 = vmatprep.subr.bf16.mxu0 0
      %2169 = vmatpush1.bf16.msra.mxu0 0
      %2170 = vmatprep.subr.bf16.mxu0 0
      %2171 = vmatpush1.bf16.msra.mxu0 0
      %2172 = vmatprep.subr.bf16.mxu0 0
      %2173 = vmatpush1.bf16.msra.mxu0 0
      %2174 = vmatprep.subr.bf16.mxu0 0
      %2175 = vmatpush1.bf16.msra.mxu0 0
      %2176 = vmatprep.subr.bf16.mxu0 0
      %2177 = vmatpush1.bf16.msra.mxu0 0
      %2178 = vmatprep.mubr.bf16.mxu0 0
      %2179 = vmatmul.mubr.bf16.gmra.mrb[0].mxu0 %v2140
      %v2180 = vpop.f32.mrb[0].mxu0
      %v2181 = vadd.f32 0.0, %v2180
      %v2182 = vpop.f32.mrb[0].mxu0
      %v2183 = vpop.f32.mrb[0].mxu0
      %v2184 = vpop.f32.mrb[0].mxu0
      %2185 = vdwg.mxu0
      %2186 = vst.msk [vmem:[#allocation2] sm:$0xff] %vm1281, %v2181
      %2188 = vrot.lane.b32.xlu0 %v2066, 120
      %v2189 = vpop.permute.xlu0 %2188
      %2192 = vrot.lane.b32.xlu0 %v2067, 120
      %v2193 = vpop.permute.xlu0 %2192
      %2194 = vrot.lane.b32.xlu0 %v2068, 120
      %v2195 = vpop.permute.xlu0 %2194
      %v2197 = vsel %vm1281, %v2189, 0
      %v2200 = vsel %vm1281, %v2193, 0
      %v2203 = vsel %vm1281, %v2195, 0
      %2205 = vmatprep.subr.bf16.mxu0 0
      %2206 = vmatpush1.bf16.xpose.msra.mxu0 %v2200
      %2207 = vmatprep.subr.bf16.mxu0 0
      %2208 = vmatpush1.bf16.xpose.msra.mxu0 %v2203
      %2209 = vmatprep.subr.bf16.mxu0 0
      %2210 = vmatpush1.bf16.xpose.msra.mxu0 0
      %2211 = vmatprep.subr.bf16.mxu0 0
      %2212 = vmatpush1.bf16.xpose.msra.mxu0 0
      %2213 = vmatprep.subr.bf16.mxu0 0
      %2214 = vmatpush1.bf16.xpose.msra.mxu0 0
      %2215 = vmatprep.subr.bf16.mxu0 0
      %2216 = vmatpush1.bf16.xpose.msra.mxu0 0
      %2217 = vmatprep.subr.bf16.mxu0 0
      %2218 = vmatpush1.bf16.xpose.msra.mxu0 0
      %2219 = vmatprep.subr.bf16.mxu0 0
      %2220 = vmatpush1.bf16.xpose.msra.mxu0 0
      %2221 = vmatprep.subr.bf16.mxu0 0
      %2222 = vmatpush1.bf16.xpose.msra.mxu0 0
      %2223 = vmatprep.subr.bf16.mxu0 0
      %2224 = vmatpush1.bf16.xpose.msra.mxu0 0
      %2225 = vmatprep.subr.bf16.mxu0 0
      %2226 = vmatpush1.bf16.xpose.msra.mxu0 0
      %2227 = vmatprep.subr.bf16.mxu0 0
      %2228 = vmatpush1.bf16.xpose.msra.mxu0 0
      %2229 = vmatprep.subr.bf16.mxu0 0
      %2230 = vmatpush1.bf16.xpose.msra.mxu0 0
      %2231 = vmatprep.subr.bf16.mxu0 0
      %2232 = vmatpush1.bf16.xpose.msra.mxu0 0
      %2233 = vmatprep.subr.bf16.mxu0 0
      %2234 = vmatpush1.bf16.xpose.msra.mxu0 0
      %2235 = vmatprep.subr.bf16.mxu0 0
      %2236 = vmatpush1.bf16.xpose.msra.mxu0 0
      %2237 = vmatprep.mubr.bf16.mxu0 0
      %2238 = vmatmul.mubr.bf16.gmra.mrb[0].mxu0 %v2197
      %v2239 = vpop.f32.mrb[0].mxu0
      %v2240 = vadd.f32 %v2075, %v2239
      %v2241 = vpop.f32.mrb[0].mxu0
      %v2242 = vpop.f32.mrb[0].mxu0
      %v2243 = vpop.f32.mrb[0].mxu0
      %2244 = vdwg.mxu0
      %v2245 = vsel %vm2126, %v2240, -inf
      %2246 = vmax.xlane.f32.xlu0 %v2245
      %v2247 = vpop.xlane.xlu0 %2246
      %v2248 = vsub.f32 %v2240, %v2247
      %v2249 = vmul.f32 %v2248, 1.442695
      %v2250 = vpow.pop %v2249
      %v2251 = vsel %vm2126, %v2250, 0.0
      %2252 = vadd.xlane.f32.xlu0 %v2251
      %v2253 = vpop.xlane.xlu0 %2252
      %v2254 = vrcp.pop %v2253
      %v2255 = vmul.f32 %v2250, %v2254
      %v2256 = vpack.c.bf16 %v2255, %v2255
      %2259 = vrot.lane.b32.xlu0 %v2069, 120
      %v2260 = vpop.permute.xlu0 %2259
      %2261 = vrot.lane.b32.xlu0 %v2070, 120
      %v2262 = vpop.permute.xlu0 %2261
      %v2265 = vsel %vm2126, %v2256, 0
      %v2268 = vsel %vm2142, %v2262, 0
      %2270 = vmatprep.subr.bf16.mxu0 0
      %2271 = vmatpush1.bf16.msra.mxu0 %v2260
      %2272 = vmatprep.subr.bf16.mxu0 0
      %2273 = vmatpush1.bf16.msra.mxu0 %v2268
      %2274 = vmatprep.subr.bf16.mxu0 0
      %2275 = vmatpush1.bf16.msra.mxu0 0
      %2276 = vmatprep.subr.bf16.mxu0 0
      %2277 = vmatpush1.bf16.msra.mxu0 0
      %2278 = vmatprep.subr.bf16.mxu0 0
      %2279 = vmatpush1.bf16.msra.mxu0 0
      %2280 = vmatprep.subr.bf16.mxu0 0
      %2281 = vmatpush1.bf16.msra.mxu0 0
      %2282 = vmatprep.subr.bf16.mxu0 0
      %2283 = vmatpush1.bf16.msra.mxu0 0
      %2284 = vmatprep.subr.bf16.mxu0 0
      %2285 = vmatpush1.bf16.msra.mxu0 0
      %2286 = vmatprep.subr.bf16.mxu0 0
      %2287 = vmatpush1.bf16.msra.mxu0 0
      %2288 = vmatprep.subr.bf16.mxu0 0
      %2289 = vmatpush1.bf16.msra.mxu0 0
      %2290 = vmatprep.subr.bf16.mxu0 0
      %2291 = vmatpush1.bf16.msra.mxu0 0
      %2292 = vmatprep.subr.bf16.mxu0 0
      %2293 = vmatpush1.bf16.msra.mxu0 0
      %2294 = vmatprep.subr.bf16.mxu0 0
      %2295 = vmatpush1.bf16.msra.mxu0 0
      %2296 = vmatprep.subr.bf16.mxu0 0
      %2297 = vmatpush1.bf16.msra.mxu0 0
      %2298 = vmatprep.subr.bf16.mxu0 0
      %2299 = vmatpush1.bf16.msra.mxu0 0
      %2300 = vmatprep.subr.bf16.mxu0 0
      %2301 = vmatpush1.bf16.msra.mxu0 0
      %2302 = vmatprep.mubr.bf16.mxu0 0
      %2303 = vmatmul.mubr.bf16.gmra.mrb[0].mxu0 %v2265
      %v2304 = vpop.f32.mrb[0].mxu0
      %v2305 = vadd.f32 0.0, %v2304
      %v2306 = vpop.f32.mrb[0].mxu0
      %v2307 = vpop.f32.mrb[0].mxu0
      %v2308 = vpop.f32.mrb[0].mxu0
      %2309 = vdwg.mxu0
      %2311 = vrot.lane.b32.xlu0 %v2305, 8
      %v2312 = vpop.permute.xlu0 %2311
      %2314 = vst.msk [vmem:[#allocation2] sm:$0xff] %vm1500, %v2312
      %2315 = vrot.lane.b32.xlu0 %v2066, 112
      %v2316 = vpop.permute.xlu0 %2315
      %2317 = vrot.lane.b32.xlu0 %v2067, 112
      %v2318 = vpop.permute.xlu0 %2317
      %2319 = vrot.lane.b32.xlu0 %v2068, 112
      %v2320 = vpop.permute.xlu0 %2319
      %v2322 = vsel %vm1281, %v2316, 0
      %v2325 = vsel %vm1281, %v2318, 0
      %v2328 = vsel %vm1281, %v2320, 0
      %2330 = vmatprep.subr.bf16.mxu0 0
      %2331 = vmatpush1.bf16.xpose.msra.mxu0 %v2325
      %2332 = vmatprep.subr.bf16.mxu0 0
      %2333 = vmatpush1.bf16.xpose.msra.mxu0 %v2328
      %2334 = vmatprep.subr.bf16.mxu0 0
      %2335 = vmatpush1.bf16.xpose.msra.mxu0 0
      %2336 = vmatprep.subr.bf16.mxu0 0
      %2337 = vmatpush1.bf16.xpose.msra.mxu0 0
      %2338 = vmatprep.subr.bf16.mxu0 0
      %2339 = vmatpush1.bf16.xpose.msra.mxu0 0
      %2340 = vmatprep.subr.bf16.mxu0 0
      %2341 = vmatpush1.bf16.xpose.msra.mxu0 0
      %2342 = vmatprep.subr.bf16.mxu0 0
      %2343 = vmatpush1.bf16.xpose.msra.mxu0 0
      %2344 = vmatprep.subr.bf16.mxu0 0
      %2345 = vmatpush1.bf16.xpose.msra.mxu0 0
      %2346 = vmatprep.subr.bf16.mxu0 0
      %2347 = vmatpush1.bf16.xpose.msra.mxu0 0
      %2348 = vmatprep.subr.bf16.mxu0 0
      %2349 = vmatpush1.bf16.xpose.msra.mxu0 0
      %2350 = vmatprep.subr.bf16.mxu0 0
      %2351 = vmatpush1.bf16.xpose.msra.mxu0 0
      %2352 = vmatprep.subr.bf16.mxu0 0
      %2353 = vmatpush1.bf16.xpose.msra.mxu0 0
      %2354 = vmatprep.subr.bf16.mxu0 0
      %2355 = vmatpush1.bf16.xpose.msra.mxu0 0
      %2356 = vmatprep.subr.bf16.mxu0 0
      %2357 = vmatpush1.bf16.xpose.msra.mxu0 0
      %2358 = vmatprep.subr.bf16.mxu0 0
      %2359 = vmatpush1.bf16.xpose.msra.mxu0 0
      %2360 = vmatprep.subr.bf16.mxu0 0
      %2361 = vmatpush1.bf16.xpose.msra.mxu0 0
      %2362 = vmatprep.mubr.bf16.mxu0 0
      %2363 = vmatmul.mubr.bf16.gmra.mrb[0].mxu0 %v2322
      %v2364 = vpop.f32.mrb[0].mxu0
      %v2365 = vadd.f32 %v2075, %v2364
      %v2366 = vpop.f32.mrb[0].mxu0
      %v2367 = vpop.f32.mrb[0].mxu0
      %v2368 = vpop.f32.mrb[0].mxu0
      %2369 = vdwg.mxu0
      %v2370 = vsel %vm2126, %v2365, -inf
      %2371 = vmax.xlane.f32.xlu0 %v2370
      %v2372 = vpop.xlane.xlu0 %2371
      %v2373 = vsub.f32 %v2365, %v2372
      %v2374 = vmul.f32 %v2373, 1.442695
      %v2375 = vpow.pop %v2374
      %v2376 = vsel %vm2126, %v2375, 0.0
      %2377 = vadd.xlane.f32.xlu0 %v2376
      %v2378 = vpop.xlane.xlu0 %2377
      %v2379 = vrcp.pop %v2378
      %v2380 = vmul.f32 %v2375, %v2379
      %v2381 = vpack.c.bf16 %v2380, %v2380
      %2382 = vrot.lane.b32.xlu0 %v2069, 112
      %v2383 = vpop.permute.xlu0 %2382
      %2384 = vrot.lane.b32.xlu0 %v2070, 112
      %v2385 = vpop.permute.xlu0 %2384
      %v2388 = vsel %vm2126, %v2381, 0
      %v2391 = vsel %vm2142, %v2385, 0
      %2393 = vmatprep.subr.bf16.mxu0 0
      %2394 = vmatpush1.bf16.msra.mxu0 %v2383
      %2395 = vmatprep.subr.bf16.mxu0 0
      %2396 = vmatpush1.bf16.msra.mxu0 %v2391
      %2397 = vmatprep.subr.bf16.mxu0 0
      %2398 = vmatpush1.bf16.msra.mxu0 0
      %2399 = vmatprep.subr.bf16.mxu0 0
      %2400 = vmatpush1.bf16.msra.mxu0 0
      %2401 = vmatprep.subr.bf16.mxu0 0
      %2402 = vmatpush1.bf16.msra.mxu0 0
      %2403 = vmatprep.subr.bf16.mxu0 0
      %2404 = vmatpush1.bf16.msra.mxu0 0
      %2405 = vmatprep.subr.bf16.mxu0 0
      %2406 = vmatpush1.bf16.msra.mxu0 0
      %2407 = vmatprep.subr.bf16.mxu0 0
      %2408 = vmatpush1.bf16.msra.mxu0 0
      %2409 = vmatprep.subr.bf16.mxu0 0
      %2410 = vmatpush1.bf16.msra.mxu0 0
      %2411 = vmatprep.subr.bf16.mxu0 0
      %2412 = vmatpush1.bf16.msra.mxu0 0
      %2413 = vmatprep.subr.bf16.mxu0 0
      %2414 = vmatpush1.bf16.msra.mxu0 0
      %2415 = vmatprep.subr.bf16.mxu0 0
      %2416 = vmatpush1.bf16.msra.mxu0 0
      %2417 = vmatprep.subr.bf16.mxu0 0
      %2418 = vmatpush1.bf16.msra.mxu0 0
      %2419 = vmatprep.subr.bf16.mxu0 0
      %2420 = vmatpush1.bf16.msra.mxu0 0
      %2421 = vmatprep.subr.bf16.mxu0 0
      %2422 = vmatpush1.bf16.msra.mxu0 0
      %2423 = vmatprep.subr.bf16.mxu0 0
      %2424 = vmatpush1.bf16.msra.mxu0 0
      %2425 = vmatprep.mubr.bf16.mxu0 0
      %2426 = vmatmul.mubr.bf16.gmra.mrb[0].mxu0 %v2388
      %v2427 = vpop.f32.mrb[0].mxu0
      %v2428 = vadd.f32 0.0, %v2427
      %v2429 = vpop.f32.mrb[0].mxu0
      %v2430 = vpop.f32.mrb[0].mxu0
      %v2431 = vpop.f32.mrb[0].mxu0
      %2432 = vdwg.mxu0
      %2434 = vrot.lane.b32.xlu0 %v2428, 16
      %v2435 = vpop.permute.xlu0 %2434
      %2437 = vst.msk [vmem:[#allocation2] sm:$0xff] %vm1614, %v2435
      %2438 = vrot.lane.b32.xlu0 %v2066, 104
      %v2439 = vpop.permute.xlu0 %2438
      %2440 = vrot.lane.b32.xlu0 %v2067, 104
      %v2441 = vpop.permute.xlu0 %2440
      %2442 = vrot.lane.b32.xlu0 %v2068, 104
      %v2443 = vpop.permute.xlu0 %2442
      %v2445 = vsel %vm1281, %v2439, 0
      %v2448 = vsel %vm1281, %v2441, 0
      %v2451 = vsel %vm1281, %v2443, 0
      %2453 = vmatprep.subr.bf16.mxu0 0
      %2454 = vmatpush1.bf16.xpose.msra.mxu0 %v2448
      %2455 = vmatprep.subr.bf16.mxu0 0
      %2456 = vmatpush1.bf16.xpose.msra.mxu0 %v2451
      %2457 = vmatprep.subr.bf16.mxu0 0
      %2458 = vmatpush1.bf16.xpose.msra.mxu0 0
      %2459 = vmatprep.subr.bf16.mxu0 0
      %2460 = vmatpush1.bf16.xpose.msra.mxu0 0
      %2461 = vmatprep.subr.bf16.mxu0 0
      %2462 = vmatpush1.bf16.xpose.msra.mxu0 0
      %2463 = vmatprep.subr.bf16.mxu0 0
      %2464 = vmatpush1.bf16.xpose.msra.mxu0 0
      %2465 = vmatprep.subr.bf16.mxu0 0
      %2466 = vmatpush1.bf16.xpose.msra.mxu0 0
      %2467 = vmatprep.subr.bf16.mxu0 0
      %2468 = vmatpush1.bf16.xpose.msra.mxu0 0
      %2469 = vmatprep.subr.bf16.mxu0 0
      %2470 = vmatpush1.bf16.xpose.msra.mxu0 0
      %2471 = vmatprep.subr.bf16.mxu0 0
      %2472 = vmatpush1.bf16.xpose.msra.mxu0 0
      %2473 = vmatprep.subr.bf16.mxu0 0
      %2474 = vmatpush1.bf16.xpose.msra.mxu0 0
      %2475 = vmatprep.subr.bf16.mxu0 0
      %2476 = vmatpush1.bf16.xpose.msra.mxu0 0
      %2477 = vmatprep.subr.bf16.mxu0 0
      %2478 = vmatpush1.bf16.xpose.msra.mxu0 0
      %2479 = vmatprep.subr.bf16.mxu0 0
      %2480 = vmatpush1.bf16.xpose.msra.mxu0 0
      %2481 = vmatprep.subr.bf16.mxu0 0
      %2482 = vmatpush1.bf16.xpose.msra.mxu0 0
      %2483 = vmatprep.subr.bf16.mxu0 0
      %2484 = vmatpush1.bf16.xpose.msra.mxu0 0
      %2485 = vmatprep.mubr.bf16.mxu0 0
      %2486 = vmatmul.mubr.bf16.gmra.mrb[0].mxu0 %v2445
      %v2487 = vpop.f32.mrb[0].mxu0
      %v2488 = vadd.f32 %v2075, %v2487
      %v2489 = vpop.f32.mrb[0].mxu0
      %v2490 = vpop.f32.mrb[0].mxu0
      %v2491 = vpop.f32.mrb[0].mxu0
      %2492 = vdwg.mxu0
      %v2493 = vsel %vm2126, %v2488, -inf
      %2494 = vmax.xlane.f32.xlu0 %v2493
      %v2495 = vpop.xlane.xlu0 %2494
      %v2496 = vsub.f32 %v2488, %v2495
      %v2497 = vmul.f32 %v2496, 1.442695
      %v2498 = vpow.pop %v2497
      %v2499 = vsel %vm2126, %v2498, 0.0
      %2500 = vadd.xlane.f32.xlu0 %v2499
      %v2501 = vpop.xlane.xlu0 %2500
      %v2502 = vrcp.pop %v2501
      %v2503 = vmul.f32 %v2498, %v2502
      %v2504 = vpack.c.bf16 %v2503, %v2503
      %2505 = vrot.lane.b32.xlu0 %v2069, 104
      %v2506 = vpop.permute.xlu0 %2505
      %2507 = vrot.lane.b32.xlu0 %v2070, 104
      %v2508 = vpop.permute.xlu0 %2507
      %v2511 = vsel %vm2126, %v2504, 0
      %v2514 = vsel %vm2142, %v2508, 0
      %2516 = vmatprep.subr.bf16.mxu0 0
      %2517 = vmatpush1.bf16.msra.mxu0 %v2506
      %2518 = vmatprep.subr.bf16.mxu0 0
      %2519 = vmatpush1.bf16.msra.mxu0 %v2514
      %2520 = vmatprep.subr.bf16.mxu0 0
      %2521 = vmatpush1.bf16.msra.mxu0 0
      %2522 = vmatprep.subr.bf16.mxu0 0
      %2523 = vmatpush1.bf16.msra.mxu0 0
      %2524 = vmatprep.subr.bf16.mxu0 0
      %2525 = vmatpush1.bf16.msra.mxu0 0
      %2526 = vmatprep.subr.bf16.mxu0 0
      %2527 = vmatpush1.bf16.msra.mxu0 0
      %2528 = vmatprep.subr.bf16.mxu0 0
      %2529 = vmatpush1.bf16.msra.mxu0 0
      %2530 = vmatprep.subr.bf16.mxu0 0
      %2531 = vmatpush1.bf16.msra.mxu0 0
      %2532 = vmatprep.subr.bf16.mxu0 0
      %2533 = vmatpush1.bf16.msra.mxu0 0
      %2534 = vmatprep.subr.bf16.mxu0 0
      %2535 = vmatpush1.bf16.msra.mxu0 0
      %2536 = vmatprep.subr.bf16.mxu0 0
      %2537 = vmatpush1.bf16.msra.mxu0 0
      %2538 = vmatprep.subr.bf16.mxu0 0
      %2539 = vmatpush1.bf16.msra.mxu0 0
      %2540 = vmatprep.subr.bf16.mxu0 0
      %2541 = vmatpush1.bf16.msra.mxu0 0
      %2542 = vmatprep.subr.bf16.mxu0 0
      %2543 = vmatpush1.bf16.msra.mxu0 0
      %2544 = vmatprep.subr.bf16.mxu0 0
      %2545 = vmatpush1.bf16.msra.mxu0 0
      %2546 = vmatprep.subr.bf16.mxu0 0
      %2547 = vmatpush1.bf16.msra.mxu0 0
      %2548 = vmatprep.mubr.bf16.mxu0 0
      %2549 = vmatmul.mubr.bf16.gmra.mrb[0].mxu0 %v2511
      %v2550 = vpop.f32.mrb[0].mxu0
      %v2551 = vadd.f32 0.0, %v2550
      %v2552 = vpop.f32.mrb[0].mxu0
      %v2553 = vpop.f32.mrb[0].mxu0
      %v2554 = vpop.f32.mrb[0].mxu0
      %2555 = vdwg.mxu0
      %2557 = vrot.lane.b32.xlu0 %v2551, 24
      %v2558 = vpop.permute.xlu0 %2557
      %2560 = vst.msk [vmem:[#allocation2] sm:$0xff] %vm1728, %v2558
      %v2561 = vld [vmem:[#allocation2] sm:$0xff]
      %v2562 = vpack.c.bf16 %v2561, %v2561
      %v2564 = vlaneseq
      %v2565 = vshrl.u32 %v2564, 7
      %v2566 = vsub.s32 0, %v2565
      %v2567 = vrot.slane %v1852, %v2566
      %v2573 = vunpack.c.l.b16 %v1848
      %v2574 = vunpack.c.l.b16 %v1849
      %v2575 = vunpack.c.l.b16 %v1850
      %v2576 = vunpack.c.l.b16 %v1851
      %v2577 = vpack.c.b16 %v2574, %v2573
      %v2578 = vpack.c.b16 %v2576, %v2575
      %v2582 = vsel %vm1107, %v2562, 0
      %2584 = vmatprep.subr.bf16.mxu0 0
      %2585 = vmatpush1.bf16.msra.mxu0 %v2577
      %2586 = vmatprep.subr.bf16.mxu0 0
      %2587 = vmatpush1.bf16.msra.mxu0 %v2578
      %2588 = vmatprep.subr.bf16.mxu0 0
      %2589 = vmatpush1.bf16.msra.mxu0 0
      %2590 = vmatprep.subr.bf16.mxu0 0
      %2591 = vmatpush1.bf16.msra.mxu0 0
      %2592 = vmatprep.subr.bf16.mxu0 0
      %2593 = vmatpush1.bf16.msra.mxu0 0
      %2594 = vmatprep.subr.bf16.mxu0 0
      %2595 = vmatpush1.bf16.msra.mxu0 0
      %2596 = vmatprep.subr.bf16.mxu0 0
      %2597 = vmatpush1.bf16.msra.mxu0 0
      %2598 = vmatprep.subr.bf16.mxu0 0
      %2599 = vmatpush1.bf16.msra.mxu0 0
      %2600 = vmatprep.subr.bf16.mxu0 0
      %2601 = vmatpush1.bf16.msra.mxu0 0
      %2602 = vmatprep.subr.bf16.mxu0 0
      %2603 = vmatpush1.bf16.msra.mxu0 0
      %2604 = vmatprep.subr.bf16.mxu0 0
      %2605 = vmatpush1.bf16.msra.mxu0 0
      %2606 = vmatprep.subr.bf16.mxu0 0
      %2607 = vmatpush1.bf16.msra.mxu0 0
      %2608 = vmatprep.subr.bf16.mxu0 0
      %2609 = vmatpush1.bf16.msra.mxu0 0
      %2610 = vmatprep.subr.bf16.mxu0 0
      %2611 = vmatpush1.bf16.msra.mxu0 0
      %2612 = vmatprep.subr.bf16.mxu0 0
      %2613 = vmatpush1.bf16.msra.mxu0 0
      %2614 = vmatprep.subr.bf16.mxu0 0
      %2615 = vmatpush1.bf16.msra.mxu0 0
      %2616 = vmatprep.mubr.bf16.mxu0 0
      %2617 = vmatmul.mubr.bf16.gmra.mrb[0].mxu0 %v2582
      %v2618 = vpop.f32.mrb[0].mxu0
      %v2619 = vadd.f32 %v2567, %v2618
      %v2620 = vpop.f32.mrb[0].mxu0
      %v2621 = vpop.f32.mrb[0].mxu0
      %v2622 = vpop.f32.mrb[0].mxu0
      %2623 = vdwg.mxu0
      %v2624 = vadd.f32 %v1821, %v2619
      %v2625 = vsel %vm1107, %v2624, 0.0
      %2626 = vadd.xlane.f32.xlu0 %v2625
      %v2627 = vpop.xlane.xlu0 %2626
      %v2628 = vmul.f32 %v2627, %v1797
      %v2629 = vsub.f32 %v2624, %v2628
      %v2630 = vmul.f32 %v2629, %v2629
      %v2631 = vsel %vm1107, %v2630, 0.0
      %2632 = vadd.xlane.f32.xlu0 %v2631
      %v2633 = vpop.xlane.xlu0 %2632
      %v2634 = vmul.f32 %v2633, %v1797
      %v2635 = vadd.f32 %v2634, 1e-05
      %v2636 = vrsqrt.pop %v2635
      %v2637 = vmul.f32 %v2629, %v2636
      %v2639 = vlaneseq
      %v2640 = vshrl.u32 %v2639, 7
      %v2641 = vsub.s32 0, %v2640
      %v2642 = vrot.slane %v1853, %v2641
      %v2644 = vmul.f32 %v2637, %v2642
      %v2646 = vlaneseq
      %v2647 = vshrl.u32 %v2646, 7
      %v2648 = vsub.s32 0, %v2647
      %v2649 = vrot.slane %v1854, %v2648
      %v2651 = vadd.f32 %v2644, %v2649
      %v2652 = vpack.c.bf16 %v2651, %v2651
      %v2653 = vld [vmem:[%s51] sm:$0xf]
      %v2654 = vld [vmem:[%s51 + $0x4] sm:$0xf]
      %v2655 = vld [vmem:[%s51 + $0x8] sm:$0xf]
      %v2656 = vld [vmem:[%s51 + $0xc] sm:$0xf]
      %v2657 = vld [vmem:[%s53] sm:$0x1]
      %v2659 = vlaneseq
      %v2660 = vshrl.u32 %v2659, 7
      %v2661 = vsub.s32 0, %v2660
      %v2662 = vrot.slane %v2657, %v2661
      %v2668 = vunpack.c.l.b16 %v2653
      %v2669 = vunpack.c.l.b16 %v2654
      %v2670 = vunpack.c.l.b16 %v2655
      %v2671 = vunpack.c.l.b16 %v2656
      %v2672 = vpack.c.b16 %v2669, %v2668
      %v2673 = vpack.c.b16 %v2671, %v2670
      %v2677 = vsel %vm1107, %v2652, 0
      %2679 = vmatprep.subr.bf16.mxu0 0
      %2680 = vmatpush1.bf16.msra.mxu0 %v2672
      %2681 = vmatprep.subr.bf16.mxu0 0
      %2682 = vmatpush1.bf16.msra.mxu0 %v2673
      %2683 = vmatprep.subr.bf16.mxu0 0
      %2684 = vmatpush1.bf16.msra.mxu0 0
      %2685 = vmatprep.subr.bf16.mxu0 0
      %2686 = vmatpush1.bf16.msra.mxu0 0
      %2687 = vmatprep.subr.bf16.mxu0 0
      %2688 = vmatpush1.bf16.msra.mxu0 0
      %2689 = vmatprep.subr.bf16.mxu0 0
      %2690 = vmatpush1.bf16.msra.mxu0 0
      %2691 = vmatprep.subr.bf16.mxu0 0
      %2692 = vmatpush1.bf16.msra.mxu0 0
      %2693 = vmatprep.subr.bf16.mxu0 0
      %2694 = vmatpush1.bf16.msra.mxu0 0
      %2695 = vmatprep.subr.bf16.mxu0 0
      %2696 = vmatpush1.bf16.msra.mxu0 0
      %2697 = vmatprep.subr.bf16.mxu0 0
      %2698 = vmatpush1.bf16.msra.mxu0 0
      %2699 = vmatprep.subr.bf16.mxu0 0
      %2700 = vmatpush1.bf16.msra.mxu0 0
      %2701 = vmatprep.subr.bf16.mxu0 0
      %2702 = vmatpush1.bf16.msra.mxu0 0
      %2703 = vmatprep.subr.bf16.mxu0 0
      %2704 = vmatpush1.bf16.msra.mxu0 0
      %2705 = vmatprep.subr.bf16.mxu0 0
      %2706 = vmatpush1.bf16.msra.mxu0 0
      %2707 = vmatprep.subr.bf16.mxu0 0
      %2708 = vmatpush1.bf16.msra.mxu0 0
      %2709 = vmatprep.subr.bf16.mxu0 0
      %2710 = vmatpush1.bf16.msra.mxu0 0
      %2711 = vmatprep.mubr.bf16.mxu0 0
      %2712 = vmatmul.mubr.bf16.gmra.mrb[0].mxu0 %v2677
      %v2713 = vpop.f32.mrb[0].mxu0
      %v2714 = vadd.f32 %v2662, %v2713
      %v2715 = vpop.f32.mrb[0].mxu0
      %v2716 = vpop.f32.mrb[0].mxu0
      %v2717 = vpop.f32.mrb[0].mxu0
      %2718 = vdwg.mxu0
      %v2719 = vmax.f32 %v2714, 0.0
      %v2720 = vpack.c.bf16 %v2719, %v2719
      %v2721 = vld [vmem:[%s55] sm:$0xf]
      %v2722 = vld [vmem:[%s55 + $0x4] sm:$0xf]
      %v2723 = vld [vmem:[%s55 + $0x8] sm:$0xf]
      %v2724 = vld [vmem:[%s55 + $0xc] sm:$0xf]
      %v2725 = vld [vmem:[%s55 + $0x10] sm:$0xf]
      %v2726 = vld [vmem:[%s55 + $0x14] sm:$0xf]
      %v2727 = vld [vmem:[%s55 + $0x18] sm:$0xf]
      %v2728 = vld [vmem:[%s55 + $0x1c] sm:$0xf]
      %v2729 = vld [vmem:[%s57] sm:$0x1]
      %v2731 = vlaneseq
      %v2732 = vshrl.u32 %v2731, 7
      %v2733 = vsub.s32 0, %v2732
      %v2734 = vrot.slane %v2729, %v2733
      %v2744 = vunpack.c.l.b16 %v2721
      %v2745 = vunpack.c.l.b16 %v2722
      %v2746 = vunpack.c.l.b16 %v2723
      %v2747 = vunpack.c.l.b16 %v2724
      %v2748 = vunpack.c.l.b16 %v2725
      %v2749 = vunpack.c.l.b16 %v2726
      %v2750 = vunpack.c.l.b16 %v2727
      %v2751 = vunpack.c.l.b16 %v2728
      %v2752 = vpack.c.b16 %v2745, %v2744
      %v2753 = vpack.c.b16 %v2747, %v2746
      %v2754 = vpack.c.b16 %v2749, %v2748
      %v2755 = vpack.c.b16 %v2751, %v2750
      %vm2760 = vcmask 523264
      %v2762 = vsel %vm2760, %v2720, 0
      %2764 = vmatprep.subr.bf16.mxu0 0
      %2765 = vmatpush1.bf16.msra.mxu0 %v2752
      %2766 = vmatprep.subr.bf16.mxu0 0
      %2767 = vmatpush1.bf16.msra.mxu0 %v2753
      %2768 = vmatprep.subr.bf16.mxu0 0
      %2769 = vmatpush1.bf16.msra.mxu0 %v2754
      %2770 = vmatprep.subr.bf16.mxu0 0
      %2771 = vmatpush1.bf16.msra.mxu0 %v2755
      %2772 = vmatprep.subr.bf16.mxu0 0
      %2773 = vmatpush1.bf16.msra.mxu0 0
      %2774 = vmatprep.subr.bf16.mxu0 0
      %2775 = vmatpush1.bf16.msra.mxu0 0
      %2776 = vmatprep.subr.bf16.mxu0 0
      %2777 = vmatpush1.bf16.msra.mxu0 0
      %2778 = vmatprep.subr.bf16.mxu0 0
      %2779 = vmatpush1.bf16.msra.mxu0 0
      %2780 = vmatprep.subr.bf16.mxu0 0
      %2781 = vmatpush1.bf16.msra.mxu0 0
      %2782 = vmatprep.subr.bf16.mxu0 0
      %2783 = vmatpush1.bf16.msra.mxu0 0
      %2784 = vmatprep.subr.bf16.mxu0 0
      %2785 = vmatpush1.bf16.msra.mxu0 0
      %2786 = vmatprep.subr.bf16.mxu0 0
      %2787 = vmatpush1.bf16.msra.mxu0 0
      %2788 = vmatprep.subr.bf16.mxu0 0
      %2789 = vmatpush1.bf16.msra.mxu0 0
      %2790 = vmatprep.subr.bf16.mxu0 0
      %2791 = vmatpush1.bf16.msra.mxu0 0
      %2792 = vmatprep.subr.bf16.mxu0 0
      %2793 = vmatpush1.bf16.msra.mxu0 0
      %2794 = vmatprep.subr.bf16.mxu0 0
      %2795 = vmatpush1.bf16.msra.mxu0 0
      %2796 = vmatprep.mubr.bf16.mxu0 0
      %2797 = vmatmul.mubr.bf16.gmra.mrb[0].mxu0 %v2762
      %v2798 = vpop.f32.mrb[0].mxu0
      %v2799 = vadd.f32 %v2734, %v2798
      %v2800 = vpop.f32.mrb[0].mxu0
      %v2801 = vpop.f32.mrb[0].mxu0
      %v2802 = vpop.f32.mrb[0].mxu0
      %2803 = vdwg.mxu0
      %v2804 = vadd.f32 %v2651, %v2799
      %v2805 = vld [vmem:[%s59] sm:$0x1]
      %v2806 = vld [vmem:[%s61] sm:$0x1]
      %v2807 = vsel %vm1107, %v2804, 0.0
      %2808 = vadd.xlane.f32.xlu0 %v2807
      %v2809 = vpop.xlane.xlu0 %2808
      %v2810 = vmul.f32 %v2809, %v1797
      %v2811 = vsub.f32 %v2804, %v2810
      %v2812 = vmul.f32 %v2811, %v2811
      %v2813 = vsel %vm1107, %v2812, 0.0
      %2814 = vadd.xlane.f32.xlu0 %v2813
      %v2815 = vpop.xlane.xlu0 %2814
      %v2816 = vmul.f32 %v2815, %v1797
      %v2817 = vadd.f32 %v2816, 1e-05
      %v2818 = vrsqrt.pop %v2817
      %v2819 = vmul.f32 %v2811, %v2818
      %v2821 = vlaneseq
      %v2822 = vshrl.u32 %v2821, 7
      %v2823 = vsub.s32 0, %v2822
      %v2824 = vrot.slane %v2805, %v2823
      %v2826 = vmul.f32 %v2819, %v2824
      %v2828 = vlaneseq
      %v2829 = vshrl.u32 %v2828, 7
      %v2830 = vsub.s32 0, %v2829
      %v2831 = vrot.slane %v2806, %v2830
      %v2833 = vadd.f32 %v2826, %v2831
      %2834 = vst.msk [vmem:[%s1052] sm:$0xff] %vm1107, %v2833
      %p2835 = scmp.lt.s32.totalorder %s78, 1
      %s2836 = scalar_select %p2835, %s78, 1
      %p2837 = scmp.lt.s32.totalorder %s79, 1
      %s2838 = scalar_select %p2837, %s79, 1
      %s2839 = smul.addr %s2836, 2
      %s2840 = sadd.s32 %s2838, %s2839
      %s2841 = smul.addr %s2840, 8
      %s2842 = scalar_lea.vmem %s63, %s2841
      // Predicated region
      $region145: #{transformer_decoder_forward.2} parent=143 // pred_check
        %p2843 = pneg %p782
      $region146: #{transformer_decoder_forward.2} parent=143 // pred_check_branch
        %2845 = sbr.rel (%p2843) target = $region148
      $region147: #{transformer_decoder_forward.2} parent=143 // pred_region
        _
      $region148: #{transformer_decoder_forward.2} parent=143 // pred_fallthru
        _
    $region144: #{transformer_decoder_forward.2} parent=5 // pred_fallthru
      _
    %p2846 = scmp.le.s32.totalorder 2, %s69
    // Predicated region
    $region149: #{transformer_decoder_forward.2} parent=5 // pred_check
      %p2847 = pneg %p2846
    $region150: #{transformer_decoder_forward.2} parent=5 // pred_check_branch
      %2849 = sbr.rel (%p2847) target = $region152
    $region151: #{transformer_decoder_forward.2} parent=5 // pred_region
      %s2850 = ssub.s32 %s69, 2
      // Predicated region
      $region153: #{transformer_decoder_forward.2} parent=151 // pred_check
        %p2851 = pneg %p788
      $region154: #{transformer_decoder_forward.2} parent=151 // pred_check_branch
        %2853 = sbr.rel (%p2851) target = $region156
      $region155: #{transformer_decoder_forward.2} parent=151 // pred_region
        %p2854 = scmp.lt.s32.totalorder %s80, 1
        %s2855 = scalar_select %p2854, %s80, 1
        %p2856 = scmp.lt.s32.totalorder %s81, 1
        %s2857 = scalar_select %p2856, %s81, 1
        %s2858 = smul.addr %s2855, 2
        %s2859 = sadd.s32 %s2857, %s2858
        %s2860 = smul.addr %s2859, 8
        %s2861 = scalar_lea.vmem %s63, %s2860
      $region156: #{transformer_decoder_forward.2} parent=151 // pred_fallthru
        _
    $region152: #{transformer_decoder_forward.2} parent=5 // pred_fallthru
      _
  $region6: #{transformer_decoder_forward.2} parent=0 // loop_footer
    %s73 = sadd.s32 1, %s69
  $region7: #{transformer_decoder_forward.2} parent=0 // loop_footer_branch
    %68 = sbr.rel target = $region3
  $region8: #{transformer_decoder_forward.2} parent=0 // loop_exit
    _

// kernel: transformer_decoder_forward.3
$region0: #{transformer_decoder_forward.3}
  #allocation0 [shape = 'u32[]', space=smem, size = 0x4, offset = 0x4, fixed_abs, tag = 'smem constant byte address 0x4 - core index']
  #allocation1 [shape = 'u32[144,128]{1,0:T(1,128)}', space=vmem, size = 0x12000, scoped, tag = 'internal scratch']
  #allocation2 [shape = 'f32[8,32]{1,0:T(8,128)}', space=vmem, size = 0x1000, scoped, tag = 'scratch operand']
  %s0 = inlined_call_operand.smem [shape: u32[34], index: -1, kind: input, shape index: {}]
  %s1 = sld [smem:[%s0]]
  %s2 = scalar_lea.smem %s0, 1
  %s3 = sld [smem:[%s2]]
  %s4 = scalar_lea.smem %s0, 2
  %s5 = sld [smem:[%s4]]
  %s6 = scalar_lea.smem %s0, 3
  %s7 = sld [smem:[%s6]]
  %s8 = scalar_lea.smem %s0, 4
  %s9 = sld [smem:[%s8]]
  %s10 = scalar_lea.smem %s0, 5
  %s11 = sld [smem:[%s10]]
  %s12 = scalar_lea.smem %s0, 6
  %s13 = sld [smem:[%s12]]
  %s14 = scalar_lea.smem %s0, 7
  %s15 = sld [smem:[%s14]]
  %s16 = scalar_lea.smem %s0, 8
  %s17 = sld [smem:[%s16]]
  %s18 = scalar_lea.smem %s0, 9
  %s19 = sld [smem:[%s18]]
  %s20 = scalar_lea.smem %s0, 10
  %s21 = sld [smem:[%s20]]
  %s22 = scalar_lea.smem %s0, 11
  %s23 = sld [smem:[%s22]]
  %s24 = scalar_lea.smem %s0, 12
  %s25 = sld [smem:[%s24]]
  %s26 = scalar_lea.smem %s0, 13
  %s27 = sld [smem:[%s26]]
  %s28 = scalar_lea.smem %s0, 14
  %s29 = sld [smem:[%s28]]
  %s30 = scalar_lea.smem %s0, 15
  %s31 = sld [smem:[%s30]]
  %s32 = scalar_lea.smem %s0, 16
  %s33 = sld [smem:[%s32]]
  %s34 = scalar_lea.smem %s0, 17
  %s35 = sld [smem:[%s34]]
  %s36 = scalar_lea.smem %s0, 18
  %s37 = sld [smem:[%s36]]
  %s38 = scalar_lea.smem %s0, 19
  %s39 = sld [smem:[%s38]]
  %s40 = scalar_lea.smem %s0, 20
  %s41 = sld [smem:[%s40]]
  %s42 = scalar_lea.smem %s0, 21
  %s43 = sld [smem:[%s42]]
  %s44 = scalar_lea.smem %s0, 22
  %s45 = sld [smem:[%s44]]
  %s46 = scalar_lea.smem %s0, 23
  %s47 = sld [smem:[%s46]]
  %s48 = scalar_lea.smem %s0, 24
  %s49 = sld [smem:[%s48]]
  %s50 = scalar_lea.smem %s0, 25
  %s51 = sld [smem:[%s50]]
  %s52 = scalar_lea.smem %s0, 26
  %s53 = sld [smem:[%s52]]
  %s54 = scalar_lea.smem %s0, 27
  %s55 = sld [smem:[%s54]]
  %s56 = scalar_lea.smem %s0, 28
  %s57 = sld [smem:[%s56]]
  %s58 = scalar_lea.smem %s0, 29
  %s59 = sld [smem:[%s58]]
  %s60 = scalar_lea.smem %s0, 30
  %s61 = sld [smem:[%s60]]
  %s62 = scalar_lea.smem %s0, 31
  %s63 = sld [smem:[%s62]]
  %s64 = scalar_lea.smem %s0, 32
  %s65 = sld [smem:[%s64]]
  %s66 = scalar_lea.smem %s0, 33
  %s67 = sld [smem:[%s66]]
  %s68 = sld [smem:[#allocation0]]
  $region165: #{transformer_decoder_forward.3} parent=0
    _
  %s70 = ssub.s32 1, %s68
  %s71 = scalar_select 0, %s70, %s68
  loop: start=0, step=1, limit=6
  $region2: #{transformer_decoder_forward.3} parent=0 // loop_pre_header
    _
  $region3: #{transformer_decoder_forward.3} parent=0 // loop_header
    %s73 = sphi 0, %s77
    %p74 = scmp.ge.s32.totalorder %s73, 6
    %s80 = sphi 0, %s92
    %s81 = sphi 0, %s88
    %s82 = sphi 0, %s80
    %s83 = sphi 0, %s81
    %s84 = sphi 0, %s82
    %s85 = sphi 0, %s83
    %s95 = sphi 0, %s97
    %s98 = sphi 0, %s95
    %s99 = sphi 0, %s98
    %s115 = sphi 0, %s99
    %s121 = sphi 0, %s123
    %s124 = sphi 0, %s121
    %s125 = sphi 0, %s124
    %s141 = sphi 0, %s125
    %s147 = sphi 0, %s149
    %s150 = sphi 0, %s147
    %s151 = sphi 0, %s150
    %s167 = sphi 0, %s151
    %s173 = sphi 0, %s175
    %s176 = sphi 0, %s173
    %s177 = sphi 0, %s176
    %s193 = sphi 0, %s177
    %s199 = sphi 0, %s201
    %s202 = sphi 0, %s199
    %s203 = sphi 0, %s202
    %s219 = sphi 0, %s203
    %s223 = sphi 0, %s223
    %s225 = sphi 0, %s223
    %s226 = sphi 0, %s225
    %s240 = sphi 0, %s226
    %s244 = sphi 0, %s244
    %s246 = sphi 0, %s244
    %s247 = sphi 0, %s246
    %s261 = sphi 0, %s247
    %s265 = sphi 0, %s265
    %s267 = sphi 0, %s265
    %s268 = sphi 0, %s267
    %s282 = sphi 0, %s268
    %s286 = sphi 0, %s286
    %s288 = sphi 0, %s286
    %s289 = sphi 0, %s288
    %s303 = sphi 0, %s289
    %s307 = sphi 0, %s307
    %s309 = sphi 0, %s307
    %s310 = sphi 0, %s309
    %s324 = sphi 0, %s310
    %s328 = sphi 0, %s328
    %s330 = sphi 0, %s328
    %s331 = sphi 0, %s330
    %s345 = sphi 0, %s331
    %s349 = sphi 0, %s349
    %s351 = sphi 0, %s349
    %s352 = sphi 0, %s351
    %s366 = sphi 0, %s352
    %s370 = sphi 0, %s370
    %s372 = sphi 0, %s370
    %s373 = sphi 0, %s372
    %s387 = sphi 0, %s373
    %s391 = sphi 0, %s391
    %s393 = sphi 0, %s391
    %s394 = sphi 0, %s393
    %s408 = sphi 0, %s394
    %s412 = sphi 0, %s412
    %s414 = sphi 0, %s412
    %s415 = sphi 0, %s414
    %s429 = sphi 0, %s415
    %s433 = sphi 0, %s433
    %s435 = sphi 0, %s433
    %s436 = sphi 0, %s435
    %s450 = sphi 0, %s436
    %s454 = sphi 0, %s454
    %s456 = sphi 0, %s454
    %s457 = sphi 0, %s456
    %s471 = sphi 0, %s457
    %s475 = sphi 0, %s475
    %s477 = sphi 0, %s475
    %s478 = sphi 0, %s477
    %s492 = sphi 0, %s478
    %s496 = sphi 0, %s496
    %s498 = sphi 0, %s496
    %s499 = sphi 0, %s498
    %s513 = sphi 0, %s499
    %s517 = sphi 0, %s517
    %s519 = sphi 0, %s517
    %s520 = sphi 0, %s519
    %s534 = sphi 0, %s520
    %s538 = sphi 0, %s538
    %s540 = sphi 0, %s538
    %s541 = sphi 0, %s540
    %s555 = sphi 0, %s541
    %s559 = sphi 0, %s559
    %s561 = sphi 0, %s559
    %s562 = sphi 0, %s561
    %s576 = sphi 0, %s562
    %s580 = sphi 0, %s580
    %s582 = sphi 0, %s580
    %s583 = sphi 0, %s582
    %s597 = sphi 0, %s583
    %s601 = sphi 0, %s601
    %s603 = sphi 0, %s601
    %s604 = sphi 0, %s603
    %s618 = sphi 0, %s604
    %s622 = sphi 0, %s622
    %s624 = sphi 0, %s622
    %s625 = sphi 0, %s624
    %s639 = sphi 0, %s625
    %s643 = sphi 0, %s643
    %s645 = sphi 0, %s643
    %s646 = sphi 0, %s645
    %s660 = sphi 0, %s646
    %s664 = sphi 0, %s664
    %s666 = sphi 0, %s664
    %s667 = sphi 0, %s666
    %s681 = sphi 0, %s667
    %s685 = sphi 0, %s685
    %s687 = sphi 0, %s685
    %s688 = sphi 0, %s687
    %s702 = sphi 0, %s688
    %s706 = sphi 0, %s706
    %s708 = sphi 0, %s706
    %s709 = sphi 0, %s708
    %s723 = sphi 0, %s709
    %s727 = sphi 0, %s727
    %s729 = sphi 0, %s727
    %s730 = sphi 0, %s729
    %s744 = sphi 0, %s730
    %s748 = sphi 0, %s748
    %s750 = sphi 0, %s748
    %s751 = sphi 0, %s750
    %s765 = sphi 0, %s751
    %s769 = sphi 0, %s769
    %s771 = sphi 0, %s769
    %s772 = sphi 0, %s771
    %s786 = sphi 0, %s772
    %s790 = sphi 0, %s790
    %s792 = sphi 0, %s790
    %s793 = sphi 0, %s792
    %s807 = sphi 0, %s793
    %s815 = sphi 0, %s817
    %s818 = sphi 0, %s815
    %s819 = sphi 0, %s818
    %s835 = sphi 0, %s819
  $region4: #{transformer_decoder_forward.3} parent=0 // loop_header_branch
    %76 = sbr.rel (%p74) target = $region8
  $region5: #{transformer_decoder_forward.3} parent=0 // loop_body
    %s78 = ssub.s32 %s73, 1
    %s79 = ssub.s32 %s73, 2
    %s86 = sadd.s32 1, %s81
    %p87 = scmp.ge.s32.totalorder %s86, 2
    %s88 = scalar_select %p87, 0, %s86
    %s89 = sadd.s32 1, %s80
    %s90 = scalar_select %p87, %s89, %s80
    %p91 = scmp.ge.s32.totalorder %s90, 2
    %s92 = scalar_select %p91, 0, %s90
    %s93 = ssub.s32 %s80, %s92
    %p94 = scmp.eq.s32.totalorder %s93, 0
    %s96 = sadd.s32 %s95, 1
    %s97 = scalar_select %p94, %s95, %s96
    %p100 = pneg %p94
    %p101 = scmp.eq.s32.totalorder %s73, 3
    %p102 = por %p100, %p101
    %p103 = scmp.ne.s32.totalorder %s95, %s98
    %p104 = scmp.eq.s32.totalorder %s73, 0
    %p105 = por %p103, %p104
    %p106 = scmp.ne.s32.totalorder %s95, %s98
    %p107 = scmp.eq.s32.totalorder %s78, 3
    %p108 = por %p106, %p107
    %p109 = scmp.ne.s32.totalorder %s98, %s99
    %p110 = scmp.eq.s32.totalorder %s78, 0
    %p111 = por %p109, %p110
    %p112 = scmp.ne.s32.totalorder %s98, %s99
    %p113 = scmp.eq.s32.totalorder %s79, 3
    %p114 = por %p112, %p113
    %p116 = scmp.ne.s32.totalorder %s99, %s115
    %p117 = scmp.eq.s32.totalorder %s79, 0
    %p118 = por %p116, %p117
    %s119 = ssub.s32 %s80, %s92
    %p120 = scmp.eq.s32.totalorder %s119, 0
    %s122 = sadd.s32 %s121, 1
    %s123 = scalar_select %p120, %s121, %s122
    %p126 = pneg %p120
    %p127 = scmp.eq.s32.totalorder %s73, 3
    %p128 = por %p126, %p127
    %p129 = scmp.ne.s32.totalorder %s121, %s124
    %p130 = scmp.eq.s32.totalorder %s73, 0
    %p131 = por %p129, %p130
    %p132 = scmp.ne.s32.totalorder %s121, %s124
    %p133 = scmp.eq.s32.totalorder %s78, 3
    %p134 = por %p132, %p133
    %p135 = scmp.ne.s32.totalorder %s124, %s125
    %p136 = scmp.eq.s32.totalorder %s78, 0
    %p137 = por %p135, %p136
    %p138 = scmp.ne.s32.totalorder %s124, %s125
    %p139 = scmp.eq.s32.totalorder %s79, 3
    %p140 = por %p138, %p139
    %p142 = scmp.ne.s32.totalorder %s125, %s141
    %p143 = scmp.eq.s32.totalorder %s79, 0
    %p144 = por %p142, %p143
    %s145 = ssub.s32 %s80, %s92
    %p146 = scmp.eq.s32.totalorder %s145, 0
    %s148 = sadd.s32 %s147, 1
    %s149 = scalar_select %p146, %s147, %s148
    %p152 = pneg %p146
    %p153 = scmp.eq.s32.totalorder %s73, 3
    %p154 = por %p152, %p153
    %p155 = scmp.ne.s32.totalorder %s147, %s150
    %p156 = scmp.eq.s32.totalorder %s73, 0
    %p157 = por %p155, %p156
    %p158 = scmp.ne.s32.totalorder %s147, %s150
    %p159 = scmp.eq.s32.totalorder %s78, 3
    %p160 = por %p158, %p159
    %p161 = scmp.ne.s32.totalorder %s150, %s151
    %p162 = scmp.eq.s32.totalorder %s78, 0
    %p163 = por %p161, %p162
    %p164 = scmp.ne.s32.totalorder %s150, %s151
    %p165 = scmp.eq.s32.totalorder %s79, 3
    %p166 = por %p164, %p165
    %p168 = scmp.ne.s32.totalorder %s151, %s167
    %p169 = scmp.eq.s32.totalorder %s79, 0
    %p170 = por %p168, %p169
    %s171 = ssub.s32 %s80, %s92
    %p172 = scmp.eq.s32.totalorder %s171, 0
    %s174 = sadd.s32 %s173, 1
    %s175 = scalar_select %p172, %s173, %s174
    %p178 = pneg %p172
    %p179 = scmp.eq.s32.totalorder %s73, 3
    %p180 = por %p178, %p179
    %p181 = scmp.ne.s32.totalorder %s173, %s176
    %p182 = scmp.eq.s32.totalorder %s73, 0
    %p183 = por %p181, %p182
    %p184 = scmp.ne.s32.totalorder %s173, %s176
    %p185 = scmp.eq.s32.totalorder %s78, 3
    %p186 = por %p184, %p185
    %p187 = scmp.ne.s32.totalorder %s176, %s177
    %p188 = scmp.eq.s32.totalorder %s78, 0
    %p189 = por %p187, %p188
    %p190 = scmp.ne.s32.totalorder %s176, %s177
    %p191 = scmp.eq.s32.totalorder %s79, 3
    %p192 = por %p190, %p191
    %p194 = scmp.ne.s32.totalorder %s177, %s193
    %p195 = scmp.eq.s32.totalorder %s79, 0
    %p196 = por %p194, %p195
    %s197 = ssub.s32 %s80, %s92
    %p198 = scmp.eq.s32.totalorder %s197, 0
    %s200 = sadd.s32 %s199, 1
    %s201 = scalar_select %p198, %s199, %s200
    %p204 = pneg %p198
    %p205 = scmp.eq.s32.totalorder %s73, 3
    %p206 = por %p204, %p205
    %p207 = scmp.ne.s32.totalorder %s199, %s202
    %p208 = scmp.eq.s32.totalorder %s73, 0
    %p209 = por %p207, %p208
    %p210 = scmp.ne.s32.totalorder %s199, %s202
    %p211 = scmp.eq.s32.totalorder %s78, 3
    %p212 = por %p210, %p211
    %p213 = scmp.ne.s32.totalorder %s202, %s203
    %p214 = scmp.eq.s32.totalorder %s78, 0
    %p215 = por %p213, %p214
    %p216 = scmp.ne.s32.totalorder %s202, %s203
    %p217 = scmp.eq.s32.totalorder %s79, 3
    %p218 = por %p216, %p217
    %p220 = scmp.ne.s32.totalorder %s203, %s219
    %p221 = scmp.eq.s32.totalorder %s79, 0
    %p222 = por %p220, %p221
    %s224 = sadd.s32 %s223, 1
    %p227 = scmp.eq.s32.totalorder %s73, 3
    %p228 = scmp.ne.s32.totalorder %s223, %s225
    %p229 = scmp.eq.s32.totalorder %s73, 0
    %p230 = por %p228, %p229
    %p231 = scmp.ne.s32.totalorder %s223, %s225
    %p232 = scmp.eq.s32.totalorder %s78, 3
    %p233 = por %p231, %p232
    %p234 = scmp.ne.s32.totalorder %s225, %s226
    %p235 = scmp.eq.s32.totalorder %s78, 0
    %p236 = por %p234, %p235
    %p237 = scmp.ne.s32.totalorder %s225, %s226
    %p238 = scmp.eq.s32.totalorder %s79, 3
    %p239 = por %p237, %p238
    %p241 = scmp.ne.s32.totalorder %s226, %s240
    %p242 = scmp.eq.s32.totalorder %s79, 0
    %p243 = por %p241, %p242
    %s245 = sadd.s32 %s244, 1
    %p248 = scmp.eq.s32.totalorder %s73, 3
    %p249 = scmp.ne.s32.totalorder %s244, %s246
    %p250 = scmp.eq.s32.totalorder %s73, 0
    %p251 = por %p249, %p250
    %p252 = scmp.ne.s32.totalorder %s244, %s246
    %p253 = scmp.eq.s32.totalorder %s78, 3
    %p254 = por %p252, %p253
    %p255 = scmp.ne.s32.totalorder %s246, %s247
    %p256 = scmp.eq.s32.totalorder %s78, 0
    %p257 = por %p255, %p256
    %p258 = scmp.ne.s32.totalorder %s246, %s247
    %p259 = scmp.eq.s32.totalorder %s79, 3
    %p260 = por %p258, %p259
    %p262 = scmp.ne.s32.totalorder %s247, %s261
    %p263 = scmp.eq.s32.totalorder %s79, 0
    %p264 = por %p262, %p263
    %s266 = sadd.s32 %s265, 1
    %p269 = scmp.eq.s32.totalorder %s73, 3
    %p270 = scmp.ne.s32.totalorder %s265, %s267
    %p271 = scmp.eq.s32.totalorder %s73, 0
    %p272 = por %p270, %p271
    %p273 = scmp.ne.s32.totalorder %s265, %s267
    %p274 = scmp.eq.s32.totalorder %s78, 3
    %p275 = por %p273, %p274
    %p276 = scmp.ne.s32.totalorder %s267, %s268
    %p277 = scmp.eq.s32.totalorder %s78, 0
    %p278 = por %p276, %p277
    %p279 = scmp.ne.s32.totalorder %s267, %s268
    %p280 = scmp.eq.s32.totalorder %s79, 3
    %p281 = por %p279, %p280
    %p283 = scmp.ne.s32.totalorder %s268, %s282
    %p284 = scmp.eq.s32.totalorder %s79, 0
    %p285 = por %p283, %p284
    %s287 = sadd.s32 %s286, 1
    %p290 = scmp.eq.s32.totalorder %s73, 3
    %p291 = scmp.ne.s32.totalorder %s286, %s288
    %p292 = scmp.eq.s32.totalorder %s73, 0
    %p293 = por %p291, %p292
    %p294 = scmp.ne.s32.totalorder %s286, %s288
    %p295 = scmp.eq.s32.totalorder %s78, 3
    %p296 = por %p294, %p295
    %p297 = scmp.ne.s32.totalorder %s288, %s289
    %p298 = scmp.eq.s32.totalorder %s78, 0
    %p299 = por %p297, %p298
    %p300 = scmp.ne.s32.totalorder %s288, %s289
    %p301 = scmp.eq.s32.totalorder %s79, 3
    %p302 = por %p300, %p301
    %p304 = scmp.ne.s32.totalorder %s289, %s303
    %p305 = scmp.eq.s32.totalorder %s79, 0
    %p306 = por %p304, %p305
    %s308 = sadd.s32 %s307, 1
    %p311 = scmp.eq.s32.totalorder %s73, 3
    %p312 = scmp.ne.s32.totalorder %s307, %s309
    %p313 = scmp.eq.s32.totalorder %s73, 0
    %p314 = por %p312, %p313
    %p315 = scmp.ne.s32.totalorder %s307, %s309
    %p316 = scmp.eq.s32.totalorder %s78, 3
    %p317 = por %p315, %p316
    %p318 = scmp.ne.s32.totalorder %s309, %s310
    %p319 = scmp.eq.s32.totalorder %s78, 0
    %p320 = por %p318, %p319
    %p321 = scmp.ne.s32.totalorder %s309, %s310
    %p322 = scmp.eq.s32.totalorder %s79, 3
    %p323 = por %p321, %p322
    %p325 = scmp.ne.s32.totalorder %s310, %s324
    %p326 = scmp.eq.s32.totalorder %s79, 0
    %p327 = por %p325, %p326
    %s329 = sadd.s32 %s328, 1
    %p332 = scmp.eq.s32.totalorder %s73, 3
    %p333 = scmp.ne.s32.totalorder %s328, %s330
    %p334 = scmp.eq.s32.totalorder %s73, 0
    %p335 = por %p333, %p334
    %p336 = scmp.ne.s32.totalorder %s328, %s330
    %p337 = scmp.eq.s32.totalorder %s78, 3
    %p338 = por %p336, %p337
    %p339 = scmp.ne.s32.totalorder %s330, %s331
    %p340 = scmp.eq.s32.totalorder %s78, 0
    %p341 = por %p339, %p340
    %p342 = scmp.ne.s32.totalorder %s330, %s331
    %p343 = scmp.eq.s32.totalorder %s79, 3
    %p344 = por %p342, %p343
    %p346 = scmp.ne.s32.totalorder %s331, %s345
    %p347 = scmp.eq.s32.totalorder %s79, 0
    %p348 = por %p346, %p347
    %s350 = sadd.s32 %s349, 1
    %p353 = scmp.eq.s32.totalorder %s73, 3
    %p354 = scmp.ne.s32.totalorder %s349, %s351
    %p355 = scmp.eq.s32.totalorder %s73, 0
    %p356 = por %p354, %p355
    %p357 = scmp.ne.s32.totalorder %s349, %s351
    %p358 = scmp.eq.s32.totalorder %s78, 3
    %p359 = por %p357, %p358
    %p360 = scmp.ne.s32.totalorder %s351, %s352
    %p361 = scmp.eq.s32.totalorder %s78, 0
    %p362 = por %p360, %p361
    %p363 = scmp.ne.s32.totalorder %s351, %s352
    %p364 = scmp.eq.s32.totalorder %s79, 3
    %p365 = por %p363, %p364
    %p367 = scmp.ne.s32.totalorder %s352, %s366
    %p368 = scmp.eq.s32.totalorder %s79, 0
    %p369 = por %p367, %p368
    %s371 = sadd.s32 %s370, 1
    %p374 = scmp.eq.s32.totalorder %s73, 3
    %p375 = scmp.ne.s32.totalorder %s370, %s372
    %p376 = scmp.eq.s32.totalorder %s73, 0
    %p377 = por %p375, %p376
    %p378 = scmp.ne.s32.totalorder %s370, %s372
    %p379 = scmp.eq.s32.totalorder %s78, 3
    %p380 = por %p378, %p379
    %p381 = scmp.ne.s32.totalorder %s372, %s373
    %p382 = scmp.eq.s32.totalorder %s78, 0
    %p383 = por %p381, %p382
    %p384 = scmp.ne.s32.totalorder %s372, %s373
    %p385 = scmp.eq.s32.totalorder %s79, 3
    %p386 = por %p384, %p385
    %p388 = scmp.ne.s32.totalorder %s373, %s387
    %p389 = scmp.eq.s32.totalorder %s79, 0
    %p390 = por %p388, %p389
    %s392 = sadd.s32 %s391, 1
    %p395 = scmp.eq.s32.totalorder %s73, 3
    %p396 = scmp.ne.s32.totalorder %s391, %s393
    %p397 = scmp.eq.s32.totalorder %s73, 0
    %p398 = por %p396, %p397
    %p399 = scmp.ne.s32.totalorder %s391, %s393
    %p400 = scmp.eq.s32.totalorder %s78, 3
    %p401 = por %p399, %p400
    %p402 = scmp.ne.s32.totalorder %s393, %s394
    %p403 = scmp.eq.s32.totalorder %s78, 0
    %p404 = por %p402, %p403
    %p405 = scmp.ne.s32.totalorder %s393, %s394
    %p406 = scmp.eq.s32.totalorder %s79, 3
    %p407 = por %p405, %p406
    %p409 = scmp.ne.s32.totalorder %s394, %s408
    %p410 = scmp.eq.s32.totalorder %s79, 0
    %p411 = por %p409, %p410
    %s413 = sadd.s32 %s412, 1
    %p416 = scmp.eq.s32.totalorder %s73, 3
    %p417 = scmp.ne.s32.totalorder %s412, %s414
    %p418 = scmp.eq.s32.totalorder %s73, 0
    %p419 = por %p417, %p418
    %p420 = scmp.ne.s32.totalorder %s412, %s414
    %p421 = scmp.eq.s32.totalorder %s78, 3
    %p422 = por %p420, %p421
    %p423 = scmp.ne.s32.totalorder %s414, %s415
    %p424 = scmp.eq.s32.totalorder %s78, 0
    %p425 = por %p423, %p424
    %p426 = scmp.ne.s32.totalorder %s414, %s415
    %p427 = scmp.eq.s32.totalorder %s79, 3
    %p428 = por %p426, %p427
    %p430 = scmp.ne.s32.totalorder %s415, %s429
    %p431 = scmp.eq.s32.totalorder %s79, 0
    %p432 = por %p430, %p431
    %s434 = sadd.s32 %s433, 1
    %p437 = scmp.eq.s32.totalorder %s73, 3
    %p438 = scmp.ne.s32.totalorder %s433, %s435
    %p439 = scmp.eq.s32.totalorder %s73, 0
    %p440 = por %p438, %p439
    %p441 = scmp.ne.s32.totalorder %s433, %s435
    %p442 = scmp.eq.s32.totalorder %s78, 3
    %p443 = por %p441, %p442
    %p444 = scmp.ne.s32.totalorder %s435, %s436
    %p445 = scmp.eq.s32.totalorder %s78, 0
    %p446 = por %p444, %p445
    %p447 = scmp.ne.s32.totalorder %s435, %s436
    %p448 = scmp.eq.s32.totalorder %s79, 3
    %p449 = por %p447, %p448
    %p451 = scmp.ne.s32.totalorder %s436, %s450
    %p452 = scmp.eq.s32.totalorder %s79, 0
    %p453 = por %p451, %p452
    %s455 = sadd.s32 %s454, 1
    %p458 = scmp.eq.s32.totalorder %s73, 3
    %p459 = scmp.ne.s32.totalorder %s454, %s456
    %p460 = scmp.eq.s32.totalorder %s73, 0
    %p461 = por %p459, %p460
    %p462 = scmp.ne.s32.totalorder %s454, %s456
    %p463 = scmp.eq.s32.totalorder %s78, 3
    %p464 = por %p462, %p463
    %p465 = scmp.ne.s32.totalorder %s456, %s457
    %p466 = scmp.eq.s32.totalorder %s78, 0
    %p467 = por %p465, %p466
    %p468 = scmp.ne.s32.totalorder %s456, %s457
    %p469 = scmp.eq.s32.totalorder %s79, 3
    %p470 = por %p468, %p469
    %p472 = scmp.ne.s32.totalorder %s457, %s471
    %p473 = scmp.eq.s32.totalorder %s79, 0
    %p474 = por %p472, %p473
    %s476 = sadd.s32 %s475, 1
    %p479 = scmp.eq.s32.totalorder %s73, 3
    %p480 = scmp.ne.s32.totalorder %s475, %s477
    %p481 = scmp.eq.s32.totalorder %s73, 0
    %p482 = por %p480, %p481
    %p483 = scmp.ne.s32.totalorder %s475, %s477
    %p484 = scmp.eq.s32.totalorder %s78, 3
    %p485 = por %p483, %p484
    %p486 = scmp.ne.s32.totalorder %s477, %s478
    %p487 = scmp.eq.s32.totalorder %s78, 0
    %p488 = por %p486, %p487
    %p489 = scmp.ne.s32.totalorder %s477, %s478
    %p490 = scmp.eq.s32.totalorder %s79, 3
    %p491 = por %p489, %p490
    %p493 = scmp.ne.s32.totalorder %s478, %s492
    %p494 = scmp.eq.s32.totalorder %s79, 0
    %p495 = por %p493, %p494
    %s497 = sadd.s32 %s496, 1
    %p500 = scmp.eq.s32.totalorder %s73, 3
    %p501 = scmp.ne.s32.totalorder %s496, %s498
    %p502 = scmp.eq.s32.totalorder %s73, 0
    %p503 = por %p501, %p502
    %p504 = scmp.ne.s32.totalorder %s496, %s498
    %p505 = scmp.eq.s32.totalorder %s78, 3
    %p506 = por %p504, %p505
    %p507 = scmp.ne.s32.totalorder %s498, %s499
    %p508 = scmp.eq.s32.totalorder %s78, 0
    %p509 = por %p507, %p508
    %p510 = scmp.ne.s32.totalorder %s498, %s499
    %p511 = scmp.eq.s32.totalorder %s79, 3
    %p512 = por %p510, %p511
    %p514 = scmp.ne.s32.totalorder %s499, %s513
    %p515 = scmp.eq.s32.totalorder %s79, 0
    %p516 = por %p514, %p515
    %s518 = sadd.s32 %s517, 1
    %p521 = scmp.eq.s32.totalorder %s73, 3
    %p522 = scmp.ne.s32.totalorder %s517, %s519
    %p523 = scmp.eq.s32.totalorder %s73, 0
    %p524 = por %p522, %p523
    %p525 = scmp.ne.s32.totalorder %s517, %s519
    %p526 = scmp.eq.s32.totalorder %s78, 3
    %p527 = por %p525, %p526
    %p528 = scmp.ne.s32.totalorder %s519, %s520
    %p529 = scmp.eq.s32.totalorder %s78, 0
    %p530 = por %p528, %p529
    %p531 = scmp.ne.s32.totalorder %s519, %s520
    %p532 = scmp.eq.s32.totalorder %s79, 3
    %p533 = por %p531, %p532
    %p535 = scmp.ne.s32.totalorder %s520, %s534
    %p536 = scmp.eq.s32.totalorder %s79, 0
    %p537 = por %p535, %p536
    %s539 = sadd.s32 %s538, 1
    %p542 = scmp.eq.s32.totalorder %s73, 3
    %p543 = scmp.ne.s32.totalorder %s538, %s540
    %p544 = scmp.eq.s32.totalorder %s73, 0
    %p545 = por %p543, %p544
    %p546 = scmp.ne.s32.totalorder %s538, %s540
    %p547 = scmp.eq.s32.totalorder %s78, 3
    %p548 = por %p546, %p547
    %p549 = scmp.ne.s32.totalorder %s540, %s541
    %p550 = scmp.eq.s32.totalorder %s78, 0
    %p551 = por %p549, %p550
    %p552 = scmp.ne.s32.totalorder %s540, %s541
    %p553 = scmp.eq.s32.totalorder %s79, 3
    %p554 = por %p552, %p553
    %p556 = scmp.ne.s32.totalorder %s541, %s555
    %p557 = scmp.eq.s32.totalorder %s79, 0
    %p558 = por %p556, %p557
    %s560 = sadd.s32 %s559, 1
    %p563 = scmp.eq.s32.totalorder %s73, 3
    %p564 = scmp.ne.s32.totalorder %s559, %s561
    %p565 = scmp.eq.s32.totalorder %s73, 0
    %p566 = por %p564, %p565
    %p567 = scmp.ne.s32.totalorder %s559, %s561
    %p568 = scmp.eq.s32.totalorder %s78, 3
    %p569 = por %p567, %p568
    %p570 = scmp.ne.s32.totalorder %s561, %s562
    %p571 = scmp.eq.s32.totalorder %s78, 0
    %p572 = por %p570, %p571
    %p573 = scmp.ne.s32.totalorder %s561, %s562
    %p574 = scmp.eq.s32.totalorder %s79, 3
    %p575 = por %p573, %p574
    %p577 = scmp.ne.s32.totalorder %s562, %s576
    %p578 = scmp.eq.s32.totalorder %s79, 0
    %p579 = por %p577, %p578
    %s581 = sadd.s32 %s580, 1
    %p584 = scmp.eq.s32.totalorder %s73, 3
    %p585 = scmp.ne.s32.totalorder %s580, %s582
    %p586 = scmp.eq.s32.totalorder %s73, 0
    %p587 = por %p585, %p586
    %p588 = scmp.ne.s32.totalorder %s580, %s582
    %p589 = scmp.eq.s32.totalorder %s78, 3
    %p590 = por %p588, %p589
    %p591 = scmp.ne.s32.totalorder %s582, %s583
    %p592 = scmp.eq.s32.totalorder %s78, 0
    %p593 = por %p591, %p592
    %p594 = scmp.ne.s32.totalorder %s582, %s583
    %p595 = scmp.eq.s32.totalorder %s79, 3
    %p596 = por %p594, %p595
    %p598 = scmp.ne.s32.totalorder %s583, %s597
    %p599 = scmp.eq.s32.totalorder %s79, 0
    %p600 = por %p598, %p599
    %s602 = sadd.s32 %s601, 1
    %p605 = scmp.eq.s32.totalorder %s73, 3
    %p606 = scmp.ne.s32.totalorder %s601, %s603
    %p607 = scmp.eq.s32.totalorder %s73, 0
    %p608 = por %p606, %p607
    %p609 = scmp.ne.s32.totalorder %s601, %s603
    %p610 = scmp.eq.s32.totalorder %s78, 3
    %p611 = por %p609, %p610
    %p612 = scmp.ne.s32.totalorder %s603, %s604
    %p613 = scmp.eq.s32.totalorder %s78, 0
    %p614 = por %p612, %p613
    %p615 = scmp.ne.s32.totalorder %s603, %s604
    %p616 = scmp.eq.s32.totalorder %s79, 3
    %p617 = por %p615, %p616
    %p619 = scmp.ne.s32.totalorder %s604, %s618
    %p620 = scmp.eq.s32.totalorder %s79, 0
    %p621 = por %p619, %p620
    %s623 = sadd.s32 %s622, 1
    %p626 = scmp.eq.s32.totalorder %s73, 3
    %p627 = scmp.ne.s32.totalorder %s622, %s624
    %p628 = scmp.eq.s32.totalorder %s73, 0
    %p629 = por %p627, %p628
    %p630 = scmp.ne.s32.totalorder %s622, %s624
    %p631 = scmp.eq.s32.totalorder %s78, 3
    %p632 = por %p630, %p631
    %p633 = scmp.ne.s32.totalorder %s624, %s625
    %p634 = scmp.eq.s32.totalorder %s78, 0
    %p635 = por %p633, %p634
    %p636 = scmp.ne.s32.totalorder %s624, %s625
    %p637 = scmp.eq.s32.totalorder %s79, 3
    %p638 = por %p636, %p637
    %p640 = scmp.ne.s32.totalorder %s625, %s639
    %p641 = scmp.eq.s32.totalorder %s79, 0
    %p642 = por %p640, %p641
    %s644 = sadd.s32 %s643, 1
    %p647 = scmp.eq.s32.totalorder %s73, 3
    %p648 = scmp.ne.s32.totalorder %s643, %s645
    %p649 = scmp.eq.s32.totalorder %s73, 0
    %p650 = por %p648, %p649
    %p651 = scmp.ne.s32.totalorder %s643, %s645
    %p652 = scmp.eq.s32.totalorder %s78, 3
    %p653 = por %p651, %p652
    %p654 = scmp.ne.s32.totalorder %s645, %s646
    %p655 = scmp.eq.s32.totalorder %s78, 0
    %p656 = por %p654, %p655
    %p657 = scmp.ne.s32.totalorder %s645, %s646
    %p658 = scmp.eq.s32.totalorder %s79, 3
    %p659 = por %p657, %p658
    %p661 = scmp.ne.s32.totalorder %s646, %s660
    %p662 = scmp.eq.s32.totalorder %s79, 0
    %p663 = por %p661, %p662
    %s665 = sadd.s32 %s664, 1
    %p668 = scmp.eq.s32.totalorder %s73, 3
    %p669 = scmp.ne.s32.totalorder %s664, %s666
    %p670 = scmp.eq.s32.totalorder %s73, 0
    %p671 = por %p669, %p670
    %p672 = scmp.ne.s32.totalorder %s664, %s666
    %p673 = scmp.eq.s32.totalorder %s78, 3
    %p674 = por %p672, %p673
    %p675 = scmp.ne.s32.totalorder %s666, %s667
    %p676 = scmp.eq.s32.totalorder %s78, 0
    %p677 = por %p675, %p676
    %p678 = scmp.ne.s32.totalorder %s666, %s667
    %p679 = scmp.eq.s32.totalorder %s79, 3
    %p680 = por %p678, %p679
    %p682 = scmp.ne.s32.totalorder %s667, %s681
    %p683 = scmp.eq.s32.totalorder %s79, 0
    %p684 = por %p682, %p683
    %s686 = sadd.s32 %s685, 1
    %p689 = scmp.eq.s32.totalorder %s73, 3
    %p690 = scmp.ne.s32.totalorder %s685, %s687
    %p691 = scmp.eq.s32.totalorder %s73, 0
    %p692 = por %p690, %p691
    %p693 = scmp.ne.s32.totalorder %s685, %s687
    %p694 = scmp.eq.s32.totalorder %s78, 3
    %p695 = por %p693, %p694
    %p696 = scmp.ne.s32.totalorder %s687, %s688
    %p697 = scmp.eq.s32.totalorder %s78, 0
    %p698 = por %p696, %p697
    %p699 = scmp.ne.s32.totalorder %s687, %s688
    %p700 = scmp.eq.s32.totalorder %s79, 3
    %p701 = por %p699, %p700
    %p703 = scmp.ne.s32.totalorder %s688, %s702
    %p704 = scmp.eq.s32.totalorder %s79, 0
    %p705 = por %p703, %p704
    %s707 = sadd.s32 %s706, 1
    %p710 = scmp.eq.s32.totalorder %s73, 3
    %p711 = scmp.ne.s32.totalorder %s706, %s708
    %p712 = scmp.eq.s32.totalorder %s73, 0
    %p713 = por %p711, %p712
    %p714 = scmp.ne.s32.totalorder %s706, %s708
    %p715 = scmp.eq.s32.totalorder %s78, 3
    %p716 = por %p714, %p715
    %p717 = scmp.ne.s32.totalorder %s708, %s709
    %p718 = scmp.eq.s32.totalorder %s78, 0
    %p719 = por %p717, %p718
    %p720 = scmp.ne.s32.totalorder %s708, %s709
    %p721 = scmp.eq.s32.totalorder %s79, 3
    %p722 = por %p720, %p721
    %p724 = scmp.ne.s32.totalorder %s709, %s723
    %p725 = scmp.eq.s32.totalorder %s79, 0
    %p726 = por %p724, %p725
    %s728 = sadd.s32 %s727, 1
    %p731 = scmp.eq.s32.totalorder %s73, 3
    %p732 = scmp.ne.s32.totalorder %s727, %s729
    %p733 = scmp.eq.s32.totalorder %s73, 0
    %p734 = por %p732, %p733
    %p735 = scmp.ne.s32.totalorder %s727, %s729
    %p736 = scmp.eq.s32.totalorder %s78, 3
    %p737 = por %p735, %p736
    %p738 = scmp.ne.s32.totalorder %s729, %s730
    %p739 = scmp.eq.s32.totalorder %s78, 0
    %p740 = por %p738, %p739
    %p741 = scmp.ne.s32.totalorder %s729, %s730
    %p742 = scmp.eq.s32.totalorder %s79, 3
    %p743 = por %p741, %p742
    %p745 = scmp.ne.s32.totalorder %s730, %s744
    %p746 = scmp.eq.s32.totalorder %s79, 0
    %p747 = por %p745, %p746
    %s749 = sadd.s32 %s748, 1
    %p752 = scmp.eq.s32.totalorder %s73, 3
    %p753 = scmp.ne.s32.totalorder %s748, %s750
    %p754 = scmp.eq.s32.totalorder %s73, 0
    %p755 = por %p753, %p754
    %p756 = scmp.ne.s32.totalorder %s748, %s750
    %p757 = scmp.eq.s32.totalorder %s78, 3
    %p758 = por %p756, %p757
    %p759 = scmp.ne.s32.totalorder %s750, %s751
    %p760 = scmp.eq.s32.totalorder %s78, 0
    %p761 = por %p759, %p760
    %p762 = scmp.ne.s32.totalorder %s750, %s751
    %p763 = scmp.eq.s32.totalorder %s79, 3
    %p764 = por %p762, %p763
    %p766 = scmp.ne.s32.totalorder %s751, %s765
    %p767 = scmp.eq.s32.totalorder %s79, 0
    %p768 = por %p766, %p767
    %s770 = sadd.s32 %s769, 1
    %p773 = scmp.eq.s32.totalorder %s73, 3
    %p774 = scmp.ne.s32.totalorder %s769, %s771
    %p775 = scmp.eq.s32.totalorder %s73, 0
    %p776 = por %p774, %p775
    %p777 = scmp.ne.s32.totalorder %s769, %s771
    %p778 = scmp.eq.s32.totalorder %s78, 3
    %p779 = por %p777, %p778
    %p780 = scmp.ne.s32.totalorder %s771, %s772
    %p781 = scmp.eq.s32.totalorder %s78, 0
    %p782 = por %p780, %p781
    %p783 = scmp.ne.s32.totalorder %s771, %s772
    %p784 = scmp.eq.s32.totalorder %s79, 3
    %p785 = por %p783, %p784
    %p787 = scmp.ne.s32.totalorder %s772, %s786
    %p788 = scmp.eq.s32.totalorder %s79, 0
    %p789 = por %p787, %p788
    %s791 = sadd.s32 %s790, 1
    %p794 = scmp.eq.s32.totalorder %s73, 3
    %p795 = scmp.ne.s32.totalorder %s790, %s792
    %p796 = scmp.eq.s32.totalorder %s73, 0
    %p797 = por %p795, %p796
    %p798 = scmp.ne.s32.totalorder %s790, %s792
    %p799 = scmp.eq.s32.totalorder %s78, 3
    %p800 = por %p798, %p799
    %p801 = scmp.ne.s32.totalorder %s792, %s793
    %p802 = scmp.eq.s32.totalorder %s78, 0
    %p803 = por %p801, %p802
    %p804 = scmp.ne.s32.totalorder %s792, %s793
    %p805 = scmp.eq.s32.totalorder %s79, 3
    %p806 = por %p804, %p805
    %p808 = scmp.ne.s32.totalorder %s793, %s807
    %p809 = scmp.eq.s32.totalorder %s79, 0
    %p810 = por %p808, %p809
    %s811 = ssub.s32 %s80, %s92
    %s812 = ssub.s32 %s81, %s88
    %s813 = sor.u32 %s811, %s812
    %p814 = scmp.eq.s32.totalorder %s813, 0
    %s816 = sadd.s32 %s815, 1
    %s817 = scalar_select %p814, %s815, %s816
    %p820 = pneg %p814
    %p821 = scmp.eq.s32.totalorder %s73, 3
    %p822 = por %p820, %p821
    %p823 = scmp.ne.s32.totalorder %s815, %s818
    %p824 = scmp.eq.s32.totalorder %s73, 0
    %p825 = por %p823, %p824
    %p826 = scmp.ne.s32.totalorder %s815, %s818
    %p827 = scmp.eq.s32.totalorder %s78, 3
    %p828 = por %p826, %p827
    %p829 = scmp.ne.s32.totalorder %s818, %s819
    %p830 = scmp.eq.s32.totalorder %s78, 0
    %p831 = por %p829, %p830
    %p832 = scmp.ne.s32.totalorder %s818, %s819
    %p833 = scmp.eq.s32.totalorder %s79, 3
    %p834 = por %p832, %p833
    %p836 = scmp.ne.s32.totalorder %s819, %s835
    %p837 = scmp.eq.s32.totalorder %s79, 0
    %p838 = por %p836, %p837
    %p839 = scmp.le.s32.totalorder 1, %s73
    %p840 = scmp.lt.s32.totalorder %s73, 5
    %p841 = pnand %p839, %p840
    %p842 = pneg %p841
    // Predicated region
    $region9: #{transformer_decoder_forward.3} parent=5 // pred_check
      _
    $region10: #{transformer_decoder_forward.3} parent=5 // pred_check_branch
      %844 = sbr.rel (%p841) target = $region12
    $region11: #{transformer_decoder_forward.3} parent=5 // pred_region
      %s845 = ssub.s32 %s73, 1
      // Predicated region
      $region13: #{transformer_decoder_forward.3} parent=11 // pred_check
        %p846 = pneg %p236
      $region14: #{transformer_decoder_forward.3} parent=11 // pred_check_branch
        %848 = sbr.rel (%p846) target = $region16
      $region15: #{transformer_decoder_forward.3} parent=11 // pred_region
        _
      $region16: #{transformer_decoder_forward.3} parent=11 // pred_fallthru
        _
      // Predicated region
      $region17: #{transformer_decoder_forward.3} parent=11 // pred_check
        %p849 = pneg %p257
      $region18: #{transformer_decoder_forward.3} parent=11 // pred_check_branch
        %851 = sbr.rel (%p849) target = $region20
      $region19: #{transformer_decoder_forward.3} parent=11 // pred_region
        _
      $region20: #{transformer_decoder_forward.3} parent=11 // pred_fallthru
        _
      // Predicated region
      $region21: #{transformer_decoder_forward.3} parent=11 // pred_check
        %p852 = pneg %p278
      $region22: #{transformer_decoder_forward.3} parent=11 // pred_check_branch
        %854 = sbr.rel (%p852) target = $region24
      $region23: #{transformer_decoder_forward.3} parent=11 // pred_region
        _
      $region24: #{transformer_decoder_forward.3} parent=11 // pred_fallthru
        _
      // Predicated region
      $region25: #{transformer_decoder_forward.3} parent=11 // pred_check
        %p855 = pneg %p299
      $region26: #{transformer_decoder_forward.3} parent=11 // pred_check_branch
        %857 = sbr.rel (%p855) target = $region28
      $region27: #{transformer_decoder_forward.3} parent=11 // pred_region
        _
      $region28: #{transformer_decoder_forward.3} parent=11 // pred_fallthru
        _
      // Predicated region
      $region29: #{transformer_decoder_forward.3} parent=11 // pred_check
        %p858 = pneg %p320
      $region30: #{transformer_decoder_forward.3} parent=11 // pred_check_branch
        %860 = sbr.rel (%p858) target = $region32
      $region31: #{transformer_decoder_forward.3} parent=11 // pred_region
        _
      $region32: #{transformer_decoder_forward.3} parent=11 // pred_fallthru
        _
      // Predicated region
      $region33: #{transformer_decoder_forward.3} parent=11 // pred_check
        %p861 = pneg %p341
      $region34: #{transformer_decoder_forward.3} parent=11 // pred_check_branch
        %863 = sbr.rel (%p861) target = $region36
      $region35: #{transformer_decoder_forward.3} parent=11 // pred_region
        _
      $region36: #{transformer_decoder_forward.3} parent=11 // pred_fallthru
        _
      // Predicated region
      $region37: #{transformer_decoder_forward.3} parent=11 // pred_check
        %p864 = pneg %p362
      $region38: #{transformer_decoder_forward.3} parent=11 // pred_check_branch
        %866 = sbr.rel (%p864) target = $region40
      $region39: #{transformer_decoder_forward.3} parent=11 // pred_region
        _
      $region40: #{transformer_decoder_forward.3} parent=11 // pred_fallthru
        _
      // Predicated region
      $region41: #{transformer_decoder_forward.3} parent=11 // pred_check
        %p867 = pneg %p383
      $region42: #{transformer_decoder_forward.3} parent=11 // pred_check_branch
        %869 = sbr.rel (%p867) target = $region44
      $region43: #{transformer_decoder_forward.3} parent=11 // pred_region
        _
      $region44: #{transformer_decoder_forward.3} parent=11 // pred_fallthru
        _
      // Predicated region
      $region45: #{transformer_decoder_forward.3} parent=11 // pred_check
        %p870 = pneg %p404
      $region46: #{transformer_decoder_forward.3} parent=11 // pred_check_branch
        %872 = sbr.rel (%p870) target = $region48
      $region47: #{transformer_decoder_forward.3} parent=11 // pred_region
        _
      $region48: #{transformer_decoder_forward.3} parent=11 // pred_fallthru
        _
      // Predicated region
      $region49: #{transformer_decoder_forward.3} parent=11 // pred_check
        %p873 = pneg %p425
      $region50: #{transformer_decoder_forward.3} parent=11 // pred_check_branch
        %875 = sbr.rel (%p873) target = $region52
      $region51: #{transformer_decoder_forward.3} parent=11 // pred_region
        _
      $region52: #{transformer_decoder_forward.3} parent=11 // pred_fallthru
        _
      // Predicated region
      $region53: #{transformer_decoder_forward.3} parent=11 // pred_check
        %p876 = pneg %p446
      $region54: #{transformer_decoder_forward.3} parent=11 // pred_check_branch
        %878 = sbr.rel (%p876) target = $region56
      $region55: #{transformer_decoder_forward.3} parent=11 // pred_region
        _
      $region56: #{transformer_decoder_forward.3} parent=11 // pred_fallthru
        _
      // Predicated region
      $region57: #{transformer_decoder_forward.3} parent=11 // pred_check
        %p879 = pneg %p467
      $region58: #{transformer_decoder_forward.3} parent=11 // pred_check_branch
        %881 = sbr.rel (%p879) target = $region60
      $region59: #{transformer_decoder_forward.3} parent=11 // pred_region
        _
      $region60: #{transformer_decoder_forward.3} parent=11 // pred_fallthru
        _
      // Predicated region
      $region61: #{transformer_decoder_forward.3} parent=11 // pred_check
        %p882 = pneg %p488
      $region62: #{transformer_decoder_forward.3} parent=11 // pred_check_branch
        %884 = sbr.rel (%p882) target = $region64
      $region63: #{transformer_decoder_forward.3} parent=11 // pred_region
        _
      $region64: #{transformer_decoder_forward.3} parent=11 // pred_fallthru
        _
      // Predicated region
      $region65: #{transformer_decoder_forward.3} parent=11 // pred_check
        %p885 = pneg %p509
      $region66: #{transformer_decoder_forward.3} parent=11 // pred_check_branch
        %887 = sbr.rel (%p885) target = $region68
      $region67: #{transformer_decoder_forward.3} parent=11 // pred_region
        _
      $region68: #{transformer_decoder_forward.3} parent=11 // pred_fallthru
        _
      // Predicated region
      $region69: #{transformer_decoder_forward.3} parent=11 // pred_check
        %p888 = pneg %p530
      $region70: #{transformer_decoder_forward.3} parent=11 // pred_check_branch
        %890 = sbr.rel (%p888) target = $region72
      $region71: #{transformer_decoder_forward.3} parent=11 // pred_region
        _
      $region72: #{transformer_decoder_forward.3} parent=11 // pred_fallthru
        _
      // Predicated region
      $region73: #{transformer_decoder_forward.3} parent=11 // pred_check
        %p891 = pneg %p551
      $region74: #{transformer_decoder_forward.3} parent=11 // pred_check_branch
        %893 = sbr.rel (%p891) target = $region76
      $region75: #{transformer_decoder_forward.3} parent=11 // pred_region
        _
      $region76: #{transformer_decoder_forward.3} parent=11 // pred_fallthru
        _
      // Predicated region
      $region77: #{transformer_decoder_forward.3} parent=11 // pred_check
        %p894 = pneg %p572
      $region78: #{transformer_decoder_forward.3} parent=11 // pred_check_branch
        %896 = sbr.rel (%p894) target = $region80
      $region79: #{transformer_decoder_forward.3} parent=11 // pred_region
        _
      $region80: #{transformer_decoder_forward.3} parent=11 // pred_fallthru
        _
      // Predicated region
      $region81: #{transformer_decoder_forward.3} parent=11 // pred_check
        %p897 = pneg %p593
      $region82: #{transformer_decoder_forward.3} parent=11 // pred_check_branch
        %899 = sbr.rel (%p897) target = $region84
      $region83: #{transformer_decoder_forward.3} parent=11 // pred_region
        _
      $region84: #{transformer_decoder_forward.3} parent=11 // pred_fallthru
        _
      // Predicated region
      $region85: #{transformer_decoder_forward.3} parent=11 // pred_check
        %p900 = pneg %p614
      $region86: #{transformer_decoder_forward.3} parent=11 // pred_check_branch
        %902 = sbr.rel (%p900) target = $region88
      $region87: #{transformer_decoder_forward.3} parent=11 // pred_region
        _
      $region88: #{transformer_decoder_forward.3} parent=11 // pred_fallthru
        _
      // Predicated region
      $region89: #{transformer_decoder_forward.3} parent=11 // pred_check
        %p903 = pneg %p635
      $region90: #{transformer_decoder_forward.3} parent=11 // pred_check_branch
        %905 = sbr.rel (%p903) target = $region92
      $region91: #{transformer_decoder_forward.3} parent=11 // pred_region
        _
      $region92: #{transformer_decoder_forward.3} parent=11 // pred_fallthru
        _
      // Predicated region
      $region93: #{transformer_decoder_forward.3} parent=11 // pred_check
        %p906 = pneg %p656
      $region94: #{transformer_decoder_forward.3} parent=11 // pred_check_branch
        %908 = sbr.rel (%p906) target = $region96
      $region95: #{transformer_decoder_forward.3} parent=11 // pred_region
        _
      $region96: #{transformer_decoder_forward.3} parent=11 // pred_fallthru
        _
      // Predicated region
      $region97: #{transformer_decoder_forward.3} parent=11 // pred_check
        %p909 = pneg %p677
      $region98: #{transformer_decoder_forward.3} parent=11 // pred_check_branch
        %911 = sbr.rel (%p909) target = $region100
      $region99: #{transformer_decoder_forward.3} parent=11 // pred_region
        _
      $region100: #{transformer_decoder_forward.3} parent=11 // pred_fallthru
        _
      // Predicated region
      $region101: #{transformer_decoder_forward.3} parent=11 // pred_check
        %p912 = pneg %p698
      $region102: #{transformer_decoder_forward.3} parent=11 // pred_check_branch
        %914 = sbr.rel (%p912) target = $region104
      $region103: #{transformer_decoder_forward.3} parent=11 // pred_region
        _
      $region104: #{transformer_decoder_forward.3} parent=11 // pred_fallthru
        _
      // Predicated region
      $region105: #{transformer_decoder_forward.3} parent=11 // pred_check
        %p915 = pneg %p719
      $region106: #{transformer_decoder_forward.3} parent=11 // pred_check_branch
        %917 = sbr.rel (%p915) target = $region108
      $region107: #{transformer_decoder_forward.3} parent=11 // pred_region
        _
      $region108: #{transformer_decoder_forward.3} parent=11 // pred_fallthru
        _
      // Predicated region
      $region109: #{transformer_decoder_forward.3} parent=11 // pred_check
        %p918 = pneg %p740
      $region110: #{transformer_decoder_forward.3} parent=11 // pred_check_branch
        %920 = sbr.rel (%p918) target = $region112
      $region111: #{transformer_decoder_forward.3} parent=11 // pred_region
        _
      $region112: #{transformer_decoder_forward.3} parent=11 // pred_fallthru
        _
      // Predicated region
      $region113: #{transformer_decoder_forward.3} parent=11 // pred_check
        %p921 = pneg %p761
      $region114: #{transformer_decoder_forward.3} parent=11 // pred_check_branch
        %923 = sbr.rel (%p921) target = $region116
      $region115: #{transformer_decoder_forward.3} parent=11 // pred_region
        _
      $region116: #{transformer_decoder_forward.3} parent=11 // pred_fallthru
        _
      // Predicated region
      $region117: #{transformer_decoder_forward.3} parent=11 // pred_check
        %p924 = pneg %p782
      $region118: #{transformer_decoder_forward.3} parent=11 // pred_check_branch
        %926 = sbr.rel (%p924) target = $region120
      $region119: #{transformer_decoder_forward.3} parent=11 // pred_region
        _
      $region120: #{transformer_decoder_forward.3} parent=11 // pred_fallthru
        _
      // Predicated region
      $region121: #{transformer_decoder_forward.3} parent=11 // pred_check
        %p927 = pneg %p803
      $region122: #{transformer_decoder_forward.3} parent=11 // pred_check_branch
        %929 = sbr.rel (%p927) target = $region124
      $region123: #{transformer_decoder_forward.3} parent=11 // pred_region
        _
      $region124: #{transformer_decoder_forward.3} parent=11 // pred_fallthru
        _
    $region12: #{transformer_decoder_forward.3} parent=5 // pred_fallthru
      _
    %p930 = scmp.lt.s32.totalorder %s73, 4
    // Predicated region
    $region125: #{transformer_decoder_forward.3} parent=5 // pred_check
      %p931 = pneg %p930
    $region126: #{transformer_decoder_forward.3} parent=5 // pred_check_branch
      %933 = sbr.rel (%p931) target = $region128
    $region127: #{transformer_decoder_forward.3} parent=5 // pred_region
      // Predicated region
      $region129: #{transformer_decoder_forward.3} parent=127 // pred_check
        %p934 = pneg %p105
      $region130: #{transformer_decoder_forward.3} parent=127 // pred_check_branch
        %936 = sbr.rel (%p934) target = $region132
      $region131: #{transformer_decoder_forward.3} parent=127 // pred_region
        %p937 = scmp.lt.s32.totalorder %s80, 1
        %s938 = scalar_select %p937, %s80, 1
        %s939 = smul.addr %s938, 2
        %s940 = smul.addr %s939, 8
        %s941 = scalar_lea.vmem %s1, %s940
      $region132: #{transformer_decoder_forward.3} parent=127 // pred_fallthru
        _
      // Predicated region
      $region133: #{transformer_decoder_forward.3} parent=127 // pred_check
        %p942 = pneg %p131
      $region134: #{transformer_decoder_forward.3} parent=127 // pred_check_branch
        %944 = sbr.rel (%p942) target = $region136
      $region135: #{transformer_decoder_forward.3} parent=127 // pred_region
        %p945 = scmp.lt.s32.totalorder %s80, 1
        %s946 = scalar_select %p945, %s80, 1
        %s947 = smul.addr %s946, 3
        %s948 = smul.addr %s947, 8
        %s949 = scalar_lea.vmem %s3, %s948
      $region136: #{transformer_decoder_forward.3} parent=127 // pred_fallthru
        _
      // Predicated region
      $region137: #{transformer_decoder_forward.3} parent=127 // pred_check
        %p950 = pneg %p157
      $region138: #{transformer_decoder_forward.3} parent=127 // pred_check_branch
        %952 = sbr.rel (%p950) target = $region140
      $region139: #{transformer_decoder_forward.3} parent=127 // pred_region
        %p953 = scmp.lt.s32.totalorder %s80, 1
        %s954 = scalar_select %p953, %s80, 1
        %s955 = smul.addr %s954, 2
        %s956 = smul.addr %s955, 8
        %s957 = scalar_lea.vmem %s5, %s956
      $region140: #{transformer_decoder_forward.3} parent=127 // pred_fallthru
        _
      // Predicated region
      $region141: #{transformer_decoder_forward.3} parent=127 // pred_check
        %p958 = pneg %p183
      $region142: #{transformer_decoder_forward.3} parent=127 // pred_check_branch
        %960 = sbr.rel (%p958) target = $region144
      $region143: #{transformer_decoder_forward.3} parent=127 // pred_region
        %p961 = scmp.lt.s32.totalorder %s80, 1
        %s962 = scalar_select %p961, %s80, 1
        %s963 = smul.addr %s962, 3
        %s964 = smul.addr %s963, 8
        %s965 = scalar_lea.vmem %s7, %s964
      $region144: #{transformer_decoder_forward.3} parent=127 // pred_fallthru
        _
      // Predicated region
      $region145: #{transformer_decoder_forward.3} parent=127 // pred_check
        %p966 = pneg %p209
      $region146: #{transformer_decoder_forward.3} parent=127 // pred_check_branch
        %968 = sbr.rel (%p966) target = $region148
      $region147: #{transformer_decoder_forward.3} parent=127 // pred_region
        %p969 = scmp.lt.s32.totalorder %s80, 1
        %s970 = scalar_select %p969, %s80, 1
        %s971 = scalar_lea.vmem %s9, %s970
      $region148: #{transformer_decoder_forward.3} parent=127 // pred_fallthru
        _
    $region128: #{transformer_decoder_forward.3} parent=5 // pred_fallthru
      _
    %p972 = scmp.le.s32.totalorder 1, %s73
    %p973 = scmp.lt.s32.totalorder %s73, 5
    %p974 = pnand %p972, %p973
    %p975 = pneg %p974
    // Predicated region
    $region149: #{transformer_decoder_forward.3} parent=5 // pred_check
      _
    $region150: #{transformer_decoder_forward.3} parent=5 // pred_check_branch
      %977 = sbr.rel (%p974) target = $region152
    $region151: #{transformer_decoder_forward.3} parent=5 // pred_region
      %s978 = ssub.s32 %s73, 1
      %p979 = scmp.lt.s32.totalorder %s82, 1
      %s980 = scalar_select %p979, %s82, 1
      %s981 = smul.addr %s980, 2
      %s982 = smul.addr %s981, 8
      %s983 = scalar_lea.vmem %s1, %s982
      %p984 = pneg %p111
      %p985 = pneg %p108
      %p986 = scmp.lt.s32.totalorder %s82, 1
      %s987 = scalar_select %p986, %s82, 1
      %s988 = smul.addr %s987, 3
      %s989 = smul.addr %s988, 8
      %s990 = scalar_lea.vmem %s3, %s989
      %p991 = pneg %p137
      %p992 = pneg %p134
      %p993 = scmp.lt.s32.totalorder %s82, 1
      %s994 = scalar_select %p993, %s82, 1
      %s995 = smul.addr %s994, 2
      %s996 = smul.addr %s995, 8
      %s997 = scalar_lea.vmem %s5, %s996
      %p998 = pneg %p163
      %p999 = pneg %p160
      %p1000 = scmp.lt.s32.totalorder %s82, 1
      %s1001 = scalar_select %p1000, %s82, 1
      %s1002 = smul.addr %s1001, 3
      %s1003 = smul.addr %s1002, 8
      %s1004 = scalar_lea.vmem %s7, %s1003
      %p1005 = pneg %p189
      %p1006 = pneg %p186
      %p1007 = scmp.lt.s32.totalorder %s82, 1
      %s1008 = scalar_select %p1007, %s82, 1
      %s1009 = scalar_lea.vmem %s9, %s1008
      %p1010 = pneg %p215
      %p1011 = pneg %p212
      %p1012 = pneg %p236
      %p1013 = pneg %p233
      %p1014 = pneg %p257
      %p1015 = pneg %p254
      %p1016 = pneg %p278
      %p1017 = pneg %p275
      %p1018 = pneg %p299
      %p1019 = pneg %p296
      %p1020 = pneg %p320
      %p1021 = pneg %p317
      %p1022 = pneg %p341
      %p1023 = pneg %p338
      %p1024 = pneg %p362
      %p1025 = pneg %p359
      %p1026 = pneg %p383
      %p1027 = pneg %p380
      %p1028 = pneg %p404
      %p1029 = pneg %p401
      %p1030 = pneg %p425
      %p1031 = pneg %p422
      %p1032 = pneg %p446
      %p1033 = pneg %p443
      %p1034 = pneg %p467
      %p1035 = pneg %p464
      %p1036 = pneg %p488
      %p1037 = pneg %p485
      %p1038 = pneg %p509
      %p1039 = pneg %p506
      %p1040 = pneg %p530
      %p1041 = pneg %p527
      %p1042 = pneg %p551
      %p1043 = pneg %p548
      %p1044 = pneg %p572
      %p1045 = pneg %p569
      %p1046 = pneg %p593
      %p1047 = pneg %p590
      %p1048 = pneg %p614
      %p1049 = pneg %p611
      %p1050 = pneg %p635
      %p1051 = pneg %p632
      %p1052 = pneg %p656
      %p1053 = pneg %p653
      %p1054 = pneg %p677
      %p1055 = pneg %p674
      %p1056 = pneg %p698
      %p1057 = pneg %p695
      %p1058 = pneg %p719
      %p1059 = pneg %p716
      %p1060 = pneg %p740
      %p1061 = pneg %p737
      %p1062 = pneg %p761
      %p1063 = pneg %p758
      %p1064 = pneg %p782
      %p1065 = pneg %p779
      %p1066 = pneg %p803
      %p1067 = pneg %p800
      %p1068 = pneg %p831
      %p1069 = pneg %p828
      %p1070 = scmp.lt.s32.totalorder %s82, 1
      %s1071 = scalar_select %p1070, %s82, 1
      %p1072 = scmp.lt.s32.totalorder %s83, 1
      %s1073 = scalar_select %p1072, %s83, 1
      %s1074 = smul.addr %s1071, 2
      %s1075 = sadd.s32 %s1073, %s1074
      %s1076 = smul.addr %s1075, 8
      %s1077 = scalar_lea.vmem %s67, %s1076
      %p1078 = scmp.lt.s32.totalorder %s82, 1
      %s1079 = scalar_select %p1078, %s82, 1
      %s1080 = smul.addr %s1079, 2
      %s1081 = smul.addr %s1080, 8
      %s1082 = scalar_lea.vmem %s1, %s1081
      %p1083 = scmp.lt.s32.totalorder %s82, 1
      %s1084 = scalar_select %p1083, %s82, 1
      %s1085 = smul.addr %s1084, 3
      %s1086 = smul.addr %s1085, 8
      %s1087 = scalar_lea.vmem %s3, %s1086
      %p1088 = scmp.lt.s32.totalorder %s82, 1
      %s1089 = scalar_select %p1088, %s82, 1
      %s1090 = smul.addr %s1089, 2
      %s1091 = smul.addr %s1090, 8
      %s1092 = scalar_lea.vmem %s5, %s1091
      %p1093 = scmp.lt.s32.totalorder %s82, 1
      %s1094 = scalar_select %p1093, %s82, 1
      %s1095 = smul.addr %s1094, 3
      %s1096 = smul.addr %s1095, 8
      %s1097 = scalar_lea.vmem %s7, %s1096
      %p1098 = scmp.lt.s32.totalorder %s82, 1
      %s1099 = scalar_select %p1098, %s82, 1
      %s1100 = scalar_lea.vmem %s9, %s1099
      %p1101 = scmp.lt.s32.totalorder %s82, 1
      %s1102 = scalar_select %p1101, %s82, 1
      %p1103 = scmp.lt.s32.totalorder %s83, 1
      %s1104 = scalar_select %p1103, %s83, 1
      %s1105 = smul.addr %s1102, 2
      %s1106 = sadd.s32 %s1104, %s1105
      %s1107 = smul.addr %s1106, 8
      %s1108 = scalar_lea.vmem %s67, %s1107
      %v1110 = vld [vmem:[%s1082] sm:$0xff]
      %v1111 = vld [vmem:[%s1082 + $0x8] sm:$0xff]
      %v1112 = vld [vmem:[%s1092] sm:$0xff]
      %v1113 = vld [vmem:[%s1092 + $0x8] sm:$0xff]
      %s1114 = smul.u32 %s83, 8
      %s1115 = scalar_lea.vmem %s1082, %s1114
      %v1116 = vld [vmem:[%s1115] sm:$0xff]
      %s1117 = scalar_lea.vmem %s1092, %s1114
      %v1118 = vld [vmem:[%s1117] sm:$0xff]
      %v1119 = vadd.f32 %v1116, %v1118
      %v1120 = vadd.f32 %v1110, %v1112
      %v1121 = vadd.f32 %v1111, %v1113
      %v1122 = vld [vmem:[%s11] sm:$0xf]
      %v1123 = vld [vmem:[%s11 + $0x4] sm:$0xf]
      %v1124 = vld [vmem:[%s11 + $0x8] sm:$0xf]
      %v1125 = vld [vmem:[%s11 + $0xc] sm:$0xf]
      %v1126 = vld [vmem:[%s13] sm:$0x1]
      %v1127 = vld [vmem:[%s15] sm:$0xf]
      %v1128 = vld [vmem:[%s15 + $0x4] sm:$0xf]
      %v1129 = vld [vmem:[%s15 + $0x8] sm:$0xf]
      %v1130 = vld [vmem:[%s15 + $0xc] sm:$0xf]
      %v1131 = vld [vmem:[%s17] sm:$0x1]
      %v1132 = vld [vmem:[%s19] sm:$0xf]
      %v1133 = vld [vmem:[%s19 + $0x4] sm:$0xf]
      %v1134 = vld [vmem:[%s19 + $0x8] sm:$0xf]
      %v1135 = vld [vmem:[%s19 + $0xc] sm:$0xf]
      %v1136 = vld [vmem:[%s21] sm:$0x1]
      %v1137 = vld [vmem:[%s23] sm:$0xf]
      %v1138 = vld [vmem:[%s23 + $0x4] sm:$0xf]
      %v1139 = vld [vmem:[%s23 + $0x8] sm:$0xf]
      %v1140 = vld [vmem:[%s23 + $0xc] sm:$0xf]
      %v1141 = vld [vmem:[%s25] sm:$0x1]
      %v1142 = vld [vmem:[%s27] sm:$0x1]
      %v1143 = vld [vmem:[%s29] sm:$0x1]
      %v1144 = vpack.c.bf16 %v1119, %v1119
      %v1146 = vlaneseq
      %v1147 = vshrl.u32 %v1146, 7
      %v1148 = vsub.s32 0, %v1147
      %v1149 = vrot.slane %v1126, %v1148
      %v1155 = vunpack.c.l.b16 %v1122
      %v1156 = vunpack.c.l.b16 %v1123
      %v1157 = vunpack.c.l.b16 %v1124
      %v1158 = vunpack.c.l.b16 %v1125
      %v1159 = vpack.c.b16 %v1156, %v1155
      %v1160 = vpack.c.b16 %v1158, %v1157
      %vm1163 = vcmask 261120
      %v1165 = vsel %vm1163, %v1144, 0
      %1167 = vmatprep.subr.bf16.mxu0 0
      %1168 = vmatpush1.bf16.msra.mxu0 %v1159
      %1169 = vmatprep.subr.bf16.mxu0 0
      %1170 = vmatpush1.bf16.msra.mxu0 %v1160
      %1171 = vmatprep.subr.bf16.mxu0 0
      %1172 = vmatpush1.bf16.msra.mxu0 0
      %1173 = vmatprep.subr.bf16.mxu0 0
      %1174 = vmatpush1.bf16.msra.mxu0 0
      %1175 = vmatprep.subr.bf16.mxu0 0
      %1176 = vmatpush1.bf16.msra.mxu0 0
      %1177 = vmatprep.subr.bf16.mxu0 0
      %1178 = vmatpush1.bf16.msra.mxu0 0
      %1179 = vmatprep.subr.bf16.mxu0 0
      %1180 = vmatpush1.bf16.msra.mxu0 0
      %1181 = vmatprep.subr.bf16.mxu0 0
      %1182 = vmatpush1.bf16.msra.mxu0 0
      %1183 = vmatprep.subr.bf16.mxu0 0
      %1184 = vmatpush1.bf16.msra.mxu0 0
      %1185 = vmatprep.subr.bf16.mxu0 0
      %1186 = vmatpush1.bf16.msra.mxu0 0
      %1187 = vmatprep.subr.bf16.mxu0 0
      %1188 = vmatpush1.bf16.msra.mxu0 0
      %1189 = vmatprep.subr.bf16.mxu0 0
      %1190 = vmatpush1.bf16.msra.mxu0 0
      %1191 = vmatprep.subr.bf16.mxu0 0
      %1192 = vmatpush1.bf16.msra.mxu0 0
      %1193 = vmatprep.subr.bf16.mxu0 0
      %1194 = vmatpush1.bf16.msra.mxu0 0
      %1195 = vmatprep.subr.bf16.mxu0 0
      %1196 = vmatpush1.bf16.msra.mxu0 0
      %1197 = vmatprep.subr.bf16.mxu0 0
      %1198 = vmatpush1.bf16.msra.mxu0 0
      %1199 = vmatprep.mubr.bf16.mxu0 0
      %1200 = vmatmul.mubr.bf16.gmra.mrb[0].mxu0 %v1165
      %v1201 = vpop.f32.mrb[0].mxu0
      %v1202 = vadd.f32 %v1149, %v1201
      %v1203 = vpop.f32.mrb[0].mxu0
      %v1204 = vpop.f32.mrb[0].mxu0
      %v1205 = vpop.f32.mrb[0].mxu0
      %1206 = vdwg.mxu0
      %v1207 = vmul.f32 %v1202, 0.35355338
      %v1208 = vpack.c.bf16 %v1121, %v1120
      %v1210 = vlaneseq
      %v1211 = vshrl.u32 %v1210, 7
      %v1212 = vsub.s32 0, %v1211
      %v1213 = vrot.slane %v1131, %v1212
      %v1219 = vunpack.c.l.b16 %v1127
      %v1220 = vunpack.c.l.b16 %v1128
      %v1221 = vunpack.c.l.b16 %v1129
      %v1222 = vunpack.c.l.b16 %v1130
      %v1223 = vpack.c.b16 %v1220, %v1219
      %v1224 = vpack.c.b16 %v1222, %v1221
      %v1228 = vsel %vm1163, %v1208, 0
      %1230 = vmatprep.subr.bf16.mxu0 0
      %1231 = vmatpush1.bf16.msra.mxu0 %v1223
      %1232 = vmatprep.subr.bf16.mxu0 0
      %1233 = vmatpush1.bf16.msra.mxu0 %v1224
      %1234 = vmatprep.subr.bf16.mxu0 0
      %1235 = vmatpush1.bf16.msra.mxu0 0
      %1236 = vmatprep.subr.bf16.mxu0 0
      %1237 = vmatpush1.bf16.msra.mxu0 0
      %1238 = vmatprep.subr.bf16.mxu0 0
      %1239 = vmatpush1.bf16.msra.mxu0 0
      %1240 = vmatprep.subr.bf16.mxu0 0
      %1241 = vmatpush1.bf16.msra.mxu0 0
      %1242 = vmatprep.subr.bf16.mxu0 0
      %1243 = vmatpush1.bf16.msra.mxu0 0
      %1244 = vmatprep.subr.bf16.mxu0 0
      %1245 = vmatpush1.bf16.msra.mxu0 0
      %1246 = vmatprep.subr.bf16.mxu0 0
      %1247 = vmatpush1.bf16.msra.mxu0 0
      %1248 = vmatprep.subr.bf16.mxu0 0
      %1249 = vmatpush1.bf16.msra.mxu0 0
      %1250 = vmatprep.subr.bf16.mxu0 0
      %1251 = vmatpush1.bf16.msra.mxu0 0
      %1252 = vmatprep.subr.bf16.mxu0 0
      %1253 = vmatpush1.bf16.msra.mxu0 0
      %1254 = vmatprep.subr.bf16.mxu0 0
      %1255 = vmatpush1.bf16.msra.mxu0 0
      %1256 = vmatprep.subr.bf16.mxu0 0
      %1257 = vmatpush1.bf16.msra.mxu0 0
      %1258 = vmatprep.subr.bf16.mxu0 0
      %1259 = vmatpush1.bf16.msra.mxu0 0
      %1260 = vmatprep.subr.bf16.mxu0 0
      %1261 = vmatpush1.bf16.msra.mxu0 0
      %1262 = vmatprep.mubr.bf16.mxu0 0
      %1263 = vmatmul.mubr.bf16.gmra.mrb[0].mxu0 %v1228
      %v1264 = vpop.f32.mrb[0].mxu0
      %v1265 = vadd.f32 %v1213, %v1264
      %v1266 = vpop.f32.mrb[0].mxu0
      %v1267 = vpop.f32.mrb[0].mxu0
      %v1268 = vadd.f32 %v1213, %v1267
      %v1269 = vpop.f32.mrb[0].mxu0
      %1270 = vdwg.mxu0
      %v1271 = vpack.c.bf16 %v1111, %v1110
      %v1273 = vlaneseq
      %v1274 = vshrl.u32 %v1273, 7
      %v1275 = vsub.s32 0, %v1274
      %v1276 = vrot.slane %v1136, %v1275
      %v1282 = vunpack.c.l.b16 %v1132
      %v1283 = vunpack.c.l.b16 %v1133
      %v1284 = vunpack.c.l.b16 %v1134
      %v1285 = vunpack.c.l.b16 %v1135
      %v1286 = vpack.c.b16 %v1283, %v1282
      %v1287 = vpack.c.b16 %v1285, %v1284
      %v1291 = vsel %vm1163, %v1271, 0
      %1293 = vmatprep.subr.bf16.mxu0 0
      %1294 = vmatpush1.bf16.msra.mxu0 %v1286
      %1295 = vmatprep.subr.bf16.mxu0 0
      %1296 = vmatpush1.bf16.msra.mxu0 %v1287
      %1297 = vmatprep.subr.bf16.mxu0 0
      %1298 = vmatpush1.bf16.msra.mxu0 0
      %1299 = vmatprep.subr.bf16.mxu0 0
      %1300 = vmatpush1.bf16.msra.mxu0 0
      %1301 = vmatprep.subr.bf16.mxu0 0
      %1302 = vmatpush1.bf16.msra.mxu0 0
      %1303 = vmatprep.subr.bf16.mxu0 0
      %1304 = vmatpush1.bf16.msra.mxu0 0
      %1305 = vmatprep.subr.bf16.mxu0 0
      %1306 = vmatpush1.bf16.msra.mxu0 0
      %1307 = vmatprep.subr.bf16.mxu0 0
      %1308 = vmatpush1.bf16.msra.mxu0 0
      %1309 = vmatprep.subr.bf16.mxu0 0
      %1310 = vmatpush1.bf16.msra.mxu0 0
      %1311 = vmatprep.subr.bf16.mxu0 0
      %1312 = vmatpush1.bf16.msra.mxu0 0
      %1313 = vmatprep.subr.bf16.mxu0 0
      %1314 = vmatpush1.bf16.msra.mxu0 0
      %1315 = vmatprep.subr.bf16.mxu0 0
      %1316 = vmatpush1.bf16.msra.mxu0 0
      %1317 = vmatprep.subr.bf16.mxu0 0
      %1318 = vmatpush1.bf16.msra.mxu0 0
      %1319 = vmatprep.subr.bf16.mxu0 0
      %1320 = vmatpush1.bf16.msra.mxu0 0
      %1321 = vmatprep.subr.bf16.mxu0 0
      %1322 = vmatpush1.bf16.msra.mxu0 0
      %1323 = vmatprep.subr.bf16.mxu0 0
      %1324 = vmatpush1.bf16.msra.mxu0 0
      %1325 = vmatprep.mubr.bf16.mxu0 0
      %1326 = vmatmul.mubr.bf16.gmra.mrb[0].mxu0 %v1291
      %v1327 = vpop.f32.mrb[0].mxu0
      %v1328 = vadd.f32 %v1276, %v1327
      %v1329 = vpop.f32.mrb[0].mxu0
      %v1330 = vpop.f32.mrb[0].mxu0
      %v1331 = vadd.f32 %v1276, %v1330
      %v1332 = vpop.f32.mrb[0].mxu0
      %1333 = vdwg.mxu0
      %v1334 = vpack.c.bf16 %v1207, %v1207
      %v1335 = vpack.c.bf16 %v1268, %v1265
      %v1336 = vpack.c.bf16 %v1331, %v1328
      %vm1337 = vcmask 64512
      %v1339 = vsel %vm1337, %v1334, 0
      %v1342 = vsel %vm1337, %v1335, 0
      %1344 = vmatprep.subr.bf16.mxu0 0
      %1345 = vmatpush1.bf16.xpose.msra.mxu0 %v1342
      %1346 = vmatprep.subr.bf16.mxu0 0
      %1347 = vmatpush1.bf16.xpose.msra.mxu0 0
      %1348 = vmatprep.subr.bf16.mxu0 0
      %1349 = vmatpush1.bf16.xpose.msra.mxu0 0
      %1350 = vmatprep.subr.bf16.mxu0 0
      %1351 = vmatpush1.bf16.xpose.msra.mxu0 0
      %1352 = vmatprep.subr.bf16.mxu0 0
      %1353 = vmatpush1.bf16.xpose.msra.mxu0 0
      %1354 = vmatprep.subr.bf16.mxu0 0
      %1355 = vmatpush1.bf16.xpose.msra.mxu0 0
      %1356 = vmatprep.subr.bf16.mxu0 0
      %1357 = vmatpush1.bf16.xpose.msra.mxu0 0
      %1358 = vmatprep.subr.bf16.mxu0 0
      %1359 = vmatpush1.bf16.xpose.msra.mxu0 0
      %1360 = vmatprep.subr.bf16.mxu0 0
      %1361 = vmatpush1.bf16.xpose.msra.mxu0 0
      %1362 = vmatprep.subr.bf16.mxu0 0
      %1363 = vmatpush1.bf16.xpose.msra.mxu0 0
      %1364 = vmatprep.subr.bf16.mxu0 0
      %1365 = vmatpush1.bf16.xpose.msra.mxu0 0
      %1366 = vmatprep.subr.bf16.mxu0 0
      %1367 = vmatpush1.bf16.xpose.msra.mxu0 0
      %1368 = vmatprep.subr.bf16.mxu0 0
      %1369 = vmatpush1.bf16.xpose.msra.mxu0 0
      %1370 = vmatprep.subr.bf16.mxu0 0
      %1371 = vmatpush1.bf16.xpose.msra.mxu0 0
      %1372 = vmatprep.subr.bf16.mxu0 0
      %1373 = vmatpush1.bf16.xpose.msra.mxu0 0
      %1374 = vmatprep.subr.bf16.mxu0 0
      %1375 = vmatpush1.bf16.xpose.msra.mxu0 0
      %1376 = vmatprep.mubr.bf16.mxu0 0
      %1377 = vmatmul.mubr.bf16.gmra.mrb[0].mxu0 %v1339
      %v1378 = vpop.f32.mrb[0].mxu0
      %v1379 = vadd.f32 0.0, %v1378
      %v1380 = vpop.f32.mrb[0].mxu0
      %v1381 = vpop.f32.mrb[0].mxu0
      %v1382 = vpop.f32.mrb[0].mxu0
      %1383 = vdwg.mxu0
      %vm1384 = vcmask 130048
      %v1385 = vsel %vm1384, %v1379, -inf
      %1386 = vmax.xlane.f32.xlu0 %v1385
      %v1387 = vpop.xlane.xlu0 %1386
      %v1388 = vsub.f32 %v1379, %v1387
      %v1389 = vmul.f32 %v1388, 1.442695
      %v1390 = vpow.pop %v1389
      %v1391 = vsel %vm1384, %v1390, 0.0
      %1392 = vadd.xlane.f32.xlu0 %v1391
      %v1393 = vpop.xlane.xlu0 %1392
      %v1394 = vrcp.pop %v1393
      %v1395 = vmul.f32 %v1390, %v1394
      %v1396 = vpack.c.bf16 %v1395, %v1395
      %v1398 = vsel %vm1384, %v1396, 0
      %1400 = vmatprep.subr.bf16.mxu0 0
      %1401 = vmatpush1.bf16.msra.mxu0 %v1336
      %1402 = vmatprep.subr.bf16.mxu0 0
      %1403 = vmatpush1.bf16.msra.mxu0 0
      %1404 = vmatprep.subr.bf16.mxu0 0
      %1405 = vmatpush1.bf16.msra.mxu0 0
      %1406 = vmatprep.subr.bf16.mxu0 0
      %1407 = vmatpush1.bf16.msra.mxu0 0
      %1408 = vmatprep.subr.bf16.mxu0 0
      %1409 = vmatpush1.bf16.msra.mxu0 0
      %1410 = vmatprep.subr.bf16.mxu0 0
      %1411 = vmatpush1.bf16.msra.mxu0 0
      %1412 = vmatprep.subr.bf16.mxu0 0
      %1413 = vmatpush1.bf16.msra.mxu0 0
      %1414 = vmatprep.subr.bf16.mxu0 0
      %1415 = vmatpush1.bf16.msra.mxu0 0
      %1416 = vmatprep.subr.bf16.mxu0 0
      %1417 = vmatpush1.bf16.msra.mxu0 0
      %1418 = vmatprep.subr.bf16.mxu0 0
      %1419 = vmatpush1.bf16.msra.mxu0 0
      %1420 = vmatprep.subr.bf16.mxu0 0
      %1421 = vmatpush1.bf16.msra.mxu0 0
      %1422 = vmatprep.subr.bf16.mxu0 0
      %1423 = vmatpush1.bf16.msra.mxu0 0
      %1424 = vmatprep.subr.bf16.mxu0 0
      %1425 = vmatpush1.bf16.msra.mxu0 0
      %1426 = vmatprep.subr.bf16.mxu0 0
      %1427 = vmatpush1.bf16.msra.mxu0 0
      %1428 = vmatprep.subr.bf16.mxu0 0
      %1429 = vmatpush1.bf16.msra.mxu0 0
      %1430 = vmatprep.subr.bf16.mxu0 0
      %1431 = vmatpush1.bf16.msra.mxu0 0
      %1432 = vmatprep.mubr.bf16.mxu0 0
      %1433 = vmatmul.mubr.bf16.gmra.mrb[0].mxu0 %v1398
      %v1434 = vpop.f32.mrb[0].mxu0
      %v1435 = vadd.f32 0.0, %v1434
      %v1436 = vpop.f32.mrb[0].mxu0
      %v1437 = vpop.f32.mrb[0].mxu0
      %v1438 = vpop.f32.mrb[0].mxu0
      %1439 = vdwg.mxu0
      %1440 = vst.msk [vmem:[#allocation2] sm:$0xff] %vm1337, %v1435
      %1442 = vrot.lane.b32.xlu0 %v1334, 120
      %v1443 = vpop.permute.xlu0 %1442
      %1445 = vrot.lane.b32.xlu0 %v1335, 120
      %v1446 = vpop.permute.xlu0 %1445
      %v1448 = vsel %vm1337, %v1443, 0
      %v1451 = vsel %vm1337, %v1446, 0
      %1453 = vmatprep.subr.bf16.mxu0 0
      %1454 = vmatpush1.bf16.xpose.msra.mxu0 %v1451
      %1455 = vmatprep.subr.bf16.mxu0 0
      %1456 = vmatpush1.bf16.xpose.msra.mxu0 0
      %1457 = vmatprep.subr.bf16.mxu0 0
      %1458 = vmatpush1.bf16.xpose.msra.mxu0 0
      %1459 = vmatprep.subr.bf16.mxu0 0
      %1460 = vmatpush1.bf16.xpose.msra.mxu0 0
      %1461 = vmatprep.subr.bf16.mxu0 0
      %1462 = vmatpush1.bf16.xpose.msra.mxu0 0
      %1463 = vmatprep.subr.bf16.mxu0 0
      %1464 = vmatpush1.bf16.xpose.msra.mxu0 0
      %1465 = vmatprep.subr.bf16.mxu0 0
      %1466 = vmatpush1.bf16.xpose.msra.mxu0 0
      %1467 = vmatprep.subr.bf16.mxu0 0
      %1468 = vmatpush1.bf16.xpose.msra.mxu0 0
      %1469 = vmatprep.subr.bf16.mxu0 0
      %1470 = vmatpush1.bf16.xpose.msra.mxu0 0
      %1471 = vmatprep.subr.bf16.mxu0 0
      %1472 = vmatpush1.bf16.xpose.msra.mxu0 0
      %1473 = vmatprep.subr.bf16.mxu0 0
      %1474 = vmatpush1.bf16.xpose.msra.mxu0 0
      %1475 = vmatprep.subr.bf16.mxu0 0
      %1476 = vmatpush1.bf16.xpose.msra.mxu0 0
      %1477 = vmatprep.subr.bf16.mxu0 0
      %1478 = vmatpush1.bf16.xpose.msra.mxu0 0
      %1479 = vmatprep.subr.bf16.mxu0 0
      %1480 = vmatpush1.bf16.xpose.msra.mxu0 0
      %1481 = vmatprep.subr.bf16.mxu0 0
      %1482 = vmatpush1.bf16.xpose.msra.mxu0 0
      %1483 = vmatprep.subr.bf16.mxu0 0
      %1484 = vmatpush1.bf16.xpose.msra.mxu0 0
      %1485 = vmatprep.mubr.bf16.mxu0 0
      %1486 = vmatmul.mubr.bf16.gmra.mrb[0].mxu0 %v1448
      %v1487 = vpop.f32.mrb[0].mxu0
      %v1488 = vadd.f32 0.0, %v1487
      %v1489 = vpop.f32.mrb[0].mxu0
      %v1490 = vpop.f32.mrb[0].mxu0
      %v1491 = vpop.f32.mrb[0].mxu0
      %1492 = vdwg.mxu0
      %v1493 = vsel %vm1384, %v1488, -inf
      %1494 = vmax.xlane.f32.xlu0 %v1493
      %v1495 = vpop.xlane.xlu0 %1494
      %v1496 = vsub.f32 %v1488, %v1495
      %v1497 = vmul.f32 %v1496, 1.442695
      %v1498 = vpow.pop %v1497
      %v1499 = vsel %vm1384, %v1498, 0.0
      %1500 = vadd.xlane.f32.xlu0 %v1499
      %v1501 = vpop.xlane.xlu0 %1500
      %v1502 = vrcp.pop %v1501
      %v1503 = vmul.f32 %v1498, %v1502
      %v1504 = vpack.c.bf16 %v1503, %v1503
      %1506 = vrot.lane.b32.xlu0 %v1336, 120
      %v1507 = vpop.permute.xlu0 %1506
      %v1510 = vsel %vm1384, %v1504, 0
      %1512 = vmatprep.subr.bf16.mxu0 0
      %1513 = vmatpush1.bf16.msra.mxu0 %v1507
      %1514 = vmatprep.subr.bf16.mxu0 0
      %1515 = vmatpush1.bf16.msra.mxu0 0
      %1516 = vmatprep.subr.bf16.mxu0 0
      %1517 = vmatpush1.bf16.msra.mxu0 0
      %1518 = vmatprep.subr.bf16.mxu0 0
      %1519 = vmatpush1.bf16.msra.mxu0 0
      %1520 = vmatprep.subr.bf16.mxu0 0
      %1521 = vmatpush1.bf16.msra.mxu0 0
      %1522 = vmatprep.subr.bf16.mxu0 0
      %1523 = vmatpush1.bf16.msra.mxu0 0
      %1524 = vmatprep.subr.bf16.mxu0 0
      %1525 = vmatpush1.bf16.msra.mxu0 0
      %1526 = vmatprep.subr.bf16.mxu0 0
      %1527 = vmatpush1.bf16.msra.mxu0 0
      %1528 = vmatprep.subr.bf16.mxu0 0
      %1529 = vmatpush1.bf16.msra.mxu0 0
      %1530 = vmatprep.subr.bf16.mxu0 0
      %1531 = vmatpush1.bf16.msra.mxu0 0
      %1532 = vmatprep.subr.bf16.mxu0 0
      %1533 = vmatpush1.bf16.msra.mxu0 0
      %1534 = vmatprep.subr.bf16.mxu0 0
      %1535 = vmatpush1.bf16.msra.mxu0 0
      %1536 = vmatprep.subr.bf16.mxu0 0
      %1537 = vmatpush1.bf16.msra.mxu0 0
      %1538 = vmatprep.subr.bf16.mxu0 0
      %1539 = vmatpush1.bf16.msra.mxu0 0
      %1540 = vmatprep.subr.bf16.mxu0 0
      %1541 = vmatpush1.bf16.msra.mxu0 0
      %1542 = vmatprep.subr.bf16.mxu0 0
      %1543 = vmatpush1.bf16.msra.mxu0 0
      %1544 = vmatprep.mubr.bf16.mxu0 0
      %1545 = vmatmul.mubr.bf16.gmra.mrb[0].mxu0 %v1510
      %v1546 = vpop.f32.mrb[0].mxu0
      %v1547 = vadd.f32 0.0, %v1546
      %v1548 = vpop.f32.mrb[0].mxu0
      %v1549 = vpop.f32.mrb[0].mxu0
      %v1550 = vpop.f32.mrb[0].mxu0
      %1551 = vdwg.mxu0
      %1553 = vrot.lane.b32.xlu0 %v1547, 8
      %v1554 = vpop.permute.xlu0 %1553
      %vm1556 = vcmask 130112
      %1557 = vst.msk [vmem:[#allocation2] sm:$0xff] %vm1556, %v1554
      %1558 = vrot.lane.b32.xlu0 %v1334, 112
      %v1559 = vpop.permute.xlu0 %1558
      %1560 = vrot.lane.b32.xlu0 %v1335, 112
      %v1561 = vpop.permute.xlu0 %1560
      %v1563 = vsel %vm1337, %v1559, 0
      %v1566 = vsel %vm1337, %v1561, 0
      %1568 = vmatprep.subr.bf16.mxu0 0
      %1569 = vmatpush1.bf16.xpose.msra.mxu0 %v1566
      %1570 = vmatprep.subr.bf16.mxu0 0
      %1571 = vmatpush1.bf16.xpose.msra.mxu0 0
      %1572 = vmatprep.subr.bf16.mxu0 0
      %1573 = vmatpush1.bf16.xpose.msra.mxu0 0
      %1574 = vmatprep.subr.bf16.mxu0 0
      %1575 = vmatpush1.bf16.xpose.msra.mxu0 0
      %1576 = vmatprep.subr.bf16.mxu0 0
      %1577 = vmatpush1.bf16.xpose.msra.mxu0 0
      %1578 = vmatprep.subr.bf16.mxu0 0
      %1579 = vmatpush1.bf16.xpose.msra.mxu0 0
      %1580 = vmatprep.subr.bf16.mxu0 0
      %1581 = vmatpush1.bf16.xpose.msra.mxu0 0
      %1582 = vmatprep.subr.bf16.mxu0 0
      %1583 = vmatpush1.bf16.xpose.msra.mxu0 0
      %1584 = vmatprep.subr.bf16.mxu0 0
      %1585 = vmatpush1.bf16.xpose.msra.mxu0 0
      %1586 = vmatprep.subr.bf16.mxu0 0
      %1587 = vmatpush1.bf16.xpose.msra.mxu0 0
      %1588 = vmatprep.subr.bf16.mxu0 0
      %1589 = vmatpush1.bf16.xpose.msra.mxu0 0
      %1590 = vmatprep.subr.bf16.mxu0 0
      %1591 = vmatpush1.bf16.xpose.msra.mxu0 0
      %1592 = vmatprep.subr.bf16.mxu0 0
      %1593 = vmatpush1.bf16.xpose.msra.mxu0 0
      %1594 = vmatprep.subr.bf16.mxu0 0
      %1595 = vmatpush1.bf16.xpose.msra.mxu0 0
      %1596 = vmatprep.subr.bf16.mxu0 0
      %1597 = vmatpush1.bf16.xpose.msra.mxu0 0
      %1598 = vmatprep.subr.bf16.mxu0 0
      %1599 = vmatpush1.bf16.xpose.msra.mxu0 0
      %1600 = vmatprep.mubr.bf16.mxu0 0
      %1601 = vmatmul.mubr.bf16.gmra.mrb[0].mxu0 %v1563
      %v1602 = vpop.f32.mrb[0].mxu0
      %v1603 = vadd.f32 0.0, %v1602
      %v1604 = vpop.f32.mrb[0].mxu0
      %v1605 = vpop.f32.mrb[0].mxu0
      %v1606 = vpop.f32.mrb[0].mxu0
      %1607 = vdwg.mxu0
      %v1608 = vsel %vm1384, %v1603, -inf
      %1609 = vmax.xlane.f32.xlu0 %v1608
      %v1610 = vpop.xlane.xlu0 %1609
      %v1611 = vsub.f32 %v1603, %v1610
      %v1612 = vmul.f32 %v1611, 1.442695
      %v1613 = vpow.pop %v1612
      %v1614 = vsel %vm1384, %v1613, 0.0
      %1615 = vadd.xlane.f32.xlu0 %v1614
      %v1616 = vpop.xlane.xlu0 %1615
      %v1617 = vrcp.pop %v1616
      %v1618 = vmul.f32 %v1613, %v1617
      %v1619 = vpack.c.bf16 %v1618, %v1618
      %1620 = vrot.lane.b32.xlu0 %v1336, 112
      %v1621 = vpop.permute.xlu0 %1620
      %v1624 = vsel %vm1384, %v1619, 0
      %1626 = vmatprep.subr.bf16.mxu0 0
      %1627 = vmatpush1.bf16.msra.mxu0 %v1621
      %1628 = vmatprep.subr.bf16.mxu0 0
      %1629 = vmatpush1.bf16.msra.mxu0 0
      %1630 = vmatprep.subr.bf16.mxu0 0
      %1631 = vmatpush1.bf16.msra.mxu0 0
      %1632 = vmatprep.subr.bf16.mxu0 0
      %1633 = vmatpush1.bf16.msra.mxu0 0
      %1634 = vmatprep.subr.bf16.mxu0 0
      %1635 = vmatpush1.bf16.msra.mxu0 0
      %1636 = vmatprep.subr.bf16.mxu0 0
      %1637 = vmatpush1.bf16.msra.mxu0 0
      %1638 = vmatprep.subr.bf16.mxu0 0
      %1639 = vmatpush1.bf16.msra.mxu0 0
      %1640 = vmatprep.subr.bf16.mxu0 0
      %1641 = vmatpush1.bf16.msra.mxu0 0
      %1642 = vmatprep.subr.bf16.mxu0 0
      %1643 = vmatpush1.bf16.msra.mxu0 0
      %1644 = vmatprep.subr.bf16.mxu0 0
      %1645 = vmatpush1.bf16.msra.mxu0 0
      %1646 = vmatprep.subr.bf16.mxu0 0
      %1647 = vmatpush1.bf16.msra.mxu0 0
      %1648 = vmatprep.subr.bf16.mxu0 0
      %1649 = vmatpush1.bf16.msra.mxu0 0
      %1650 = vmatprep.subr.bf16.mxu0 0
      %1651 = vmatpush1.bf16.msra.mxu0 0
      %1652 = vmatprep.subr.bf16.mxu0 0
      %1653 = vmatpush1.bf16.msra.mxu0 0
      %1654 = vmatprep.subr.bf16.mxu0 0
      %1655 = vmatpush1.bf16.msra.mxu0 0
      %1656 = vmatprep.subr.bf16.mxu0 0
      %1657 = vmatpush1.bf16.msra.mxu0 0
      %1658 = vmatprep.mubr.bf16.mxu0 0
      %1659 = vmatmul.mubr.bf16.gmra.mrb[0].mxu0 %v1624
      %v1660 = vpop.f32.mrb[0].mxu0
      %v1661 = vadd.f32 0.0, %v1660
      %v1662 = vpop.f32.mrb[0].mxu0
      %v1663 = vpop.f32.mrb[0].mxu0
      %v1664 = vpop.f32.mrb[0].mxu0
      %1665 = vdwg.mxu0
      %1667 = vrot.lane.b32.xlu0 %v1661, 16
      %v1668 = vpop.permute.xlu0 %1667
      %vm1670 = vcmask 195712
      %1671 = vst.msk [vmem:[#allocation2] sm:$0xff] %vm1670, %v1668
      %1672 = vrot.lane.b32.xlu0 %v1334, 104
      %v1673 = vpop.permute.xlu0 %1672
      %1674 = vrot.lane.b32.xlu0 %v1335, 104
      %v1675 = vpop.permute.xlu0 %1674
      %v1677 = vsel %vm1337, %v1673, 0
      %v1680 = vsel %vm1337, %v1675, 0
      %1682 = vmatprep.subr.bf16.mxu0 0
      %1683 = vmatpush1.bf16.xpose.msra.mxu0 %v1680
      %1684 = vmatprep.subr.bf16.mxu0 0
      %1685 = vmatpush1.bf16.xpose.msra.mxu0 0
      %1686 = vmatprep.subr.bf16.mxu0 0
      %1687 = vmatpush1.bf16.xpose.msra.mxu0 0
      %1688 = vmatprep.subr.bf16.mxu0 0
      %1689 = vmatpush1.bf16.xpose.msra.mxu0 0
      %1690 = vmatprep.subr.bf16.mxu0 0
      %1691 = vmatpush1.bf16.xpose.msra.mxu0 0
      %1692 = vmatprep.subr.bf16.mxu0 0
      %1693 = vmatpush1.bf16.xpose.msra.mxu0 0
      %1694 = vmatprep.subr.bf16.mxu0 0
      %1695 = vmatpush1.bf16.xpose.msra.mxu0 0
      %1696 = vmatprep.subr.bf16.mxu0 0
      %1697 = vmatpush1.bf16.xpose.msra.mxu0 0
      %1698 = vmatprep.subr.bf16.mxu0 0
      %1699 = vmatpush1.bf16.xpose.msra.mxu0 0
      %1700 = vmatprep.subr.bf16.mxu0 0
      %1701 = vmatpush1.bf16.xpose.msra.mxu0 0
      %1702 = vmatprep.subr.bf16.mxu0 0
      %1703 = vmatpush1.bf16.xpose.msra.mxu0 0
      %1704 = vmatprep.subr.bf16.mxu0 0
      %1705 = vmatpush1.bf16.xpose.msra.mxu0 0
      %1706 = vmatprep.subr.bf16.mxu0 0
      %1707 = vmatpush1.bf16.xpose.msra.mxu0 0
      %1708 = vmatprep.subr.bf16.mxu0 0
      %1709 = vmatpush1.bf16.xpose.msra.mxu0 0
      %1710 = vmatprep.subr.bf16.mxu0 0
      %1711 = vmatpush1.bf16.xpose.msra.mxu0 0
      %1712 = vmatprep.subr.bf16.mxu0 0
      %1713 = vmatpush1.bf16.xpose.msra.mxu0 0
      %1714 = vmatprep.mubr.bf16.mxu0 0
      %1715 = vmatmul.mubr.bf16.gmra.mrb[0].mxu0 %v1677
      %v1716 = vpop.f32.mrb[0].mxu0
      %v1717 = vadd.f32 0.0, %v1716
      %v1718 = vpop.f32.mrb[0].mxu0
      %v1719 = vpop.f32.mrb[0].mxu0
      %v1720 = vpop.f32.mrb[0].mxu0
      %1721 = vdwg.mxu0
      %v1722 = vsel %vm1384, %v1717, -inf
      %1723 = vmax.xlane.f32.xlu0 %v1722
      %v1724 = vpop.xlane.xlu0 %1723
      %v1725 = vsub.f32 %v1717, %v1724
      %v1726 = vmul.f32 %v1725, 1.442695
      %v1727 = vpow.pop %v1726
      %v1728 = vsel %vm1384, %v1727, 0.0
      %1729 = vadd.xlane.f32.xlu0 %v1728
      %v1730 = vpop.xlane.xlu0 %1729
      %v1731 = vrcp.pop %v1730
      %v1732 = vmul.f32 %v1727, %v1731
      %v1733 = vpack.c.bf16 %v1732, %v1732
      %1734 = vrot.lane.b32.xlu0 %v1336, 104
      %v1735 = vpop.permute.xlu0 %1734
      %v1738 = vsel %vm1384, %v1733, 0
      %1740 = vmatprep.subr.bf16.mxu0 0
      %1741 = vmatpush1.bf16.msra.mxu0 %v1735
      %1742 = vmatprep.subr.bf16.mxu0 0
      %1743 = vmatpush1.bf16.msra.mxu0 0
      %1744 = vmatprep.subr.bf16.mxu0 0
      %1745 = vmatpush1.bf16.msra.mxu0 0
      %1746 = vmatprep.subr.bf16.mxu0 0
      %1747 = vmatpush1.bf16.msra.mxu0 0
      %1748 = vmatprep.subr.bf16.mxu0 0
      %1749 = vmatpush1.bf16.msra.mxu0 0
      %1750 = vmatprep.subr.bf16.mxu0 0
      %1751 = vmatpush1.bf16.msra.mxu0 0
      %1752 = vmatprep.subr.bf16.mxu0 0
      %1753 = vmatpush1.bf16.msra.mxu0 0
      %1754 = vmatprep.subr.bf16.mxu0 0
      %1755 = vmatpush1.bf16.msra.mxu0 0
      %1756 = vmatprep.subr.bf16.mxu0 0
      %1757 = vmatpush1.bf16.msra.mxu0 0
      %1758 = vmatprep.subr.bf16.mxu0 0
      %1759 = vmatpush1.bf16.msra.mxu0 0
      %1760 = vmatprep.subr.bf16.mxu0 0
      %1761 = vmatpush1.bf16.msra.mxu0 0
      %1762 = vmatprep.subr.bf16.mxu0 0
      %1763 = vmatpush1.bf16.msra.mxu0 0
      %1764 = vmatprep.subr.bf16.mxu0 0
      %1765 = vmatpush1.bf16.msra.mxu0 0
      %1766 = vmatprep.subr.bf16.mxu0 0
      %1767 = vmatpush1.bf16.msra.mxu0 0
      %1768 = vmatprep.subr.bf16.mxu0 0
      %1769 = vmatpush1.bf16.msra.mxu0 0
      %1770 = vmatprep.subr.bf16.mxu0 0
      %1771 = vmatpush1.bf16.msra.mxu0 0
      %1772 = vmatprep.mubr.bf16.mxu0 0
      %1773 = vmatmul.mubr.bf16.gmra.mrb[0].mxu0 %v1738
      %v1774 = vpop.f32.mrb[0].mxu0
      %v1775 = vadd.f32 0.0, %v1774
      %v1776 = vpop.f32.mrb[0].mxu0
      %v1777 = vpop.f32.mrb[0].mxu0
      %v1778 = vpop.f32.mrb[0].mxu0
      %1779 = vdwg.mxu0
      %1781 = vrot.lane.b32.xlu0 %v1775, 24
      %v1782 = vpop.permute.xlu0 %1781
      %vm1784 = vcmask 261312
      %1785 = vst.msk [vmem:[#allocation2] sm:$0xff] %vm1784, %v1782
      %v1786 = vld [vmem:[#allocation2] sm:$0xff]
      %v1787 = vpack.c.bf16 %v1786, %v1786
      %v1789 = vlaneseq
      %v1790 = vshrl.u32 %v1789, 7
      %v1791 = vsub.s32 0, %v1790
      %v1792 = vrot.slane %v1141, %v1791
      %v1798 = vunpack.c.l.b16 %v1137
      %v1799 = vunpack.c.l.b16 %v1138
      %v1800 = vunpack.c.l.b16 %v1139
      %v1801 = vunpack.c.l.b16 %v1140
      %v1802 = vpack.c.b16 %v1799, %v1798
      %v1803 = vpack.c.b16 %v1801, %v1800
      %v1807 = vsel %vm1163, %v1787, 0
      %1809 = vmatprep.subr.bf16.mxu0 0
      %1810 = vmatpush1.bf16.msra.mxu0 %v1802
      %1811 = vmatprep.subr.bf16.mxu0 0
      %1812 = vmatpush1.bf16.msra.mxu0 %v1803
      %1813 = vmatprep.subr.bf16.mxu0 0
      %1814 = vmatpush1.bf16.msra.mxu0 0
      %1815 = vmatprep.subr.bf16.mxu0 0
      %1816 = vmatpush1.bf16.msra.mxu0 0
      %1817 = vmatprep.subr.bf16.mxu0 0
      %1818 = vmatpush1.bf16.msra.mxu0 0
      %1819 = vmatprep.subr.bf16.mxu0 0
      %1820 = vmatpush1.bf16.msra.mxu0 0
      %1821 = vmatprep.subr.bf16.mxu0 0
      %1822 = vmatpush1.bf16.msra.mxu0 0
      %1823 = vmatprep.subr.bf16.mxu0 0
      %1824 = vmatpush1.bf16.msra.mxu0 0
      %1825 = vmatprep.subr.bf16.mxu0 0
      %1826 = vmatpush1.bf16.msra.mxu0 0
      %1827 = vmatprep.subr.bf16.mxu0 0
      %1828 = vmatpush1.bf16.msra.mxu0 0
      %1829 = vmatprep.subr.bf16.mxu0 0
      %1830 = vmatpush1.bf16.msra.mxu0 0
      %1831 = vmatprep.subr.bf16.mxu0 0
      %1832 = vmatpush1.bf16.msra.mxu0 0
      %1833 = vmatprep.subr.bf16.mxu0 0
      %1834 = vmatpush1.bf16.msra.mxu0 0
      %1835 = vmatprep.subr.bf16.mxu0 0
      %1836 = vmatpush1.bf16.msra.mxu0 0
      %1837 = vmatprep.subr.bf16.mxu0 0
      %1838 = vmatpush1.bf16.msra.mxu0 0
      %1839 = vmatprep.subr.bf16.mxu0 0
      %1840 = vmatpush1.bf16.msra.mxu0 0
      %1841 = vmatprep.mubr.bf16.mxu0 0
      %1842 = vmatmul.mubr.bf16.gmra.mrb[0].mxu0 %v1807
      %v1843 = vpop.f32.mrb[0].mxu0
      %v1844 = vadd.f32 %v1792, %v1843
      %v1845 = vpop.f32.mrb[0].mxu0
      %v1846 = vpop.f32.mrb[0].mxu0
      %v1847 = vpop.f32.mrb[0].mxu0
      %1848 = vdwg.mxu0
      %v1849 = vadd.f32 %v1116, %v1844
      %v1850 = vsel %vm1163, %v1849, 0.0
      %1851 = vadd.xlane.f32.xlu0 %v1850
      %v1852 = vpop.xlane.xlu0 %1851
      %v1853 = vrcp.pop 32.0
      %v1854 = vmul.f32 %v1852, %v1853
      %v1855 = vsub.f32 %v1849, %v1854
      %v1856 = vmul.f32 %v1855, %v1855
      %v1857 = vsel %vm1163, %v1856, 0.0
      %1858 = vadd.xlane.f32.xlu0 %v1857
      %v1859 = vpop.xlane.xlu0 %1858
      %v1860 = vmul.f32 %v1859, %v1853
      %v1861 = vadd.f32 %v1860, 1e-05
      %v1862 = vrsqrt.pop %v1861
      %v1863 = vmul.f32 %v1855, %v1862
      %v1865 = vlaneseq
      %v1866 = vshrl.u32 %v1865, 7
      %v1867 = vsub.s32 0, %v1866
      %v1868 = vrot.slane %v1142, %v1867
      %v1870 = vmul.f32 %v1863, %v1868
      %v1872 = vlaneseq
      %v1873 = vshrl.u32 %v1872, 7
      %v1874 = vsub.s32 0, %v1873
      %v1875 = vrot.slane %v1143, %v1874
      %v1877 = vadd.f32 %v1870, %v1875
      %v1878 = vld [vmem:[%s1087] sm:$0xff]
      %v1879 = vld [vmem:[%s1087 + $0x8] sm:$0xff]
      %v1880 = vld [vmem:[%s1087 + $0x10] sm:$0xff]
      %v1881 = vld [vmem:[%s1097] sm:$0xff]
      %v1882 = vld [vmem:[%s1097 + $0x8] sm:$0xff]
      %v1883 = vld [vmem:[%s1097 + $0x10] sm:$0xff]
      %v1884 = vadd.f32 %v1878, %v1881
      %v1885 = vadd.f32 %v1879, %v1882
      %v1886 = vadd.f32 %v1880, %v1883
      %v1887 = vadd.f32 %v1877, %v1118
      %v1888 = vld [vmem:[%s1100] sm:$0x1]
      %v1889 = vld [vmem:[%s31] sm:$0xf]
      %v1890 = vld [vmem:[%s31 + $0x4] sm:$0xf]
      %v1891 = vld [vmem:[%s31 + $0x8] sm:$0xf]
      %v1892 = vld [vmem:[%s31 + $0xc] sm:$0xf]
      %v1893 = vld [vmem:[%s33] sm:$0x1]
      %v1894 = vld [vmem:[%s35] sm:$0xf]
      %v1895 = vld [vmem:[%s35 + $0x4] sm:$0xf]
      %v1896 = vld [vmem:[%s35 + $0x8] sm:$0xf]
      %v1897 = vld [vmem:[%s35 + $0xc] sm:$0xf]
      %v1898 = vld [vmem:[%s37] sm:$0x1]
      %v1899 = vld [vmem:[%s39] sm:$0xf]
      %v1900 = vld [vmem:[%s39 + $0x4] sm:$0xf]
      %v1901 = vld [vmem:[%s39 + $0x8] sm:$0xf]
      %v1902 = vld [vmem:[%s39 + $0xc] sm:$0xf]
      %v1903 = vld [vmem:[%s41] sm:$0x1]
      %v1904 = vld [vmem:[%s43] sm:$0xf]
      %v1905 = vld [vmem:[%s43 + $0x4] sm:$0xf]
      %v1906 = vld [vmem:[%s43 + $0x8] sm:$0xf]
      %v1907 = vld [vmem:[%s43 + $0xc] sm:$0xf]
      %v1908 = vld [vmem:[%s45] sm:$0x1]
      %v1909 = vld [vmem:[%s47] sm:$0x1]
      %v1910 = vld [vmem:[%s49] sm:$0x1]
      %v1911 = vpack.c.bf16 %v1887, %v1887
      %v1913 = vlaneseq
      %v1914 = vshrl.u32 %v1913, 7
      %v1915 = vsub.s32 0, %v1914
      %v1916 = vrot.slane %v1893, %v1915
      %v1922 = vunpack.c.l.b16 %v1889
      %v1923 = vunpack.c.l.b16 %v1890
      %v1924 = vunpack.c.l.b16 %v1891
      %v1925 = vunpack.c.l.b16 %v1892
      %v1926 = vpack.c.b16 %v1923, %v1922
      %v1927 = vpack.c.b16 %v1925, %v1924
      %v1931 = vsel %vm1163, %v1911, 0
      %1933 = vmatprep.subr.bf16.mxu0 0
      %1934 = vmatpush1.bf16.msra.mxu0 %v1926
      %1935 = vmatprep.subr.bf16.mxu0 0
      %1936 = vmatpush1.bf16.msra.mxu0 %v1927
      %1937 = vmatprep.subr.bf16.mxu0 0
      %1938 = vmatpush1.bf16.msra.mxu0 0
      %1939 = vmatprep.subr.bf16.mxu0 0
      %1940 = vmatpush1.bf16.msra.mxu0 0
      %1941 = vmatprep.subr.bf16.mxu0 0
      %1942 = vmatpush1.bf16.msra.mxu0 0
      %1943 = vmatprep.subr.bf16.mxu0 0
      %1944 = vmatpush1.bf16.msra.mxu0 0
      %1945 = vmatprep.subr.bf16.mxu0 0
      %1946 = vmatpush1.bf16.msra.mxu0 0
      %1947 = vmatprep.subr.bf16.mxu0 0
      %1948 = vmatpush1.bf16.msra.mxu0 0
      %1949 = vmatprep.subr.bf16.mxu0 0
      %1950 = vmatpush1.bf16.msra.mxu0 0
      %1951 = vmatprep.subr.bf16.mxu0 0
      %1952 = vmatpush1.bf16.msra.mxu0 0
      %1953 = vmatprep.subr.bf16.mxu0 0
      %1954 = vmatpush1.bf16.msra.mxu0 0
      %1955 = vmatprep.subr.bf16.mxu0 0
      %1956 = vmatpush1.bf16.msra.mxu0 0
      %1957 = vmatprep.subr.bf16.mxu0 0
      %1958 = vmatpush1.bf16.msra.mxu0 0
      %1959 = vmatprep.subr.bf16.mxu0 0
      %1960 = vmatpush1.bf16.msra.mxu0 0
      %1961 = vmatprep.subr.bf16.mxu0 0
      %1962 = vmatpush1.bf16.msra.mxu0 0
      %1963 = vmatprep.subr.bf16.mxu0 0
      %1964 = vmatpush1.bf16.msra.mxu0 0
      %1965 = vmatprep.mubr.bf16.mxu0 0
      %1966 = vmatmul.mubr.bf16.gmra.mrb[0].mxu0 %v1931
      %v1967 = vpop.f32.mrb[0].mxu0
      %v1968 = vadd.f32 %v1916, %v1967
      %v1969 = vpop.f32.mrb[0].mxu0
      %v1970 = vpop.f32.mrb[0].mxu0
      %v1971 = vpop.f32.mrb[0].mxu0
      %1972 = vdwg.mxu0
      %v1973 = vmul.f32 %v1968, 0.35355338
      %v1974 = vpack.c.bf16 %v1885, %v1884
      %v1975 = vpack.c.bf16 %v1886, %v1886
      %v1977 = vlaneseq
      %v1978 = vshrl.u32 %v1977, 7
      %v1979 = vsub.s32 0, %v1978
      %v1980 = vrot.slane %v1898, %v1979
      %v1986 = vunpack.c.l.b16 %v1894
      %v1987 = vunpack.c.l.b16 %v1895
      %v1988 = vunpack.c.l.b16 %v1896
      %v1989 = vunpack.c.l.b16 %v1897
      %v1990 = vpack.c.b16 %v1987, %v1986
      %v1991 = vpack.c.b16 %v1989, %v1988
      %v1995 = vsel %vm1163, %v1974, 0
      %v1998 = vsel %vm1163, %v1975, 0
      %2000 = vmatprep.subr.bf16.mxu0 0
      %2001 = vmatpush1.bf16.msra.mxu0 %v1990
      %2002 = vmatprep.subr.bf16.mxu0 0
      %2003 = vmatpush1.bf16.msra.mxu0 %v1991
      %2004 = vmatprep.subr.bf16.mxu0 0
      %2005 = vmatpush1.bf16.msra.mxu0 0
      %2006 = vmatprep.subr.bf16.mxu0 0
      %2007 = vmatpush1.bf16.msra.mxu0 0
      %2008 = vmatprep.subr.bf16.mxu0 0
      %2009 = vmatpush1.bf16.msra.mxu0 0
      %2010 = vmatprep.subr.bf16.mxu0 0
      %2011 = vmatpush1.bf16.msra.mxu0 0
      %2012 = vmatprep.subr.bf16.mxu0 0
      %2013 = vmatpush1.bf16.msra.mxu0 0
      %2014 = vmatprep.subr.bf16.mxu0 0
      %2015 = vmatpush1.bf16.msra.mxu0 0
      %2016 = vmatprep.subr.bf16.mxu0 0
      %2017 = vmatpush1.bf16.msra.mxu0 0
      %2018 = vmatprep.subr.bf16.mxu0 0
      %2019 = vmatpush1.bf16.msra.mxu0 0
      %2020 = vmatprep.subr.bf16.mxu0 0
      %2021 = vmatpush1.bf16.msra.mxu0 0
      %2022 = vmatprep.subr.bf16.mxu0 0
      %2023 = vmatpush1.bf16.msra.mxu0 0
      %2024 = vmatprep.subr.bf16.mxu0 0
      %2025 = vmatpush1.bf16.msra.mxu0 0
      %2026 = vmatprep.subr.bf16.mxu0 0
      %2027 = vmatpush1.bf16.msra.mxu0 0
      %2028 = vmatprep.subr.bf16.mxu0 0
      %2029 = vmatpush1.bf16.msra.mxu0 0
      %2030 = vmatprep.subr.bf16.mxu0 0
      %2031 = vmatpush1.bf16.msra.mxu0 0
      %2032 = vmatprep.mubr.bf16.mxu0 0
      %2033 = vmatmul.mubr.bf16.gmra.mrb[0].mxu0 %v1995
      %v2034 = vpop.f32.mrb[0].mxu0
      %v2035 = vadd.f32 %v1980, %v2034
      %v2036 = vpop.f32.mrb[0].mxu0
      %v2037 = vpop.f32.mrb[0].mxu0
      %v2038 = vadd.f32 %v1980, %v2037
      %v2039 = vpop.f32.mrb[0].mxu0
      %2040 = vmatprep.mubr.bf16.mxu0 0
      %2041 = vmatmul.mubr.bf16.gmra.mrb[0].mxu0 %v1998
      %v2042 = vpop.f32.mrb[0].mxu0
      %v2043 = vadd.f32 %v1980, %v2042
      %v2044 = vpop.f32.mrb[0].mxu0
      %v2045 = vpop.f32.mrb[0].mxu0
      %v2046 = vpop.f32.mrb[0].mxu0
      %2047 = vdwg.mxu0
      %v2048 = vpack.c.bf16 %v1879, %v1878
      %v2049 = vpack.c.bf16 %v1880, %v1880
      %v2051 = vlaneseq
      %v2052 = vshrl.u32 %v2051, 7
      %v2053 = vsub.s32 0, %v2052
      %v2054 = vrot.slane %v1903, %v2053
      %v2060 = vunpack.c.l.b16 %v1899
      %v2061 = vunpack.c.l.b16 %v1900
      %v2062 = vunpack.c.l.b16 %v1901
      %v2063 = vunpack.c.l.b16 %v1902
      %v2064 = vpack.c.b16 %v2061, %v2060
      %v2065 = vpack.c.b16 %v2063, %v2062
      %v2069 = vsel %vm1163, %v2048, 0
      %v2072 = vsel %vm1163, %v2049, 0
      %2074 = vmatprep.subr.bf16.mxu0 0
      %2075 = vmatpush1.bf16.msra.mxu0 %v2064
      %2076 = vmatprep.subr.bf16.mxu0 0
      %2077 = vmatpush1.bf16.msra.mxu0 %v2065
      %2078 = vmatprep.subr.bf16.mxu0 0
      %2079 = vmatpush1.bf16.msra.mxu0 0
      %2080 = vmatprep.subr.bf16.mxu0 0
      %2081 = vmatpush1.bf16.msra.mxu0 0
      %2082 = vmatprep.subr.bf16.mxu0 0
      %2083 = vmatpush1.bf16.msra.mxu0 0
      %2084 = vmatprep.subr.bf16.mxu0 0
      %2085 = vmatpush1.bf16.msra.mxu0 0
      %2086 = vmatprep.subr.bf16.mxu0 0
      %2087 = vmatpush1.bf16.msra.mxu0 0
      %2088 = vmatprep.subr.bf16.mxu0 0
      %2089 = vmatpush1.bf16.msra.mxu0 0
      %2090 = vmatprep.subr.bf16.mxu0 0
      %2091 = vmatpush1.bf16.msra.mxu0 0
      %2092 = vmatprep.subr.bf16.mxu0 0
      %2093 = vmatpush1.bf16.msra.mxu0 0
      %2094 = vmatprep.subr.bf16.mxu0 0
      %2095 = vmatpush1.bf16.msra.mxu0 0
      %2096 = vmatprep.subr.bf16.mxu0 0
      %2097 = vmatpush1.bf16.msra.mxu0 0
      %2098 = vmatprep.subr.bf16.mxu0 0
      %2099 = vmatpush1.bf16.msra.mxu0 0
      %2100 = vmatprep.subr.bf16.mxu0 0
      %2101 = vmatpush1.bf16.msra.mxu0 0
      %2102 = vmatprep.subr.bf16.mxu0 0
      %2103 = vmatpush1.bf16.msra.mxu0 0
      %2104 = vmatprep.subr.bf16.mxu0 0
      %2105 = vmatpush1.bf16.msra.mxu0 0
      %2106 = vmatprep.mubr.bf16.mxu0 0
      %2107 = vmatmul.mubr.bf16.gmra.mrb[0].mxu0 %v2069
      %v2108 = vpop.f32.mrb[0].mxu0
      %v2109 = vadd.f32 %v2054, %v2108
      %v2110 = vpop.f32.mrb[0].mxu0
      %v2111 = vpop.f32.mrb[0].mxu0
      %v2112 = vadd.f32 %v2054, %v2111
      %v2113 = vpop.f32.mrb[0].mxu0
      %2114 = vmatprep.mubr.bf16.mxu0 0
      %2115 = vmatmul.mubr.bf16.gmra.mrb[0].mxu0 %v2072
      %v2116 = vpop.f32.mrb[0].mxu0
      %v2117 = vadd.f32 %v2054, %v2116
      %v2118 = vpop.f32.mrb[0].mxu0
      %v2119 = vpop.f32.mrb[0].mxu0
      %v2120 = vpop.f32.mrb[0].mxu0
      %2121 = vdwg.mxu0
      %v2122 = vpack.c.bf16 %v1973, %v1973
      %v2123 = vpack.c.bf16 %v2038, %v2035
      %v2124 = vpack.c.bf16 %v2043, %v2043
      %v2125 = vpack.c.bf16 %v2112, %v2109
      %v2126 = vpack.c.bf16 %v2117, %v2117
      %v2128 = vlaneseq
      %v2129 = vshrl.u32 %v2128, 7
      %v2130 = vsub.s32 0, %v2129
      %v2131 = vrot.slane %v1888, %v2130
      %v2134 = vsel %vm1337, %v2122, 0
      %v2137 = vsel %vm1337, %v2123, 0
      %v2140 = vsel %vm1337, %v2124, 0
      %2142 = vmatprep.subr.bf16.mxu0 0
      %2143 = vmatpush1.bf16.xpose.msra.mxu0 %v2137
      %2144 = vmatprep.subr.bf16.mxu0 0
      %2145 = vmatpush1.bf16.xpose.msra.mxu0 %v2140
      %2146 = vmatprep.subr.bf16.mxu0 0
      %2147 = vmatpush1.bf16.xpose.msra.mxu0 0
      %2148 = vmatprep.subr.bf16.mxu0 0
      %2149 = vmatpush1.bf16.xpose.msra.mxu0 0
      %2150 = vmatprep.subr.bf16.mxu0 0
      %2151 = vmatpush1.bf16.xpose.msra.mxu0 0
      %2152 = vmatprep.subr.bf16.mxu0 0
      %2153 = vmatpush1.bf16.xpose.msra.mxu0 0
      %2154 = vmatprep.subr.bf16.mxu0 0
      %2155 = vmatpush1.bf16.xpose.msra.mxu0 0
      %2156 = vmatprep.subr.bf16.mxu0 0
      %2157 = vmatpush1.bf16.xpose.msra.mxu0 0
      %2158 = vmatprep.subr.bf16.mxu0 0
      %2159 = vmatpush1.bf16.xpose.msra.mxu0 0
      %2160 = vmatprep.subr.bf16.mxu0 0
      %2161 = vmatpush1.bf16.xpose.msra.mxu0 0
      %2162 = vmatprep.subr.bf16.mxu0 0
      %2163 = vmatpush1.bf16.xpose.msra.mxu0 0
      %2164 = vmatprep.subr.bf16.mxu0 0
      %2165 = vmatpush1.bf16.xpose.msra.mxu0 0
      %2166 = vmatprep.subr.bf16.mxu0 0
      %2167 = vmatpush1.bf16.xpose.msra.mxu0 0
      %2168 = vmatprep.subr.bf16.mxu0 0
      %2169 = vmatpush1.bf16.xpose.msra.mxu0 0
      %2170 = vmatprep.subr.bf16.mxu0 0
      %2171 = vmatpush1.bf16.xpose.msra.mxu0 0
      %2172 = vmatprep.subr.bf16.mxu0 0
      %2173 = vmatpush1.bf16.xpose.msra.mxu0 0
      %2174 = vmatprep.mubr.bf16.mxu0 0
      %2175 = vmatmul.mubr.bf16.gmra.mrb[0].mxu0 %v2134
      %v2176 = vpop.f32.mrb[0].mxu0
      %v2177 = vadd.f32 %v2131, %v2176
      %v2178 = vpop.f32.mrb[0].mxu0
      %v2179 = vpop.f32.mrb[0].mxu0
      %v2180 = vpop.f32.mrb[0].mxu0
      %2181 = vdwg.mxu0
      %vm2182 = vcmask 195584
      %v2183 = vsel %vm2182, %v2177, -inf
      %2184 = vmax.xlane.f32.xlu0 %v2183
      %v2185 = vpop.xlane.xlu0 %2184
      %v2186 = vsub.f32 %v2177, %v2185
      %v2187 = vmul.f32 %v2186, 1.442695
      %v2188 = vpow.pop %v2187
      %v2189 = vsel %vm2182, %v2188, 0.0
      %2190 = vadd.xlane.f32.xlu0 %v2189
      %v2191 = vpop.xlane.xlu0 %2190
      %v2192 = vrcp.pop %v2191
      %v2193 = vmul.f32 %v2188, %v2192
      %v2194 = vpack.c.bf16 %v2193, %v2193
      %v2196 = vsel %vm2182, %v2194, 0
      %vm2198 = vcmask 1043456
      %v2200 = vsel %vm2198, %v2126, 0
      %2202 = vmatprep.subr.bf16.mxu0 0
      %2203 = vmatpush1.bf16.msra.mxu0 %v2125
      %2204 = vmatprep.subr.bf16.mxu0 0
      %2205 = vmatpush1.bf16.msra.mxu0 %v2200
      %2206 = vmatprep.subr.bf16.mxu0 0
      %2207 = vmatpush1.bf16.msra.mxu0 0
      %2208 = vmatprep.subr.bf16.mxu0 0
      %2209 = vmatpush1.bf16.msra.mxu0 0
      %2210 = vmatprep.subr.bf16.mxu0 0
      %2211 = vmatpush1.bf16.msra.mxu0 0
      %2212 = vmatprep.subr.bf16.mxu0 0
      %2213 = vmatpush1.bf16.msra.mxu0 0
      %2214 = vmatprep.subr.bf16.mxu0 0
      %2215 = vmatpush1.bf16.msra.mxu0 0
      %2216 = vmatprep.subr.bf16.mxu0 0
      %2217 = vmatpush1.bf16.msra.mxu0 0
      %2218 = vmatprep.subr.bf16.mxu0 0
      %2219 = vmatpush1.bf16.msra.mxu0 0
      %2220 = vmatprep.subr.bf16.mxu0 0
      %2221 = vmatpush1.bf16.msra.mxu0 0
      %2222 = vmatprep.subr.bf16.mxu0 0
      %2223 = vmatpush1.bf16.msra.mxu0 0
      %2224 = vmatprep.subr.bf16.mxu0 0
      %2225 = vmatpush1.bf16.msra.mxu0 0
      %2226 = vmatprep.subr.bf16.mxu0 0
      %2227 = vmatpush1.bf16.msra.mxu0 0
      %2228 = vmatprep.subr.bf16.mxu0 0
      %2229 = vmatpush1.bf16.msra.mxu0 0
      %2230 = vmatprep.subr.bf16.mxu0 0
      %2231 = vmatpush1.bf16.msra.mxu0 0
      %2232 = vmatprep.subr.bf16.mxu0 0
      %2233 = vmatpush1.bf16.msra.mxu0 0
      %2234 = vmatprep.mubr.bf16.mxu0 0
      %2235 = vmatmul.mubr.bf16.gmra.mrb[0].mxu0 %v2196
      %v2236 = vpop.f32.mrb[0].mxu0
      %v2237 = vadd.f32 0.0, %v2236
      %v2238 = vpop.f32.mrb[0].mxu0
      %v2239 = vpop.f32.mrb[0].mxu0
      %v2240 = vpop.f32.mrb[0].mxu0
      %2241 = vdwg.mxu0
      %2242 = vst.msk [vmem:[#allocation2] sm:$0xff] %vm1337, %v2237
      %2244 = vrot.lane.b32.xlu0 %v2122, 120
      %v2245 = vpop.permute.xlu0 %2244
      %2248 = vrot.lane.b32.xlu0 %v2123, 120
      %v2249 = vpop.permute.xlu0 %2248
      %2250 = vrot.lane.b32.xlu0 %v2124, 120
      %v2251 = vpop.permute.xlu0 %2250
      %v2253 = vsel %vm1337, %v2245, 0
      %v2256 = vsel %vm1337, %v2249, 0
      %v2259 = vsel %vm1337, %v2251, 0
      %2261 = vmatprep.subr.bf16.mxu0 0
      %2262 = vmatpush1.bf16.xpose.msra.mxu0 %v2256
      %2263 = vmatprep.subr.bf16.mxu0 0
      %2264 = vmatpush1.bf16.xpose.msra.mxu0 %v2259
      %2265 = vmatprep.subr.bf16.mxu0 0
      %2266 = vmatpush1.bf16.xpose.msra.mxu0 0
      %2267 = vmatprep.subr.bf16.mxu0 0
      %2268 = vmatpush1.bf16.xpose.msra.mxu0 0
      %2269 = vmatprep.subr.bf16.mxu0 0
      %2270 = vmatpush1.bf16.xpose.msra.mxu0 0
      %2271 = vmatprep.subr.bf16.mxu0 0
      %2272 = vmatpush1.bf16.xpose.msra.mxu0 0
      %2273 = vmatprep.subr.bf16.mxu0 0
      %2274 = vmatpush1.bf16.xpose.msra.mxu0 0
      %2275 = vmatprep.subr.bf16.mxu0 0
      %2276 = vmatpush1.bf16.xpose.msra.mxu0 0
      %2277 = vmatprep.subr.bf16.mxu0 0
      %2278 = vmatpush1.bf16.xpose.msra.mxu0 0
      %2279 = vmatprep.subr.bf16.mxu0 0
      %2280 = vmatpush1.bf16.xpose.msra.mxu0 0
      %2281 = vmatprep.subr.bf16.mxu0 0
      %2282 = vmatpush1.bf16.xpose.msra.mxu0 0
      %2283 = vmatprep.subr.bf16.mxu0 0
      %2284 = vmatpush1.bf16.xpose.msra.mxu0 0
      %2285 = vmatprep.subr.bf16.mxu0 0
      %2286 = vmatpush1.bf16.xpose.msra.mxu0 0
      %2287 = vmatprep.subr.bf16.mxu0 0
      %2288 = vmatpush1.bf16.xpose.msra.mxu0 0
      %2289 = vmatprep.subr.bf16.mxu0 0
      %2290 = vmatpush1.bf16.xpose.msra.mxu0 0
      %2291 = vmatprep.subr.bf16.mxu0 0
      %2292 = vmatpush1.bf16.xpose.msra.mxu0 0
      %2293 = vmatprep.mubr.bf16.mxu0 0
      %2294 = vmatmul.mubr.bf16.gmra.mrb[0].mxu0 %v2253
      %v2295 = vpop.f32.mrb[0].mxu0
      %v2296 = vadd.f32 %v2131, %v2295
      %v2297 = vpop.f32.mrb[0].mxu0
      %v2298 = vpop.f32.mrb[0].mxu0
      %v2299 = vpop.f32.mrb[0].mxu0
      %2300 = vdwg.mxu0
      %v2301 = vsel %vm2182, %v2296, -inf
      %2302 = vmax.xlane.f32.xlu0 %v2301
      %v2303 = vpop.xlane.xlu0 %2302
      %v2304 = vsub.f32 %v2296, %v2303
      %v2305 = vmul.f32 %v2304, 1.442695
      %v2306 = vpow.pop %v2305
      %v2307 = vsel %vm2182, %v2306, 0.0
      %2308 = vadd.xlane.f32.xlu0 %v2307
      %v2309 = vpop.xlane.xlu0 %2308
      %v2310 = vrcp.pop %v2309
      %v2311 = vmul.f32 %v2306, %v2310
      %v2312 = vpack.c.bf16 %v2311, %v2311
      %2315 = vrot.lane.b32.xlu0 %v2125, 120
      %v2316 = vpop.permute.xlu0 %2315
      %2317 = vrot.lane.b32.xlu0 %v2126, 120
      %v2318 = vpop.permute.xlu0 %2317
      %v2321 = vsel %vm2182, %v2312, 0
      %v2324 = vsel %vm2198, %v2318, 0
      %2326 = vmatprep.subr.bf16.mxu0 0
      %2327 = vmatpush1.bf16.msra.mxu0 %v2316
      %2328 = vmatprep.subr.bf16.mxu0 0
      %2329 = vmatpush1.bf16.msra.mxu0 %v2324
      %2330 = vmatprep.subr.bf16.mxu0 0
      %2331 = vmatpush1.bf16.msra.mxu0 0
      %2332 = vmatprep.subr.bf16.mxu0 0
      %2333 = vmatpush1.bf16.msra.mxu0 0
      %2334 = vmatprep.subr.bf16.mxu0 0
      %2335 = vmatpush1.bf16.msra.mxu0 0
      %2336 = vmatprep.subr.bf16.mxu0 0
      %2337 = vmatpush1.bf16.msra.mxu0 0
      %2338 = vmatprep.subr.bf16.mxu0 0
      %2339 = vmatpush1.bf16.msra.mxu0 0
      %2340 = vmatprep.subr.bf16.mxu0 0
      %2341 = vmatpush1.bf16.msra.mxu0 0
      %2342 = vmatprep.subr.bf16.mxu0 0
      %2343 = vmatpush1.bf16.msra.mxu0 0
      %2344 = vmatprep.subr.bf16.mxu0 0
      %2345 = vmatpush1.bf16.msra.mxu0 0
      %2346 = vmatprep.subr.bf16.mxu0 0
      %2347 = vmatpush1.bf16.msra.mxu0 0
      %2348 = vmatprep.subr.bf16.mxu0 0
      %2349 = vmatpush1.bf16.msra.mxu0 0
      %2350 = vmatprep.subr.bf16.mxu0 0
      %2351 = vmatpush1.bf16.msra.mxu0 0
      %2352 = vmatprep.subr.bf16.mxu0 0
      %2353 = vmatpush1.bf16.msra.mxu0 0
      %2354 = vmatprep.subr.bf16.mxu0 0
      %2355 = vmatpush1.bf16.msra.mxu0 0
      %2356 = vmatprep.subr.bf16.mxu0 0
      %2357 = vmatpush1.bf16.msra.mxu0 0
      %2358 = vmatprep.mubr.bf16.mxu0 0
      %2359 = vmatmul.mubr.bf16.gmra.mrb[0].mxu0 %v2321
      %v2360 = vpop.f32.mrb[0].mxu0
      %v2361 = vadd.f32 0.0, %v2360
      %v2362 = vpop.f32.mrb[0].mxu0
      %v2363 = vpop.f32.mrb[0].mxu0
      %v2364 = vpop.f32.mrb[0].mxu0
      %2365 = vdwg.mxu0
      %2367 = vrot.lane.b32.xlu0 %v2361, 8
      %v2368 = vpop.permute.xlu0 %2367
      %2370 = vst.msk [vmem:[#allocation2] sm:$0xff] %vm1556, %v2368
      %2371 = vrot.lane.b32.xlu0 %v2122, 112
      %v2372 = vpop.permute.xlu0 %2371
      %2373 = vrot.lane.b32.xlu0 %v2123, 112
      %v2374 = vpop.permute.xlu0 %2373
      %2375 = vrot.lane.b32.xlu0 %v2124, 112
      %v2376 = vpop.permute.xlu0 %2375
      %v2378 = vsel %vm1337, %v2372, 0
      %v2381 = vsel %vm1337, %v2374, 0
      %v2384 = vsel %vm1337, %v2376, 0
      %2386 = vmatprep.subr.bf16.mxu0 0
      %2387 = vmatpush1.bf16.xpose.msra.mxu0 %v2381
      %2388 = vmatprep.subr.bf16.mxu0 0
      %2389 = vmatpush1.bf16.xpose.msra.mxu0 %v2384
      %2390 = vmatprep.subr.bf16.mxu0 0
      %2391 = vmatpush1.bf16.xpose.msra.mxu0 0
      %2392 = vmatprep.subr.bf16.mxu0 0
      %2393 = vmatpush1.bf16.xpose.msra.mxu0 0
      %2394 = vmatprep.subr.bf16.mxu0 0
      %2395 = vmatpush1.bf16.xpose.msra.mxu0 0
      %2396 = vmatprep.subr.bf16.mxu0 0
      %2397 = vmatpush1.bf16.xpose.msra.mxu0 0
      %2398 = vmatprep.subr.bf16.mxu0 0
      %2399 = vmatpush1.bf16.xpose.msra.mxu0 0
      %2400 = vmatprep.subr.bf16.mxu0 0
      %2401 = vmatpush1.bf16.xpose.msra.mxu0 0
      %2402 = vmatprep.subr.bf16.mxu0 0
      %2403 = vmatpush1.bf16.xpose.msra.mxu0 0
      %2404 = vmatprep.subr.bf16.mxu0 0
      %2405 = vmatpush1.bf16.xpose.msra.mxu0 0
      %2406 = vmatprep.subr.bf16.mxu0 0
      %2407 = vmatpush1.bf16.xpose.msra.mxu0 0
      %2408 = vmatprep.subr.bf16.mxu0 0
      %2409 = vmatpush1.bf16.xpose.msra.mxu0 0
      %2410 = vmatprep.subr.bf16.mxu0 0
      %2411 = vmatpush1.bf16.xpose.msra.mxu0 0
      %2412 = vmatprep.subr.bf16.mxu0 0
      %2413 = vmatpush1.bf16.xpose.msra.mxu0 0
      %2414 = vmatprep.subr.bf16.mxu0 0
      %2415 = vmatpush1.bf16.xpose.msra.mxu0 0
      %2416 = vmatprep.subr.bf16.mxu0 0
      %2417 = vmatpush1.bf16.xpose.msra.mxu0 0
      %2418 = vmatprep.mubr.bf16.mxu0 0
      %2419 = vmatmul.mubr.bf16.gmra.mrb[0].mxu0 %v2378
      %v2420 = vpop.f32.mrb[0].mxu0
      %v2421 = vadd.f32 %v2131, %v2420
      %v2422 = vpop.f32.mrb[0].mxu0
      %v2423 = vpop.f32.mrb[0].mxu0
      %v2424 = vpop.f32.mrb[0].mxu0
      %2425 = vdwg.mxu0
      %v2426 = vsel %vm2182, %v2421, -inf
      %2427 = vmax.xlane.f32.xlu0 %v2426
      %v2428 = vpop.xlane.xlu0 %2427
      %v2429 = vsub.f32 %v2421, %v2428
      %v2430 = vmul.f32 %v2429, 1.442695
      %v2431 = vpow.pop %v2430
      %v2432 = vsel %vm2182, %v2431, 0.0
      %2433 = vadd.xlane.f32.xlu0 %v2432
      %v2434 = vpop.xlane.xlu0 %2433
      %v2435 = vrcp.pop %v2434
      %v2436 = vmul.f32 %v2431, %v2435
      %v2437 = vpack.c.bf16 %v2436, %v2436
      %2438 = vrot.lane.b32.xlu0 %v2125, 112
      %v2439 = vpop.permute.xlu0 %2438
      %2440 = vrot.lane.b32.xlu0 %v2126, 112
      %v2441 = vpop.permute.xlu0 %2440
      %v2444 = vsel %vm2182, %v2437, 0
      %v2447 = vsel %vm2198, %v2441, 0
      %2449 = vmatprep.subr.bf16.mxu0 0
      %2450 = vmatpush1.bf16.msra.mxu0 %v2439
      %2451 = vmatprep.subr.bf16.mxu0 0
      %2452 = vmatpush1.bf16.msra.mxu0 %v2447
      %2453 = vmatprep.subr.bf16.mxu0 0
      %2454 = vmatpush1.bf16.msra.mxu0 0
      %2455 = vmatprep.subr.bf16.mxu0 0
      %2456 = vmatpush1.bf16.msra.mxu0 0
      %2457 = vmatprep.subr.bf16.mxu0 0
      %2458 = vmatpush1.bf16.msra.mxu0 0
      %2459 = vmatprep.subr.bf16.mxu0 0
      %2460 = vmatpush1.bf16.msra.mxu0 0
      %2461 = vmatprep.subr.bf16.mxu0 0
      %2462 = vmatpush1.bf16.msra.mxu0 0
      %2463 = vmatprep.subr.bf16.mxu0 0
      %2464 = vmatpush1.bf16.msra.mxu0 0
      %2465 = vmatprep.subr.bf16.mxu0 0
      %2466 = vmatpush1.bf16.msra.mxu0 0
      %2467 = vmatprep.subr.bf16.mxu0 0
      %2468 = vmatpush1.bf16.msra.mxu0 0
      %2469 = vmatprep.subr.bf16.mxu0 0
      %2470 = vmatpush1.bf16.msra.mxu0 0
      %2471 = vmatprep.subr.bf16.mxu0 0
      %2472 = vmatpush1.bf16.msra.mxu0 0
      %2473 = vmatprep.subr.bf16.mxu0 0
      %2474 = vmatpush1.bf16.msra.mxu0 0
      %2475 = vmatprep.subr.bf16.mxu0 0
      %2476 = vmatpush1.bf16.msra.mxu0 0
      %2477 = vmatprep.subr.bf16.mxu0 0
      %2478 = vmatpush1.bf16.msra.mxu0 0
      %2479 = vmatprep.subr.bf16.mxu0 0
      %2480 = vmatpush1.bf16.msra.mxu0 0
      %2481 = vmatprep.mubr.bf16.mxu0 0
      %2482 = vmatmul.mubr.bf16.gmra.mrb[0].mxu0 %v2444
      %v2483 = vpop.f32.mrb[0].mxu0
      %v2484 = vadd.f32 0.0, %v2483
      %v2485 = vpop.f32.mrb[0].mxu0
      %v2486 = vpop.f32.mrb[0].mxu0
      %v2487 = vpop.f32.mrb[0].mxu0
      %2488 = vdwg.mxu0
      %2490 = vrot.lane.b32.xlu0 %v2484, 16
      %v2491 = vpop.permute.xlu0 %2490
      %2493 = vst.msk [vmem:[#allocation2] sm:$0xff] %vm1670, %v2491
      %2494 = vrot.lane.b32.xlu0 %v2122, 104
      %v2495 = vpop.permute.xlu0 %2494
      %2496 = vrot.lane.b32.xlu0 %v2123, 104
      %v2497 = vpop.permute.xlu0 %2496
      %2498 = vrot.lane.b32.xlu0 %v2124, 104
      %v2499 = vpop.permute.xlu0 %2498
      %v2501 = vsel %vm1337, %v2495, 0
      %v2504 = vsel %vm1337, %v2497, 0
      %v2507 = vsel %vm1337, %v2499, 0
      %2509 = vmatprep.subr.bf16.mxu0 0
      %2510 = vmatpush1.bf16.xpose.msra.mxu0 %v2504
      %2511 = vmatprep.subr.bf16.mxu0 0
      %2512 = vmatpush1.bf16.xpose.msra.mxu0 %v2507
      %2513 = vmatprep.subr.bf16.mxu0 0
      %2514 = vmatpush1.bf16.xpose.msra.mxu0 0
      %2515 = vmatprep.subr.bf16.mxu0 0
      %2516 = vmatpush1.bf16.xpose.msra.mxu0 0
      %2517 = vmatprep.subr.bf16.mxu0 0
      %2518 = vmatpush1.bf16.xpose.msra.mxu0 0
      %2519 = vmatprep.subr.bf16.mxu0 0
      %2520 = vmatpush1.bf16.xpose.msra.mxu0 0
      %2521 = vmatprep.subr.bf16.mxu0 0
      %2522 = vmatpush1.bf16.xpose.msra.mxu0 0
      %2523 = vmatprep.subr.bf16.mxu0 0
      %2524 = vmatpush1.bf16.xpose.msra.mxu0 0
      %2525 = vmatprep.subr.bf16.mxu0 0
      %2526 = vmatpush1.bf16.xpose.msra.mxu0 0
      %2527 = vmatprep.subr.bf16.mxu0 0
      %2528 = vmatpush1.bf16.xpose.msra.mxu0 0
      %2529 = vmatprep.subr.bf16.mxu0 0
      %2530 = vmatpush1.bf16.xpose.msra.mxu0 0
      %2531 = vmatprep.subr.bf16.mxu0 0
      %2532 = vmatpush1.bf16.xpose.msra.mxu0 0
      %2533 = vmatprep.subr.bf16.mxu0 0
      %2534 = vmatpush1.bf16.xpose.msra.mxu0 0
      %2535 = vmatprep.subr.bf16.mxu0 0
      %2536 = vmatpush1.bf16.xpose.msra.mxu0 0
      %2537 = vmatprep.subr.bf16.mxu0 0
      %2538 = vmatpush1.bf16.xpose.msra.mxu0 0
      %2539 = vmatprep.subr.bf16.mxu0 0
      %2540 = vmatpush1.bf16.xpose.msra.mxu0 0
      %2541 = vmatprep.mubr.bf16.mxu0 0
      %2542 = vmatmul.mubr.bf16.gmra.mrb[0].mxu0 %v2501
      %v2543 = vpop.f32.mrb[0].mxu0
      %v2544 = vadd.f32 %v2131, %v2543
      %v2545 = vpop.f32.mrb[0].mxu0
      %v2546 = vpop.f32.mrb[0].mxu0
      %v2547 = vpop.f32.mrb[0].mxu0
      %2548 = vdwg.mxu0
      %v2549 = vsel %vm2182, %v2544, -inf
      %2550 = vmax.xlane.f32.xlu0 %v2549
      %v2551 = vpop.xlane.xlu0 %2550
      %v2552 = vsub.f32 %v2544, %v2551
      %v2553 = vmul.f32 %v2552, 1.442695
      %v2554 = vpow.pop %v2553
      %v2555 = vsel %vm2182, %v2554, 0.0
      %2556 = vadd.xlane.f32.xlu0 %v2555
      %v2557 = vpop.xlane.xlu0 %2556
      %v2558 = vrcp.pop %v2557
      %v2559 = vmul.f32 %v2554, %v2558
      %v2560 = vpack.c.bf16 %v2559, %v2559
      %2561 = vrot.lane.b32.xlu0 %v2125, 104
      %v2562 = vpop.permute.xlu0 %2561
      %2563 = vrot.lane.b32.xlu0 %v2126, 104
      %v2564 = vpop.permute.xlu0 %2563
      %v2567 = vsel %vm2182, %v2560, 0
      %v2570 = vsel %vm2198, %v2564, 0
      %2572 = vmatprep.subr.bf16.mxu0 0
      %2573 = vmatpush1.bf16.msra.mxu0 %v2562
      %2574 = vmatprep.subr.bf16.mxu0 0
      %2575 = vmatpush1.bf16.msra.mxu0 %v2570
      %2576 = vmatprep.subr.bf16.mxu0 0
      %2577 = vmatpush1.bf16.msra.mxu0 0
      %2578 = vmatprep.subr.bf16.mxu0 0
      %2579 = vmatpush1.bf16.msra.mxu0 0
      %2580 = vmatprep.subr.bf16.mxu0 0
      %2581 = vmatpush1.bf16.msra.mxu0 0
      %2582 = vmatprep.subr.bf16.mxu0 0
      %2583 = vmatpush1.bf16.msra.mxu0 0
      %2584 = vmatprep.subr.bf16.mxu0 0
      %2585 = vmatpush1.bf16.msra.mxu0 0
      %2586 = vmatprep.subr.bf16.mxu0 0
      %2587 = vmatpush1.bf16.msra.mxu0 0
      %2588 = vmatprep.subr.bf16.mxu0 0
      %2589 = vmatpush1.bf16.msra.mxu0 0
      %2590 = vmatprep.subr.bf16.mxu0 0
      %2591 = vmatpush1.bf16.msra.mxu0 0
      %2592 = vmatprep.subr.bf16.mxu0 0
      %2593 = vmatpush1.bf16.msra.mxu0 0
      %2594 = vmatprep.subr.bf16.mxu0 0
      %2595 = vmatpush1.bf16.msra.mxu0 0
      %2596 = vmatprep.subr.bf16.mxu0 0
      %2597 = vmatpush1.bf16.msra.mxu0 0
      %2598 = vmatprep.subr.bf16.mxu0 0
      %2599 = vmatpush1.bf16.msra.mxu0 0
      %2600 = vmatprep.subr.bf16.mxu0 0
      %2601 = vmatpush1.bf16.msra.mxu0 0
      %2602 = vmatprep.subr.bf16.mxu0 0
      %2603 = vmatpush1.bf16.msra.mxu0 0
      %2604 = vmatprep.mubr.bf16.mxu0 0
      %2605 = vmatmul.mubr.bf16.gmra.mrb[0].mxu0 %v2567
      %v2606 = vpop.f32.mrb[0].mxu0
      %v2607 = vadd.f32 0.0, %v2606
      %v2608 = vpop.f32.mrb[0].mxu0
      %v2609 = vpop.f32.mrb[0].mxu0
      %v2610 = vpop.f32.mrb[0].mxu0
      %2611 = vdwg.mxu0
      %2613 = vrot.lane.b32.xlu0 %v2607, 24
      %v2614 = vpop.permute.xlu0 %2613
      %2616 = vst.msk [vmem:[#allocation2] sm:$0xff] %vm1784, %v2614
      %v2617 = vld [vmem:[#allocation2] sm:$0xff]
      %v2618 = vpack.c.bf16 %v2617, %v2617
      %v2620 = vlaneseq
      %v2621 = vshrl.u32 %v2620, 7
      %v2622 = vsub.s32 0, %v2621
      %v2623 = vrot.slane %v1908, %v2622
      %v2629 = vunpack.c.l.b16 %v1904
      %v2630 = vunpack.c.l.b16 %v1905
      %v2631 = vunpack.c.l.b16 %v1906
      %v2632 = vunpack.c.l.b16 %v1907
      %v2633 = vpack.c.b16 %v2630, %v2629
      %v2634 = vpack.c.b16 %v2632, %v2631
      %v2638 = vsel %vm1163, %v2618, 0
      %2640 = vmatprep.subr.bf16.mxu0 0
      %2641 = vmatpush1.bf16.msra.mxu0 %v2633
      %2642 = vmatprep.subr.bf16.mxu0 0
      %2643 = vmatpush1.bf16.msra.mxu0 %v2634
      %2644 = vmatprep.subr.bf16.mxu0 0
      %2645 = vmatpush1.bf16.msra.mxu0 0
      %2646 = vmatprep.subr.bf16.mxu0 0
      %2647 = vmatpush1.bf16.msra.mxu0 0
      %2648 = vmatprep.subr.bf16.mxu0 0
      %2649 = vmatpush1.bf16.msra.mxu0 0
      %2650 = vmatprep.subr.bf16.mxu0 0
      %2651 = vmatpush1.bf16.msra.mxu0 0
      %2652 = vmatprep.subr.bf16.mxu0 0
      %2653 = vmatpush1.bf16.msra.mxu0 0
      %2654 = vmatprep.subr.bf16.mxu0 0
      %2655 = vmatpush1.bf16.msra.mxu0 0
      %2656 = vmatprep.subr.bf16.mxu0 0
      %2657 = vmatpush1.bf16.msra.mxu0 0
      %2658 = vmatprep.subr.bf16.mxu0 0
      %2659 = vmatpush1.bf16.msra.mxu0 0
      %2660 = vmatprep.subr.bf16.mxu0 0
      %2661 = vmatpush1.bf16.msra.mxu0 0
      %2662 = vmatprep.subr.bf16.mxu0 0
      %2663 = vmatpush1.bf16.msra.mxu0 0
      %2664 = vmatprep.subr.bf16.mxu0 0
      %2665 = vmatpush1.bf16.msra.mxu0 0
      %2666 = vmatprep.subr.bf16.mxu0 0
      %2667 = vmatpush1.bf16.msra.mxu0 0
      %2668 = vmatprep.subr.bf16.mxu0 0
      %2669 = vmatpush1.bf16.msra.mxu0 0
      %2670 = vmatprep.subr.bf16.mxu0 0
      %2671 = vmatpush1.bf16.msra.mxu0 0
      %2672 = vmatprep.mubr.bf16.mxu0 0
      %2673 = vmatmul.mubr.bf16.gmra.mrb[0].mxu0 %v2638
      %v2674 = vpop.f32.mrb[0].mxu0
      %v2675 = vadd.f32 %v2623, %v2674
      %v2676 = vpop.f32.mrb[0].mxu0
      %v2677 = vpop.f32.mrb[0].mxu0
      %v2678 = vpop.f32.mrb[0].mxu0
      %2679 = vdwg.mxu0
      %v2680 = vadd.f32 %v1877, %v2675
      %v2681 = vsel %vm1163, %v2680, 0.0
      %2682 = vadd.xlane.f32.xlu0 %v2681
      %v2683 = vpop.xlane.xlu0 %2682
      %v2684 = vmul.f32 %v2683, %v1853
      %v2685 = vsub.f32 %v2680, %v2684
      %v2686 = vmul.f32 %v2685, %v2685
      %v2687 = vsel %vm1163, %v2686, 0.0
      %2688 = vadd.xlane.f32.xlu0 %v2687
      %v2689 = vpop.xlane.xlu0 %2688
      %v2690 = vmul.f32 %v2689, %v1853
      %v2691 = vadd.f32 %v2690, 1e-05
      %v2692 = vrsqrt.pop %v2691
      %v2693 = vmul.f32 %v2685, %v2692
      %v2695 = vlaneseq
      %v2696 = vshrl.u32 %v2695, 7
      %v2697 = vsub.s32 0, %v2696
      %v2698 = vrot.slane %v1909, %v2697
      %v2700 = vmul.f32 %v2693, %v2698
      %v2702 = vlaneseq
      %v2703 = vshrl.u32 %v2702, 7
      %v2704 = vsub.s32 0, %v2703
      %v2705 = vrot.slane %v1910, %v2704
      %v2707 = vadd.f32 %v2700, %v2705
      %v2708 = vpack.c.bf16 %v2707, %v2707
      %v2709 = vld [vmem:[%s51] sm:$0xf]
      %v2710 = vld [vmem:[%s51 + $0x4] sm:$0xf]
      %v2711 = vld [vmem:[%s51 + $0x8] sm:$0xf]
      %v2712 = vld [vmem:[%s51 + $0xc] sm:$0xf]
      %v2713 = vld [vmem:[%s53] sm:$0x1]
      %v2715 = vlaneseq
      %v2716 = vshrl.u32 %v2715, 7
      %v2717 = vsub.s32 0, %v2716
      %v2718 = vrot.slane %v2713, %v2717
      %v2724 = vunpack.c.l.b16 %v2709
      %v2725 = vunpack.c.l.b16 %v2710
      %v2726 = vunpack.c.l.b16 %v2711
      %v2727 = vunpack.c.l.b16 %v2712
      %v2728 = vpack.c.b16 %v2725, %v2724
      %v2729 = vpack.c.b16 %v2727, %v2726
      %v2733 = vsel %vm1163, %v2708, 0
      %2735 = vmatprep.subr.bf16.mxu0 0
      %2736 = vmatpush1.bf16.msra.mxu0 %v2728
      %2737 = vmatprep.subr.bf16.mxu0 0
      %2738 = vmatpush1.bf16.msra.mxu0 %v2729
      %2739 = vmatprep.subr.bf16.mxu0 0
      %2740 = vmatpush1.bf16.msra.mxu0 0
      %2741 = vmatprep.subr.bf16.mxu0 0
      %2742 = vmatpush1.bf16.msra.mxu0 0
      %2743 = vmatprep.subr.bf16.mxu0 0
      %2744 = vmatpush1.bf16.msra.mxu0 0
      %2745 = vmatprep.subr.bf16.mxu0 0
      %2746 = vmatpush1.bf16.msra.mxu0 0
      %2747 = vmatprep.subr.bf16.mxu0 0
      %2748 = vmatpush1.bf16.msra.mxu0 0
      %2749 = vmatprep.subr.bf16.mxu0 0
      %2750 = vmatpush1.bf16.msra.mxu0 0
      %2751 = vmatprep.subr.bf16.mxu0 0
      %2752 = vmatpush1.bf16.msra.mxu0 0
      %2753 = vmatprep.subr.bf16.mxu0 0
      %2754 = vmatpush1.bf16.msra.mxu0 0
      %2755 = vmatprep.subr.bf16.mxu0 0
      %2756 = vmatpush1.bf16.msra.mxu0 0
      %2757 = vmatprep.subr.bf16.mxu0 0
      %2758 = vmatpush1.bf16.msra.mxu0 0
      %2759 = vmatprep.subr.bf16.mxu0 0
      %2760 = vmatpush1.bf16.msra.mxu0 0
      %2761 = vmatprep.subr.bf16.mxu0 0
      %2762 = vmatpush1.bf16.msra.mxu0 0
      %2763 = vmatprep.subr.bf16.mxu0 0
      %2764 = vmatpush1.bf16.msra.mxu0 0
      %2765 = vmatprep.subr.bf16.mxu0 0
      %2766 = vmatpush1.bf16.msra.mxu0 0
      %2767 = vmatprep.mubr.bf16.mxu0 0
      %2768 = vmatmul.mubr.bf16.gmra.mrb[0].mxu0 %v2733
      %v2769 = vpop.f32.mrb[0].mxu0
      %v2770 = vadd.f32 %v2718, %v2769
      %v2771 = vpop.f32.mrb[0].mxu0
      %v2772 = vpop.f32.mrb[0].mxu0
      %v2773 = vpop.f32.mrb[0].mxu0
      %2774 = vdwg.mxu0
      %v2775 = vmax.f32 %v2770, 0.0
      %v2776 = vpack.c.bf16 %v2775, %v2775
      %v2777 = vld [vmem:[%s55] sm:$0xf]
      %v2778 = vld [vmem:[%s55 + $0x4] sm:$0xf]
      %v2779 = vld [vmem:[%s55 + $0x8] sm:$0xf]
      %v2780 = vld [vmem:[%s55 + $0xc] sm:$0xf]
      %v2781 = vld [vmem:[%s55 + $0x10] sm:$0xf]
      %v2782 = vld [vmem:[%s55 + $0x14] sm:$0xf]
      %v2783 = vld [vmem:[%s55 + $0x18] sm:$0xf]
      %v2784 = vld [vmem:[%s55 + $0x1c] sm:$0xf]
      %v2785 = vld [vmem:[%s57] sm:$0x1]
      %v2787 = vlaneseq
      %v2788 = vshrl.u32 %v2787, 7
      %v2789 = vsub.s32 0, %v2788
      %v2790 = vrot.slane %v2785, %v2789
      %v2800 = vunpack.c.l.b16 %v2777
      %v2801 = vunpack.c.l.b16 %v2778
      %v2802 = vunpack.c.l.b16 %v2779
      %v2803 = vunpack.c.l.b16 %v2780
      %v2804 = vunpack.c.l.b16 %v2781
      %v2805 = vunpack.c.l.b16 %v2782
      %v2806 = vunpack.c.l.b16 %v2783
      %v2807 = vunpack.c.l.b16 %v2784
      %v2808 = vpack.c.b16 %v2801, %v2800
      %v2809 = vpack.c.b16 %v2803, %v2802
      %v2810 = vpack.c.b16 %v2805, %v2804
      %v2811 = vpack.c.b16 %v2807, %v2806
      %vm2816 = vcmask 523264
      %v2818 = vsel %vm2816, %v2776, 0
      %2820 = vmatprep.subr.bf16.mxu0 0
      %2821 = vmatpush1.bf16.msra.mxu0 %v2808
      %2822 = vmatprep.subr.bf16.mxu0 0
      %2823 = vmatpush1.bf16.msra.mxu0 %v2809
      %2824 = vmatprep.subr.bf16.mxu0 0
      %2825 = vmatpush1.bf16.msra.mxu0 %v2810
      %2826 = vmatprep.subr.bf16.mxu0 0
      %2827 = vmatpush1.bf16.msra.mxu0 %v2811
      %2828 = vmatprep.subr.bf16.mxu0 0
      %2829 = vmatpush1.bf16.msra.mxu0 0
      %2830 = vmatprep.subr.bf16.mxu0 0
      %2831 = vmatpush1.bf16.msra.mxu0 0
      %2832 = vmatprep.subr.bf16.mxu0 0
      %2833 = vmatpush1.bf16.msra.mxu0 0
      %2834 = vmatprep.subr.bf16.mxu0 0
      %2835 = vmatpush1.bf16.msra.mxu0 0
      %2836 = vmatprep.subr.bf16.mxu0 0
      %2837 = vmatpush1.bf16.msra.mxu0 0
      %2838 = vmatprep.subr.bf16.mxu0 0
      %2839 = vmatpush1.bf16.msra.mxu0 0
      %2840 = vmatprep.subr.bf16.mxu0 0
      %2841 = vmatpush1.bf16.msra.mxu0 0
      %2842 = vmatprep.subr.bf16.mxu0 0
      %2843 = vmatpush1.bf16.msra.mxu0 0
      %2844 = vmatprep.subr.bf16.mxu0 0
      %2845 = vmatpush1.bf16.msra.mxu0 0
      %2846 = vmatprep.subr.bf16.mxu0 0
      %2847 = vmatpush1.bf16.msra.mxu0 0
      %2848 = vmatprep.subr.bf16.mxu0 0
      %2849 = vmatpush1.bf16.msra.mxu0 0
      %2850 = vmatprep.subr.bf16.mxu0 0
      %2851 = vmatpush1.bf16.msra.mxu0 0
      %2852 = vmatprep.mubr.bf16.mxu0 0
      %2853 = vmatmul.mubr.bf16.gmra.mrb[0].mxu0 %v2818
      %v2854 = vpop.f32.mrb[0].mxu0
      %v2855 = vadd.f32 %v2790, %v2854
      %v2856 = vpop.f32.mrb[0].mxu0
      %v2857 = vpop.f32.mrb[0].mxu0
      %v2858 = vpop.f32.mrb[0].mxu0
      %2859 = vdwg.mxu0
      %v2860 = vadd.f32 %v2707, %v2855
      %v2861 = vld [vmem:[%s59] sm:$0x1]
      %v2862 = vld [vmem:[%s61] sm:$0x1]
      %v2863 = vsel %vm1163, %v2860, 0.0
      %2864 = vadd.xlane.f32.xlu0 %v2863
      %v2865 = vpop.xlane.xlu0 %2864
      %v2866 = vmul.f32 %v2865, %v1853
      %v2867 = vsub.f32 %v2860, %v2866
      %v2868 = vmul.f32 %v2867, %v2867
      %v2869 = vsel %vm1163, %v2868, 0.0
      %2870 = vadd.xlane.f32.xlu0 %v2869
      %v2871 = vpop.xlane.xlu0 %2870
      %v2872 = vmul.f32 %v2871, %v1853
      %v2873 = vadd.f32 %v2872, 1e-05
      %v2874 = vrsqrt.pop %v2873
      %v2875 = vmul.f32 %v2867, %v2874
      %v2877 = vlaneseq
      %v2878 = vshrl.u32 %v2877, 7
      %v2879 = vsub.s32 0, %v2878
      %v2880 = vrot.slane %v2861, %v2879
      %v2882 = vmul.f32 %v2875, %v2880
      %v2884 = vlaneseq
      %v2885 = vshrl.u32 %v2884, 7
      %v2886 = vsub.s32 0, %v2885
      %v2887 = vrot.slane %v2862, %v2886
      %v2889 = vadd.f32 %v2882, %v2887
      %v2890 = vld [vmem:[%s63] sm:$0x1]
      %v2891 = vld [vmem:[%s65] sm:$0x1]
      %v2892 = vsel %vm1163, %v2889, 0.0
      %2893 = vadd.xlane.f32.xlu0 %v2892
      %v2894 = vpop.xlane.xlu0 %2893
      %v2895 = vmul.f32 %v2894, %v1853
      %v2896 = vsub.f32 %v2889, %v2895
      %v2897 = vmul.f32 %v2896, %v2896
      %v2898 = vsel %vm1163, %v2897, 0.0
      %2899 = vadd.xlane.f32.xlu0 %v2898
      %v2900 = vpop.xlane.xlu0 %2899
      %v2901 = vmul.f32 %v2900, %v1853
      %v2902 = vadd.f32 %v2901, 1e-05
      %v2903 = vrsqrt.pop %v2902
      %v2904 = vmul.f32 %v2896, %v2903
      %v2906 = vlaneseq
      %v2907 = vshrl.u32 %v2906, 7
      %v2908 = vsub.s32 0, %v2907
      %v2909 = vrot.slane %v2890, %v2908
      %v2911 = vmul.f32 %v2904, %v2909
      %v2913 = vlaneseq
      %v2914 = vshrl.u32 %v2913, 7
      %v2915 = vsub.s32 0, %v2914
      %v2916 = vrot.slane %v2891, %v2915
      %v2918 = vadd.f32 %v2911, %v2916
      %2919 = vst.msk [vmem:[%s1108] sm:$0xff] %vm1163, %v2918
      %p2920 = scmp.lt.s32.totalorder %s82, 1
      %s2921 = scalar_select %p2920, %s82, 1
      %p2922 = scmp.lt.s32.totalorder %s83, 1
      %s2923 = scalar_select %p2922, %s83, 1
      %s2924 = smul.addr %s2921, 2
      %s2925 = sadd.s32 %s2923, %s2924
      %s2926 = smul.addr %s2925, 8
      %s2927 = scalar_lea.vmem %s67, %s2926
      // Predicated region
      $region153: #{transformer_decoder_forward.3} parent=151 // pred_check
        %p2928 = pneg %p828
      $region154: #{transformer_decoder_forward.3} parent=151 // pred_check_branch
        %2930 = sbr.rel (%p2928) target = $region156
      $region155: #{transformer_decoder_forward.3} parent=151 // pred_region
        _
      $region156: #{transformer_decoder_forward.3} parent=151 // pred_fallthru
        _
    $region152: #{transformer_decoder_forward.3} parent=5 // pred_fallthru
      _
    %p2931 = scmp.le.s32.totalorder 2, %s73
    // Predicated region
    $region157: #{transformer_decoder_forward.3} parent=5 // pred_check
      %p2932 = pneg %p2931
    $region158: #{transformer_decoder_forward.3} parent=5 // pred_check_branch
      %2934 = sbr.rel (%p2932) target = $region160
    $region159: #{transformer_decoder_forward.3} parent=5 // pred_region
      %s2935 = ssub.s32 %s73, 2
      // Predicated region
      $region161: #{transformer_decoder_forward.3} parent=159 // pred_check
        %p2936 = pneg %p834
      $region162: #{transformer_decoder_forward.3} parent=159 // pred_check_branch
        %2938 = sbr.rel (%p2936) target = $region164
      $region163: #{transformer_decoder_forward.3} parent=159 // pred_region
        %p2939 = scmp.lt.s32.totalorder %s84, 1
        %s2940 = scalar_select %p2939, %s84, 1
        %p2941 = scmp.lt.s32.totalorder %s85, 1
        %s2942 = scalar_select %p2941, %s85, 1
        %s2943 = smul.addr %s2940, 2
        %s2944 = sadd.s32 %s2942, %s2943
        %s2945 = smul.addr %s2944, 8
        %s2946 = scalar_lea.vmem %s67, %s2945
      $region164: #{transformer_decoder_forward.3} parent=159 // pred_fallthru
        _
    $region160: #{transformer_decoder_forward.3} parent=5 // pred_fallthru
      _
  $region6: #{transformer_decoder_forward.3} parent=0 // loop_footer
    %s77 = sadd.s32 1, %s73
  $region7: #{transformer_decoder_forward.3} parent=0 // loop_footer_branch
    %72 = sbr.rel target = $region3
  $region8: #{transformer_decoder_forward.3} parent=0 // loop_exit
    _

</llo_original>
